<compile_context>
chip_gen: v7x
topology: tpu7x:2x2x1
jax: 0.10.0
libtpu: 0.0.40
codegen_flags: <defaults>
</compile_context>

<pallas_src>
import functools

import jax
import jax.numpy as jnp
from jax.experimental import pallas as pl
from jax.experimental.pallas import tpu as pltpu


def _pick_oh_tile(OH, OW, target_rows):
    """Largest output-row tile that divides OH exactly (no M padding, exact BN
    stats), keeps toh*OW near `target_rows`, and is legal as the second-to-last
    dim of the NCHW output block (multiple of 8, or the full OH)."""
    if OH * OW <= target_rows:
        return OH
    for d in range(OH, 0, -1):
        if OH % d == 0 and d % 8 == 0 and d * OW <= target_rows:
            return d
    return OH  # fallback: whole image per grid step (always a legal block)


def _conv_tile(x_ref, w_ref, *, toh, OW, C, KH, KW, stride, OCP):
    """f32 conv-output tile (toh*OW, OCP) for image pl.program_id(0), output rows
    [pl.program_id(1)*toh, +toh).  Streams (kh, kw)-shifted windows of the
    VMEM-resident padded NHWC image into the MXU — no im2col in HBM."""
    t = pl.program_id(1)
    row0 = t * (toh * stride)            # first padded-input row of this tile
    tm = toh * OW
    acc = jnp.zeros((tm, OCP), jnp.float32)
    for kh in range(KH):                 # static unroll: KH*KW MXU accumulations
        for kw in range(KW):
            if stride == 1:
                xs = x_ref[0, pl.ds(row0 + kh, toh), pl.ds(kw, OW), :]
            else:  # TODO(synk): only the stride==1 path is exercised here
                xs = x_ref[0, pl.ds(row0 + kh, toh, stride),
                           pl.ds(kw, OW, stride), :]
            a = xs.reshape(tm, C)        # collapse (toh, OW); channel lanes kept
            acc = acc + jnp.dot(a, w_ref[kh, kw],
                                preferred_element_type=jnp.float32)
    return acc


def _conv_stats_kernel(x_ref, w_ref, sum_ref, sumsq_ref, *, cfg):
    """Pass 1: per-tile partial channel sum / sum-of-squares (no conv writeback)."""
    acc = _conv_tile(x_ref, w_ref, **cfg)                        # (tm, OCP) f32
    sum_ref[...] = jnp.sum(acc, axis=0, keepdims=True)[None]     # (1, 1, OCP)
    sumsq_ref[...] = jnp.sum(acc * acc, axis=0, keepdims=True)[None]


def _conv_bn_tanh_kernel(x_ref, w_ref, scale_ref, shift_ref, out_ref, *, cfg, OC):
    """Pass 2: recompute the conv tile, apply BN affine + tanh, and write the
    final NCHW block directly (in-kernel transpose; no trailing XLA transpose)."""
    acc = _conv_tile(x_ref, w_ref, **cfg)                        # (tm, OCP) f32
    y = jnp.tanh(acc * scale_ref[...] + shift_ref[...])          # f32 VPU math
    toh, OW = cfg["toh"], cfg["OW"]
    yt = y.T[:OC, :]                     # (OC, toh*OW): channels -> sublanes
    for i in range(toh):                 # static unroll: one output row per store
        out_ref[0, :, i, :] = yt[:, i * OW:(i + 1) * OW].astype(out_ref.dtype)


@functools.partial(jax.jit,
                   static_argnames=("stride", "padding", "eps", "target_tile_rows"))
def conv2d_bn_tanh(x, weight, bias, gamma, beta, *, stride=1, padding=1,
                   eps=1e-5, target_tile_rows=256):
    """x: [N, C, H, W]; weight: [OC, C, KH, KW]; returns [N, OC, OH, OW] (f32)."""
    # A per-channel bias before training-mode BatchNorm is cancelled exactly by
    # the mean subtraction -> the forward output is identical without it.
    del bias

    N, C, H, W = x.shape
    OC, _, KH, KW = weight.shape
    OH = (H + 2 * padding - KH) // stride + 1
    OW = (W + 2 * padding - KW) // stride + 1
    M = N * OH * OW
    OCP = pl.cdiv(OC, 128) * 128         # lane-dense output channels for the MXU

    toh = _pick_oh_tile(OH, OW, target_tile_rows)
    n_t = OH // toh
    HP, WP = H + 2 * padding, W + 2 * padding

    # ---- glue: bf16 cast first, then the small NHWC transpose + spatial pad ----
    xp = jnp.pad(x.astype(jnp.bfloat16).transpose(0, 2, 3, 1),
                 ((0, 0), (padding, padding), (padding, padding), (0, 0)))
    # weight -> (KH, KW, C, OCP) so w[kh, kw] is the (C, OCP) matmul operand.
    w_col = jnp.pad(weight.astype(jnp.bfloat16).transpose(2, 3, 1, 0),
                    ((0, 0), (0, 0), (0, 0), (0, OCP - OC)))

    cfg = dict(toh=toh, OW=OW, C=C, KH=KH, KW=KW, stride=stride, OCP=OCP)
    cparams = pltpu.CompilerParams(
        dimension_semantics=("parallel", "parallel"),
        vmem_limit_bytes=32 * 1024 * 1024)
    x_spec = pl.BlockSpec((1, HP, WP, C), lambda n, t: (n, 0, 0, 0))
    w_spec = pl.BlockSpec((KH, KW, C, OCP), lambda n, t: (0, 0, 0, 0))

    # ---- pass 1: conv (in-kernel patch streaming) + per-tile channel stats ----
    psum, psumsq = pl.pallas_call(
        functools.partial(_conv_stats_kernel, cfg=cfg),
        out_shape=(jax.ShapeDtypeStruct((N * n_t, 1, OCP), jnp.float32),
                   jax.ShapeDtypeStruct((N * n_t, 1, OCP), jnp.float32)),
        grid_spec=pltpu.PrefetchScalarGridSpec(
            num_scalar_prefetch=0,
            grid=(N, n_t),
            in_specs=[x_spec, w_spec],
            out_specs=(pl.BlockSpec((1, 1, OCP), lambda n, t: (n * n_t + t, 0, 0)),
                       pl.BlockSpec((1, 1, OCP), lambda n, t: (n * n_t + t, 0, 0)))),
        compiler_params=cparams,
    )(xp, w_col)

    # ---- glue: BatchNorm2d training-mode statistics (biased variance) ----
    m = jnp.float32(M)
    mean = jnp.sum(psum, axis=(0, 1)) / m                    # (OCP,)
    var = jnp.maximum(jnp.sum(psumsq, axis=(0, 1)) / m - mean * mean, 0.0)
    gamma_p = jnp.pad(gamma.astype(jnp.float32), (0, OCP - OC))
    beta_p = jnp.pad(beta.astype(jnp.float32), (0, OCP - OC))
    scale = gamma_p / jnp.sqrt(var + eps)                    # padded lanes: 0
    shift = beta_p - mean * scale
    scale = scale.reshape(1, OCP)
    shift = shift.reshape(1, OCP)

    # ---- pass 2: recompute conv tile, BN affine + tanh, direct NCHW write ----
    out = pl.pallas_call(
        functools.partial(_conv_bn_tanh_kernel, cfg=cfg, OC=OC),
        out_shape=jax.ShapeDtypeStruct((N, OC, OH, OW), jnp.float32),
        grid_spec=pltpu.PrefetchScalarGridSpec(
            num_scalar_prefetch=0,
            grid=(N, n_t),
            in_specs=[x_spec, w_spec,
                      pl.BlockSpec((1, OCP), lambda n, t: (0, 0)),
                      pl.BlockSpec((1, OCP), lambda n, t: (0, 0))],
            out_specs=pl.BlockSpec((1, OC, toh, OW), lambda n, t: (n, 0, t, 0))),
        compiler_params=cparams,
    )(xp, w_col, scale, shift)
    return out


def reference(x, weight, bias, gamma, beta, *, stride=1, padding=1, eps=1e-5):
    out = jax.lax.conv_general_dilated(
        x, weight, window_strides=(stride, stride),
        padding=[(padding, padding), (padding, padding)],
        dimension_numbers=("NCHW", "OIHW", "NCHW"))
    out = out + bias.reshape(1, -1, 1, 1)
    mean = out.mean(axis=(0, 2, 3), keepdims=True)
    var = ((out - mean) ** 2).mean(axis=(0, 2, 3), keepdims=True)
    out = (out - mean) / jnp.sqrt(var + eps)
    out = out * gamma.reshape(1, -1, 1, 1) + beta.reshape(1, -1, 1, 1)
    return jnp.tanh(out)


if __name__ == "__main__":
    # small shapes consistent with the module: N=2, C_in=4, H=W=16, C_out=8, k=3, pad=1
    N, C_in, H, W = 2, 4, 16, 16
    C_out, KH, KW = 8, 3, 3
    stride, padding = 1, 1

    key = jax.random.PRNGKey(0)
    kx, kw, kb, kg, kbeta = jax.random.split(key, 5)

    x = jax.random.normal(kx, (N, C_in, H, W), dtype=jnp.float32)
    fan_in = C_in * KH * KW
    bound = 1.0 / jnp.sqrt(jnp.float32(fan_in))
    weight = jax.random.uniform(kw, (C_out, C_in, KH, KW), jnp.float32, -bound, bound)
    bias = jax.random.uniform(kb, (C_out,), jnp.float32, -bound, bound)
    gamma = 1.0 + 0.1 * jax.random.normal(kg, (C_out,), dtype=jnp.float32)
    beta = 0.1 * jax.random.normal(kbeta, (C_out,), dtype=jnp.float32)

    out = conv2d_bn_tanh(x, weight, bias, gamma, beta,
                         stride=stride, padding=padding)
    out = jax.block_until_ready(out)

    ref = reference(x, weight, bias, gamma, beta, stride=stride, padding=padding)
    assert out.shape == (N, C_out, H, W)
    # bf16 MXU inputs (f32 accumulation / f32 everywhere else) -> loose tolerance.
    err = jnp.max(jnp.abs(out - ref))
    assert err < 3e-2, f"mismatch vs JAX reference: max abs err = {err}"

    print("KERNEL_OK")
</pallas_src>

<mosaic_0001>
module attributes {stable_mosaic.version = 11 : i64} {
  func.func @_conv_stats_kernel(%arg0: i32, %arg1: i32, %arg2: memref<1x18x18x4xbf16, #tpu.memory_space<vmem>>, %arg3: memref<3x3x4x128xbf16, #tpu.memory_space<vmem>>, %arg4: memref<1x1x128xf32, #tpu.memory_space<vmem>>, %arg5: memref<1x1x128xf32, #tpu.memory_space<vmem>>) attributes {dimension_semantics = [#tpu.dimension_semantics<parallel>, #tpu.dimension_semantics<parallel>], iteration_bounds = array<i64: 2, 1>, scalar_prefetch = 0 : i64, scratch_operands = 0 : i64, tpu.core_type = #tpu.core_type<tc>, window_params = [{transform_indices = @transform_0, window_bounds = array<i64: 1, 18, 18, 4>}, {pipeline_mode = #tpu.pipeline_mode<synchronous>, transform_indices = @transform_1, window_bounds = array<i64: 3, 3, 4, 128>}, {transform_indices = @transform_2, window_bounds = array<i64: 1, 1, 128>}, {transform_indices = @transform_3, window_bounds = array<i64: 1, 1, 128>}]} {
    %c16_i32 = arith.constant 16 : i32
    %0 = arith.muli %arg1, %c16_i32 : i32
    %cst = arith.constant 0.000000e+00 : f32
    %1 = vector.broadcast %cst : f32 to vector<256x128xf32>
    %c0_i32 = arith.constant 0 : i32
    %2 = arith.addi %0, %c0_i32 : i32
    %c0 = arith.constant 0 : index
    %3 = arith.index_cast %2 : i32 to index
    %c0_0 = arith.constant 0 : index
    %c0_1 = arith.constant 0 : index
    %4 = vector.load %arg2[%c0, %3, %c0_0, %c0_1] : memref<1x18x18x4xbf16, #tpu.memory_space<vmem>>, vector<1x16x16x4xbf16>
    %5 = vector.shape_cast %4 : vector<1x16x16x4xbf16> to vector<16x16x4xbf16>
    %6 = vector.shape_cast %5 : vector<16x16x4xbf16> to vector<256x4xbf16>
    %c0_2 = arith.constant 0 : index
    %c0_3 = arith.constant 0 : index
    %c0_4 = arith.constant 0 : index
    %c0_5 = arith.constant 0 : index
    %7 = vector.load %arg3[%c0_2, %c0_3, %c0_4, %c0_5] : memref<3x3x4x128xbf16, #tpu.memory_space<vmem>>, vector<1x1x4x128xbf16>
    %8 = vector.shape_cast %7 : vector<1x1x4x128xbf16> to vector<4x128xbf16>
    %cst_6 = arith.constant dense<0.000000e+00> : vector<256x128xf32>
    %9 = tpu.matmul %6, %8, %cst_6 {dimension_numbers = #tpu.dot_dimension_numbers<[1], [0], [0], [1], [0, 0, 1, 1], [], []>} : vector<256x4xbf16>, vector<4x128xbf16>, vector<256x128xf32> -> vector<256x128xf32>
    %10 = arith.addf %1, %9 : vector<256x128xf32>
    %c0_i32_7 = arith.constant 0 : i32
    %11 = arith.addi %0, %c0_i32_7 : i32
    %c0_8 = arith.constant 0 : index
    %12 = arith.index_cast %11 : i32 to index
    %c1 = arith.constant 1 : index
    %c0_9 = arith.constant 0 : index
    %13 = vector.load %arg2[%c0_8, %12, %c1, %c0_9] : memref<1x18x18x4xbf16, #tpu.memory_space<vmem>>, vector<1x16x16x4xbf16>
    %14 = vector.shape_cast %13 : vector<1x16x16x4xbf16> to vector<16x16x4xbf16>
    %15 = vector.shape_cast %14 : vector<16x16x4xbf16> to vector<256x4xbf16>
    %c0_10 = arith.constant 0 : index
    %c1_11 = arith.constant 1 : index
    %c0_12 = arith.constant 0 : index
    %c0_13 = arith.constant 0 : index
    %16 = vector.load %arg3[%c0_10, %c1_11, %c0_12, %c0_13] : memref<3x3x4x128xbf16, #tpu.memory_space<vmem>>, vector<1x1x4x128xbf16>
    %17 = vector.shape_cast %16 : vector<1x1x4x128xbf16> to vector<4x128xbf16>
    %cst_14 = arith.constant dense<0.000000e+00> : vector<256x128xf32>
    %18 = tpu.matmul %15, %17, %cst_14 {dimension_numbers = #tpu.dot_dimension_numbers<[1], [0], [0], [1], [0, 0, 1, 1], [], []>} : vector<256x4xbf16>, vector<4x128xbf16>, vector<256x128xf32> -> vector<256x128xf32>
    %19 = arith.addf %10, %18 : vector<256x128xf32>
    %c0_i32_15 = arith.constant 0 : i32
    %20 = arith.addi %0, %c0_i32_15 : i32
    %c0_16 = arith.constant 0 : index
    %21 = arith.index_cast %20 : i32 to index
    %c2 = arith.constant 2 : index
    %c0_17 = arith.constant 0 : index
    %22 = vector.load %arg2[%c0_16, %21, %c2, %c0_17] : memref<1x18x18x4xbf16, #tpu.memory_space<vmem>>, vector<1x16x16x4xbf16>
    %23 = vector.shape_cast %22 : vector<1x16x16x4xbf16> to vector<16x16x4xbf16>
    %24 = vector.shape_cast %23 : vector<16x16x4xbf16> to vector<256x4xbf16>
    %c0_18 = arith.constant 0 : index
    %c2_19 = arith.constant 2 : index
    %c0_20 = arith.constant 0 : index
    %c0_21 = arith.constant 0 : index
    %25 = vector.load %arg3[%c0_18, %c2_19, %c0_20, %c0_21] : memref<3x3x4x128xbf16, #tpu.memory_space<vmem>>, vector<1x1x4x128xbf16>
    %26 = vector.shape_cast %25 : vector<1x1x4x128xbf16> to vector<4x128xbf16>
    %cst_22 = arith.constant dense<0.000000e+00> : vector<256x128xf32>
    %27 = tpu.matmul %24, %26, %cst_22 {dimension_numbers = #tpu.dot_dimension_numbers<[1], [0], [0], [1], [0, 0, 1, 1], [], []>} : vector<256x4xbf16>, vector<4x128xbf16>, vector<256x128xf32> -> vector<256x128xf32>
    %28 = arith.addf %19, %27 : vector<256x128xf32>
    %c1_i32 = arith.constant 1 : i32
    %29 = arith.addi %0, %c1_i32 : i32
    %c0_23 = arith.constant 0 : index
    %30 = arith.index_cast %29 : i32 to index
    %c0_24 = arith.constant 0 : index
    %c0_25 = arith.constant 0 : index
    %31 = vector.load %arg2[%c0_23, %30, %c0_24, %c0_25] : memref<1x18x18x4xbf16, #tpu.memory_space<vmem>>, vector<1x16x16x4xbf16>
    %32 = vector.shape_cast %31 : vector<1x16x16x4xbf16> to vector<16x16x4xbf16>
    %33 = vector.shape_cast %32 : vector<16x16x4xbf16> to vector<256x4xbf16>
    %c1_26 = arith.constant 1 : index
    %c0_27 = arith.constant 0 : index
    %c0_28 = arith.constant 0 : index
    %c0_29 = arith.constant 0 : index
    %34 = vector.load %arg3[%c1_26, %c0_27, %c0_28, %c0_29] : memref<3x3x4x128xbf16, #tpu.memory_space<vmem>>, vector<1x1x4x128xbf16>
    %35 = vector.shape_cast %34 : vector<1x1x4x128xbf16> to vector<4x128xbf16>
    %cst_30 = arith.constant dense<0.000000e+00> : vector<256x128xf32>
    %36 = tpu.matmul %33, %35, %cst_30 {dimension_numbers = #tpu.dot_dimension_numbers<[1], [0], [0], [1], [0, 0, 1, 1], [], []>} : vector<256x4xbf16>, vector<4x128xbf16>, vector<256x128xf32> -> vector<256x128xf32>
    %37 = arith.addf %28, %36 : vector<256x128xf32>
    %c1_i32_31 = arith.constant 1 : i32
    %38 = arith.addi %0, %c1_i32_31 : i32
    %c0_32 = arith.constant 0 : index
    %39 = arith.index_cast %38 : i32 to index
    %c1_33 = arith.constant 1 : index
    %c0_34 = arith.constant 0 : index
    %40 = vector.load %arg2[%c0_32, %39, %c1_33, %c0_34] : memref<1x18x18x4xbf16, #tpu.memory_space<vmem>>, vector<1x16x16x4xbf16>
    %41 = vector.shape_cast %40 : vector<1x16x16x4xbf16> to vector<16x16x4xbf16>
    %42 = vector.shape_cast %41 : vector<16x16x4xbf16> to vector<256x4xbf16>
    %c1_35 = arith.constant 1 : index
    %c1_36 = arith.constant 1 : index
    %c0_37 = arith.constant 0 : index
    %c0_38 = arith.constant 0 : index
    %43 = vector.load %arg3[%c1_35, %c1_36, %c0_37, %c0_38] : memref<3x3x4x128xbf16, #tpu.memory_space<vmem>>, vector<1x1x4x128xbf16>
    %44 = vector.shape_cast %43 : vector<1x1x4x128xbf16> to vector<4x128xbf16>
    %cst_39 = arith.constant dense<0.000000e+00> : vector<256x128xf32>
    %45 = tpu.matmul %42, %44, %cst_39 {dimension_numbers = #tpu.dot_dimension_numbers<[1], [0], [0], [1], [0, 0, 1, 1], [], []>} : vector<256x4xbf16>, vector<4x128xbf16>, vector<256x128xf32> -> vector<256x128xf32>
    %46 = arith.addf %37, %45 : vector<256x128xf32>
    %c1_i32_40 = arith.constant 1 : i32
    %47 = arith.addi %0, %c1_i32_40 : i32
    %c0_41 = arith.constant 0 : index
    %48 = arith.index_cast %47 : i32 to index
    %c2_42 = arith.constant 2 : index
    %c0_43 = arith.constant 0 : index
    %49 = vector.load %arg2[%c0_41, %48, %c2_42, %c0_43] : memref<1x18x18x4xbf16, #tpu.memory_space<vmem>>, vector<1x16x16x4xbf16>
    %50 = vector.shape_cast %49 : vector<1x16x16x4xbf16> to vector<16x16x4xbf16>
    %51 = vector.shape_cast %50 : vector<16x16x4xbf16> to vector<256x4xbf16>
    %c1_44 = arith.constant 1 : index
    %c2_45 = arith.constant 2 : index
    %c0_46 = arith.constant 0 : index
    %c0_47 = arith.constant 0 : index
    %52 = vector.load %arg3[%c1_44, %c2_45, %c0_46, %c0_47] : memref<3x3x4x128xbf16, #tpu.memory_space<vmem>>, vector<1x1x4x128xbf16>
    %53 = vector.shape_cast %52 : vector<1x1x4x128xbf16> to vector<4x128xbf16>
    %cst_48 = arith.constant dense<0.000000e+00> : vector<256x128xf32>
    %54 = tpu.matmul %51, %53, %cst_48 {dimension_numbers = #tpu.dot_dimension_numbers<[1], [0], [0], [1], [0, 0, 1, 1], [], []>} : vector<256x4xbf16>, vector<4x128xbf16>, vector<256x128xf32> -> vector<256x128xf32>
    %55 = arith.addf %46, %54 : vector<256x128xf32>
    %c2_i32 = arith.constant 2 : i32
    %56 = arith.addi %0, %c2_i32 : i32
    %c0_49 = arith.constant 0 : index
    %57 = arith.index_cast %56 : i32 to index
    %c0_50 = arith.constant 0 : index
    %c0_51 = arith.constant 0 : index
    %58 = vector.load %arg2[%c0_49, %57, %c0_50, %c0_51] : memref<1x18x18x4xbf16, #tpu.memory_space<vmem>>, vector<1x16x16x4xbf16>
    %59 = vector.shape_cast %58 : vector<1x16x16x4xbf16> to vector<16x16x4xbf16>
    %60 = vector.shape_cast %59 : vector<16x16x4xbf16> to vector<256x4xbf16>
    %c2_52 = arith.constant 2 : index
    %c0_53 = arith.constant 0 : index
    %c0_54 = arith.constant 0 : index
    %c0_55 = arith.constant 0 : index
    %61 = vector.load %arg3[%c2_52, %c0_53, %c0_54, %c0_55] : memref<3x3x4x128xbf16, #tpu.memory_space<vmem>>, vector<1x1x4x128xbf16>
    %62 = vector.shape_cast %61 : vector<1x1x4x128xbf16> to vector<4x128xbf16>
    %cst_56 = arith.constant dense<0.000000e+00> : vector<256x128xf32>
    %63 = tpu.matmul %60, %62, %cst_56 {dimension_numbers = #tpu.dot_dimension_numbers<[1], [0], [0], [1], [0, 0, 1, 1], [], []>} : vector<256x4xbf16>, vector<4x128xbf16>, vector<256x128xf32> -> vector<256x128xf32>
    %64 = arith.addf %55, %63 : vector<256x128xf32>
    %c2_i32_57 = arith.constant 2 : i32
    %65 = arith.addi %0, %c2_i32_57 : i32
    %c0_58 = arith.constant 0 : index
    %66 = arith.index_cast %65 : i32 to index
    %c1_59 = arith.constant 1 : index
    %c0_60 = arith.constant 0 : index
    %67 = vector.load %arg2[%c0_58, %66, %c1_59, %c0_60] : memref<1x18x18x4xbf16, #tpu.memory_space<vmem>>, vector<1x16x16x4xbf16>
    %68 = vector.shape_cast %67 : vector<1x16x16x4xbf16> to vector<16x16x4xbf16>
    %69 = vector.shape_cast %68 : vector<16x16x4xbf16> to vector<256x4xbf16>
    %c2_61 = arith.constant 2 : index
    %c1_62 = arith.constant 1 : index
    %c0_63 = arith.constant 0 : index
    %c0_64 = arith.constant 0 : index
    %70 = vector.load %arg3[%c2_61, %c1_62, %c0_63, %c0_64] : memref<3x3x4x128xbf16, #tpu.memory_space<vmem>>, vector<1x1x4x128xbf16>
    %71 = vector.shape_cast %70 : vector<1x1x4x128xbf16> to vector<4x128xbf16>
    %cst_65 = arith.constant dense<0.000000e+00> : vector<256x128xf32>
    %72 = tpu.matmul %69, %71, %cst_65 {dimension_numbers = #tpu.dot_dimension_numbers<[1], [0], [0], [1], [0, 0, 1, 1], [], []>} : vector<256x4xbf16>, vector<4x128xbf16>, vector<256x128xf32> -> vector<256x128xf32>
    %73 = arith.addf %64, %72 : vector<256x128xf32>
    %c2_i32_66 = arith.constant 2 : i32
    %74 = arith.addi %0, %c2_i32_66 : i32
    %c0_67 = arith.constant 0 : index
    %75 = arith.index_cast %74 : i32 to index
    %c2_68 = arith.constant 2 : index
    %c0_69 = arith.constant 0 : index
    %76 = vector.load %arg2[%c0_67, %75, %c2_68, %c0_69] : memref<1x18x18x4xbf16, #tpu.memory_space<vmem>>, vector<1x16x16x4xbf16>
    %77 = vector.shape_cast %76 : vector<1x16x16x4xbf16> to vector<16x16x4xbf16>
    %78 = vector.shape_cast %77 : vector<16x16x4xbf16> to vector<256x4xbf16>
    %c2_70 = arith.constant 2 : index
    %c2_71 = arith.constant 2 : index
    %c0_72 = arith.constant 0 : index
    %c0_73 = arith.constant 0 : index
    %79 = vector.load %arg3[%c2_70, %c2_71, %c0_72, %c0_73] : memref<3x3x4x128xbf16, #tpu.memory_space<vmem>>, vector<1x1x4x128xbf16>
    %80 = vector.shape_cast %79 : vector<1x1x4x128xbf16> to vector<4x128xbf16>
    %cst_74 = arith.constant dense<0.000000e+00> : vector<256x128xf32>
    %81 = tpu.matmul %78, %80, %cst_74 {dimension_numbers = #tpu.dot_dimension_numbers<[1], [0], [0], [1], [0, 0, 1, 1], [], []>} : vector<256x4xbf16>, vector<4x128xbf16>, vector<256x128xf32> -> vector<256x128xf32>
    %82 = arith.addf %73, %81 : vector<256x128xf32>
    %cst_75 = arith.constant dense<0.000000e+00> : vector<128xf32>
    %83 = vector.multi_reduction <add>, %82, %cst_75 [0] : vector<256x128xf32> to vector<128xf32>
    %84 = vector.shape_cast %83 : vector<128xf32> to vector<1x128xf32>
    %85 = vector.shape_cast %84 : vector<1x128xf32> to vector<1x1x128xf32>
    %c0_76 = arith.constant 0 : index
    %c0_77 = arith.constant 0 : index
    %c0_78 = arith.constant 0 : index
    %86 = vector.load %arg4[%c0_76, %c0_77, %c0_78] : memref<1x1x128xf32, #tpu.memory_space<vmem>>, vector<1x1x128xf32>
    tpu.vector_store %arg4[%c0_76, %c0_77, %c0_78], %85 {strides = array<i32>} : memref<1x1x128xf32, #tpu.memory_space<vmem>>, vector<1x1x128xf32>,
    %87 = arith.mulf %82, %82 : vector<256x128xf32>
    %cst_79 = arith.constant dense<0.000000e+00> : vector<128xf32>
    %88 = vector.multi_reduction <add>, %87, %cst_79 [0] : vector<256x128xf32> to vector<128xf32>
    %89 = vector.shape_cast %88 : vector<128xf32> to vector<1x128xf32>
    %90 = vector.shape_cast %89 : vector<1x128xf32> to vector<1x1x128xf32>
    %c0_80 = arith.constant 0 : index
    %c0_81 = arith.constant 0 : index
    %c0_82 = arith.constant 0 : index
    %91 = vector.load %arg5[%c0_80, %c0_81, %c0_82] : memref<1x1x128xf32, #tpu.memory_space<vmem>>, vector<1x1x128xf32>
    tpu.vector_store %arg5[%c0_80, %c0_81, %c0_82], %90 {strides = array<i32>} : memref<1x1x128xf32, #tpu.memory_space<vmem>>, vector<1x1x128xf32>,
    return
  }
  func.func @transform_0(%arg0: i32, %arg1: i32) -> (i32, i32, i32, i32) {
    %c0_i32 = arith.constant 0 : i32
    %c0_i32_0 = arith.constant 0 : i32
    %c0_i32_1 = arith.constant 0 : i32
    %c0_i32_2 = arith.constant 0 : i32
    return %arg0, %c0_i32, %c0_i32_0, %c0_i32_1 : i32, i32, i32, i32
  }
  func.func @transform_1(%arg0: i32, %arg1: i32) -> (i32, i32, i32, i32) {
    %c0_i32 = arith.constant 0 : i32
    %c0_i32_0 = arith.constant 0 : i32
    %c0_i32_1 = arith.constant 0 : i32
    %c0_i32_2 = arith.constant 0 : i32
    %c0_i32_3 = arith.constant 0 : i32
    return %c0_i32, %c0_i32_0, %c0_i32_1, %c0_i32_2 : i32, i32, i32, i32
  }
  func.func @transform_2(%arg0: i32, %arg1: i32) -> (i32, i32, i32) {
    %c1_i32 = arith.constant 1 : i32
    %0 = arith.muli %arg0, %c1_i32 : i32
    %1 = arith.addi %0, %arg1 : i32
    %c0_i32 = arith.constant 0 : i32
    %c0_i32_0 = arith.constant 0 : i32
    %c0_i32_1 = arith.constant 0 : i32
    return %1, %c0_i32, %c0_i32_0 : i32, i32, i32
  }
  func.func @transform_3(%arg0: i32, %arg1: i32) -> (i32, i32, i32) {
    %c1_i32 = arith.constant 1 : i32
    %0 = arith.muli %arg0, %c1_i32 : i32
    %1 = arith.addi %0, %arg1 : i32
    %c0_i32 = arith.constant 0 : i32
    %c0_i32_0 = arith.constant 0 : i32
    %c0_i32_1 = arith.constant 0 : i32
    return %1, %c0_i32, %c0_i32_0 : i32, i32, i32
  }
}

module attributes {stable_mosaic.version = 11 : i64} {
  func.func @_conv_bn_tanh_kernel(%arg0: i32, %arg1: i32, %arg2: memref<1x18x18x4xbf16, #tpu.memory_space<vmem>>, %arg3: memref<3x3x4x128xbf16, #tpu.memory_space<vmem>>, %arg4: memref<1x128xf32, #tpu.memory_space<vmem>>, %arg5: memref<1x128xf32, #tpu.memory_space<vmem>>, %arg6: memref<1x8x16x16xf32, #tpu.memory_space<vmem>>) attributes {dimension_semantics = [#tpu.dimension_semantics<parallel>, #tpu.dimension_semantics<parallel>], iteration_bounds = array<i64: 2, 1>, scalar_prefetch = 0 : i64, scratch_operands = 0 : i64, tpu.core_type = #tpu.core_type<tc>, window_params = [{transform_indices = @transform_0, window_bounds = array<i64: 1, 18, 18, 4>}, {pipeline_mode = #tpu.pipeline_mode<synchronous>, transform_indices = @transform_1, window_bounds = array<i64: 3, 3, 4, 128>}, {pipeline_mode = #tpu.pipeline_mode<synchronous>, transform_indices = @transform_2, window_bounds = array<i64: 1, 128>}, {pipeline_mode = #tpu.pipeline_mode<synchronous>, transform_indices = @transform_3, window_bounds = array<i64: 1, 128>}, {transform_indices = @transform_4, window_bounds = array<i64: 1, 8, 16, 16>}]} {
    %c16_i32 = arith.constant 16 : i32
    %0 = arith.muli %arg1, %c16_i32 : i32
    %cst = arith.constant 0.000000e+00 : f32
    %1 = vector.broadcast %cst : f32 to vector<256x128xf32>
    %c0_i32 = arith.constant 0 : i32
    %2 = arith.addi %0, %c0_i32 : i32
    %c0 = arith.constant 0 : index
    %3 = arith.index_cast %2 : i32 to index
    %c0_0 = arith.constant 0 : index
    %c0_1 = arith.constant 0 : index
    %4 = vector.load %arg2[%c0, %3, %c0_0, %c0_1] : memref<1x18x18x4xbf16, #tpu.memory_space<vmem>>, vector<1x16x16x4xbf16>
    %5 = vector.shape_cast %4 : vector<1x16x16x4xbf16> to vector<16x16x4xbf16>
    %6 = vector.shape_cast %5 : vector<16x16x4xbf16> to vector<256x4xbf16>
    %c0_2 = arith.constant 0 : index
    %c0_3 = arith.constant 0 : index
    %c0_4 = arith.constant 0 : index
    %c0_5 = arith.constant 0 : index
    %7 = vector.load %arg3[%c0_2, %c0_3, %c0_4, %c0_5] : memref<3x3x4x128xbf16, #tpu.memory_space<vmem>>, vector<1x1x4x128xbf16>
    %8 = vector.shape_cast %7 : vector<1x1x4x128xbf16> to vector<4x128xbf16>
    %cst_6 = arith.constant dense<0.000000e+00> : vector<256x128xf32>
    %9 = tpu.matmul %6, %8, %cst_6 {dimension_numbers = #tpu.dot_dimension_numbers<[1], [0], [0], [1], [0, 0, 1, 1], [], []>} : vector<256x4xbf16>, vector<4x128xbf16>, vector<256x128xf32> -> vector<256x128xf32>
    %10 = arith.addf %1, %9 : vector<256x128xf32>
    %c0_i32_7 = arith.constant 0 : i32
    %11 = arith.addi %0, %c0_i32_7 : i32
    %c0_8 = arith.constant 0 : index
    %12 = arith.index_cast %11 : i32 to index
    %c1 = arith.constant 1 : index
    %c0_9 = arith.constant 0 : index
    %13 = vector.load %arg2[%c0_8, %12, %c1, %c0_9] : memref<1x18x18x4xbf16, #tpu.memory_space<vmem>>, vector<1x16x16x4xbf16>
    %14 = vector.shape_cast %13 : vector<1x16x16x4xbf16> to vector<16x16x4xbf16>
    %15 = vector.shape_cast %14 : vector<16x16x4xbf16> to vector<256x4xbf16>
    %c0_10 = arith.constant 0 : index
    %c1_11 = arith.constant 1 : index
    %c0_12 = arith.constant 0 : index
    %c0_13 = arith.constant 0 : index
    %16 = vector.load %arg3[%c0_10, %c1_11, %c0_12, %c0_13] : memref<3x3x4x128xbf16, #tpu.memory_space<vmem>>, vector<1x1x4x128xbf16>
    %17 = vector.shape_cast %16 : vector<1x1x4x128xbf16> to vector<4x128xbf16>
    %cst_14 = arith.constant dense<0.000000e+00> : vector<256x128xf32>
    %18 = tpu.matmul %15, %17, %cst_14 {dimension_numbers = #tpu.dot_dimension_numbers<[1], [0], [0], [1], [0, 0, 1, 1], [], []>} : vector<256x4xbf16>, vector<4x128xbf16>, vector<256x128xf32> -> vector<256x128xf32>
    %19 = arith.addf %10, %18 : vector<256x128xf32>
    %c0_i32_15 = arith.constant 0 : i32
    %20 = arith.addi %0, %c0_i32_15 : i32
    %c0_16 = arith.constant 0 : index
    %21 = arith.index_cast %20 : i32 to index
    %c2 = arith.constant 2 : index
    %c0_17 = arith.constant 0 : index
    %22 = vector.load %arg2[%c0_16, %21, %c2, %c0_17] : memref<1x18x18x4xbf16, #tpu.memory_space<vmem>>, vector<1x16x16x4xbf16>
    %23 = vector.shape_cast %22 : vector<1x16x16x4xbf16> to vector<16x16x4xbf16>
    %24 = vector.shape_cast %23 : vector<16x16x4xbf16> to vector<256x4xbf16>
    %c0_18 = arith.constant 0 : index
    %c2_19 = arith.constant 2 : index
    %c0_20 = arith.constant 0 : index
    %c0_21 = arith.constant 0 : index
    %25 = vector.load %arg3[%c0_18, %c2_19, %c0_20, %c0_21] : memref<3x3x4x128xbf16, #tpu.memory_space<vmem>>, vector<1x1x4x128xbf16>
    %26 = vector.shape_cast %25 : vector<1x1x4x128xbf16> to vector<4x128xbf16>
    %cst_22 = arith.constant dense<0.000000e+00> : vector<256x128xf32>
    %27 = tpu.matmul %24, %26, %cst_22 {dimension_numbers = #tpu.dot_dimension_numbers<[1], [0], [0], [1], [0, 0, 1, 1], [], []>} : vector<256x4xbf16>, vector<4x128xbf16>, vector<256x128xf32> -> vector<256x128xf32>
    %28 = arith.addf %19, %27 : vector<256x128xf32>
    %c1_i32 = arith.constant 1 : i32
    %29 = arith.addi %0, %c1_i32 : i32
    %c0_23 = arith.constant 0 : index
    %30 = arith.index_cast %29 : i32 to index
    %c0_24 = arith.constant 0 : index
    %c0_25 = arith.constant 0 : index
    %31 = vector.load %arg2[%c0_23, %30, %c0_24, %c0_25] : memref<1x18x18x4xbf16, #tpu.memory_space<vmem>>, vector<1x16x16x4xbf16>
    %32 = vector.shape_cast %31 : vector<1x16x16x4xbf16> to vector<16x16x4xbf16>
    %33 = vector.shape_cast %32 : vector<16x16x4xbf16> to vector<256x4xbf16>
    %c1_26 = arith.constant 1 : index
    %c0_27 = arith.constant 0 : index
    %c0_28 = arith.constant 0 : index
    %c0_29 = arith.constant 0 : index
    %34 = vector.load %arg3[%c1_26, %c0_27, %c0_28, %c0_29] : memref<3x3x4x128xbf16, #tpu.memory_space<vmem>>, vector<1x1x4x128xbf16>
    %35 = vector.shape_cast %34 : vector<1x1x4x128xbf16> to vector<4x128xbf16>
    %cst_30 = arith.constant dense<0.000000e+00> : vector<256x128xf32>
    %36 = tpu.matmul %33, %35, %cst_30 {dimension_numbers = #tpu.dot_dimension_numbers<[1], [0], [0], [1], [0, 0, 1, 1], [], []>} : vector<256x4xbf16>, vector<4x128xbf16>, vector<256x128xf32> -> vector<256x128xf32>
    %37 = arith.addf %28, %36 : vector<256x128xf32>
    %c1_i32_31 = arith.constant 1 : i32
    %38 = arith.addi %0, %c1_i32_31 : i32
    %c0_32 = arith.constant 0 : index
    %39 = arith.index_cast %38 : i32 to index
    %c1_33 = arith.constant 1 : index
    %c0_34 = arith.constant 0 : index
    %40 = vector.load %arg2[%c0_32, %39, %c1_33, %c0_34] : memref<1x18x18x4xbf16, #tpu.memory_space<vmem>>, vector<1x16x16x4xbf16>
    %41 = vector.shape_cast %40 : vector<1x16x16x4xbf16> to vector<16x16x4xbf16>
    %42 = vector.shape_cast %41 : vector<16x16x4xbf16> to vector<256x4xbf16>
    %c1_35 = arith.constant 1 : index
    %c1_36 = arith.constant 1 : index
    %c0_37 = arith.constant 0 : index
    %c0_38 = arith.constant 0 : index
    %43 = vector.load %arg3[%c1_35, %c1_36, %c0_37, %c0_38] : memref<3x3x4x128xbf16, #tpu.memory_space<vmem>>, vector<1x1x4x128xbf16>
    %44 = vector.shape_cast %43 : vector<1x1x4x128xbf16> to vector<4x128xbf16>
    %cst_39 = arith.constant dense<0.000000e+00> : vector<256x128xf32>
    %45 = tpu.matmul %42, %44, %cst_39 {dimension_numbers = #tpu.dot_dimension_numbers<[1], [0], [0], [1], [0, 0, 1, 1], [], []>} : vector<256x4xbf16>, vector<4x128xbf16>, vector<256x128xf32> -> vector<256x128xf32>
    %46 = arith.addf %37, %45 : vector<256x128xf32>
    %c1_i32_40 = arith.constant 1 : i32
    %47 = arith.addi %0, %c1_i32_40 : i32
    %c0_41 = arith.constant 0 : index
    %48 = arith.index_cast %47 : i32 to index
    %c2_42 = arith.constant 2 : index
    %c0_43 = arith.constant 0 : index
    %49 = vector.load %arg2[%c0_41, %48, %c2_42, %c0_43] : memref<1x18x18x4xbf16, #tpu.memory_space<vmem>>, vector<1x16x16x4xbf16>
    %50 = vector.shape_cast %49 : vector<1x16x16x4xbf16> to vector<16x16x4xbf16>
    %51 = vector.shape_cast %50 : vector<16x16x4xbf16> to vector<256x4xbf16>
    %c1_44 = arith.constant 1 : index
    %c2_45 = arith.constant 2 : index
    %c0_46 = arith.constant 0 : index
    %c0_47 = arith.constant 0 : index
    %52 = vector.load %arg3[%c1_44, %c2_45, %c0_46, %c0_47] : memref<3x3x4x128xbf16, #tpu.memory_space<vmem>>, vector<1x1x4x128xbf16>
    %53 = vector.shape_cast %52 : vector<1x1x4x128xbf16> to vector<4x128xbf16>
    %cst_48 = arith.constant dense<0.000000e+00> : vector<256x128xf32>
    %54 = tpu.matmul %51, %53, %cst_48 {dimension_numbers = #tpu.dot_dimension_numbers<[1], [0], [0], [1], [0, 0, 1, 1], [], []>} : vector<256x4xbf16>, vector<4x128xbf16>, vector<256x128xf32> -> vector<256x128xf32>
    %55 = arith.addf %46, %54 : vector<256x128xf32>
    %c2_i32 = arith.constant 2 : i32
    %56 = arith.addi %0, %c2_i32 : i32
    %c0_49 = arith.constant 0 : index
    %57 = arith.index_cast %56 : i32 to index
    %c0_50 = arith.constant 0 : index
    %c0_51 = arith.constant 0 : index
    %58 = vector.load %arg2[%c0_49, %57, %c0_50, %c0_51] : memref<1x18x18x4xbf16, #tpu.memory_space<vmem>>, vector<1x16x16x4xbf16>
    %59 = vector.shape_cast %58 : vector<1x16x16x4xbf16> to vector<16x16x4xbf16>
    %60 = vector.shape_cast %59 : vector<16x16x4xbf16> to vector<256x4xbf16>
    %c2_52 = arith.constant 2 : index
    %c0_53 = arith.constant 0 : index
    %c0_54 = arith.constant 0 : index
    %c0_55 = arith.constant 0 : index
    %61 = vector.load %arg3[%c2_52, %c0_53, %c0_54, %c0_55] : memref<3x3x4x128xbf16, #tpu.memory_space<vmem>>, vector<1x1x4x128xbf16>
    %62 = vector.shape_cast %61 : vector<1x1x4x128xbf16> to vector<4x128xbf16>
    %cst_56 = arith.constant dense<0.000000e+00> : vector<256x128xf32>
    %63 = tpu.matmul %60, %62, %cst_56 {dimension_numbers = #tpu.dot_dimension_numbers<[1], [0], [0], [1], [0, 0, 1, 1], [], []>} : vector<256x4xbf16>, vector<4x128xbf16>, vector<256x128xf32> -> vector<256x128xf32>
    %64 = arith.addf %55, %63 : vector<256x128xf32>
    %c2_i32_57 = arith.constant 2 : i32
    %65 = arith.addi %0, %c2_i32_57 : i32
    %c0_58 = arith.constant 0 : index
    %66 = arith.index_cast %65 : i32 to index
    %c1_59 = arith.constant 1 : index
    %c0_60 = arith.constant 0 : index
    %67 = vector.load %arg2[%c0_58, %66, %c1_59, %c0_60] : memref<1x18x18x4xbf16, #tpu.memory_space<vmem>>, vector<1x16x16x4xbf16>
    %68 = vector.shape_cast %67 : vector<1x16x16x4xbf16> to vector<16x16x4xbf16>
    %69 = vector.shape_cast %68 : vector<16x16x4xbf16> to vector<256x4xbf16>
    %c2_61 = arith.constant 2 : index
    %c1_62 = arith.constant 1 : index
    %c0_63 = arith.constant 0 : index
    %c0_64 = arith.constant 0 : index
    %70 = vector.load %arg3[%c2_61, %c1_62, %c0_63, %c0_64] : memref<3x3x4x128xbf16, #tpu.memory_space<vmem>>, vector<1x1x4x128xbf16>
    %71 = vector.shape_cast %70 : vector<1x1x4x128xbf16> to vector<4x128xbf16>
    %cst_65 = arith.constant dense<0.000000e+00> : vector<256x128xf32>
    %72 = tpu.matmul %69, %71, %cst_65 {dimension_numbers = #tpu.dot_dimension_numbers<[1], [0], [0], [1], [0, 0, 1, 1], [], []>} : vector<256x4xbf16>, vector<4x128xbf16>, vector<256x128xf32> -> vector<256x128xf32>
    %73 = arith.addf %64, %72 : vector<256x128xf32>
    %c2_i32_66 = arith.constant 2 : i32
    %74 = arith.addi %0, %c2_i32_66 : i32
    %c0_67 = arith.constant 0 : index
    %75 = arith.index_cast %74 : i32 to index
    %c2_68 = arith.constant 2 : index
    %c0_69 = arith.constant 0 : index
    %76 = vector.load %arg2[%c0_67, %75, %c2_68, %c0_69] : memref<1x18x18x4xbf16, #tpu.memory_space<vmem>>, vector<1x16x16x4xbf16>
    %77 = vector.shape_cast %76 : vector<1x16x16x4xbf16> to vector<16x16x4xbf16>
    %78 = vector.shape_cast %77 : vector<16x16x4xbf16> to vector<256x4xbf16>
    %c2_70 = arith.constant 2 : index
    %c2_71 = arith.constant 2 : index
    %c0_72 = arith.constant 0 : index
    %c0_73 = arith.constant 0 : index
    %79 = vector.load %arg3[%c2_70, %c2_71, %c0_72, %c0_73] : memref<3x3x4x128xbf16, #tpu.memory_space<vmem>>, vector<1x1x4x128xbf16>
    %80 = vector.shape_cast %79 : vector<1x1x4x128xbf16> to vector<4x128xbf16>
    %cst_74 = arith.constant dense<0.000000e+00> : vector<256x128xf32>
    %81 = tpu.matmul %78, %80, %cst_74 {dimension_numbers = #tpu.dot_dimension_numbers<[1], [0], [0], [1], [0, 0, 1, 1], [], []>} : vector<256x4xbf16>, vector<4x128xbf16>, vector<256x128xf32> -> vector<256x128xf32>
    %82 = arith.addf %73, %81 : vector<256x128xf32>
    %c0_75 = arith.constant 0 : index
    %c0_76 = arith.constant 0 : index
    %83 = vector.load %arg4[%c0_75, %c0_76] : memref<1x128xf32, #tpu.memory_space<vmem>>, vector<1x128xf32>
    %84 = vector.broadcast %83 : vector<1x128xf32> to vector<256x128xf32>
    %85 = arith.mulf %82, %84 : vector<256x128xf32>
    %c0_77 = arith.constant 0 : index
    %c0_78 = arith.constant 0 : index
    %86 = vector.load %arg5[%c0_77, %c0_78] : memref<1x128xf32, #tpu.memory_space<vmem>>, vector<1x128xf32>
    %87 = vector.broadcast %86 : vector<1x128xf32> to vector<256x128xf32>
    %88 = arith.addf %85, %87 : vector<256x128xf32>
    %89 = math.tanh %88 : vector<256x128xf32>
    %90 = tpu.transpose %89, [1, 0] : vector<256x128xf32> -> vector<128x256xf32>
    %91 = vector.extract_strided_slice %90 {offsets = [0, 0], sizes = [8, 256], strides = [1, 1]} : vector<128x256xf32> to vector<8x256xf32>
    %92 = vector.extract_strided_slice %91 {offsets = [0, 0], sizes = [8, 16], strides = [1, 1]} : vector<8x256xf32> to vector<8x16xf32>
    %c0_79 = arith.constant 0 : index
    %c0_80 = arith.constant 0 : index
    %c0_81 = arith.constant 0 : index
    %c0_82 = arith.constant 0 : index
    %93 = vector.load %arg6[%c0_79, %c0_80, %c0_81, %c0_82] : memref<1x8x16x16xf32, #tpu.memory_space<vmem>>, vector<1x8x1x16xf32>
    %94 = vector.shape_cast %93 : vector<1x8x1x16xf32> to vector<8x16xf32>
    %95 = vector.shape_cast %92 : vector<8x16xf32> to vector<1x8x1x16xf32>
    tpu.vector_store %arg6[%c0_79, %c0_80, %c0_81, %c0_82], %95 {strides = array<i32>} : memref<1x8x16x16xf32, #tpu.memory_space<vmem>>, vector<1x8x1x16xf32>,
    %96 = vector.extract_strided_slice %91 {offsets = [0, 16], sizes = [8, 16], strides = [1, 1]} : vector<8x256xf32> to vector<8x16xf32>
    %c0_83 = arith.constant 0 : index
    %c0_84 = arith.constant 0 : index
    %c1_85 = arith.constant 1 : index
    %c0_86 = arith.constant 0 : index
    %97 = vector.load %arg6[%c0_83, %c0_84, %c1_85, %c0_86] : memref<1x8x16x16xf32, #tpu.memory_space<vmem>>, vector<1x8x1x16xf32>
    %98 = vector.shape_cast %97 : vector<1x8x1x16xf32> to vector<8x16xf32>
    %99 = vector.shape_cast %96 : vector<8x16xf32> to vector<1x8x1x16xf32>
    tpu.vector_store %arg6[%c0_83, %c0_84, %c1_85, %c0_86], %99 {strides = array<i32>} : memref<1x8x16x16xf32, #tpu.memory_space<vmem>>, vector<1x8x1x16xf32>,
    %100 = vector.extract_strided_slice %91 {offsets = [0, 32], sizes = [8, 16], strides = [1, 1]} : vector<8x256xf32> to vector<8x16xf32>
    %c0_87 = arith.constant 0 : index
    %c0_88 = arith.constant 0 : index
    %c2_89 = arith.constant 2 : index
    %c0_90 = arith.constant 0 : index
    %101 = vector.load %arg6[%c0_87, %c0_88, %c2_89, %c0_90] : memref<1x8x16x16xf32, #tpu.memory_space<vmem>>, vector<1x8x1x16xf32>
    %102 = vector.shape_cast %101 : vector<1x8x1x16xf32> to vector<8x16xf32>
    %103 = vector.shape_cast %100 : vector<8x16xf32> to vector<1x8x1x16xf32>
    tpu.vector_store %arg6[%c0_87, %c0_88, %c2_89, %c0_90], %103 {strides = array<i32>} : memref<1x8x16x16xf32, #tpu.memory_space<vmem>>, vector<1x8x1x16xf32>,
    %104 = vector.extract_strided_slice %91 {offsets = [0, 48], sizes = [8, 16], strides = [1, 1]} : vector<8x256xf32> to vector<8x16xf32>
    %c0_91 = arith.constant 0 : index
    %c0_92 = arith.constant 0 : index
    %c3 = arith.constant 3 : index
    %c0_93 = arith.constant 0 : index
    %105 = vector.load %arg6[%c0_91, %c0_92, %c3, %c0_93] : memref<1x8x16x16xf32, #tpu.memory_space<vmem>>, vector<1x8x1x16xf32>
    %106 = vector.shape_cast %105 : vector<1x8x1x16xf32> to vector<8x16xf32>
    %107 = vector.shape_cast %104 : vector<8x16xf32> to vector<1x8x1x16xf32>
    tpu.vector_store %arg6[%c0_91, %c0_92, %c3, %c0_93], %107 {strides = array<i32>} : memref<1x8x16x16xf32, #tpu.memory_space<vmem>>, vector<1x8x1x16xf32>,
    %108 = vector.extract_strided_slice %91 {offsets = [0, 64], sizes = [8, 16], strides = [1, 1]} : vector<8x256xf32> to vector<8x16xf32>
    %c0_94 = arith.constant 0 : index
    %c0_95 = arith.constant 0 : index
    %c4 = arith.constant 4 : index
    %c0_96 = arith.constant 0 : index
    %109 = vector.load %arg6[%c0_94, %c0_95, %c4, %c0_96] : memref<1x8x16x16xf32, #tpu.memory_space<vmem>>, vector<1x8x1x16xf32>
    %110 = vector.shape_cast %109 : vector<1x8x1x16xf32> to vector<8x16xf32>
    %111 = vector.shape_cast %108 : vector<8x16xf32> to vector<1x8x1x16xf32>
    tpu.vector_store %arg6[%c0_94, %c0_95, %c4, %c0_96], %111 {strides = array<i32>} : memref<1x8x16x16xf32, #tpu.memory_space<vmem>>, vector<1x8x1x16xf32>,
    %112 = vector.extract_strided_slice %91 {offsets = [0, 80], sizes = [8, 16], strides = [1, 1]} : vector<8x256xf32> to vector<8x16xf32>
    %c0_97 = arith.constant 0 : index
    %c0_98 = arith.constant 0 : index
    %c5 = arith.constant 5 : index
    %c0_99 = arith.constant 0 : index
    %113 = vector.load %arg6[%c0_97, %c0_98, %c5, %c0_99] : memref<1x8x16x16xf32, #tpu.memory_space<vmem>>, vector<1x8x1x16xf32>
    %114 = vector.shape_cast %113 : vector<1x8x1x16xf32> to vector<8x16xf32>
    %115 = vector.shape_cast %112 : vector<8x16xf32> to vector<1x8x1x16xf32>
    tpu.vector_store %arg6[%c0_97, %c0_98, %c5, %c0_99], %115 {strides = array<i32>} : memref<1x8x16x16xf32, #tpu.memory_space<vmem>>, vector<1x8x1x16xf32>,
    %116 = vector.extract_strided_slice %91 {offsets = [0, 96], sizes = [8, 16], strides = [1, 1]} : vector<8x256xf32> to vector<8x16xf32>
    %c0_100 = arith.constant 0 : index
    %c0_101 = arith.constant 0 : index
    %c6 = arith.constant 6 : index
    %c0_102 = arith.constant 0 : index
    %117 = vector.load %arg6[%c0_100, %c0_101, %c6, %c0_102] : memref<1x8x16x16xf32, #tpu.memory_space<vmem>>, vector<1x8x1x16xf32>
    %118 = vector.shape_cast %117 : vector<1x8x1x16xf32> to vector<8x16xf32>
    %119 = vector.shape_cast %116 : vector<8x16xf32> to vector<1x8x1x16xf32>
    tpu.vector_store %arg6[%c0_100, %c0_101, %c6, %c0_102], %119 {strides = array<i32>} : memref<1x8x16x16xf32, #tpu.memory_space<vmem>>, vector<1x8x1x16xf32>,
    %120 = vector.extract_strided_slice %91 {offsets = [0, 112], sizes = [8, 16], strides = [1, 1]} : vector<8x256xf32> to vector<8x16xf32>
    %c0_103 = arith.constant 0 : index
    %c0_104 = arith.constant 0 : index
    %c7 = arith.constant 7 : index
    %c0_105 = arith.constant 0 : index
    %121 = vector.load %arg6[%c0_103, %c0_104, %c7, %c0_105] : memref<1x8x16x16xf32, #tpu.memory_space<vmem>>, vector<1x8x1x16xf32>
    %122 = vector.shape_cast %121 : vector<1x8x1x16xf32> to vector<8x16xf32>
    %123 = vector.shape_cast %120 : vector<8x16xf32> to vector<1x8x1x16xf32>
    tpu.vector_store %arg6[%c0_103, %c0_104, %c7, %c0_105], %123 {strides = array<i32>} : memref<1x8x16x16xf32, #tpu.memory_space<vmem>>, vector<1x8x1x16xf32>,
    %124 = vector.extract_strided_slice %91 {offsets = [0, 128], sizes = [8, 16], strides = [1, 1]} : vector<8x256xf32> to vector<8x16xf32>
    %c0_106 = arith.constant 0 : index
    %c0_107 = arith.constant 0 : index
    %c8 = arith.constant 8 : index
    %c0_108 = arith.constant 0 : index
    %125 = vector.load %arg6[%c0_106, %c0_107, %c8, %c0_108] : memref<1x8x16x16xf32, #tpu.memory_space<vmem>>, vector<1x8x1x16xf32>
    %126 = vector.shape_cast %125 : vector<1x8x1x16xf32> to vector<8x16xf32>
    %127 = vector.shape_cast %124 : vector<8x16xf32> to vector<1x8x1x16xf32>
    tpu.vector_store %arg6[%c0_106, %c0_107, %c8, %c0_108], %127 {strides = array<i32>} : memref<1x8x16x16xf32, #tpu.memory_space<vmem>>, vector<1x8x1x16xf32>,
    %128 = vector.extract_strided_slice %91 {offsets = [0, 144], sizes = [8, 16], strides = [1, 1]} : vector<8x256xf32> to vector<8x16xf32>
    %c0_109 = arith.constant 0 : index
    %c0_110 = arith.constant 0 : index
    %c9 = arith.constant 9 : index
    %c0_111 = arith.constant 0 : index
    %129 = vector.load %arg6[%c0_109, %c0_110, %c9, %c0_111] : memref<1x8x16x16xf32, #tpu.memory_space<vmem>>, vector<1x8x1x16xf32>
    %130 = vector.shape_cast %129 : vector<1x8x1x16xf32> to vector<8x16xf32>
    %131 = vector.shape_cast %128 : vector<8x16xf32> to vector<1x8x1x16xf32>
    tpu.vector_store %arg6[%c0_109, %c0_110, %c9, %c0_111], %131 {strides = array<i32>} : memref<1x8x16x16xf32, #tpu.memory_space<vmem>>, vector<1x8x1x16xf32>,
    %132 = vector.extract_strided_slice %91 {offsets = [0, 160], sizes = [8, 16], strides = [1, 1]} : vector<8x256xf32> to vector<8x16xf32>
    %c0_112 = arith.constant 0 : index
    %c0_113 = arith.constant 0 : index
    %c10 = arith.constant 10 : index
    %c0_114 = arith.constant 0 : index
    %133 = vector.load %arg6[%c0_112, %c0_113, %c10, %c0_114] : memref<1x8x16x16xf32, #tpu.memory_space<vmem>>, vector<1x8x1x16xf32>
    %134 = vector.shape_cast %133 : vector<1x8x1x16xf32> to vector<8x16xf32>
    %135 = vector.shape_cast %132 : vector<8x16xf32> to vector<1x8x1x16xf32>
    tpu.vector_store %arg6[%c0_112, %c0_113, %c10, %c0_114], %135 {strides = array<i32>} : memref<1x8x16x16xf32, #tpu.memory_space<vmem>>, vector<1x8x1x16xf32>,
    %136 = vector.extract_strided_slice %91 {offsets = [0, 176], sizes = [8, 16], strides = [1, 1]} : vector<8x256xf32> to vector<8x16xf32>
    %c0_115 = arith.constant 0 : index
    %c0_116 = arith.constant 0 : index
    %c11 = arith.constant 11 : index
    %c0_117 = arith.constant 0 : index
    %137 = vector.load %arg6[%c0_115, %c0_116, %c11, %c0_117] : memref<1x8x16x16xf32, #tpu.memory_space<vmem>>, vector<1x8x1x16xf32>
    %138 = vector.shape_cast %137 : vector<1x8x1x16xf32> to vector<8x16xf32>
    %139 = vector.shape_cast %136 : vector<8x16xf32> to vector<1x8x1x16xf32>
    tpu.vector_store %arg6[%c0_115, %c0_116, %c11, %c0_117], %139 {strides = array<i32>} : memref<1x8x16x16xf32, #tpu.memory_space<vmem>>, vector<1x8x1x16xf32>,
    %140 = vector.extract_strided_slice %91 {offsets = [0, 192], sizes = [8, 16], strides = [1, 1]} : vector<8x256xf32> to vector<8x16xf32>
    %c0_118 = arith.constant 0 : index
    %c0_119 = arith.constant 0 : index
    %c12 = arith.constant 12 : index
    %c0_120 = arith.constant 0 : index
    %141 = vector.load %arg6[%c0_118, %c0_119, %c12, %c0_120] : memref<1x8x16x16xf32, #tpu.memory_space<vmem>>, vector<1x8x1x16xf32>
    %142 = vector.shape_cast %141 : vector<1x8x1x16xf32> to vector<8x16xf32>
    %143 = vector.shape_cast %140 : vector<8x16xf32> to vector<1x8x1x16xf32>
    tpu.vector_store %arg6[%c0_118, %c0_119, %c12, %c0_120], %143 {strides = array<i32>} : memref<1x8x16x16xf32, #tpu.memory_space<vmem>>, vector<1x8x1x16xf32>,
    %144 = vector.extract_strided_slice %91 {offsets = [0, 208], sizes = [8, 16], strides = [1, 1]} : vector<8x256xf32> to vector<8x16xf32>
    %c0_121 = arith.constant 0 : index
    %c0_122 = arith.constant 0 : index
    %c13 = arith.constant 13 : index
    %c0_123 = arith.constant 0 : index
    %145 = vector.load %arg6[%c0_121, %c0_122, %c13, %c0_123] : memref<1x8x16x16xf32, #tpu.memory_space<vmem>>, vector<1x8x1x16xf32>
    %146 = vector.shape_cast %145 : vector<1x8x1x16xf32> to vector<8x16xf32>
    %147 = vector.shape_cast %144 : vector<8x16xf32> to vector<1x8x1x16xf32>
    tpu.vector_store %arg6[%c0_121, %c0_122, %c13, %c0_123], %147 {strides = array<i32>} : memref<1x8x16x16xf32, #tpu.memory_space<vmem>>, vector<1x8x1x16xf32>,
    %148 = vector.extract_strided_slice %91 {offsets = [0, 224], sizes = [8, 16], strides = [1, 1]} : vector<8x256xf32> to vector<8x16xf32>
    %c0_124 = arith.constant 0 : index
    %c0_125 = arith.constant 0 : index
    %c14 = arith.constant 14 : index
    %c0_126 = arith.constant 0 : index
    %149 = vector.load %arg6[%c0_124, %c0_125, %c14, %c0_126] : memref<1x8x16x16xf32, #tpu.memory_space<vmem>>, vector<1x8x1x16xf32>
    %150 = vector.shape_cast %149 : vector<1x8x1x16xf32> to vector<8x16xf32>
    %151 = vector.shape_cast %148 : vector<8x16xf32> to vector<1x8x1x16xf32>
    tpu.vector_store %arg6[%c0_124, %c0_125, %c14, %c0_126], %151 {strides = array<i32>} : memref<1x8x16x16xf32, #tpu.memory_space<vmem>>, vector<1x8x1x16xf32>,
    %152 = vector.extract_strided_slice %91 {offsets = [0, 240], sizes = [8, 16], strides = [1, 1]} : vector<8x256xf32> to vector<8x16xf32>
    %c0_127 = arith.constant 0 : index
    %c0_128 = arith.constant 0 : index
    %c15 = arith.constant 15 : index
    %c0_129 = arith.constant 0 : index
    %153 = vector.load %arg6[%c0_127, %c0_128, %c15, %c0_129] : memref<1x8x16x16xf32, #tpu.memory_space<vmem>>, vector<1x8x1x16xf32>
    %154 = vector.shape_cast %153 : vector<1x8x1x16xf32> to vector<8x16xf32>
    %155 = vector.shape_cast %152 : vector<8x16xf32> to vector<1x8x1x16xf32>
    tpu.vector_store %arg6[%c0_127, %c0_128, %c15, %c0_129], %155 {strides = array<i32>} : memref<1x8x16x16xf32, #tpu.memory_space<vmem>>, vector<1x8x1x16xf32>,
    return
  }
  func.func @transform_0(%arg0: i32, %arg1: i32) -> (i32, i32, i32, i32) {
    %c0_i32 = arith.constant 0 : i32
    %c0_i32_0 = arith.constant 0 : i32
    %c0_i32_1 = arith.constant 0 : i32
    %c0_i32_2 = arith.constant 0 : i32
    return %arg0, %c0_i32, %c0_i32_0, %c0_i32_1 : i32, i32, i32, i32
  }
  func.func @transform_1(%arg0: i32, %arg1: i32) -> (i32, i32, i32, i32) {
    %c0_i32 = arith.constant 0 : i32
    %c0_i32_0 = arith.constant 0 : i32
    %c0_i32_1 = arith.constant 0 : i32
    %c0_i32_2 = arith.constant 0 : i32
    %c0_i32_3 = arith.constant 0 : i32
    return %c0_i32, %c0_i32_0, %c0_i32_1, %c0_i32_2 : i32, i32, i32, i32
  }
  func.func @transform_2(%arg0: i32, %arg1: i32) -> (i32, i32) {
    %c0_i32 = arith.constant 0 : i32
    %c0_i32_0 = arith.constant 0 : i32
    %c0_i32_1 = arith.constant 0 : i32
    return %c0_i32, %c0_i32_0 : i32, i32
  }
  func.func @transform_3(%arg0: i32, %arg1: i32) -> (i32, i32) {
    %c0_i32 = arith.constant 0 : i32
    %c0_i32_0 = arith.constant 0 : i32
    %c0_i32_1 = arith.constant 0 : i32
    return %c0_i32, %c0_i32_0 : i32, i32
  }
  func.func @transform_4(%arg0: i32, %arg1: i32) -> (i32, i32, i32, i32) {
    %c0_i32 = arith.constant 0 : i32
    %c0_i32_0 = arith.constant 0 : i32
    %c0_i32_1 = arith.constant 0 : i32
    return %arg0, %c0_i32, %arg1, %c0_i32_0 : i32, i32, i32, i32
  }
}

</mosaic_0001>

<llo_original>
// kernel: conv2d_bn_tanh.2
$region0: #{conv2d_bn_tanh.2}
  #allocation0 [shape = 'u32[]', space=smem, size = 0x4, offset = 0x4, fixed_abs, tag = 'smem constant byte address 0x4 - core index']
  #allocation1 [shape = 'u32[144,128]{1,0:T(1,128)}', space=vmem, size = 0x12000, scoped, tag = 'internal scratch']
  %s0 = inlined_call_operand.vmem [shape: bf16[2,18,18,4], index: 0, kind: input, shape index: {}]
  %s1 = inlined_call_operand.vmem [shape: bf16[3,3,4,128], index: 1, kind: input, shape index: {}]
  %s2 = inlined_call_operand.vmem [shape: f32[2,1,128], index: 2, kind: output, shape index: {0}]
  %s3 = inlined_call_operand.vmem [shape: f32[2,1,128], index: 3, kind: output, shape index: {1}]
  %4 = xla_tuple %s2, %s3
  %s5 = sld [smem:[#allocation0]]
  $region49: #{conv2d_bn_tanh.2} parent=0
    _
  %s7 = ssub.s32 1, %s5
  %s8 = scalar_select 0, %s7, %s5
  loop: start=0, step=1, limit=4
  $region2: #{conv2d_bn_tanh.2} parent=0 // loop_pre_header
    _
  $region3: #{conv2d_bn_tanh.2} parent=0 // loop_header
    %s10 = sphi 0, %s14
    %p11 = scmp.ge.s32.totalorder %s10, 4
    %s17 = sphi 0, %s29
    %s18 = sphi 0, %s25
    %s19 = sphi 0, %s17
    %s20 = sphi 0, %s18
    %s21 = sphi 0, %s19
    %s22 = sphi 0, %s20
    %s32 = sphi 0, %s34
    %s35 = sphi 0, %s32
    %s36 = sphi 0, %s35
    %s52 = sphi 0, %s36
    %s56 = sphi 0, %s56
    %s58 = sphi 0, %s56
    %s59 = sphi 0, %s58
    %s73 = sphi 0, %s59
    %s81 = sphi 0, %s83
    %s84 = sphi 0, %s81
    %s85 = sphi 0, %s84
    %s101 = sphi 0, %s85
    %s109 = sphi 0, %s111
    %s112 = sphi 0, %s109
    %s113 = sphi 0, %s112
    %s129 = sphi 0, %s113
  $region4: #{conv2d_bn_tanh.2} parent=0 // loop_header_branch
    %13 = sbr.rel (%p11) target = $region8
  $region5: #{conv2d_bn_tanh.2} parent=0 // loop_body
    %s15 = ssub.s32 %s10, 1
    %s16 = ssub.s32 %s10, 2
    %s23 = sadd.s32 1, %s18
    %p24 = scmp.ge.s32.totalorder %s23, 1
    %s25 = scalar_select %p24, 0, %s23
    %s26 = sadd.s32 1, %s17
    %s27 = scalar_select %p24, %s26, %s17
    %p28 = scmp.ge.s32.totalorder %s27, 2
    %s29 = scalar_select %p28, 0, %s27
    %s30 = ssub.s32 %s17, %s29
    %p31 = scmp.eq.s32.totalorder %s30, 0
    %s33 = sadd.s32 %s32, 1
    %s34 = scalar_select %p31, %s32, %s33
    %p37 = pneg %p31
    %p38 = scmp.eq.s32.totalorder %s10, 1
    %p39 = por %p37, %p38
    %p40 = scmp.ne.s32.totalorder %s32, %s35
    %p41 = scmp.eq.s32.totalorder %s10, 0
    %p42 = por %p40, %p41
    %p43 = scmp.ne.s32.totalorder %s32, %s35
    %p44 = scmp.eq.s32.totalorder %s15, 1
    %p45 = por %p43, %p44
    %p46 = scmp.ne.s32.totalorder %s35, %s36
    %p47 = scmp.eq.s32.totalorder %s15, 0
    %p48 = por %p46, %p47
    %p49 = scmp.ne.s32.totalorder %s35, %s36
    %p50 = scmp.eq.s32.totalorder %s16, 1
    %p51 = por %p49, %p50
    %p53 = scmp.ne.s32.totalorder %s36, %s52
    %p54 = scmp.eq.s32.totalorder %s16, 0
    %p55 = por %p53, %p54
    %s57 = sadd.s32 %s56, 1
    %p60 = scmp.eq.s32.totalorder %s10, 1
    %p61 = scmp.ne.s32.totalorder %s56, %s58
    %p62 = scmp.eq.s32.totalorder %s10, 0
    %p63 = por %p61, %p62
    %p64 = scmp.ne.s32.totalorder %s56, %s58
    %p65 = scmp.eq.s32.totalorder %s15, 1
    %p66 = por %p64, %p65
    %p67 = scmp.ne.s32.totalorder %s58, %s59
    %p68 = scmp.eq.s32.totalorder %s15, 0
    %p69 = por %p67, %p68
    %p70 = scmp.ne.s32.totalorder %s58, %s59
    %p71 = scmp.eq.s32.totalorder %s16, 1
    %p72 = por %p70, %p71
    %p74 = scmp.ne.s32.totalorder %s59, %s73
    %p75 = scmp.eq.s32.totalorder %s16, 0
    %p76 = por %p74, %p75
    %s77 = sadd.s32 %s17, %s18
    %s78 = sadd.s32 %s29, %s25
    %s79 = ssub.s32 %s77, %s78
    %p80 = scmp.eq.s32.totalorder %s79, 0
    %s82 = sadd.s32 %s81, 1
    %s83 = scalar_select %p80, %s81, %s82
    %p86 = pneg %p80
    %p87 = scmp.eq.s32.totalorder %s10, 1
    %p88 = por %p86, %p87
    %p89 = scmp.ne.s32.totalorder %s81, %s84
    %p90 = scmp.eq.s32.totalorder %s10, 0
    %p91 = por %p89, %p90
    %p92 = scmp.ne.s32.totalorder %s81, %s84
    %p93 = scmp.eq.s32.totalorder %s15, 1
    %p94 = por %p92, %p93
    %p95 = scmp.ne.s32.totalorder %s84, %s85
    %p96 = scmp.eq.s32.totalorder %s15, 0
    %p97 = por %p95, %p96
    %p98 = scmp.ne.s32.totalorder %s84, %s85
    %p99 = scmp.eq.s32.totalorder %s16, 1
    %p100 = por %p98, %p99
    %p102 = scmp.ne.s32.totalorder %s85, %s101
    %p103 = scmp.eq.s32.totalorder %s16, 0
    %p104 = por %p102, %p103
    %s105 = sadd.s32 %s17, %s18
    %s106 = sadd.s32 %s29, %s25
    %s107 = ssub.s32 %s105, %s106
    %p108 = scmp.eq.s32.totalorder %s107, 0
    %s110 = sadd.s32 %s109, 1
    %s111 = scalar_select %p108, %s109, %s110
    %p114 = pneg %p108
    %p115 = scmp.eq.s32.totalorder %s10, 1
    %p116 = por %p114, %p115
    %p117 = scmp.ne.s32.totalorder %s109, %s112
    %p118 = scmp.eq.s32.totalorder %s10, 0
    %p119 = por %p117, %p118
    %p120 = scmp.ne.s32.totalorder %s109, %s112
    %p121 = scmp.eq.s32.totalorder %s15, 1
    %p122 = por %p120, %p121
    %p123 = scmp.ne.s32.totalorder %s112, %s113
    %p124 = scmp.eq.s32.totalorder %s15, 0
    %p125 = por %p123, %p124
    %p126 = scmp.ne.s32.totalorder %s112, %s113
    %p127 = scmp.eq.s32.totalorder %s16, 1
    %p128 = por %p126, %p127
    %p130 = scmp.ne.s32.totalorder %s113, %s129
    %p131 = scmp.eq.s32.totalorder %s16, 0
    %p132 = por %p130, %p131
    %p133 = scmp.le.s32.totalorder 1, %s10
    %p134 = scmp.lt.s32.totalorder %s10, 3
    %p135 = pnand %p133, %p134
    %p136 = pneg %p135
    // Predicated region
    $region9: #{conv2d_bn_tanh.2} parent=5 // pred_check
      _
    $region10: #{conv2d_bn_tanh.2} parent=5 // pred_check_branch
      %138 = sbr.rel (%p135) target = $region12
    $region11: #{conv2d_bn_tanh.2} parent=5 // pred_region
      %s139 = ssub.s32 %s10, 1
      // Predicated region
      $region13: #{conv2d_bn_tanh.2} parent=11 // pred_check
        %p140 = pneg %p69
      $region14: #{conv2d_bn_tanh.2} parent=11 // pred_check_branch
        %142 = sbr.rel (%p140) target = $region16
      $region15: #{conv2d_bn_tanh.2} parent=11 // pred_region
        _
      $region16: #{conv2d_bn_tanh.2} parent=11 // pred_fallthru
        _
    $region12: #{conv2d_bn_tanh.2} parent=5 // pred_fallthru
      _
    %p143 = scmp.lt.s32.totalorder %s10, 2
    // Predicated region
    $region17: #{conv2d_bn_tanh.2} parent=5 // pred_check
      %p144 = pneg %p143
    $region18: #{conv2d_bn_tanh.2} parent=5 // pred_check_branch
      %146 = sbr.rel (%p144) target = $region20
    $region19: #{conv2d_bn_tanh.2} parent=5 // pred_region
      // Predicated region
      $region21: #{conv2d_bn_tanh.2} parent=19 // pred_check
        %p147 = pneg %p42
      $region22: #{conv2d_bn_tanh.2} parent=19 // pred_check_branch
        %149 = sbr.rel (%p147) target = $region24
      $region23: #{conv2d_bn_tanh.2} parent=19 // pred_region
        %p150 = scmp.lt.s32.totalorder %s17, 1
        %s151 = scalar_select %p150, %s17, 1
        %s152 = smul.addr %s151, 54
        %s153 = smul.addr %s152, 4
        %s154 = scalar_lea.vmem %s0, %s153
      $region24: #{conv2d_bn_tanh.2} parent=19 // pred_fallthru
        _
    $region20: #{conv2d_bn_tanh.2} parent=5 // pred_fallthru
      _
    %p155 = scmp.le.s32.totalorder 1, %s10
    %p156 = scmp.lt.s32.totalorder %s10, 3
    %p157 = pnand %p155, %p156
    %p158 = pneg %p157
    // Predicated region
    $region25: #{conv2d_bn_tanh.2} parent=5 // pred_check
      _
    $region26: #{conv2d_bn_tanh.2} parent=5 // pred_check_branch
      %160 = sbr.rel (%p157) target = $region28
    $region27: #{conv2d_bn_tanh.2} parent=5 // pred_region
      %s161 = ssub.s32 %s10, 1
      %p162 = scmp.lt.s32.totalorder %s19, 1
      %s163 = scalar_select %p162, %s19, 1
      %s164 = smul.addr %s163, 54
      %s165 = smul.addr %s164, 4
      %s166 = scalar_lea.vmem %s0, %s165
      %p167 = pneg %p48
      %p168 = pneg %p45
      %p169 = pneg %p69
      %p170 = pneg %p66
      %p171 = pneg %p97
      %p172 = pneg %p94
      %s173 = sadd.s32 %s19, %s20
      %p174 = scmp.lt.s32.totalorder %s173, 1
      %s175 = scalar_select %p174, %s173, 1
      %s176 = scalar_lea.vmem %s2, %s175
      %p177 = pneg %p125
      %p178 = pneg %p122
      %s179 = sadd.s32 %s19, %s20
      %p180 = scmp.lt.s32.totalorder %s179, 1
      %s181 = scalar_select %p180, %s179, 1
      %s182 = scalar_lea.vmem %s3, %s181
      %p183 = scmp.lt.s32.totalorder %s19, 1
      %s184 = scalar_select %p183, %s19, 1
      %s185 = smul.addr %s184, 54
      %s186 = smul.addr %s185, 4
      %s187 = scalar_lea.vmem %s0, %s186
      %s188 = sadd.s32 %s19, %s20
      %p189 = scmp.lt.s32.totalorder %s188, 1
      %s190 = scalar_select %p189, %s188, 1
      %s191 = scalar_lea.vmem %s2, %s190
      %s192 = sadd.s32 %s19, %s20
      %s193 = sadd.s32 %s19, %s20
      %p194 = scmp.lt.s32.totalorder %s193, 1
      %s195 = scalar_select %p194, %s193, 1
      %s196 = scalar_lea.vmem %s3, %s195
      %s197 = sadd.s32 %s19, %s20
      %s199 = smul.u32 %s20, 16
      %s200 = smul.u32 %s199, 3
      %s201 = smul.addr %s200, 4
      %s202 = scalar_lea.vmem %s187, %s201
      %v203 = vld [vmem:[%s202] sm:$0xf]
      %v204 = vld [vmem:[%s202 + $0x4] sm:$0xf]
      %v205 = vld [vmem:[%s202 + $0xc] sm:$0xf]
      %v206 = vld [vmem:[%s202 + $0x10] sm:$0xf]
      %v207 = vld [vmem:[%s202 + $0x18] sm:$0xf]
      %v208 = vld [vmem:[%s202 + $0x1c] sm:$0xf]
      %v209 = vld [vmem:[%s202 + $0x24] sm:$0xf]
      %v210 = vld [vmem:[%s202 + $0x28] sm:$0xf]
      %v211 = vld [vmem:[%s202 + $0x30] sm:$0xf]
      %v212 = vld [vmem:[%s202 + $0x34] sm:$0xf]
      %v213 = vld [vmem:[%s202 + $0x3c] sm:$0xf]
      %v214 = vld [vmem:[%s202 + $0x40] sm:$0xf]
      %v215 = vld [vmem:[%s202 + $0x48] sm:$0xf]
      %v216 = vld [vmem:[%s202 + $0x4c] sm:$0xf]
      %v217 = vld [vmem:[%s202 + $0x54] sm:$0xf]
      %v218 = vld [vmem:[%s202 + $0x58] sm:$0xf]
      %v219 = vld [vmem:[%s202 + $0x60] sm:$0xf]
      %v220 = vld [vmem:[%s202 + $0x64] sm:$0xf]
      %v221 = vld [vmem:[%s202 + $0x6c] sm:$0xf]
      %v222 = vld [vmem:[%s202 + $0x70] sm:$0xf]
      %v223 = vld [vmem:[%s202 + $0x78] sm:$0xf]
      %v224 = vld [vmem:[%s202 + $0x7c] sm:$0xf]
      %v225 = vld [vmem:[%s202 + $0x84] sm:$0xf]
      %v226 = vld [vmem:[%s202 + $0x88] sm:$0xf]
      %v227 = vld [vmem:[%s202 + $0x90] sm:$0xf]
      %v228 = vld [vmem:[%s202 + $0x94] sm:$0xf]
      %v229 = vld [vmem:[%s202 + $0x9c] sm:$0xf]
      %v230 = vld [vmem:[%s202 + $0xa0] sm:$0xf]
      %v231 = vld [vmem:[%s202 + $0xa8] sm:$0xf]
      %v232 = vld [vmem:[%s202 + $0xac] sm:$0xf]
      %v233 = vld [vmem:[%s202 + $0xb4] sm:$0xf]
      %v234 = vld [vmem:[%s202 + $0xb8] sm:$0xf]
      %v235 = vld [vmem:[%s1] sm:$0x3]
      %v236 = vld [vmem:[%s202 + $0x8] sm:$0x1]
      %v237 = vld [vmem:[%s202 + $0x14] sm:$0x1]
      %v238 = vld [vmem:[%s202 + $0x20] sm:$0x1]
      %v239 = vld [vmem:[%s202 + $0x2c] sm:$0x1]
      %v240 = vld [vmem:[%s202 + $0x38] sm:$0x1]
      %v241 = vld [vmem:[%s202 + $0x44] sm:$0x1]
      %v242 = vld [vmem:[%s202 + $0x50] sm:$0x1]
      %v243 = vld [vmem:[%s202 + $0x5c] sm:$0x1]
      %v244 = vld [vmem:[%s202 + $0x68] sm:$0x1]
      %v245 = vld [vmem:[%s202 + $0x74] sm:$0x1]
      %v246 = vld [vmem:[%s202 + $0x80] sm:$0x1]
      %v247 = vld [vmem:[%s202 + $0x8c] sm:$0x1]
      %v248 = vld [vmem:[%s202 + $0x98] sm:$0x1]
      %v249 = vld [vmem:[%s202 + $0xa4] sm:$0x1]
      %v250 = vld [vmem:[%s202 + $0xb0] sm:$0x1]
      %v251 = vld [vmem:[%s202 + $0xbc] sm:$0x1]
      %vm252 = vsmask.f32 3328
      %vm253 = vsmask.f32 7440
      %vm254 = vmor %vm252, %vm253
      %v256 = vshrl.u32 %v203, 16
      %v258 = vrot.slane %v256, 4
      %v259 = vshll.u32 %v203, 16
      %v261 = vrot.slane %v259, 5
      %v262 = vor.u32 %v258, %v261
      %v263 = vrot.slane %v262, 4
      %v265 = vshll.u32 %v204, 16
      %v267 = vrot.slane %v265, 5
      %v268 = vsel %vm254, %v263, %v267
      %v269 = vshrl.u32 %v204, 16
      %v271 = vrot.slane %v269, 4
      %v272 = vor.u32 %v271, %v267
      %v273 = vrot.slane %v272, 4
      %v275 = vshll.u32 %v236, 16
      %v277 = vrot.slane %v275, 5
      %v278 = vsel %vm254, %v273, %v277
      %v280 = vshrl.u32 %v205, 16
      %v282 = vrot.slane %v280, 4
      %v283 = vshll.u32 %v205, 16
      %v285 = vrot.slane %v283, 5
      %v286 = vor.u32 %v282, %v285
      %v287 = vrot.slane %v286, 4
      %v289 = vshll.u32 %v206, 16
      %v291 = vrot.slane %v289, 5
      %v292 = vsel %vm254, %v287, %v291
      %v293 = vshrl.u32 %v206, 16
      %v295 = vrot.slane %v293, 4
      %v296 = vor.u32 %v295, %v291
      %v297 = vrot.slane %v296, 4
      %v299 = vshll.u32 %v237, 16
      %v301 = vrot.slane %v299, 5
      %v302 = vsel %vm254, %v297, %v301
      %v304 = vshrl.u32 %v207, 16
      %v306 = vrot.slane %v304, 4
      %v307 = vshll.u32 %v207, 16
      %v309 = vrot.slane %v307, 5
      %v310 = vor.u32 %v306, %v309
      %v311 = vrot.slane %v310, 4
      %v313 = vshll.u32 %v208, 16
      %v315 = vrot.slane %v313, 5
      %v316 = vsel %vm254, %v311, %v315
      %v317 = vshrl.u32 %v208, 16
      %v319 = vrot.slane %v317, 4
      %v320 = vor.u32 %v319, %v315
      %v321 = vrot.slane %v320, 4
      %v323 = vshll.u32 %v238, 16
      %v325 = vrot.slane %v323, 5
      %v326 = vsel %vm254, %v321, %v325
      %v328 = vshrl.u32 %v209, 16
      %v330 = vrot.slane %v328, 4
      %v331 = vshll.u32 %v209, 16
      %v333 = vrot.slane %v331, 5
      %v334 = vor.u32 %v330, %v333
      %v335 = vrot.slane %v334, 4
      %v337 = vshll.u32 %v210, 16
      %v339 = vrot.slane %v337, 5
      %v340 = vsel %vm254, %v335, %v339
      %v341 = vshrl.u32 %v210, 16
      %v343 = vrot.slane %v341, 4
      %v344 = vor.u32 %v343, %v339
      %v345 = vrot.slane %v344, 4
      %v347 = vshll.u32 %v239, 16
      %v349 = vrot.slane %v347, 5
      %v350 = vsel %vm254, %v345, %v349
      %v352 = vshrl.u32 %v211, 16
      %v354 = vrot.slane %v352, 4
      %v355 = vshll.u32 %v211, 16
      %v357 = vrot.slane %v355, 5
      %v358 = vor.u32 %v354, %v357
      %v359 = vrot.slane %v358, 4
      %v361 = vshll.u32 %v212, 16
      %v363 = vrot.slane %v361, 5
      %v364 = vsel %vm254, %v359, %v363
      %v365 = vshrl.u32 %v212, 16
      %v367 = vrot.slane %v365, 4
      %v368 = vor.u32 %v367, %v363
      %v369 = vrot.slane %v368, 4
      %v371 = vshll.u32 %v240, 16
      %v373 = vrot.slane %v371, 5
      %v374 = vsel %vm254, %v369, %v373
      %v376 = vshrl.u32 %v213, 16
      %v378 = vrot.slane %v376, 4
      %v379 = vshll.u32 %v213, 16
      %v381 = vrot.slane %v379, 5
      %v382 = vor.u32 %v378, %v381
      %v383 = vrot.slane %v382, 4
      %v385 = vshll.u32 %v214, 16
      %v387 = vrot.slane %v385, 5
      %v388 = vsel %vm254, %v383, %v387
      %v389 = vshrl.u32 %v214, 16
      %v391 = vrot.slane %v389, 4
      %v392 = vor.u32 %v391, %v387
      %v393 = vrot.slane %v392, 4
      %v395 = vshll.u32 %v241, 16
      %v397 = vrot.slane %v395, 5
      %v398 = vsel %vm254, %v393, %v397
      %v400 = vshrl.u32 %v215, 16
      %v402 = vrot.slane %v400, 4
      %v403 = vshll.u32 %v215, 16
      %v405 = vrot.slane %v403, 5
      %v406 = vor.u32 %v402, %v405
      %v407 = vrot.slane %v406, 4
      %v409 = vshll.u32 %v216, 16
      %v411 = vrot.slane %v409, 5
      %v412 = vsel %vm254, %v407, %v411
      %v413 = vshrl.u32 %v216, 16
      %v415 = vrot.slane %v413, 4
      %v416 = vor.u32 %v415, %v411
      %v417 = vrot.slane %v416, 4
      %v419 = vshll.u32 %v242, 16
      %v421 = vrot.slane %v419, 5
      %v422 = vsel %vm254, %v417, %v421
      %v424 = vshrl.u32 %v217, 16
      %v426 = vrot.slane %v424, 4
      %v427 = vshll.u32 %v217, 16
      %v429 = vrot.slane %v427, 5
      %v430 = vor.u32 %v426, %v429
      %v431 = vrot.slane %v430, 4
      %v433 = vshll.u32 %v218, 16
      %v435 = vrot.slane %v433, 5
      %v436 = vsel %vm254, %v431, %v435
      %v437 = vshrl.u32 %v218, 16
      %v439 = vrot.slane %v437, 4
      %v440 = vor.u32 %v439, %v435
      %v441 = vrot.slane %v440, 4
      %v443 = vshll.u32 %v243, 16
      %v445 = vrot.slane %v443, 5
      %v446 = vsel %vm254, %v441, %v445
      %v448 = vshrl.u32 %v219, 16
      %v450 = vrot.slane %v448, 4
      %v451 = vshll.u32 %v219, 16
      %v453 = vrot.slane %v451, 5
      %v454 = vor.u32 %v450, %v453
      %v455 = vrot.slane %v454, 4
      %v457 = vshll.u32 %v220, 16
      %v459 = vrot.slane %v457, 5
      %v460 = vsel %vm254, %v455, %v459
      %v461 = vshrl.u32 %v220, 16
      %v463 = vrot.slane %v461, 4
      %v464 = vor.u32 %v463, %v459
      %v465 = vrot.slane %v464, 4
      %v467 = vshll.u32 %v244, 16
      %v469 = vrot.slane %v467, 5
      %v470 = vsel %vm254, %v465, %v469
      %v472 = vshrl.u32 %v221, 16
      %v474 = vrot.slane %v472, 4
      %v475 = vshll.u32 %v221, 16
      %v477 = vrot.slane %v475, 5
      %v478 = vor.u32 %v474, %v477
      %v479 = vrot.slane %v478, 4
      %v481 = vshll.u32 %v222, 16
      %v483 = vrot.slane %v481, 5
      %v484 = vsel %vm254, %v479, %v483
      %v485 = vshrl.u32 %v222, 16
      %v487 = vrot.slane %v485, 4
      %v488 = vor.u32 %v487, %v483
      %v489 = vrot.slane %v488, 4
      %v491 = vshll.u32 %v245, 16
      %v493 = vrot.slane %v491, 5
      %v494 = vsel %vm254, %v489, %v493
      %v496 = vshrl.u32 %v223, 16
      %v498 = vrot.slane %v496, 4
      %v499 = vshll.u32 %v223, 16
      %v501 = vrot.slane %v499, 5
      %v502 = vor.u32 %v498, %v501
      %v503 = vrot.slane %v502, 4
      %v505 = vshll.u32 %v224, 16
      %v507 = vrot.slane %v505, 5
      %v508 = vsel %vm254, %v503, %v507
      %v509 = vshrl.u32 %v224, 16
      %v511 = vrot.slane %v509, 4
      %v512 = vor.u32 %v511, %v507
      %v513 = vrot.slane %v512, 4
      %v515 = vshll.u32 %v246, 16
      %v517 = vrot.slane %v515, 5
      %v518 = vsel %vm254, %v513, %v517
      %v520 = vshrl.u32 %v225, 16
      %v522 = vrot.slane %v520, 4
      %v523 = vshll.u32 %v225, 16
      %v525 = vrot.slane %v523, 5
      %v526 = vor.u32 %v522, %v525
      %v527 = vrot.slane %v526, 4
      %v529 = vshll.u32 %v226, 16
      %v531 = vrot.slane %v529, 5
      %v532 = vsel %vm254, %v527, %v531
      %v533 = vshrl.u32 %v226, 16
      %v535 = vrot.slane %v533, 4
      %v536 = vor.u32 %v535, %v531
      %v537 = vrot.slane %v536, 4
      %v539 = vshll.u32 %v247, 16
      %v541 = vrot.slane %v539, 5
      %v542 = vsel %vm254, %v537, %v541
      %v544 = vshrl.u32 %v227, 16
      %v546 = vrot.slane %v544, 4
      %v547 = vshll.u32 %v227, 16
      %v549 = vrot.slane %v547, 5
      %v550 = vor.u32 %v546, %v549
      %v551 = vrot.slane %v550, 4
      %v553 = vshll.u32 %v228, 16
      %v555 = vrot.slane %v553, 5
      %v556 = vsel %vm254, %v551, %v555
      %v557 = vshrl.u32 %v228, 16
      %v559 = vrot.slane %v557, 4
      %v560 = vor.u32 %v559, %v555
      %v561 = vrot.slane %v560, 4
      %v563 = vshll.u32 %v248, 16
      %v565 = vrot.slane %v563, 5
      %v566 = vsel %vm254, %v561, %v565
      %v568 = vshrl.u32 %v229, 16
      %v570 = vrot.slane %v568, 4
      %v571 = vshll.u32 %v229, 16
      %v573 = vrot.slane %v571, 5
      %v574 = vor.u32 %v570, %v573
      %v575 = vrot.slane %v574, 4
      %v577 = vshll.u32 %v230, 16
      %v579 = vrot.slane %v577, 5
      %v580 = vsel %vm254, %v575, %v579
      %v581 = vshrl.u32 %v230, 16
      %v583 = vrot.slane %v581, 4
      %v584 = vor.u32 %v583, %v579
      %v585 = vrot.slane %v584, 4
      %v587 = vshll.u32 %v249, 16
      %v589 = vrot.slane %v587, 5
      %v590 = vsel %vm254, %v585, %v589
      %v592 = vshrl.u32 %v231, 16
      %v594 = vrot.slane %v592, 4
      %v595 = vshll.u32 %v231, 16
      %v597 = vrot.slane %v595, 5
      %v598 = vor.u32 %v594, %v597
      %v599 = vrot.slane %v598, 4
      %v601 = vshll.u32 %v232, 16
      %v603 = vrot.slane %v601, 5
      %v604 = vsel %vm254, %v599, %v603
      %v605 = vshrl.u32 %v232, 16
      %v607 = vrot.slane %v605, 4
      %v608 = vor.u32 %v607, %v603
      %v609 = vrot.slane %v608, 4
      %v611 = vshll.u32 %v250, 16
      %v613 = vrot.slane %v611, 5
      %v614 = vsel %vm254, %v609, %v613
      %v616 = vshrl.u32 %v233, 16
      %v618 = vrot.slane %v616, 4
      %v619 = vshll.u32 %v233, 16
      %v621 = vrot.slane %v619, 5
      %v622 = vor.u32 %v618, %v621
      %v623 = vrot.slane %v622, 4
      %v625 = vshll.u32 %v234, 16
      %v627 = vrot.slane %v625, 5
      %v628 = vsel %vm254, %v623, %v627
      %v629 = vshrl.u32 %v234, 16
      %v631 = vrot.slane %v629, 4
      %v632 = vor.u32 %v631, %v627
      %v633 = vrot.slane %v632, 4
      %v635 = vshll.u32 %v251, 16
      %v637 = vrot.slane %v635, 5
      %v638 = vsel %vm254, %v633, %v637
      %s639 = scalar_lea.vmem %s1, 2
      %v640 = vld [vmem:[%s639] sm:$0x3]
      %v641 = vunpack.c.l.b16 %v268
      %v642 = vunpack.c.l.b16 %v278
      %v643 = vunpack.c.l.b16 %v292
      %v644 = vunpack.c.l.b16 %v302
      %v645 = vunpack.c.l.b16 %v316
      %v646 = vunpack.c.l.b16 %v326
      %v647 = vunpack.c.l.b16 %v340
      %v648 = vunpack.c.l.b16 %v350
      %v649 = vunpack.c.l.b16 %v364
      %v650 = vunpack.c.l.b16 %v374
      %v651 = vunpack.c.l.b16 %v388
      %v652 = vunpack.c.l.b16 %v398
      %v653 = vunpack.c.l.b16 %v412
      %v654 = vunpack.c.l.b16 %v422
      %v655 = vunpack.c.l.b16 %v436
      %v656 = vunpack.c.l.b16 %v446
      %v657 = vunpack.c.l.b16 %v460
      %v658 = vunpack.c.l.b16 %v470
      %v659 = vunpack.c.l.b16 %v484
      %v660 = vunpack.c.l.b16 %v494
      %v661 = vunpack.c.l.b16 %v508
      %v662 = vunpack.c.l.b16 %v518
      %v663 = vunpack.c.l.b16 %v532
      %v664 = vunpack.c.l.b16 %v542
      %v665 = vunpack.c.l.b16 %v556
      %v666 = vunpack.c.l.b16 %v566
      %v667 = vunpack.c.l.b16 %v580
      %v668 = vunpack.c.l.b16 %v590
      %v669 = vunpack.c.l.b16 %v604
      %v670 = vunpack.c.l.b16 %v614
      %v671 = vunpack.c.l.b16 %v628
      %v672 = vunpack.c.l.b16 %v638
      %v673 = vpack.c.b16 %v642, %v641
      %v674 = vpack.c.b16 %v644, %v643
      %v675 = vpack.c.b16 %v646, %v645
      %v676 = vpack.c.b16 %v648, %v647
      %v677 = vpack.c.b16 %v650, %v649
      %v678 = vpack.c.b16 %v652, %v651
      %v679 = vpack.c.b16 %v654, %v653
      %v680 = vpack.c.b16 %v656, %v655
      %v681 = vpack.c.b16 %v658, %v657
      %v682 = vpack.c.b16 %v660, %v659
      %v683 = vpack.c.b16 %v662, %v661
      %v684 = vpack.c.b16 %v664, %v663
      %v685 = vpack.c.b16 %v666, %v665
      %v686 = vpack.c.b16 %v668, %v667
      %v687 = vpack.c.b16 %v670, %v669
      %v688 = vpack.c.b16 %v672, %v671
      %vm689 = vcmask 31744
      %v691 = vsel %vm689, %v673, 0
      %v694 = vsel %vm689, %v674, 0
      %v697 = vsel %vm689, %v675, 0
      %v700 = vsel %vm689, %v676, 0
      %v703 = vsel %vm689, %v677, 0
      %v706 = vsel %vm689, %v678, 0
      %v709 = vsel %vm689, %v679, 0
      %v712 = vsel %vm689, %v680, 0
      %v715 = vsel %vm689, %v681, 0
      %v718 = vsel %vm689, %v682, 0
      %v721 = vsel %vm689, %v683, 0
      %v724 = vsel %vm689, %v684, 0
      %v727 = vsel %vm689, %v685, 0
      %v730 = vsel %vm689, %v686, 0
      %v733 = vsel %vm689, %v687, 0
      %v736 = vsel %vm689, %v688, 0
      %vm738 = vcmask 1041408
      %v740 = vsel %vm738, %v640, 0
      %742 = vmatprep.subr.bf16.mxu0 0
      %743 = vmatpush1.bf16.msra.mxu0 %v740
      %744 = vmatprep.subr.bf16.mxu0 0
      %745 = vmatpush1.bf16.msra.mxu0 0
      %746 = vmatprep.subr.bf16.mxu0 0
      %747 = vmatpush1.bf16.msra.mxu0 0
      %748 = vmatprep.subr.bf16.mxu0 0
      %749 = vmatpush1.bf16.msra.mxu0 0
      %750 = vmatprep.subr.bf16.mxu0 0
      %751 = vmatpush1.bf16.msra.mxu0 0
      %752 = vmatprep.subr.bf16.mxu0 0
      %753 = vmatpush1.bf16.msra.mxu0 0
      %754 = vmatprep.subr.bf16.mxu0 0
      %755 = vmatpush1.bf16.msra.mxu0 0
      %756 = vmatprep.subr.bf16.mxu0 0
      %757 = vmatpush1.bf16.msra.mxu0 0
      %758 = vmatprep.subr.bf16.mxu0 0
      %759 = vmatpush1.bf16.msra.mxu0 0
      %760 = vmatprep.subr.bf16.mxu0 0
      %761 = vmatpush1.bf16.msra.mxu0 0
      %762 = vmatprep.subr.bf16.mxu0 0
      %763 = vmatpush1.bf16.msra.mxu0 0
      %764 = vmatprep.subr.bf16.mxu0 0
      %765 = vmatpush1.bf16.msra.mxu0 0
      %766 = vmatprep.subr.bf16.mxu0 0
      %767 = vmatpush1.bf16.msra.mxu0 0
      %768 = vmatprep.subr.bf16.mxu0 0
      %769 = vmatpush1.bf16.msra.mxu0 0
      %770 = vmatprep.subr.bf16.mxu0 0
      %771 = vmatpush1.bf16.msra.mxu0 0
      %772 = vmatprep.subr.bf16.mxu0 0
      %773 = vmatpush1.bf16.msra.mxu0 0
      %774 = vmatprep.mubr.bf16.mxu0 0
      %775 = vmatmul.mubr.bf16.gmra.mrb[0].mxu0 %v691
      %v776 = vpop.f32.mrb[0].mxu0
      %v777 = vadd.f32 0.0, %v776
      %v778 = vpop.f32.mrb[0].mxu0
      %v779 = vpop.f32.mrb[0].mxu0
      %v780 = vadd.f32 0.0, %v779
      %v781 = vpop.f32.mrb[0].mxu0
      %782 = vmatprep.mubr.bf16.mxu0 0
      %783 = vmatmul.mubr.bf16.gmra.mrb[0].mxu0 %v694
      %v784 = vpop.f32.mrb[0].mxu0
      %v785 = vadd.f32 0.0, %v784
      %v786 = vpop.f32.mrb[0].mxu0
      %v787 = vpop.f32.mrb[0].mxu0
      %v788 = vadd.f32 0.0, %v787
      %v789 = vpop.f32.mrb[0].mxu0
      %790 = vmatprep.mubr.bf16.mxu0 0
      %791 = vmatmul.mubr.bf16.gmra.mrb[0].mxu0 %v697
      %v792 = vpop.f32.mrb[0].mxu0
      %v793 = vadd.f32 0.0, %v792
      %v794 = vpop.f32.mrb[0].mxu0
      %v795 = vpop.f32.mrb[0].mxu0
      %v796 = vadd.f32 0.0, %v795
      %v797 = vpop.f32.mrb[0].mxu0
      %798 = vmatprep.mubr.bf16.mxu0 0
      %799 = vmatmul.mubr.bf16.gmra.mrb[0].mxu0 %v700
      %v800 = vpop.f32.mrb[0].mxu0
      %v801 = vadd.f32 0.0, %v800
      %v802 = vpop.f32.mrb[0].mxu0
      %v803 = vpop.f32.mrb[0].mxu0
      %v804 = vadd.f32 0.0, %v803
      %v805 = vpop.f32.mrb[0].mxu0
      %806 = vmatprep.mubr.bf16.mxu0 0
      %807 = vmatmul.mubr.bf16.gmra.mrb[0].mxu0 %v703
      %v808 = vpop.f32.mrb[0].mxu0
      %v809 = vadd.f32 0.0, %v808
      %v810 = vpop.f32.mrb[0].mxu0
      %v811 = vpop.f32.mrb[0].mxu0
      %v812 = vadd.f32 0.0, %v811
      %v813 = vpop.f32.mrb[0].mxu0
      %814 = vmatprep.mubr.bf16.mxu0 0
      %815 = vmatmul.mubr.bf16.gmra.mrb[0].mxu0 %v706
      %v816 = vpop.f32.mrb[0].mxu0
      %v817 = vadd.f32 0.0, %v816
      %v818 = vpop.f32.mrb[0].mxu0
      %v819 = vpop.f32.mrb[0].mxu0
      %v820 = vadd.f32 0.0, %v819
      %v821 = vpop.f32.mrb[0].mxu0
      %822 = vmatprep.mubr.bf16.mxu0 0
      %823 = vmatmul.mubr.bf16.gmra.mrb[0].mxu0 %v709
      %v824 = vpop.f32.mrb[0].mxu0
      %v825 = vadd.f32 0.0, %v824
      %v826 = vpop.f32.mrb[0].mxu0
      %v827 = vpop.f32.mrb[0].mxu0
      %v828 = vadd.f32 0.0, %v827
      %v829 = vpop.f32.mrb[0].mxu0
      %830 = vmatprep.mubr.bf16.mxu0 0
      %831 = vmatmul.mubr.bf16.gmra.mrb[0].mxu0 %v712
      %v832 = vpop.f32.mrb[0].mxu0
      %v833 = vadd.f32 0.0, %v832
      %v834 = vpop.f32.mrb[0].mxu0
      %v835 = vpop.f32.mrb[0].mxu0
      %v836 = vadd.f32 0.0, %v835
      %v837 = vpop.f32.mrb[0].mxu0
      %838 = vmatprep.mubr.bf16.mxu0 0
      %839 = vmatmul.mubr.bf16.gmra.mrb[0].mxu0 %v715
      %v840 = vpop.f32.mrb[0].mxu0
      %v841 = vadd.f32 0.0, %v840
      %v842 = vpop.f32.mrb[0].mxu0
      %v843 = vpop.f32.mrb[0].mxu0
      %v844 = vadd.f32 0.0, %v843
      %v845 = vpop.f32.mrb[0].mxu0
      %846 = vmatprep.mubr.bf16.mxu0 0
      %847 = vmatmul.mubr.bf16.gmra.mrb[0].mxu0 %v718
      %v848 = vpop.f32.mrb[0].mxu0
      %v849 = vadd.f32 0.0, %v848
      %v850 = vpop.f32.mrb[0].mxu0
      %v851 = vpop.f32.mrb[0].mxu0
      %v852 = vadd.f32 0.0, %v851
      %v853 = vpop.f32.mrb[0].mxu0
      %854 = vmatprep.mubr.bf16.mxu0 0
      %855 = vmatmul.mubr.bf16.gmra.mrb[0].mxu0 %v721
      %v856 = vpop.f32.mrb[0].mxu0
      %v857 = vadd.f32 0.0, %v856
      %v858 = vpop.f32.mrb[0].mxu0
      %v859 = vpop.f32.mrb[0].mxu0
      %v860 = vadd.f32 0.0, %v859
      %v861 = vpop.f32.mrb[0].mxu0
      %862 = vmatprep.mubr.bf16.mxu0 0
      %863 = vmatmul.mubr.bf16.gmra.mrb[0].mxu0 %v724
      %v864 = vpop.f32.mrb[0].mxu0
      %v865 = vadd.f32 0.0, %v864
      %v866 = vpop.f32.mrb[0].mxu0
      %v867 = vpop.f32.mrb[0].mxu0
      %v868 = vadd.f32 0.0, %v867
      %v869 = vpop.f32.mrb[0].mxu0
      %870 = vmatprep.mubr.bf16.mxu0 0
      %871 = vmatmul.mubr.bf16.gmra.mrb[0].mxu0 %v727
      %v872 = vpop.f32.mrb[0].mxu0
      %v873 = vadd.f32 0.0, %v872
      %v874 = vpop.f32.mrb[0].mxu0
      %v875 = vpop.f32.mrb[0].mxu0
      %v876 = vadd.f32 0.0, %v875
      %v877 = vpop.f32.mrb[0].mxu0
      %878 = vmatprep.mubr.bf16.mxu0 0
      %879 = vmatmul.mubr.bf16.gmra.mrb[0].mxu0 %v730
      %v880 = vpop.f32.mrb[0].mxu0
      %v881 = vadd.f32 0.0, %v880
      %v882 = vpop.f32.mrb[0].mxu0
      %v883 = vpop.f32.mrb[0].mxu0
      %v884 = vadd.f32 0.0, %v883
      %v885 = vpop.f32.mrb[0].mxu0
      %886 = vmatprep.mubr.bf16.mxu0 0
      %887 = vmatmul.mubr.bf16.gmra.mrb[0].mxu0 %v733
      %v888 = vpop.f32.mrb[0].mxu0
      %v889 = vadd.f32 0.0, %v888
      %v890 = vpop.f32.mrb[0].mxu0
      %v891 = vpop.f32.mrb[0].mxu0
      %v892 = vadd.f32 0.0, %v891
      %v893 = vpop.f32.mrb[0].mxu0
      %894 = vmatprep.mubr.bf16.mxu0 0
      %895 = vmatmul.mubr.bf16.gmra.mrb[0].mxu0 %v736
      %v896 = vpop.f32.mrb[0].mxu0
      %v897 = vadd.f32 0.0, %v896
      %v898 = vpop.f32.mrb[0].mxu0
      %v899 = vpop.f32.mrb[0].mxu0
      %v900 = vadd.f32 0.0, %v899
      %v901 = vpop.f32.mrb[0].mxu0
      %902 = vdwg.mxu0
      %v935 = vunpack.c.l.b16 %v203
      %v936 = vunpack.c.l.b16 %v204
      %v937 = vunpack.c.l.b16 %v205
      %v938 = vunpack.c.l.b16 %v206
      %v939 = vunpack.c.l.b16 %v207
      %v940 = vunpack.c.l.b16 %v208
      %v941 = vunpack.c.l.b16 %v209
      %v942 = vunpack.c.l.b16 %v210
      %v943 = vunpack.c.l.b16 %v211
      %v944 = vunpack.c.l.b16 %v212
      %v945 = vunpack.c.l.b16 %v213
      %v946 = vunpack.c.l.b16 %v214
      %v947 = vunpack.c.l.b16 %v215
      %v948 = vunpack.c.l.b16 %v216
      %v949 = vunpack.c.l.b16 %v217
      %v950 = vunpack.c.l.b16 %v218
      %v951 = vunpack.c.l.b16 %v219
      %v952 = vunpack.c.l.b16 %v220
      %v953 = vunpack.c.l.b16 %v221
      %v954 = vunpack.c.l.b16 %v222
      %v955 = vunpack.c.l.b16 %v223
      %v956 = vunpack.c.l.b16 %v224
      %v957 = vunpack.c.l.b16 %v225
      %v958 = vunpack.c.l.b16 %v226
      %v959 = vunpack.c.l.b16 %v227
      %v960 = vunpack.c.l.b16 %v228
      %v961 = vunpack.c.l.b16 %v229
      %v962 = vunpack.c.l.b16 %v230
      %v963 = vunpack.c.l.b16 %v231
      %v964 = vunpack.c.l.b16 %v232
      %v965 = vunpack.c.l.b16 %v233
      %v966 = vunpack.c.l.b16 %v234
      %v967 = vpack.c.b16 %v936, %v935
      %v968 = vpack.c.b16 %v938, %v937
      %v969 = vpack.c.b16 %v940, %v939
      %v970 = vpack.c.b16 %v942, %v941
      %v971 = vpack.c.b16 %v944, %v943
      %v972 = vpack.c.b16 %v946, %v945
      %v973 = vpack.c.b16 %v948, %v947
      %v974 = vpack.c.b16 %v950, %v949
      %v975 = vpack.c.b16 %v952, %v951
      %v976 = vpack.c.b16 %v954, %v953
      %v977 = vpack.c.b16 %v956, %v955
      %v978 = vpack.c.b16 %v958, %v957
      %v979 = vpack.c.b16 %v960, %v959
      %v980 = vpack.c.b16 %v962, %v961
      %v981 = vpack.c.b16 %v964, %v963
      %v982 = vpack.c.b16 %v966, %v965
      %v984 = vsel %vm689, %v967, 0
      %v987 = vsel %vm689, %v968, 0
      %v990 = vsel %vm689, %v969, 0
      %v993 = vsel %vm689, %v970, 0
      %v996 = vsel %vm689, %v971, 0
      %v999 = vsel %vm689, %v972, 0
      %v1002 = vsel %vm689, %v973, 0
      %v1005 = vsel %vm689, %v974, 0
      %v1008 = vsel %vm689, %v975, 0
      %v1011 = vsel %vm689, %v976, 0
      %v1014 = vsel %vm689, %v977, 0
      %v1017 = vsel %vm689, %v978, 0
      %v1020 = vsel %vm689, %v979, 0
      %v1023 = vsel %vm689, %v980, 0
      %v1026 = vsel %vm689, %v981, 0
      %v1029 = vsel %vm689, %v982, 0
      %v1032 = vsel %vm738, %v235, 0
      %1034 = vmatprep.subr.bf16.mxu0 0
      %1035 = vmatpush1.bf16.msra.mxu0 %v1032
      %1036 = vmatprep.subr.bf16.mxu0 0
      %1037 = vmatpush1.bf16.msra.mxu0 0
      %1038 = vmatprep.subr.bf16.mxu0 0
      %1039 = vmatpush1.bf16.msra.mxu0 0
      %1040 = vmatprep.subr.bf16.mxu0 0
      %1041 = vmatpush1.bf16.msra.mxu0 0
      %1042 = vmatprep.subr.bf16.mxu0 0
      %1043 = vmatpush1.bf16.msra.mxu0 0
      %1044 = vmatprep.subr.bf16.mxu0 0
      %1045 = vmatpush1.bf16.msra.mxu0 0
      %1046 = vmatprep.subr.bf16.mxu0 0
      %1047 = vmatpush1.bf16.msra.mxu0 0
      %1048 = vmatprep.subr.bf16.mxu0 0
      %1049 = vmatpush1.bf16.msra.mxu0 0
      %1050 = vmatprep.subr.bf16.mxu0 0
      %1051 = vmatpush1.bf16.msra.mxu0 0
      %1052 = vmatprep.subr.bf16.mxu0 0
      %1053 = vmatpush1.bf16.msra.mxu0 0
      %1054 = vmatprep.subr.bf16.mxu0 0
      %1055 = vmatpush1.bf16.msra.mxu0 0
      %1056 = vmatprep.subr.bf16.mxu0 0
      %1057 = vmatpush1.bf16.msra.mxu0 0
      %1058 = vmatprep.subr.bf16.mxu0 0
      %1059 = vmatpush1.bf16.msra.mxu0 0
      %1060 = vmatprep.subr.bf16.mxu0 0
      %1061 = vmatpush1.bf16.msra.mxu0 0
      %1062 = vmatprep.subr.bf16.mxu0 0
      %1063 = vmatpush1.bf16.msra.mxu0 0
      %1064 = vmatprep.subr.bf16.mxu0 0
      %1065 = vmatpush1.bf16.msra.mxu0 0
      %1066 = vmatprep.mubr.bf16.mxu0 0
      %1067 = vmatmul.mubr.bf16.gmra.mrb[0].mxu0 %v984
      %v1068 = vpop.f32.mrb[0].mxu0
      %v1069 = vadd.f32 %v777, %v1068
      %v1070 = vpop.f32.mrb[0].mxu0
      %v1071 = vpop.f32.mrb[0].mxu0
      %v1072 = vadd.f32 %v780, %v1071
      %v1073 = vpop.f32.mrb[0].mxu0
      %1074 = vmatprep.mubr.bf16.mxu0 0
      %1075 = vmatmul.mubr.bf16.gmra.mrb[0].mxu0 %v987
      %v1076 = vpop.f32.mrb[0].mxu0
      %v1077 = vadd.f32 %v785, %v1076
      %v1078 = vpop.f32.mrb[0].mxu0
      %v1079 = vpop.f32.mrb[0].mxu0
      %v1080 = vadd.f32 %v788, %v1079
      %v1081 = vpop.f32.mrb[0].mxu0
      %1082 = vmatprep.mubr.bf16.mxu0 0
      %1083 = vmatmul.mubr.bf16.gmra.mrb[0].mxu0 %v990
      %v1084 = vpop.f32.mrb[0].mxu0
      %v1085 = vadd.f32 %v793, %v1084
      %v1086 = vpop.f32.mrb[0].mxu0
      %v1087 = vpop.f32.mrb[0].mxu0
      %v1088 = vadd.f32 %v796, %v1087
      %v1089 = vpop.f32.mrb[0].mxu0
      %1090 = vmatprep.mubr.bf16.mxu0 0
      %1091 = vmatmul.mubr.bf16.gmra.mrb[0].mxu0 %v993
      %v1092 = vpop.f32.mrb[0].mxu0
      %v1093 = vadd.f32 %v801, %v1092
      %v1094 = vpop.f32.mrb[0].mxu0
      %v1095 = vpop.f32.mrb[0].mxu0
      %v1096 = vadd.f32 %v804, %v1095
      %v1097 = vpop.f32.mrb[0].mxu0
      %1098 = vmatprep.mubr.bf16.mxu0 0
      %1099 = vmatmul.mubr.bf16.gmra.mrb[0].mxu0 %v996
      %v1100 = vpop.f32.mrb[0].mxu0
      %v1101 = vadd.f32 %v809, %v1100
      %v1102 = vpop.f32.mrb[0].mxu0
      %v1103 = vpop.f32.mrb[0].mxu0
      %v1104 = vadd.f32 %v812, %v1103
      %v1105 = vpop.f32.mrb[0].mxu0
      %1106 = vmatprep.mubr.bf16.mxu0 0
      %1107 = vmatmul.mubr.bf16.gmra.mrb[0].mxu0 %v999
      %v1108 = vpop.f32.mrb[0].mxu0
      %v1109 = vadd.f32 %v817, %v1108
      %v1110 = vpop.f32.mrb[0].mxu0
      %v1111 = vpop.f32.mrb[0].mxu0
      %v1112 = vadd.f32 %v820, %v1111
      %v1113 = vpop.f32.mrb[0].mxu0
      %1114 = vmatprep.mubr.bf16.mxu0 0
      %1115 = vmatmul.mubr.bf16.gmra.mrb[0].mxu0 %v1002
      %v1116 = vpop.f32.mrb[0].mxu0
      %v1117 = vadd.f32 %v825, %v1116
      %v1118 = vpop.f32.mrb[0].mxu0
      %v1119 = vpop.f32.mrb[0].mxu0
      %v1120 = vadd.f32 %v828, %v1119
      %v1121 = vpop.f32.mrb[0].mxu0
      %1122 = vmatprep.mubr.bf16.mxu0 0
      %1123 = vmatmul.mubr.bf16.gmra.mrb[0].mxu0 %v1005
      %v1124 = vpop.f32.mrb[0].mxu0
      %v1125 = vadd.f32 %v833, %v1124
      %v1126 = vpop.f32.mrb[0].mxu0
      %v1127 = vpop.f32.mrb[0].mxu0
      %v1128 = vadd.f32 %v836, %v1127
      %v1129 = vpop.f32.mrb[0].mxu0
      %1130 = vmatprep.mubr.bf16.mxu0 0
      %1131 = vmatmul.mubr.bf16.gmra.mrb[0].mxu0 %v1008
      %v1132 = vpop.f32.mrb[0].mxu0
      %v1133 = vadd.f32 %v841, %v1132
      %v1134 = vpop.f32.mrb[0].mxu0
      %v1135 = vpop.f32.mrb[0].mxu0
      %v1136 = vadd.f32 %v844, %v1135
      %v1137 = vpop.f32.mrb[0].mxu0
      %1138 = vmatprep.mubr.bf16.mxu0 0
      %1139 = vmatmul.mubr.bf16.gmra.mrb[0].mxu0 %v1011
      %v1140 = vpop.f32.mrb[0].mxu0
      %v1141 = vadd.f32 %v849, %v1140
      %v1142 = vpop.f32.mrb[0].mxu0
      %v1143 = vpop.f32.mrb[0].mxu0
      %v1144 = vadd.f32 %v852, %v1143
      %v1145 = vpop.f32.mrb[0].mxu0
      %1146 = vmatprep.mubr.bf16.mxu0 0
      %1147 = vmatmul.mubr.bf16.gmra.mrb[0].mxu0 %v1014
      %v1148 = vpop.f32.mrb[0].mxu0
      %v1149 = vadd.f32 %v857, %v1148
      %v1150 = vpop.f32.mrb[0].mxu0
      %v1151 = vpop.f32.mrb[0].mxu0
      %v1152 = vadd.f32 %v860, %v1151
      %v1153 = vpop.f32.mrb[0].mxu0
      %1154 = vmatprep.mubr.bf16.mxu0 0
      %1155 = vmatmul.mubr.bf16.gmra.mrb[0].mxu0 %v1017
      %v1156 = vpop.f32.mrb[0].mxu0
      %v1157 = vadd.f32 %v865, %v1156
      %v1158 = vpop.f32.mrb[0].mxu0
      %v1159 = vpop.f32.mrb[0].mxu0
      %v1160 = vadd.f32 %v868, %v1159
      %v1161 = vpop.f32.mrb[0].mxu0
      %1162 = vmatprep.mubr.bf16.mxu0 0
      %1163 = vmatmul.mubr.bf16.gmra.mrb[0].mxu0 %v1020
      %v1164 = vpop.f32.mrb[0].mxu0
      %v1165 = vadd.f32 %v873, %v1164
      %v1166 = vpop.f32.mrb[0].mxu0
      %v1167 = vpop.f32.mrb[0].mxu0
      %v1168 = vadd.f32 %v876, %v1167
      %v1169 = vpop.f32.mrb[0].mxu0
      %1170 = vmatprep.mubr.bf16.mxu0 0
      %1171 = vmatmul.mubr.bf16.gmra.mrb[0].mxu0 %v1023
      %v1172 = vpop.f32.mrb[0].mxu0
      %v1173 = vadd.f32 %v881, %v1172
      %v1174 = vpop.f32.mrb[0].mxu0
      %v1175 = vpop.f32.mrb[0].mxu0
      %v1176 = vadd.f32 %v884, %v1175
      %v1177 = vpop.f32.mrb[0].mxu0
      %1178 = vmatprep.mubr.bf16.mxu0 0
      %1179 = vmatmul.mubr.bf16.gmra.mrb[0].mxu0 %v1026
      %v1180 = vpop.f32.mrb[0].mxu0
      %v1181 = vadd.f32 %v889, %v1180
      %v1182 = vpop.f32.mrb[0].mxu0
      %v1183 = vpop.f32.mrb[0].mxu0
      %v1184 = vadd.f32 %v892, %v1183
      %v1185 = vpop.f32.mrb[0].mxu0
      %1186 = vmatprep.mubr.bf16.mxu0 0
      %1187 = vmatmul.mubr.bf16.gmra.mrb[0].mxu0 %v1029
      %v1188 = vpop.f32.mrb[0].mxu0
      %v1189 = vadd.f32 %v897, %v1188
      %v1190 = vpop.f32.mrb[0].mxu0
      %v1191 = vpop.f32.mrb[0].mxu0
      %v1192 = vadd.f32 %v900, %v1191
      %v1193 = vpop.f32.mrb[0].mxu0
      %1194 = vdwg.mxu0
      %v1195 = vld [vmem:[%s202] sm:$0xe]
      %v1196 = vld [vmem:[%s202 + $0xc] sm:$0xe]
      %v1197 = vld [vmem:[%s202 + $0x18] sm:$0xe]
      %v1198 = vld [vmem:[%s202 + $0x24] sm:$0xe]
      %v1199 = vld [vmem:[%s202 + $0x30] sm:$0xe]
      %v1200 = vld [vmem:[%s202 + $0x3c] sm:$0xe]
      %v1201 = vld [vmem:[%s202 + $0x48] sm:$0xe]
      %v1202 = vld [vmem:[%s202 + $0x54] sm:$0xe]
      %v1203 = vld [vmem:[%s202 + $0x60] sm:$0xe]
      %v1204 = vld [vmem:[%s202 + $0x6c] sm:$0xe]
      %v1205 = vld [vmem:[%s202 + $0x78] sm:$0xe]
      %v1206 = vld [vmem:[%s202 + $0x84] sm:$0xe]
      %v1207 = vld [vmem:[%s202 + $0x90] sm:$0xe]
      %v1208 = vld [vmem:[%s202 + $0x9c] sm:$0xe]
      %v1209 = vld [vmem:[%s202 + $0xa8] sm:$0xe]
      %v1210 = vld [vmem:[%s202 + $0xb4] sm:$0xe]
      %vm1243 = vcmask 1042432
      %vm1244 = vcmask 1046532
      %vm1245 = vmor %vm1243, %vm1244
      %v1246 = vrot.slane %v1195, 5
      %v1247 = vrot.slane %v1246, 4
      %v1248 = vrot.slane %v204, 5
      %v1249 = vsel %vm1245, %v1247, %v1248
      %v1250 = vrot.slane %v1248, 4
      %v1251 = vrot.slane %v236, 5
      %v1252 = vsel %vm1245, %v1250, %v1251
      %v1253 = vrot.slane %v1196, 5
      %v1254 = vrot.slane %v1253, 4
      %v1255 = vrot.slane %v206, 5
      %v1256 = vsel %vm1245, %v1254, %v1255
      %v1257 = vrot.slane %v1255, 4
      %v1258 = vrot.slane %v237, 5
      %v1259 = vsel %vm1245, %v1257, %v1258
      %v1260 = vrot.slane %v1197, 5
      %v1261 = vrot.slane %v1260, 4
      %v1262 = vrot.slane %v208, 5
      %v1263 = vsel %vm1245, %v1261, %v1262
      %v1264 = vrot.slane %v1262, 4
      %v1265 = vrot.slane %v238, 5
      %v1266 = vsel %vm1245, %v1264, %v1265
      %v1267 = vrot.slane %v1198, 5
      %v1268 = vrot.slane %v1267, 4
      %v1269 = vrot.slane %v210, 5
      %v1270 = vsel %vm1245, %v1268, %v1269
      %v1271 = vrot.slane %v1269, 4
      %v1272 = vrot.slane %v239, 5
      %v1273 = vsel %vm1245, %v1271, %v1272
      %v1274 = vrot.slane %v1199, 5
      %v1275 = vrot.slane %v1274, 4
      %v1276 = vrot.slane %v212, 5
      %v1277 = vsel %vm1245, %v1275, %v1276
      %v1278 = vrot.slane %v1276, 4
      %v1279 = vrot.slane %v240, 5
      %v1280 = vsel %vm1245, %v1278, %v1279
      %v1281 = vrot.slane %v1200, 5
      %v1282 = vrot.slane %v1281, 4
      %v1283 = vrot.slane %v214, 5
      %v1284 = vsel %vm1245, %v1282, %v1283
      %v1285 = vrot.slane %v1283, 4
      %v1286 = vrot.slane %v241, 5
      %v1287 = vsel %vm1245, %v1285, %v1286
      %v1288 = vrot.slane %v1201, 5
      %v1289 = vrot.slane %v1288, 4
      %v1290 = vrot.slane %v216, 5
      %v1291 = vsel %vm1245, %v1289, %v1290
      %v1292 = vrot.slane %v1290, 4
      %v1293 = vrot.slane %v242, 5
      %v1294 = vsel %vm1245, %v1292, %v1293
      %v1295 = vrot.slane %v1202, 5
      %v1296 = vrot.slane %v1295, 4
      %v1297 = vrot.slane %v218, 5
      %v1298 = vsel %vm1245, %v1296, %v1297
      %v1299 = vrot.slane %v1297, 4
      %v1300 = vrot.slane %v243, 5
      %v1301 = vsel %vm1245, %v1299, %v1300
      %v1302 = vrot.slane %v1203, 5
      %v1303 = vrot.slane %v1302, 4
      %v1304 = vrot.slane %v220, 5
      %v1305 = vsel %vm1245, %v1303, %v1304
      %v1306 = vrot.slane %v1304, 4
      %v1307 = vrot.slane %v244, 5
      %v1308 = vsel %vm1245, %v1306, %v1307
      %v1309 = vrot.slane %v1204, 5
      %v1310 = vrot.slane %v1309, 4
      %v1311 = vrot.slane %v222, 5
      %v1312 = vsel %vm1245, %v1310, %v1311
      %v1313 = vrot.slane %v1311, 4
      %v1314 = vrot.slane %v245, 5
      %v1315 = vsel %vm1245, %v1313, %v1314
      %v1316 = vrot.slane %v1205, 5
      %v1317 = vrot.slane %v1316, 4
      %v1318 = vrot.slane %v224, 5
      %v1319 = vsel %vm1245, %v1317, %v1318
      %v1320 = vrot.slane %v1318, 4
      %v1321 = vrot.slane %v246, 5
      %v1322 = vsel %vm1245, %v1320, %v1321
      %v1323 = vrot.slane %v1206, 5
      %v1324 = vrot.slane %v1323, 4
      %v1325 = vrot.slane %v226, 5
      %v1326 = vsel %vm1245, %v1324, %v1325
      %v1327 = vrot.slane %v1325, 4
      %v1328 = vrot.slane %v247, 5
      %v1329 = vsel %vm1245, %v1327, %v1328
      %v1330 = vrot.slane %v1207, 5
      %v1331 = vrot.slane %v1330, 4
      %v1332 = vrot.slane %v228, 5
      %v1333 = vsel %vm1245, %v1331, %v1332
      %v1334 = vrot.slane %v1332, 4
      %v1335 = vrot.slane %v248, 5
      %v1336 = vsel %vm1245, %v1334, %v1335
      %v1337 = vrot.slane %v1208, 5
      %v1338 = vrot.slane %v1337, 4
      %v1339 = vrot.slane %v230, 5
      %v1340 = vsel %vm1245, %v1338, %v1339
      %v1341 = vrot.slane %v1339, 4
      %v1342 = vrot.slane %v249, 5
      %v1343 = vsel %vm1245, %v1341, %v1342
      %v1344 = vrot.slane %v1209, 5
      %v1345 = vrot.slane %v1344, 4
      %v1346 = vrot.slane %v232, 5
      %v1347 = vsel %vm1245, %v1345, %v1346
      %v1348 = vrot.slane %v1346, 4
      %v1349 = vrot.slane %v250, 5
      %v1350 = vsel %vm1245, %v1348, %v1349
      %v1351 = vrot.slane %v1210, 5
      %v1352 = vrot.slane %v1351, 4
      %v1353 = vrot.slane %v234, 5
      %v1354 = vsel %vm1245, %v1352, %v1353
      %v1355 = vrot.slane %v1353, 4
      %v1356 = vrot.slane %v251, 5
      %v1357 = vsel %vm1245, %v1355, %v1356
      %s1358 = scalar_lea.vmem %s1, 4
      %v1359 = vld [vmem:[%s1358] sm:$0x3]
      %v1360 = vunpack.c.l.b16 %v1249
      %v1361 = vunpack.c.l.b16 %v1252
      %v1362 = vunpack.c.l.b16 %v1256
      %v1363 = vunpack.c.l.b16 %v1259
      %v1364 = vunpack.c.l.b16 %v1263
      %v1365 = vunpack.c.l.b16 %v1266
      %v1366 = vunpack.c.l.b16 %v1270
      %v1367 = vunpack.c.l.b16 %v1273
      %v1368 = vunpack.c.l.b16 %v1277
      %v1369 = vunpack.c.l.b16 %v1280
      %v1370 = vunpack.c.l.b16 %v1284
      %v1371 = vunpack.c.l.b16 %v1287
      %v1372 = vunpack.c.l.b16 %v1291
      %v1373 = vunpack.c.l.b16 %v1294
      %v1374 = vunpack.c.l.b16 %v1298
      %v1375 = vunpack.c.l.b16 %v1301
      %v1376 = vunpack.c.l.b16 %v1305
      %v1377 = vunpack.c.l.b16 %v1308
      %v1378 = vunpack.c.l.b16 %v1312
      %v1379 = vunpack.c.l.b16 %v1315
      %v1380 = vunpack.c.l.b16 %v1319
      %v1381 = vunpack.c.l.b16 %v1322
      %v1382 = vunpack.c.l.b16 %v1326
      %v1383 = vunpack.c.l.b16 %v1329
      %v1384 = vunpack.c.l.b16 %v1333
      %v1385 = vunpack.c.l.b16 %v1336
      %v1386 = vunpack.c.l.b16 %v1340
      %v1387 = vunpack.c.l.b16 %v1343
      %v1388 = vunpack.c.l.b16 %v1347
      %v1389 = vunpack.c.l.b16 %v1350
      %v1390 = vunpack.c.l.b16 %v1354
      %v1391 = vunpack.c.l.b16 %v1357
      %v1392 = vpack.c.b16 %v1361, %v1360
      %v1393 = vpack.c.b16 %v1363, %v1362
      %v1394 = vpack.c.b16 %v1365, %v1364
      %v1395 = vpack.c.b16 %v1367, %v1366
      %v1396 = vpack.c.b16 %v1369, %v1368
      %v1397 = vpack.c.b16 %v1371, %v1370
      %v1398 = vpack.c.b16 %v1373, %v1372
      %v1399 = vpack.c.b16 %v1375, %v1374
      %v1400 = vpack.c.b16 %v1377, %v1376
      %v1401 = vpack.c.b16 %v1379, %v1378
      %v1402 = vpack.c.b16 %v1381, %v1380
      %v1403 = vpack.c.b16 %v1383, %v1382
      %v1404 = vpack.c.b16 %v1385, %v1384
      %v1405 = vpack.c.b16 %v1387, %v1386
      %v1406 = vpack.c.b16 %v1389, %v1388
      %v1407 = vpack.c.b16 %v1391, %v1390
      %v1409 = vsel %vm689, %v1392, 0
      %v1412 = vsel %vm689, %v1393, 0
      %v1415 = vsel %vm689, %v1394, 0
      %v1418 = vsel %vm689, %v1395, 0
      %v1421 = vsel %vm689, %v1396, 0
      %v1424 = vsel %vm689, %v1397, 0
      %v1427 = vsel %vm689, %v1398, 0
      %v1430 = vsel %vm689, %v1399, 0
      %v1433 = vsel %vm689, %v1400, 0
      %v1436 = vsel %vm689, %v1401, 0
      %v1439 = vsel %vm689, %v1402, 0
      %v1442 = vsel %vm689, %v1403, 0
      %v1445 = vsel %vm689, %v1404, 0
      %v1448 = vsel %vm689, %v1405, 0
      %v1451 = vsel %vm689, %v1406, 0
      %v1454 = vsel %vm689, %v1407, 0
      %v1457 = vsel %vm738, %v1359, 0
      %1459 = vmatprep.subr.bf16.mxu0 0
      %1460 = vmatpush1.bf16.msra.mxu0 %v1457
      %1461 = vmatprep.subr.bf16.mxu0 0
      %1462 = vmatpush1.bf16.msra.mxu0 0
      %1463 = vmatprep.subr.bf16.mxu0 0
      %1464 = vmatpush1.bf16.msra.mxu0 0
      %1465 = vmatprep.subr.bf16.mxu0 0
      %1466 = vmatpush1.bf16.msra.mxu0 0
      %1467 = vmatprep.subr.bf16.mxu0 0
      %1468 = vmatpush1.bf16.msra.mxu0 0
      %1469 = vmatprep.subr.bf16.mxu0 0
      %1470 = vmatpush1.bf16.msra.mxu0 0
      %1471 = vmatprep.subr.bf16.mxu0 0
      %1472 = vmatpush1.bf16.msra.mxu0 0
      %1473 = vmatprep.subr.bf16.mxu0 0
      %1474 = vmatpush1.bf16.msra.mxu0 0
      %1475 = vmatprep.subr.bf16.mxu0 0
      %1476 = vmatpush1.bf16.msra.mxu0 0
      %1477 = vmatprep.subr.bf16.mxu0 0
      %1478 = vmatpush1.bf16.msra.mxu0 0
      %1479 = vmatprep.subr.bf16.mxu0 0
      %1480 = vmatpush1.bf16.msra.mxu0 0
      %1481 = vmatprep.subr.bf16.mxu0 0
      %1482 = vmatpush1.bf16.msra.mxu0 0
      %1483 = vmatprep.subr.bf16.mxu0 0
      %1484 = vmatpush1.bf16.msra.mxu0 0
      %1485 = vmatprep.subr.bf16.mxu0 0
      %1486 = vmatpush1.bf16.msra.mxu0 0
      %1487 = vmatprep.subr.bf16.mxu0 0
      %1488 = vmatpush1.bf16.msra.mxu0 0
      %1489 = vmatprep.subr.bf16.mxu0 0
      %1490 = vmatpush1.bf16.msra.mxu0 0
      %1491 = vmatprep.mubr.bf16.mxu0 0
      %1492 = vmatmul.mubr.bf16.gmra.mrb[0].mxu0 %v1409
      %v1493 = vpop.f32.mrb[0].mxu0
      %v1494 = vadd.f32 0.0, %v1493
      %v1495 = vpop.f32.mrb[0].mxu0
      %v1496 = vpop.f32.mrb[0].mxu0
      %v1497 = vadd.f32 0.0, %v1496
      %v1498 = vpop.f32.mrb[0].mxu0
      %1499 = vmatprep.mubr.bf16.mxu0 0
      %1500 = vmatmul.mubr.bf16.gmra.mrb[0].mxu0 %v1412
      %v1501 = vpop.f32.mrb[0].mxu0
      %v1502 = vadd.f32 0.0, %v1501
      %v1503 = vpop.f32.mrb[0].mxu0
      %v1504 = vpop.f32.mrb[0].mxu0
      %v1505 = vadd.f32 0.0, %v1504
      %v1506 = vpop.f32.mrb[0].mxu0
      %1507 = vmatprep.mubr.bf16.mxu0 0
      %1508 = vmatmul.mubr.bf16.gmra.mrb[0].mxu0 %v1415
      %v1509 = vpop.f32.mrb[0].mxu0
      %v1510 = vadd.f32 0.0, %v1509
      %v1511 = vpop.f32.mrb[0].mxu0
      %v1512 = vpop.f32.mrb[0].mxu0
      %v1513 = vadd.f32 0.0, %v1512
      %v1514 = vpop.f32.mrb[0].mxu0
      %1515 = vmatprep.mubr.bf16.mxu0 0
      %1516 = vmatmul.mubr.bf16.gmra.mrb[0].mxu0 %v1418
      %v1517 = vpop.f32.mrb[0].mxu0
      %v1518 = vadd.f32 0.0, %v1517
      %v1519 = vpop.f32.mrb[0].mxu0
      %v1520 = vpop.f32.mrb[0].mxu0
      %v1521 = vadd.f32 0.0, %v1520
      %v1522 = vpop.f32.mrb[0].mxu0
      %1523 = vmatprep.mubr.bf16.mxu0 0
      %1524 = vmatmul.mubr.bf16.gmra.mrb[0].mxu0 %v1421
      %v1525 = vpop.f32.mrb[0].mxu0
      %v1526 = vadd.f32 0.0, %v1525
      %v1527 = vpop.f32.mrb[0].mxu0
      %v1528 = vpop.f32.mrb[0].mxu0
      %v1529 = vadd.f32 0.0, %v1528
      %v1530 = vpop.f32.mrb[0].mxu0
      %1531 = vmatprep.mubr.bf16.mxu0 0
      %1532 = vmatmul.mubr.bf16.gmra.mrb[0].mxu0 %v1424
      %v1533 = vpop.f32.mrb[0].mxu0
      %v1534 = vadd.f32 0.0, %v1533
      %v1535 = vpop.f32.mrb[0].mxu0
      %v1536 = vpop.f32.mrb[0].mxu0
      %v1537 = vadd.f32 0.0, %v1536
      %v1538 = vpop.f32.mrb[0].mxu0
      %1539 = vmatprep.mubr.bf16.mxu0 0
      %1540 = vmatmul.mubr.bf16.gmra.mrb[0].mxu0 %v1427
      %v1541 = vpop.f32.mrb[0].mxu0
      %v1542 = vadd.f32 0.0, %v1541
      %v1543 = vpop.f32.mrb[0].mxu0
      %v1544 = vpop.f32.mrb[0].mxu0
      %v1545 = vadd.f32 0.0, %v1544
      %v1546 = vpop.f32.mrb[0].mxu0
      %1547 = vmatprep.mubr.bf16.mxu0 0
      %1548 = vmatmul.mubr.bf16.gmra.mrb[0].mxu0 %v1430
      %v1549 = vpop.f32.mrb[0].mxu0
      %v1550 = vadd.f32 0.0, %v1549
      %v1551 = vpop.f32.mrb[0].mxu0
      %v1552 = vpop.f32.mrb[0].mxu0
      %v1553 = vadd.f32 0.0, %v1552
      %v1554 = vpop.f32.mrb[0].mxu0
      %1555 = vmatprep.mubr.bf16.mxu0 0
      %1556 = vmatmul.mubr.bf16.gmra.mrb[0].mxu0 %v1433
      %v1557 = vpop.f32.mrb[0].mxu0
      %v1558 = vadd.f32 0.0, %v1557
      %v1559 = vpop.f32.mrb[0].mxu0
      %v1560 = vpop.f32.mrb[0].mxu0
      %v1561 = vadd.f32 0.0, %v1560
      %v1562 = vpop.f32.mrb[0].mxu0
      %1563 = vmatprep.mubr.bf16.mxu0 0
      %1564 = vmatmul.mubr.bf16.gmra.mrb[0].mxu0 %v1436
      %v1565 = vpop.f32.mrb[0].mxu0
      %v1566 = vadd.f32 0.0, %v1565
      %v1567 = vpop.f32.mrb[0].mxu0
      %v1568 = vpop.f32.mrb[0].mxu0
      %v1569 = vadd.f32 0.0, %v1568
      %v1570 = vpop.f32.mrb[0].mxu0
      %1571 = vmatprep.mubr.bf16.mxu0 0
      %1572 = vmatmul.mubr.bf16.gmra.mrb[0].mxu0 %v1439
      %v1573 = vpop.f32.mrb[0].mxu0
      %v1574 = vadd.f32 0.0, %v1573
      %v1575 = vpop.f32.mrb[0].mxu0
      %v1576 = vpop.f32.mrb[0].mxu0
      %v1577 = vadd.f32 0.0, %v1576
      %v1578 = vpop.f32.mrb[0].mxu0
      %1579 = vmatprep.mubr.bf16.mxu0 0
      %1580 = vmatmul.mubr.bf16.gmra.mrb[0].mxu0 %v1442
      %v1581 = vpop.f32.mrb[0].mxu0
      %v1582 = vadd.f32 0.0, %v1581
      %v1583 = vpop.f32.mrb[0].mxu0
      %v1584 = vpop.f32.mrb[0].mxu0
      %v1585 = vadd.f32 0.0, %v1584
      %v1586 = vpop.f32.mrb[0].mxu0
      %1587 = vmatprep.mubr.bf16.mxu0 0
      %1588 = vmatmul.mubr.bf16.gmra.mrb[0].mxu0 %v1445
      %v1589 = vpop.f32.mrb[0].mxu0
      %v1590 = vadd.f32 0.0, %v1589
      %v1591 = vpop.f32.mrb[0].mxu0
      %v1592 = vpop.f32.mrb[0].mxu0
      %v1593 = vadd.f32 0.0, %v1592
      %v1594 = vpop.f32.mrb[0].mxu0
      %1595 = vmatprep.mubr.bf16.mxu0 0
      %1596 = vmatmul.mubr.bf16.gmra.mrb[0].mxu0 %v1448
      %v1597 = vpop.f32.mrb[0].mxu0
      %v1598 = vadd.f32 0.0, %v1597
      %v1599 = vpop.f32.mrb[0].mxu0
      %v1600 = vpop.f32.mrb[0].mxu0
      %v1601 = vadd.f32 0.0, %v1600
      %v1602 = vpop.f32.mrb[0].mxu0
      %1603 = vmatprep.mubr.bf16.mxu0 0
      %1604 = vmatmul.mubr.bf16.gmra.mrb[0].mxu0 %v1451
      %v1605 = vpop.f32.mrb[0].mxu0
      %v1606 = vadd.f32 0.0, %v1605
      %v1607 = vpop.f32.mrb[0].mxu0
      %v1608 = vpop.f32.mrb[0].mxu0
      %v1609 = vadd.f32 0.0, %v1608
      %v1610 = vpop.f32.mrb[0].mxu0
      %1611 = vmatprep.mubr.bf16.mxu0 0
      %1612 = vmatmul.mubr.bf16.gmra.mrb[0].mxu0 %v1454
      %v1613 = vpop.f32.mrb[0].mxu0
      %v1614 = vadd.f32 0.0, %v1613
      %v1615 = vpop.f32.mrb[0].mxu0
      %v1616 = vpop.f32.mrb[0].mxu0
      %v1617 = vadd.f32 0.0, %v1616
      %v1618 = vpop.f32.mrb[0].mxu0
      %1619 = vdwg.mxu0
      %v1620 = vadd.f32 %v1069, %v1494
      %v1621 = vadd.f32 %v1072, %v1497
      %v1622 = vadd.f32 %v1077, %v1502
      %v1623 = vadd.f32 %v1080, %v1505
      %v1624 = vadd.f32 %v1085, %v1510
      %v1625 = vadd.f32 %v1088, %v1513
      %v1626 = vadd.f32 %v1093, %v1518
      %v1627 = vadd.f32 %v1096, %v1521
      %v1628 = vadd.f32 %v1101, %v1526
      %v1629 = vadd.f32 %v1104, %v1529
      %v1630 = vadd.f32 %v1109, %v1534
      %v1631 = vadd.f32 %v1112, %v1537
      %v1632 = vadd.f32 %v1117, %v1542
      %v1633 = vadd.f32 %v1120, %v1545
      %v1634 = vadd.f32 %v1125, %v1550
      %v1635 = vadd.f32 %v1128, %v1553
      %v1636 = vadd.f32 %v1133, %v1558
      %v1637 = vadd.f32 %v1136, %v1561
      %v1638 = vadd.f32 %v1141, %v1566
      %v1639 = vadd.f32 %v1144, %v1569
      %v1640 = vadd.f32 %v1149, %v1574
      %v1641 = vadd.f32 %v1152, %v1577
      %v1642 = vadd.f32 %v1157, %v1582
      %v1643 = vadd.f32 %v1160, %v1585
      %v1644 = vadd.f32 %v1165, %v1590
      %v1645 = vadd.f32 %v1168, %v1593
      %v1646 = vadd.f32 %v1173, %v1598
      %v1647 = vadd.f32 %v1176, %v1601
      %v1648 = vadd.f32 %v1181, %v1606
      %v1649 = vadd.f32 %v1184, %v1609
      %v1650 = vadd.f32 %v1189, %v1614
      %v1651 = vadd.f32 %v1192, %v1617
      %s1652 = sadd.s32 %s199, 1
      %s1653 = smul.u32 %s1652, 3
      %s1654 = smul.addr %s1653, 4
      %s1655 = scalar_lea.vmem %s187, %s1654
      %v1656 = vld [vmem:[%s1655] sm:$0xf]
      %v1657 = vld [vmem:[%s1655 + $0x4] sm:$0xf]
      %v1658 = vld [vmem:[%s1655 + $0xc] sm:$0xf]
      %v1659 = vld [vmem:[%s1655 + $0x10] sm:$0xf]
      %v1660 = vld [vmem:[%s1655 + $0x18] sm:$0xf]
      %v1661 = vld [vmem:[%s1655 + $0x1c] sm:$0xf]
      %v1662 = vld [vmem:[%s1655 + $0x24] sm:$0xf]
      %v1663 = vld [vmem:[%s1655 + $0x28] sm:$0xf]
      %v1664 = vld [vmem:[%s1655 + $0x30] sm:$0xf]
      %v1665 = vld [vmem:[%s1655 + $0x34] sm:$0xf]
      %v1666 = vld [vmem:[%s1655 + $0x3c] sm:$0xf]
      %v1667 = vld [vmem:[%s1655 + $0x40] sm:$0xf]
      %v1668 = vld [vmem:[%s1655 + $0x48] sm:$0xf]
      %v1669 = vld [vmem:[%s1655 + $0x4c] sm:$0xf]
      %v1670 = vld [vmem:[%s1655 + $0x54] sm:$0xf]
      %v1671 = vld [vmem:[%s1655 + $0x58] sm:$0xf]
      %v1672 = vld [vmem:[%s1655 + $0x60] sm:$0xf]
      %v1673 = vld [vmem:[%s1655 + $0x64] sm:$0xf]
      %v1674 = vld [vmem:[%s1655 + $0x6c] sm:$0xf]
      %v1675 = vld [vmem:[%s1655 + $0x70] sm:$0xf]
      %v1676 = vld [vmem:[%s1655 + $0x78] sm:$0xf]
      %v1677 = vld [vmem:[%s1655 + $0x7c] sm:$0xf]
      %v1678 = vld [vmem:[%s1655 + $0x84] sm:$0xf]
      %v1679 = vld [vmem:[%s1655 + $0x88] sm:$0xf]
      %v1680 = vld [vmem:[%s1655 + $0x90] sm:$0xf]
      %v1681 = vld [vmem:[%s1655 + $0x94] sm:$0xf]
      %v1682 = vld [vmem:[%s1655 + $0x9c] sm:$0xf]
      %v1683 = vld [vmem:[%s1655 + $0xa0] sm:$0xf]
      %v1684 = vld [vmem:[%s1655 + $0xa8] sm:$0xf]
      %v1685 = vld [vmem:[%s1655 + $0xac] sm:$0xf]
      %v1686 = vld [vmem:[%s1655 + $0xb4] sm:$0xf]
      %v1687 = vld [vmem:[%s1655 + $0xb8] sm:$0xf]
      %s1688 = scalar_lea.vmem %s1, 6
      %v1689 = vld [vmem:[%s1688] sm:$0x3]
      %v1722 = vunpack.c.l.b16 %v1656
      %v1723 = vunpack.c.l.b16 %v1657
      %v1724 = vunpack.c.l.b16 %v1658
      %v1725 = vunpack.c.l.b16 %v1659
      %v1726 = vunpack.c.l.b16 %v1660
      %v1727 = vunpack.c.l.b16 %v1661
      %v1728 = vunpack.c.l.b16 %v1662
      %v1729 = vunpack.c.l.b16 %v1663
      %v1730 = vunpack.c.l.b16 %v1664
      %v1731 = vunpack.c.l.b16 %v1665
      %v1732 = vunpack.c.l.b16 %v1666
      %v1733 = vunpack.c.l.b16 %v1667
      %v1734 = vunpack.c.l.b16 %v1668
      %v1735 = vunpack.c.l.b16 %v1669
      %v1736 = vunpack.c.l.b16 %v1670
      %v1737 = vunpack.c.l.b16 %v1671
      %v1738 = vunpack.c.l.b16 %v1672
      %v1739 = vunpack.c.l.b16 %v1673
      %v1740 = vunpack.c.l.b16 %v1674
      %v1741 = vunpack.c.l.b16 %v1675
      %v1742 = vunpack.c.l.b16 %v1676
      %v1743 = vunpack.c.l.b16 %v1677
      %v1744 = vunpack.c.l.b16 %v1678
      %v1745 = vunpack.c.l.b16 %v1679
      %v1746 = vunpack.c.l.b16 %v1680
      %v1747 = vunpack.c.l.b16 %v1681
      %v1748 = vunpack.c.l.b16 %v1682
      %v1749 = vunpack.c.l.b16 %v1683
      %v1750 = vunpack.c.l.b16 %v1684
      %v1751 = vunpack.c.l.b16 %v1685
      %v1752 = vunpack.c.l.b16 %v1686
      %v1753 = vunpack.c.l.b16 %v1687
      %v1754 = vpack.c.b16 %v1723, %v1722
      %v1755 = vpack.c.b16 %v1725, %v1724
      %v1756 = vpack.c.b16 %v1727, %v1726
      %v1757 = vpack.c.b16 %v1729, %v1728
      %v1758 = vpack.c.b16 %v1731, %v1730
      %v1759 = vpack.c.b16 %v1733, %v1732
      %v1760 = vpack.c.b16 %v1735, %v1734
      %v1761 = vpack.c.b16 %v1737, %v1736
      %v1762 = vpack.c.b16 %v1739, %v1738
      %v1763 = vpack.c.b16 %v1741, %v1740
      %v1764 = vpack.c.b16 %v1743, %v1742
      %v1765 = vpack.c.b16 %v1745, %v1744
      %v1766 = vpack.c.b16 %v1747, %v1746
      %v1767 = vpack.c.b16 %v1749, %v1748
      %v1768 = vpack.c.b16 %v1751, %v1750
      %v1769 = vpack.c.b16 %v1753, %v1752
      %v1771 = vsel %vm689, %v1754, 0
      %v1774 = vsel %vm689, %v1755, 0
      %v1777 = vsel %vm689, %v1756, 0
      %v1780 = vsel %vm689, %v1757, 0
      %v1783 = vsel %vm689, %v1758, 0
      %v1786 = vsel %vm689, %v1759, 0
      %v1789 = vsel %vm689, %v1760, 0
      %v1792 = vsel %vm689, %v1761, 0
      %v1795 = vsel %vm689, %v1762, 0
      %v1798 = vsel %vm689, %v1763, 0
      %v1801 = vsel %vm689, %v1764, 0
      %v1804 = vsel %vm689, %v1765, 0
      %v1807 = vsel %vm689, %v1766, 0
      %v1810 = vsel %vm689, %v1767, 0
      %v1813 = vsel %vm689, %v1768, 0
      %v1816 = vsel %vm689, %v1769, 0
      %v1819 = vsel %vm738, %v1689, 0
      %1821 = vmatprep.subr.bf16.mxu0 0
      %1822 = vmatpush1.bf16.msra.mxu0 %v1819
      %1823 = vmatprep.subr.bf16.mxu0 0
      %1824 = vmatpush1.bf16.msra.mxu0 0
      %1825 = vmatprep.subr.bf16.mxu0 0
      %1826 = vmatpush1.bf16.msra.mxu0 0
      %1827 = vmatprep.subr.bf16.mxu0 0
      %1828 = vmatpush1.bf16.msra.mxu0 0
      %1829 = vmatprep.subr.bf16.mxu0 0
      %1830 = vmatpush1.bf16.msra.mxu0 0
      %1831 = vmatprep.subr.bf16.mxu0 0
      %1832 = vmatpush1.bf16.msra.mxu0 0
      %1833 = vmatprep.subr.bf16.mxu0 0
      %1834 = vmatpush1.bf16.msra.mxu0 0
      %1835 = vmatprep.subr.bf16.mxu0 0
      %1836 = vmatpush1.bf16.msra.mxu0 0
      %1837 = vmatprep.subr.bf16.mxu0 0
      %1838 = vmatpush1.bf16.msra.mxu0 0
      %1839 = vmatprep.subr.bf16.mxu0 0
      %1840 = vmatpush1.bf16.msra.mxu0 0
      %1841 = vmatprep.subr.bf16.mxu0 0
      %1842 = vmatpush1.bf16.msra.mxu0 0
      %1843 = vmatprep.subr.bf16.mxu0 0
      %1844 = vmatpush1.bf16.msra.mxu0 0
      %1845 = vmatprep.subr.bf16.mxu0 0
      %1846 = vmatpush1.bf16.msra.mxu0 0
      %1847 = vmatprep.subr.bf16.mxu0 0
      %1848 = vmatpush1.bf16.msra.mxu0 0
      %1849 = vmatprep.subr.bf16.mxu0 0
      %1850 = vmatpush1.bf16.msra.mxu0 0
      %1851 = vmatprep.subr.bf16.mxu0 0
      %1852 = vmatpush1.bf16.msra.mxu0 0
      %1853 = vmatprep.mubr.bf16.mxu0 0
      %1854 = vmatmul.mubr.bf16.gmra.mrb[0].mxu0 %v1771
      %v1855 = vpop.f32.mrb[0].mxu0
      %v1856 = vadd.f32 0.0, %v1855
      %v1857 = vpop.f32.mrb[0].mxu0
      %v1858 = vpop.f32.mrb[0].mxu0
      %v1859 = vadd.f32 0.0, %v1858
      %v1860 = vpop.f32.mrb[0].mxu0
      %1861 = vmatprep.mubr.bf16.mxu0 0
      %1862 = vmatmul.mubr.bf16.gmra.mrb[0].mxu0 %v1774
      %v1863 = vpop.f32.mrb[0].mxu0
      %v1864 = vadd.f32 0.0, %v1863
      %v1865 = vpop.f32.mrb[0].mxu0
      %v1866 = vpop.f32.mrb[0].mxu0
      %v1867 = vadd.f32 0.0, %v1866
      %v1868 = vpop.f32.mrb[0].mxu0
      %1869 = vmatprep.mubr.bf16.mxu0 0
      %1870 = vmatmul.mubr.bf16.gmra.mrb[0].mxu0 %v1777
      %v1871 = vpop.f32.mrb[0].mxu0
      %v1872 = vadd.f32 0.0, %v1871
      %v1873 = vpop.f32.mrb[0].mxu0
      %v1874 = vpop.f32.mrb[0].mxu0
      %v1875 = vadd.f32 0.0, %v1874
      %v1876 = vpop.f32.mrb[0].mxu0
      %1877 = vmatprep.mubr.bf16.mxu0 0
      %1878 = vmatmul.mubr.bf16.gmra.mrb[0].mxu0 %v1780
      %v1879 = vpop.f32.mrb[0].mxu0
      %v1880 = vadd.f32 0.0, %v1879
      %v1881 = vpop.f32.mrb[0].mxu0
      %v1882 = vpop.f32.mrb[0].mxu0
      %v1883 = vadd.f32 0.0, %v1882
      %v1884 = vpop.f32.mrb[0].mxu0
      %1885 = vmatprep.mubr.bf16.mxu0 0
      %1886 = vmatmul.mubr.bf16.gmra.mrb[0].mxu0 %v1783
      %v1887 = vpop.f32.mrb[0].mxu0
      %v1888 = vadd.f32 0.0, %v1887
      %v1889 = vpop.f32.mrb[0].mxu0
      %v1890 = vpop.f32.mrb[0].mxu0
      %v1891 = vadd.f32 0.0, %v1890
      %v1892 = vpop.f32.mrb[0].mxu0
      %1893 = vmatprep.mubr.bf16.mxu0 0
      %1894 = vmatmul.mubr.bf16.gmra.mrb[0].mxu0 %v1786
      %v1895 = vpop.f32.mrb[0].mxu0
      %v1896 = vadd.f32 0.0, %v1895
      %v1897 = vpop.f32.mrb[0].mxu0
      %v1898 = vpop.f32.mrb[0].mxu0
      %v1899 = vadd.f32 0.0, %v1898
      %v1900 = vpop.f32.mrb[0].mxu0
      %1901 = vmatprep.mubr.bf16.mxu0 0
      %1902 = vmatmul.mubr.bf16.gmra.mrb[0].mxu0 %v1789
      %v1903 = vpop.f32.mrb[0].mxu0
      %v1904 = vadd.f32 0.0, %v1903
      %v1905 = vpop.f32.mrb[0].mxu0
      %v1906 = vpop.f32.mrb[0].mxu0
      %v1907 = vadd.f32 0.0, %v1906
      %v1908 = vpop.f32.mrb[0].mxu0
      %1909 = vmatprep.mubr.bf16.mxu0 0
      %1910 = vmatmul.mubr.bf16.gmra.mrb[0].mxu0 %v1792
      %v1911 = vpop.f32.mrb[0].mxu0
      %v1912 = vadd.f32 0.0, %v1911
      %v1913 = vpop.f32.mrb[0].mxu0
      %v1914 = vpop.f32.mrb[0].mxu0
      %v1915 = vadd.f32 0.0, %v1914
      %v1916 = vpop.f32.mrb[0].mxu0
      %1917 = vmatprep.mubr.bf16.mxu0 0
      %1918 = vmatmul.mubr.bf16.gmra.mrb[0].mxu0 %v1795
      %v1919 = vpop.f32.mrb[0].mxu0
      %v1920 = vadd.f32 0.0, %v1919
      %v1921 = vpop.f32.mrb[0].mxu0
      %v1922 = vpop.f32.mrb[0].mxu0
      %v1923 = vadd.f32 0.0, %v1922
      %v1924 = vpop.f32.mrb[0].mxu0
      %1925 = vmatprep.mubr.bf16.mxu0 0
      %1926 = vmatmul.mubr.bf16.gmra.mrb[0].mxu0 %v1798
      %v1927 = vpop.f32.mrb[0].mxu0
      %v1928 = vadd.f32 0.0, %v1927
      %v1929 = vpop.f32.mrb[0].mxu0
      %v1930 = vpop.f32.mrb[0].mxu0
      %v1931 = vadd.f32 0.0, %v1930
      %v1932 = vpop.f32.mrb[0].mxu0
      %1933 = vmatprep.mubr.bf16.mxu0 0
      %1934 = vmatmul.mubr.bf16.gmra.mrb[0].mxu0 %v1801
      %v1935 = vpop.f32.mrb[0].mxu0
      %v1936 = vadd.f32 0.0, %v1935
      %v1937 = vpop.f32.mrb[0].mxu0
      %v1938 = vpop.f32.mrb[0].mxu0
      %v1939 = vadd.f32 0.0, %v1938
      %v1940 = vpop.f32.mrb[0].mxu0
      %1941 = vmatprep.mubr.bf16.mxu0 0
      %1942 = vmatmul.mubr.bf16.gmra.mrb[0].mxu0 %v1804
      %v1943 = vpop.f32.mrb[0].mxu0
      %v1944 = vadd.f32 0.0, %v1943
      %v1945 = vpop.f32.mrb[0].mxu0
      %v1946 = vpop.f32.mrb[0].mxu0
      %v1947 = vadd.f32 0.0, %v1946
      %v1948 = vpop.f32.mrb[0].mxu0
      %1949 = vmatprep.mubr.bf16.mxu0 0
      %1950 = vmatmul.mubr.bf16.gmra.mrb[0].mxu0 %v1807
      %v1951 = vpop.f32.mrb[0].mxu0
      %v1952 = vadd.f32 0.0, %v1951
      %v1953 = vpop.f32.mrb[0].mxu0
      %v1954 = vpop.f32.mrb[0].mxu0
      %v1955 = vadd.f32 0.0, %v1954
      %v1956 = vpop.f32.mrb[0].mxu0
      %1957 = vmatprep.mubr.bf16.mxu0 0
      %1958 = vmatmul.mubr.bf16.gmra.mrb[0].mxu0 %v1810
      %v1959 = vpop.f32.mrb[0].mxu0
      %v1960 = vadd.f32 0.0, %v1959
      %v1961 = vpop.f32.mrb[0].mxu0
      %v1962 = vpop.f32.mrb[0].mxu0
      %v1963 = vadd.f32 0.0, %v1962
      %v1964 = vpop.f32.mrb[0].mxu0
      %1965 = vmatprep.mubr.bf16.mxu0 0
      %1966 = vmatmul.mubr.bf16.gmra.mrb[0].mxu0 %v1813
      %v1967 = vpop.f32.mrb[0].mxu0
      %v1968 = vadd.f32 0.0, %v1967
      %v1969 = vpop.f32.mrb[0].mxu0
      %v1970 = vpop.f32.mrb[0].mxu0
      %v1971 = vadd.f32 0.0, %v1970
      %v1972 = vpop.f32.mrb[0].mxu0
      %1973 = vmatprep.mubr.bf16.mxu0 0
      %1974 = vmatmul.mubr.bf16.gmra.mrb[0].mxu0 %v1816
      %v1975 = vpop.f32.mrb[0].mxu0
      %v1976 = vadd.f32 0.0, %v1975
      %v1977 = vpop.f32.mrb[0].mxu0
      %v1978 = vpop.f32.mrb[0].mxu0
      %v1979 = vadd.f32 0.0, %v1978
      %v1980 = vpop.f32.mrb[0].mxu0
      %1981 = vdwg.mxu0
      %v1982 = vadd.f32 %v1620, %v1856
      %v1983 = vadd.f32 %v1621, %v1859
      %v1984 = vadd.f32 %v1622, %v1864
      %v1985 = vadd.f32 %v1623, %v1867
      %v1986 = vadd.f32 %v1624, %v1872
      %v1987 = vadd.f32 %v1625, %v1875
      %v1988 = vadd.f32 %v1626, %v1880
      %v1989 = vadd.f32 %v1627, %v1883
      %v1990 = vadd.f32 %v1628, %v1888
      %v1991 = vadd.f32 %v1629, %v1891
      %v1992 = vadd.f32 %v1630, %v1896
      %v1993 = vadd.f32 %v1631, %v1899
      %v1994 = vadd.f32 %v1632, %v1904
      %v1995 = vadd.f32 %v1633, %v1907
      %v1996 = vadd.f32 %v1634, %v1912
      %v1997 = vadd.f32 %v1635, %v1915
      %v1998 = vadd.f32 %v1636, %v1920
      %v1999 = vadd.f32 %v1637, %v1923
      %v2000 = vadd.f32 %v1638, %v1928
      %v2001 = vadd.f32 %v1639, %v1931
      %v2002 = vadd.f32 %v1640, %v1936
      %v2003 = vadd.f32 %v1641, %v1939
      %v2004 = vadd.f32 %v1642, %v1944
      %v2005 = vadd.f32 %v1643, %v1947
      %v2006 = vadd.f32 %v1644, %v1952
      %v2007 = vadd.f32 %v1645, %v1955
      %v2008 = vadd.f32 %v1646, %v1960
      %v2009 = vadd.f32 %v1647, %v1963
      %v2010 = vadd.f32 %v1648, %v1968
      %v2011 = vadd.f32 %v1649, %v1971
      %v2012 = vadd.f32 %v1650, %v1976
      %v2013 = vadd.f32 %v1651, %v1979
      %v2014 = vld [vmem:[%s1655] sm:$0xf]
      %v2015 = vld [vmem:[%s1655 + $0x4] sm:$0xf]
      %v2016 = vld [vmem:[%s1655 + $0x8] sm:$0x1]
      %v2017 = vld [vmem:[%s1655 + $0xc] sm:$0xf]
      %v2018 = vld [vmem:[%s1655 + $0x10] sm:$0xf]
      %v2019 = vld [vmem:[%s1655 + $0x14] sm:$0x1]
      %v2020 = vld [vmem:[%s1655 + $0x18] sm:$0xf]
      %v2021 = vld [vmem:[%s1655 + $0x1c] sm:$0xf]
      %v2022 = vld [vmem:[%s1655 + $0x20] sm:$0x1]
      %v2023 = vld [vmem:[%s1655 + $0x24] sm:$0xf]
      %v2024 = vld [vmem:[%s1655 + $0x28] sm:$0xf]
      %v2025 = vld [vmem:[%s1655 + $0x2c] sm:$0x1]
      %v2026 = vld [vmem:[%s1655 + $0x30] sm:$0xf]
      %v2027 = vld [vmem:[%s1655 + $0x34] sm:$0xf]
      %v2028 = vld [vmem:[%s1655 + $0x38] sm:$0x1]
      %v2029 = vld [vmem:[%s1655 + $0x3c] sm:$0xf]
      %v2030 = vld [vmem:[%s1655 + $0x40] sm:$0xf]
      %v2031 = vld [vmem:[%s1655 + $0x44] sm:$0x1]
      %v2032 = vld [vmem:[%s1655 + $0x48] sm:$0xf]
      %v2033 = vld [vmem:[%s1655 + $0x4c] sm:$0xf]
      %v2034 = vld [vmem:[%s1655 + $0x50] sm:$0x1]
      %v2035 = vld [vmem:[%s1655 + $0x54] sm:$0xf]
      %v2036 = vld [vmem:[%s1655 + $0x58] sm:$0xf]
      %v2037 = vld [vmem:[%s1655 + $0x5c] sm:$0x1]
      %v2038 = vld [vmem:[%s1655 + $0x60] sm:$0xf]
      %v2039 = vld [vmem:[%s1655 + $0x64] sm:$0xf]
      %v2040 = vld [vmem:[%s1655 + $0x68] sm:$0x1]
      %v2041 = vld [vmem:[%s1655 + $0x6c] sm:$0xf]
      %v2042 = vld [vmem:[%s1655 + $0x70] sm:$0xf]
      %v2043 = vld [vmem:[%s1655 + $0x74] sm:$0x1]
      %v2044 = vld [vmem:[%s1655 + $0x78] sm:$0xf]
      %v2045 = vld [vmem:[%s1655 + $0x7c] sm:$0xf]
      %v2046 = vld [vmem:[%s1655 + $0x80] sm:$0x1]
      %v2047 = vld [vmem:[%s1655 + $0x84] sm:$0xf]
      %v2048 = vld [vmem:[%s1655 + $0x88] sm:$0xf]
      %v2049 = vld [vmem:[%s1655 + $0x8c] sm:$0x1]
      %v2050 = vld [vmem:[%s1655 + $0x90] sm:$0xf]
      %v2051 = vld [vmem:[%s1655 + $0x94] sm:$0xf]
      %v2052 = vld [vmem:[%s1655 + $0x98] sm:$0x1]
      %v2053 = vld [vmem:[%s1655 + $0x9c] sm:$0xf]
      %v2054 = vld [vmem:[%s1655 + $0xa0] sm:$0xf]
      %v2055 = vld [vmem:[%s1655 + $0xa4] sm:$0x1]
      %v2056 = vld [vmem:[%s1655 + $0xa8] sm:$0xf]
      %v2057 = vld [vmem:[%s1655 + $0xac] sm:$0xf]
      %v2058 = vld [vmem:[%s1655 + $0xb0] sm:$0x1]
      %v2059 = vld [vmem:[%s1655 + $0xb4] sm:$0xf]
      %v2060 = vld [vmem:[%s1655 + $0xb8] sm:$0xf]
      %v2061 = vld [vmem:[%s1655 + $0xbc] sm:$0x1]
      %v2063 = vshrl.u32 %v2014, 16
      %v2065 = vrot.slane %v2063, 4
      %v2066 = vshll.u32 %v2014, 16
      %v2068 = vrot.slane %v2066, 5
      %v2069 = vor.u32 %v2065, %v2068
      %v2070 = vrot.slane %v2069, 4
      %v2072 = vshll.u32 %v2015, 16
      %v2074 = vrot.slane %v2072, 5
      %v2075 = vsel %vm254, %v2070, %v2074
      %v2076 = vshrl.u32 %v2015, 16
      %v2078 = vrot.slane %v2076, 4
      %v2079 = vor.u32 %v2078, %v2074
      %v2080 = vrot.slane %v2079, 4
      %v2082 = vshll.u32 %v2016, 16
      %v2084 = vrot.slane %v2082, 5
      %v2085 = vsel %vm254, %v2080, %v2084
      %v2087 = vshrl.u32 %v2017, 16
      %v2089 = vrot.slane %v2087, 4
      %v2090 = vshll.u32 %v2017, 16
      %v2092 = vrot.slane %v2090, 5
      %v2093 = vor.u32 %v2089, %v2092
      %v2094 = vrot.slane %v2093, 4
      %v2096 = vshll.u32 %v2018, 16
      %v2098 = vrot.slane %v2096, 5
      %v2099 = vsel %vm254, %v2094, %v2098
      %v2100 = vshrl.u32 %v2018, 16
      %v2102 = vrot.slane %v2100, 4
      %v2103 = vor.u32 %v2102, %v2098
      %v2104 = vrot.slane %v2103, 4
      %v2106 = vshll.u32 %v2019, 16
      %v2108 = vrot.slane %v2106, 5
      %v2109 = vsel %vm254, %v2104, %v2108
      %v2111 = vshrl.u32 %v2020, 16
      %v2113 = vrot.slane %v2111, 4
      %v2114 = vshll.u32 %v2020, 16
      %v2116 = vrot.slane %v2114, 5
      %v2117 = vor.u32 %v2113, %v2116
      %v2118 = vrot.slane %v2117, 4
      %v2120 = vshll.u32 %v2021, 16
      %v2122 = vrot.slane %v2120, 5
      %v2123 = vsel %vm254, %v2118, %v2122
      %v2124 = vshrl.u32 %v2021, 16
      %v2126 = vrot.slane %v2124, 4
      %v2127 = vor.u32 %v2126, %v2122
      %v2128 = vrot.slane %v2127, 4
      %v2130 = vshll.u32 %v2022, 16
      %v2132 = vrot.slane %v2130, 5
      %v2133 = vsel %vm254, %v2128, %v2132
      %v2135 = vshrl.u32 %v2023, 16
      %v2137 = vrot.slane %v2135, 4
      %v2138 = vshll.u32 %v2023, 16
      %v2140 = vrot.slane %v2138, 5
      %v2141 = vor.u32 %v2137, %v2140
      %v2142 = vrot.slane %v2141, 4
      %v2144 = vshll.u32 %v2024, 16
      %v2146 = vrot.slane %v2144, 5
      %v2147 = vsel %vm254, %v2142, %v2146
      %v2148 = vshrl.u32 %v2024, 16
      %v2150 = vrot.slane %v2148, 4
      %v2151 = vor.u32 %v2150, %v2146
      %v2152 = vrot.slane %v2151, 4
      %v2154 = vshll.u32 %v2025, 16
      %v2156 = vrot.slane %v2154, 5
      %v2157 = vsel %vm254, %v2152, %v2156
      %v2159 = vshrl.u32 %v2026, 16
      %v2161 = vrot.slane %v2159, 4
      %v2162 = vshll.u32 %v2026, 16
      %v2164 = vrot.slane %v2162, 5
      %v2165 = vor.u32 %v2161, %v2164
      %v2166 = vrot.slane %v2165, 4
      %v2168 = vshll.u32 %v2027, 16
      %v2170 = vrot.slane %v2168, 5
      %v2171 = vsel %vm254, %v2166, %v2170
      %v2172 = vshrl.u32 %v2027, 16
      %v2174 = vrot.slane %v2172, 4
      %v2175 = vor.u32 %v2174, %v2170
      %v2176 = vrot.slane %v2175, 4
      %v2178 = vshll.u32 %v2028, 16
      %v2180 = vrot.slane %v2178, 5
      %v2181 = vsel %vm254, %v2176, %v2180
      %v2183 = vshrl.u32 %v2029, 16
      %v2185 = vrot.slane %v2183, 4
      %v2186 = vshll.u32 %v2029, 16
      %v2188 = vrot.slane %v2186, 5
      %v2189 = vor.u32 %v2185, %v2188
      %v2190 = vrot.slane %v2189, 4
      %v2192 = vshll.u32 %v2030, 16
      %v2194 = vrot.slane %v2192, 5
      %v2195 = vsel %vm254, %v2190, %v2194
      %v2196 = vshrl.u32 %v2030, 16
      %v2198 = vrot.slane %v2196, 4
      %v2199 = vor.u32 %v2198, %v2194
      %v2200 = vrot.slane %v2199, 4
      %v2202 = vshll.u32 %v2031, 16
      %v2204 = vrot.slane %v2202, 5
      %v2205 = vsel %vm254, %v2200, %v2204
      %v2207 = vshrl.u32 %v2032, 16
      %v2209 = vrot.slane %v2207, 4
      %v2210 = vshll.u32 %v2032, 16
      %v2212 = vrot.slane %v2210, 5
      %v2213 = vor.u32 %v2209, %v2212
      %v2214 = vrot.slane %v2213, 4
      %v2216 = vshll.u32 %v2033, 16
      %v2218 = vrot.slane %v2216, 5
      %v2219 = vsel %vm254, %v2214, %v2218
      %v2220 = vshrl.u32 %v2033, 16
      %v2222 = vrot.slane %v2220, 4
      %v2223 = vor.u32 %v2222, %v2218
      %v2224 = vrot.slane %v2223, 4
      %v2226 = vshll.u32 %v2034, 16
      %v2228 = vrot.slane %v2226, 5
      %v2229 = vsel %vm254, %v2224, %v2228
      %v2231 = vshrl.u32 %v2035, 16
      %v2233 = vrot.slane %v2231, 4
      %v2234 = vshll.u32 %v2035, 16
      %v2236 = vrot.slane %v2234, 5
      %v2237 = vor.u32 %v2233, %v2236
      %v2238 = vrot.slane %v2237, 4
      %v2240 = vshll.u32 %v2036, 16
      %v2242 = vrot.slane %v2240, 5
      %v2243 = vsel %vm254, %v2238, %v2242
      %v2244 = vshrl.u32 %v2036, 16
      %v2246 = vrot.slane %v2244, 4
      %v2247 = vor.u32 %v2246, %v2242
      %v2248 = vrot.slane %v2247, 4
      %v2250 = vshll.u32 %v2037, 16
      %v2252 = vrot.slane %v2250, 5
      %v2253 = vsel %vm254, %v2248, %v2252
      %v2255 = vshrl.u32 %v2038, 16
      %v2257 = vrot.slane %v2255, 4
      %v2258 = vshll.u32 %v2038, 16
      %v2260 = vrot.slane %v2258, 5
      %v2261 = vor.u32 %v2257, %v2260
      %v2262 = vrot.slane %v2261, 4
      %v2264 = vshll.u32 %v2039, 16
      %v2266 = vrot.slane %v2264, 5
      %v2267 = vsel %vm254, %v2262, %v2266
      %v2268 = vshrl.u32 %v2039, 16
      %v2270 = vrot.slane %v2268, 4
      %v2271 = vor.u32 %v2270, %v2266
      %v2272 = vrot.slane %v2271, 4
      %v2274 = vshll.u32 %v2040, 16
      %v2276 = vrot.slane %v2274, 5
      %v2277 = vsel %vm254, %v2272, %v2276
      %v2279 = vshrl.u32 %v2041, 16
      %v2281 = vrot.slane %v2279, 4
      %v2282 = vshll.u32 %v2041, 16
      %v2284 = vrot.slane %v2282, 5
      %v2285 = vor.u32 %v2281, %v2284
      %v2286 = vrot.slane %v2285, 4
      %v2288 = vshll.u32 %v2042, 16
      %v2290 = vrot.slane %v2288, 5
      %v2291 = vsel %vm254, %v2286, %v2290
      %v2292 = vshrl.u32 %v2042, 16
      %v2294 = vrot.slane %v2292, 4
      %v2295 = vor.u32 %v2294, %v2290
      %v2296 = vrot.slane %v2295, 4
      %v2298 = vshll.u32 %v2043, 16
      %v2300 = vrot.slane %v2298, 5
      %v2301 = vsel %vm254, %v2296, %v2300
      %v2303 = vshrl.u32 %v2044, 16
      %v2305 = vrot.slane %v2303, 4
      %v2306 = vshll.u32 %v2044, 16
      %v2308 = vrot.slane %v2306, 5
      %v2309 = vor.u32 %v2305, %v2308
      %v2310 = vrot.slane %v2309, 4
      %v2312 = vshll.u32 %v2045, 16
      %v2314 = vrot.slane %v2312, 5
      %v2315 = vsel %vm254, %v2310, %v2314
      %v2316 = vshrl.u32 %v2045, 16
      %v2318 = vrot.slane %v2316, 4
      %v2319 = vor.u32 %v2318, %v2314
      %v2320 = vrot.slane %v2319, 4
      %v2322 = vshll.u32 %v2046, 16
      %v2324 = vrot.slane %v2322, 5
      %v2325 = vsel %vm254, %v2320, %v2324
      %v2327 = vshrl.u32 %v2047, 16
      %v2329 = vrot.slane %v2327, 4
      %v2330 = vshll.u32 %v2047, 16
      %v2332 = vrot.slane %v2330, 5
      %v2333 = vor.u32 %v2329, %v2332
      %v2334 = vrot.slane %v2333, 4
      %v2336 = vshll.u32 %v2048, 16
      %v2338 = vrot.slane %v2336, 5
      %v2339 = vsel %vm254, %v2334, %v2338
      %v2340 = vshrl.u32 %v2048, 16
      %v2342 = vrot.slane %v2340, 4
      %v2343 = vor.u32 %v2342, %v2338
      %v2344 = vrot.slane %v2343, 4
      %v2346 = vshll.u32 %v2049, 16
      %v2348 = vrot.slane %v2346, 5
      %v2349 = vsel %vm254, %v2344, %v2348
      %v2351 = vshrl.u32 %v2050, 16
      %v2353 = vrot.slane %v2351, 4
      %v2354 = vshll.u32 %v2050, 16
      %v2356 = vrot.slane %v2354, 5
      %v2357 = vor.u32 %v2353, %v2356
      %v2358 = vrot.slane %v2357, 4
      %v2360 = vshll.u32 %v2051, 16
      %v2362 = vrot.slane %v2360, 5
      %v2363 = vsel %vm254, %v2358, %v2362
      %v2364 = vshrl.u32 %v2051, 16
      %v2366 = vrot.slane %v2364, 4
      %v2367 = vor.u32 %v2366, %v2362
      %v2368 = vrot.slane %v2367, 4
      %v2370 = vshll.u32 %v2052, 16
      %v2372 = vrot.slane %v2370, 5
      %v2373 = vsel %vm254, %v2368, %v2372
      %v2375 = vshrl.u32 %v2053, 16
      %v2377 = vrot.slane %v2375, 4
      %v2378 = vshll.u32 %v2053, 16
      %v2380 = vrot.slane %v2378, 5
      %v2381 = vor.u32 %v2377, %v2380
      %v2382 = vrot.slane %v2381, 4
      %v2384 = vshll.u32 %v2054, 16
      %v2386 = vrot.slane %v2384, 5
      %v2387 = vsel %vm254, %v2382, %v2386
      %v2388 = vshrl.u32 %v2054, 16
      %v2390 = vrot.slane %v2388, 4
      %v2391 = vor.u32 %v2390, %v2386
      %v2392 = vrot.slane %v2391, 4
      %v2394 = vshll.u32 %v2055, 16
      %v2396 = vrot.slane %v2394, 5
      %v2397 = vsel %vm254, %v2392, %v2396
      %v2399 = vshrl.u32 %v2056, 16
      %v2401 = vrot.slane %v2399, 4
      %v2402 = vshll.u32 %v2056, 16
      %v2404 = vrot.slane %v2402, 5
      %v2405 = vor.u32 %v2401, %v2404
      %v2406 = vrot.slane %v2405, 4
      %v2408 = vshll.u32 %v2057, 16
      %v2410 = vrot.slane %v2408, 5
      %v2411 = vsel %vm254, %v2406, %v2410
      %v2412 = vshrl.u32 %v2057, 16
      %v2414 = vrot.slane %v2412, 4
      %v2415 = vor.u32 %v2414, %v2410
      %v2416 = vrot.slane %v2415, 4
      %v2418 = vshll.u32 %v2058, 16
      %v2420 = vrot.slane %v2418, 5
      %v2421 = vsel %vm254, %v2416, %v2420
      %v2423 = vshrl.u32 %v2059, 16
      %v2425 = vrot.slane %v2423, 4
      %v2426 = vshll.u32 %v2059, 16
      %v2428 = vrot.slane %v2426, 5
      %v2429 = vor.u32 %v2425, %v2428
      %v2430 = vrot.slane %v2429, 4
      %v2432 = vshll.u32 %v2060, 16
      %v2434 = vrot.slane %v2432, 5
      %v2435 = vsel %vm254, %v2430, %v2434
      %v2436 = vshrl.u32 %v2060, 16
      %v2438 = vrot.slane %v2436, 4
      %v2439 = vor.u32 %v2438, %v2434
      %v2440 = vrot.slane %v2439, 4
      %v2442 = vshll.u32 %v2061, 16
      %v2444 = vrot.slane %v2442, 5
      %v2445 = vsel %vm254, %v2440, %v2444
      %s2446 = scalar_lea.vmem %s1, 8
      %v2447 = vld [vmem:[%s2446] sm:$0x3]
      %v2448 = vunpack.c.l.b16 %v2075
      %v2449 = vunpack.c.l.b16 %v2085
      %v2450 = vunpack.c.l.b16 %v2099
      %v2451 = vunpack.c.l.b16 %v2109
      %v2452 = vunpack.c.l.b16 %v2123
      %v2453 = vunpack.c.l.b16 %v2133
      %v2454 = vunpack.c.l.b16 %v2147
      %v2455 = vunpack.c.l.b16 %v2157
      %v2456 = vunpack.c.l.b16 %v2171
      %v2457 = vunpack.c.l.b16 %v2181
      %v2458 = vunpack.c.l.b16 %v2195
      %v2459 = vunpack.c.l.b16 %v2205
      %v2460 = vunpack.c.l.b16 %v2219
      %v2461 = vunpack.c.l.b16 %v2229
      %v2462 = vunpack.c.l.b16 %v2243
      %v2463 = vunpack.c.l.b16 %v2253
      %v2464 = vunpack.c.l.b16 %v2267
      %v2465 = vunpack.c.l.b16 %v2277
      %v2466 = vunpack.c.l.b16 %v2291
      %v2467 = vunpack.c.l.b16 %v2301
      %v2468 = vunpack.c.l.b16 %v2315
      %v2469 = vunpack.c.l.b16 %v2325
      %v2470 = vunpack.c.l.b16 %v2339
      %v2471 = vunpack.c.l.b16 %v2349
      %v2472 = vunpack.c.l.b16 %v2363
      %v2473 = vunpack.c.l.b16 %v2373
      %v2474 = vunpack.c.l.b16 %v2387
      %v2475 = vunpack.c.l.b16 %v2397
      %v2476 = vunpack.c.l.b16 %v2411
      %v2477 = vunpack.c.l.b16 %v2421
      %v2478 = vunpack.c.l.b16 %v2435
      %v2479 = vunpack.c.l.b16 %v2445
      %v2480 = vpack.c.b16 %v2449, %v2448
      %v2481 = vpack.c.b16 %v2451, %v2450
      %v2482 = vpack.c.b16 %v2453, %v2452
      %v2483 = vpack.c.b16 %v2455, %v2454
      %v2484 = vpack.c.b16 %v2457, %v2456
      %v2485 = vpack.c.b16 %v2459, %v2458
      %v2486 = vpack.c.b16 %v2461, %v2460
      %v2487 = vpack.c.b16 %v2463, %v2462
      %v2488 = vpack.c.b16 %v2465, %v2464
      %v2489 = vpack.c.b16 %v2467, %v2466
      %v2490 = vpack.c.b16 %v2469, %v2468
      %v2491 = vpack.c.b16 %v2471, %v2470
      %v2492 = vpack.c.b16 %v2473, %v2472
      %v2493 = vpack.c.b16 %v2475, %v2474
      %v2494 = vpack.c.b16 %v2477, %v2476
      %v2495 = vpack.c.b16 %v2479, %v2478
      %v2497 = vsel %vm689, %v2480, 0
      %v2500 = vsel %vm689, %v2481, 0
      %v2503 = vsel %vm689, %v2482, 0
      %v2506 = vsel %vm689, %v2483, 0
      %v2509 = vsel %vm689, %v2484, 0
      %v2512 = vsel %vm689, %v2485, 0
      %v2515 = vsel %vm689, %v2486, 0
      %v2518 = vsel %vm689, %v2487, 0
      %v2521 = vsel %vm689, %v2488, 0
      %v2524 = vsel %vm689, %v2489, 0
      %v2527 = vsel %vm689, %v2490, 0
      %v2530 = vsel %vm689, %v2491, 0
      %v2533 = vsel %vm689, %v2492, 0
      %v2536 = vsel %vm689, %v2493, 0
      %v2539 = vsel %vm689, %v2494, 0
      %v2542 = vsel %vm689, %v2495, 0
      %v2545 = vsel %vm738, %v2447, 0
      %2547 = vmatprep.subr.bf16.mxu0 0
      %2548 = vmatpush1.bf16.msra.mxu0 %v2545
      %2549 = vmatprep.subr.bf16.mxu0 0
      %2550 = vmatpush1.bf16.msra.mxu0 0
      %2551 = vmatprep.subr.bf16.mxu0 0
      %2552 = vmatpush1.bf16.msra.mxu0 0
      %2553 = vmatprep.subr.bf16.mxu0 0
      %2554 = vmatpush1.bf16.msra.mxu0 0
      %2555 = vmatprep.subr.bf16.mxu0 0
      %2556 = vmatpush1.bf16.msra.mxu0 0
      %2557 = vmatprep.subr.bf16.mxu0 0
      %2558 = vmatpush1.bf16.msra.mxu0 0
      %2559 = vmatprep.subr.bf16.mxu0 0
      %2560 = vmatpush1.bf16.msra.mxu0 0
      %2561 = vmatprep.subr.bf16.mxu0 0
      %2562 = vmatpush1.bf16.msra.mxu0 0
      %2563 = vmatprep.subr.bf16.mxu0 0
      %2564 = vmatpush1.bf16.msra.mxu0 0
      %2565 = vmatprep.subr.bf16.mxu0 0
      %2566 = vmatpush1.bf16.msra.mxu0 0
      %2567 = vmatprep.subr.bf16.mxu0 0
      %2568 = vmatpush1.bf16.msra.mxu0 0
      %2569 = vmatprep.subr.bf16.mxu0 0
      %2570 = vmatpush1.bf16.msra.mxu0 0
      %2571 = vmatprep.subr.bf16.mxu0 0
      %2572 = vmatpush1.bf16.msra.mxu0 0
      %2573 = vmatprep.subr.bf16.mxu0 0
      %2574 = vmatpush1.bf16.msra.mxu0 0
      %2575 = vmatprep.subr.bf16.mxu0 0
      %2576 = vmatpush1.bf16.msra.mxu0 0
      %2577 = vmatprep.subr.bf16.mxu0 0
      %2578 = vmatpush1.bf16.msra.mxu0 0
      %2579 = vmatprep.mubr.bf16.mxu0 0
      %2580 = vmatmul.mubr.bf16.gmra.mrb[0].mxu0 %v2497
      %v2581 = vpop.f32.mrb[0].mxu0
      %v2582 = vadd.f32 0.0, %v2581
      %v2583 = vpop.f32.mrb[0].mxu0
      %v2584 = vpop.f32.mrb[0].mxu0
      %v2585 = vadd.f32 0.0, %v2584
      %v2586 = vpop.f32.mrb[0].mxu0
      %2587 = vmatprep.mubr.bf16.mxu0 0
      %2588 = vmatmul.mubr.bf16.gmra.mrb[0].mxu0 %v2500
      %v2589 = vpop.f32.mrb[0].mxu0
      %v2590 = vadd.f32 0.0, %v2589
      %v2591 = vpop.f32.mrb[0].mxu0
      %v2592 = vpop.f32.mrb[0].mxu0
      %v2593 = vadd.f32 0.0, %v2592
      %v2594 = vpop.f32.mrb[0].mxu0
      %2595 = vmatprep.mubr.bf16.mxu0 0
      %2596 = vmatmul.mubr.bf16.gmra.mrb[0].mxu0 %v2503
      %v2597 = vpop.f32.mrb[0].mxu0
      %v2598 = vadd.f32 0.0, %v2597
      %v2599 = vpop.f32.mrb[0].mxu0
      %v2600 = vpop.f32.mrb[0].mxu0
      %v2601 = vadd.f32 0.0, %v2600
      %v2602 = vpop.f32.mrb[0].mxu0
      %2603 = vmatprep.mubr.bf16.mxu0 0
      %2604 = vmatmul.mubr.bf16.gmra.mrb[0].mxu0 %v2506
      %v2605 = vpop.f32.mrb[0].mxu0
      %v2606 = vadd.f32 0.0, %v2605
      %v2607 = vpop.f32.mrb[0].mxu0
      %v2608 = vpop.f32.mrb[0].mxu0
      %v2609 = vadd.f32 0.0, %v2608
      %v2610 = vpop.f32.mrb[0].mxu0
      %2611 = vmatprep.mubr.bf16.mxu0 0
      %2612 = vmatmul.mubr.bf16.gmra.mrb[0].mxu0 %v2509
      %v2613 = vpop.f32.mrb[0].mxu0
      %v2614 = vadd.f32 0.0, %v2613
      %v2615 = vpop.f32.mrb[0].mxu0
      %v2616 = vpop.f32.mrb[0].mxu0
      %v2617 = vadd.f32 0.0, %v2616
      %v2618 = vpop.f32.mrb[0].mxu0
      %2619 = vmatprep.mubr.bf16.mxu0 0
      %2620 = vmatmul.mubr.bf16.gmra.mrb[0].mxu0 %v2512
      %v2621 = vpop.f32.mrb[0].mxu0
      %v2622 = vadd.f32 0.0, %v2621
      %v2623 = vpop.f32.mrb[0].mxu0
      %v2624 = vpop.f32.mrb[0].mxu0
      %v2625 = vadd.f32 0.0, %v2624
      %v2626 = vpop.f32.mrb[0].mxu0
      %2627 = vmatprep.mubr.bf16.mxu0 0
      %2628 = vmatmul.mubr.bf16.gmra.mrb[0].mxu0 %v2515
      %v2629 = vpop.f32.mrb[0].mxu0
      %v2630 = vadd.f32 0.0, %v2629
      %v2631 = vpop.f32.mrb[0].mxu0
      %v2632 = vpop.f32.mrb[0].mxu0
      %v2633 = vadd.f32 0.0, %v2632
      %v2634 = vpop.f32.mrb[0].mxu0
      %2635 = vmatprep.mubr.bf16.mxu0 0
      %2636 = vmatmul.mubr.bf16.gmra.mrb[0].mxu0 %v2518
      %v2637 = vpop.f32.mrb[0].mxu0
      %v2638 = vadd.f32 0.0, %v2637
      %v2639 = vpop.f32.mrb[0].mxu0
      %v2640 = vpop.f32.mrb[0].mxu0
      %v2641 = vadd.f32 0.0, %v2640
      %v2642 = vpop.f32.mrb[0].mxu0
      %2643 = vmatprep.mubr.bf16.mxu0 0
      %2644 = vmatmul.mubr.bf16.gmra.mrb[0].mxu0 %v2521
      %v2645 = vpop.f32.mrb[0].mxu0
      %v2646 = vadd.f32 0.0, %v2645
      %v2647 = vpop.f32.mrb[0].mxu0
      %v2648 = vpop.f32.mrb[0].mxu0
      %v2649 = vadd.f32 0.0, %v2648
      %v2650 = vpop.f32.mrb[0].mxu0
      %2651 = vmatprep.mubr.bf16.mxu0 0
      %2652 = vmatmul.mubr.bf16.gmra.mrb[0].mxu0 %v2524
      %v2653 = vpop.f32.mrb[0].mxu0
      %v2654 = vadd.f32 0.0, %v2653
      %v2655 = vpop.f32.mrb[0].mxu0
      %v2656 = vpop.f32.mrb[0].mxu0
      %v2657 = vadd.f32 0.0, %v2656
      %v2658 = vpop.f32.mrb[0].mxu0
      %2659 = vmatprep.mubr.bf16.mxu0 0
      %2660 = vmatmul.mubr.bf16.gmra.mrb[0].mxu0 %v2527
      %v2661 = vpop.f32.mrb[0].mxu0
      %v2662 = vadd.f32 0.0, %v2661
      %v2663 = vpop.f32.mrb[0].mxu0
      %v2664 = vpop.f32.mrb[0].mxu0
      %v2665 = vadd.f32 0.0, %v2664
      %v2666 = vpop.f32.mrb[0].mxu0
      %2667 = vmatprep.mubr.bf16.mxu0 0
      %2668 = vmatmul.mubr.bf16.gmra.mrb[0].mxu0 %v2530
      %v2669 = vpop.f32.mrb[0].mxu0
      %v2670 = vadd.f32 0.0, %v2669
      %v2671 = vpop.f32.mrb[0].mxu0
      %v2672 = vpop.f32.mrb[0].mxu0
      %v2673 = vadd.f32 0.0, %v2672
      %v2674 = vpop.f32.mrb[0].mxu0
      %2675 = vmatprep.mubr.bf16.mxu0 0
      %2676 = vmatmul.mubr.bf16.gmra.mrb[0].mxu0 %v2533
      %v2677 = vpop.f32.mrb[0].mxu0
      %v2678 = vadd.f32 0.0, %v2677
      %v2679 = vpop.f32.mrb[0].mxu0
      %v2680 = vpop.f32.mrb[0].mxu0
      %v2681 = vadd.f32 0.0, %v2680
      %v2682 = vpop.f32.mrb[0].mxu0
      %2683 = vmatprep.mubr.bf16.mxu0 0
      %2684 = vmatmul.mubr.bf16.gmra.mrb[0].mxu0 %v2536
      %v2685 = vpop.f32.mrb[0].mxu0
      %v2686 = vadd.f32 0.0, %v2685
      %v2687 = vpop.f32.mrb[0].mxu0
      %v2688 = vpop.f32.mrb[0].mxu0
      %v2689 = vadd.f32 0.0, %v2688
      %v2690 = vpop.f32.mrb[0].mxu0
      %2691 = vmatprep.mubr.bf16.mxu0 0
      %2692 = vmatmul.mubr.bf16.gmra.mrb[0].mxu0 %v2539
      %v2693 = vpop.f32.mrb[0].mxu0
      %v2694 = vadd.f32 0.0, %v2693
      %v2695 = vpop.f32.mrb[0].mxu0
      %v2696 = vpop.f32.mrb[0].mxu0
      %v2697 = vadd.f32 0.0, %v2696
      %v2698 = vpop.f32.mrb[0].mxu0
      %2699 = vmatprep.mubr.bf16.mxu0 0
      %2700 = vmatmul.mubr.bf16.gmra.mrb[0].mxu0 %v2542
      %v2701 = vpop.f32.mrb[0].mxu0
      %v2702 = vadd.f32 0.0, %v2701
      %v2703 = vpop.f32.mrb[0].mxu0
      %v2704 = vpop.f32.mrb[0].mxu0
      %v2705 = vadd.f32 0.0, %v2704
      %v2706 = vpop.f32.mrb[0].mxu0
      %2707 = vdwg.mxu0
      %v2708 = vadd.f32 %v1982, %v2582
      %v2709 = vadd.f32 %v1983, %v2585
      %v2710 = vadd.f32 %v1984, %v2590
      %v2711 = vadd.f32 %v1985, %v2593
      %v2712 = vadd.f32 %v1986, %v2598
      %v2713 = vadd.f32 %v1987, %v2601
      %v2714 = vadd.f32 %v1988, %v2606
      %v2715 = vadd.f32 %v1989, %v2609
      %v2716 = vadd.f32 %v1990, %v2614
      %v2717 = vadd.f32 %v1991, %v2617
      %v2718 = vadd.f32 %v1992, %v2622
      %v2719 = vadd.f32 %v1993, %v2625
      %v2720 = vadd.f32 %v1994, %v2630
      %v2721 = vadd.f32 %v1995, %v2633
      %v2722 = vadd.f32 %v1996, %v2638
      %v2723 = vadd.f32 %v1997, %v2641
      %v2724 = vadd.f32 %v1998, %v2646
      %v2725 = vadd.f32 %v1999, %v2649
      %v2726 = vadd.f32 %v2000, %v2654
      %v2727 = vadd.f32 %v2001, %v2657
      %v2728 = vadd.f32 %v2002, %v2662
      %v2729 = vadd.f32 %v2003, %v2665
      %v2730 = vadd.f32 %v2004, %v2670
      %v2731 = vadd.f32 %v2005, %v2673
      %v2732 = vadd.f32 %v2006, %v2678
      %v2733 = vadd.f32 %v2007, %v2681
      %v2734 = vadd.f32 %v2008, %v2686
      %v2735 = vadd.f32 %v2009, %v2689
      %v2736 = vadd.f32 %v2010, %v2694
      %v2737 = vadd.f32 %v2011, %v2697
      %v2738 = vadd.f32 %v2012, %v2702
      %v2739 = vadd.f32 %v2013, %v2705
      %v2740 = vld [vmem:[%s1655] sm:$0xe]
      %v2741 = vld [vmem:[%s1655 + $0xc] sm:$0xe]
      %v2742 = vld [vmem:[%s1655 + $0x18] sm:$0xe]
      %v2743 = vld [vmem:[%s1655 + $0x24] sm:$0xe]
      %v2744 = vld [vmem:[%s1655 + $0x30] sm:$0xe]
      %v2745 = vld [vmem:[%s1655 + $0x3c] sm:$0xe]
      %v2746 = vld [vmem:[%s1655 + $0x48] sm:$0xe]
      %v2747 = vld [vmem:[%s1655 + $0x54] sm:$0xe]
      %v2748 = vld [vmem:[%s1655 + $0x60] sm:$0xe]
      %v2749 = vld [vmem:[%s1655 + $0x6c] sm:$0xe]
      %v2750 = vld [vmem:[%s1655 + $0x78] sm:$0xe]
      %v2751 = vld [vmem:[%s1655 + $0x84] sm:$0xe]
      %v2752 = vld [vmem:[%s1655 + $0x90] sm:$0xe]
      %v2753 = vld [vmem:[%s1655 + $0x9c] sm:$0xe]
      %v2754 = vld [vmem:[%s1655 + $0xa8] sm:$0xe]
      %v2755 = vld [vmem:[%s1655 + $0xb4] sm:$0xe]
      %v2804 = vrot.slane %v2740, 5
      %v2805 = vrot.slane %v2804, 4
      %v2806 = vrot.slane %v2015, 5
      %v2807 = vsel %vm1245, %v2805, %v2806
      %v2808 = vrot.slane %v2806, 4
      %v2809 = vrot.slane %v2016, 5
      %v2810 = vsel %vm1245, %v2808, %v2809
      %v2811 = vrot.slane %v2741, 5
      %v2812 = vrot.slane %v2811, 4
      %v2813 = vrot.slane %v2018, 5
      %v2814 = vsel %vm1245, %v2812, %v2813
      %v2815 = vrot.slane %v2813, 4
      %v2816 = vrot.slane %v2019, 5
      %v2817 = vsel %vm1245, %v2815, %v2816
      %v2818 = vrot.slane %v2742, 5
      %v2819 = vrot.slane %v2818, 4
      %v2820 = vrot.slane %v2021, 5
      %v2821 = vsel %vm1245, %v2819, %v2820
      %v2822 = vrot.slane %v2820, 4
      %v2823 = vrot.slane %v2022, 5
      %v2824 = vsel %vm1245, %v2822, %v2823
      %v2825 = vrot.slane %v2743, 5
      %v2826 = vrot.slane %v2825, 4
      %v2827 = vrot.slane %v2024, 5
      %v2828 = vsel %vm1245, %v2826, %v2827
      %v2829 = vrot.slane %v2827, 4
      %v2830 = vrot.slane %v2025, 5
      %v2831 = vsel %vm1245, %v2829, %v2830
      %v2832 = vrot.slane %v2744, 5
      %v2833 = vrot.slane %v2832, 4
      %v2834 = vrot.slane %v2027, 5
      %v2835 = vsel %vm1245, %v2833, %v2834
      %v2836 = vrot.slane %v2834, 4
      %v2837 = vrot.slane %v2028, 5
      %v2838 = vsel %vm1245, %v2836, %v2837
      %v2839 = vrot.slane %v2745, 5
      %v2840 = vrot.slane %v2839, 4
      %v2841 = vrot.slane %v2030, 5
      %v2842 = vsel %vm1245, %v2840, %v2841
      %v2843 = vrot.slane %v2841, 4
      %v2844 = vrot.slane %v2031, 5
      %v2845 = vsel %vm1245, %v2843, %v2844
      %v2846 = vrot.slane %v2746, 5
      %v2847 = vrot.slane %v2846, 4
      %v2848 = vrot.slane %v2033, 5
      %v2849 = vsel %vm1245, %v2847, %v2848
      %v2850 = vrot.slane %v2848, 4
      %v2851 = vrot.slane %v2034, 5
      %v2852 = vsel %vm1245, %v2850, %v2851
      %v2853 = vrot.slane %v2747, 5
      %v2854 = vrot.slane %v2853, 4
      %v2855 = vrot.slane %v2036, 5
      %v2856 = vsel %vm1245, %v2854, %v2855
      %v2857 = vrot.slane %v2855, 4
      %v2858 = vrot.slane %v2037, 5
      %v2859 = vsel %vm1245, %v2857, %v2858
      %v2860 = vrot.slane %v2748, 5
      %v2861 = vrot.slane %v2860, 4
      %v2862 = vrot.slane %v2039, 5
      %v2863 = vsel %vm1245, %v2861, %v2862
      %v2864 = vrot.slane %v2862, 4
      %v2865 = vrot.slane %v2040, 5
      %v2866 = vsel %vm1245, %v2864, %v2865
      %v2867 = vrot.slane %v2749, 5
      %v2868 = vrot.slane %v2867, 4
      %v2869 = vrot.slane %v2042, 5
      %v2870 = vsel %vm1245, %v2868, %v2869
      %v2871 = vrot.slane %v2869, 4
      %v2872 = vrot.slane %v2043, 5
      %v2873 = vsel %vm1245, %v2871, %v2872
      %v2874 = vrot.slane %v2750, 5
      %v2875 = vrot.slane %v2874, 4
      %v2876 = vrot.slane %v2045, 5
      %v2877 = vsel %vm1245, %v2875, %v2876
      %v2878 = vrot.slane %v2876, 4
      %v2879 = vrot.slane %v2046, 5
      %v2880 = vsel %vm1245, %v2878, %v2879
      %v2881 = vrot.slane %v2751, 5
      %v2882 = vrot.slane %v2881, 4
      %v2883 = vrot.slane %v2048, 5
      %v2884 = vsel %vm1245, %v2882, %v2883
      %v2885 = vrot.slane %v2883, 4
      %v2886 = vrot.slane %v2049, 5
      %v2887 = vsel %vm1245, %v2885, %v2886
      %v2888 = vrot.slane %v2752, 5
      %v2889 = vrot.slane %v2888, 4
      %v2890 = vrot.slane %v2051, 5
      %v2891 = vsel %vm1245, %v2889, %v2890
      %v2892 = vrot.slane %v2890, 4
      %v2893 = vrot.slane %v2052, 5
      %v2894 = vsel %vm1245, %v2892, %v2893
      %v2895 = vrot.slane %v2753, 5
      %v2896 = vrot.slane %v2895, 4
      %v2897 = vrot.slane %v2054, 5
      %v2898 = vsel %vm1245, %v2896, %v2897
      %v2899 = vrot.slane %v2897, 4
      %v2900 = vrot.slane %v2055, 5
      %v2901 = vsel %vm1245, %v2899, %v2900
      %v2902 = vrot.slane %v2754, 5
      %v2903 = vrot.slane %v2902, 4
      %v2904 = vrot.slane %v2057, 5
      %v2905 = vsel %vm1245, %v2903, %v2904
      %v2906 = vrot.slane %v2904, 4
      %v2907 = vrot.slane %v2058, 5
      %v2908 = vsel %vm1245, %v2906, %v2907
      %v2909 = vrot.slane %v2755, 5
      %v2910 = vrot.slane %v2909, 4
      %v2911 = vrot.slane %v2060, 5
      %v2912 = vsel %vm1245, %v2910, %v2911
      %v2913 = vrot.slane %v2911, 4
      %v2914 = vrot.slane %v2061, 5
      %v2915 = vsel %vm1245, %v2913, %v2914
      %s2916 = scalar_lea.vmem %s1, 10
      %v2917 = vld [vmem:[%s2916] sm:$0x3]
      %v2918 = vunpack.c.l.b16 %v2807
      %v2919 = vunpack.c.l.b16 %v2810
      %v2920 = vunpack.c.l.b16 %v2814
      %v2921 = vunpack.c.l.b16 %v2817
      %v2922 = vunpack.c.l.b16 %v2821
      %v2923 = vunpack.c.l.b16 %v2824
      %v2924 = vunpack.c.l.b16 %v2828
      %v2925 = vunpack.c.l.b16 %v2831
      %v2926 = vunpack.c.l.b16 %v2835
      %v2927 = vunpack.c.l.b16 %v2838
      %v2928 = vunpack.c.l.b16 %v2842
      %v2929 = vunpack.c.l.b16 %v2845
      %v2930 = vunpack.c.l.b16 %v2849
      %v2931 = vunpack.c.l.b16 %v2852
      %v2932 = vunpack.c.l.b16 %v2856
      %v2933 = vunpack.c.l.b16 %v2859
      %v2934 = vunpack.c.l.b16 %v2863
      %v2935 = vunpack.c.l.b16 %v2866
      %v2936 = vunpack.c.l.b16 %v2870
      %v2937 = vunpack.c.l.b16 %v2873
      %v2938 = vunpack.c.l.b16 %v2877
      %v2939 = vunpack.c.l.b16 %v2880
      %v2940 = vunpack.c.l.b16 %v2884
      %v2941 = vunpack.c.l.b16 %v2887
      %v2942 = vunpack.c.l.b16 %v2891
      %v2943 = vunpack.c.l.b16 %v2894
      %v2944 = vunpack.c.l.b16 %v2898
      %v2945 = vunpack.c.l.b16 %v2901
      %v2946 = vunpack.c.l.b16 %v2905
      %v2947 = vunpack.c.l.b16 %v2908
      %v2948 = vunpack.c.l.b16 %v2912
      %v2949 = vunpack.c.l.b16 %v2915
      %v2950 = vpack.c.b16 %v2919, %v2918
      %v2951 = vpack.c.b16 %v2921, %v2920
      %v2952 = vpack.c.b16 %v2923, %v2922
      %v2953 = vpack.c.b16 %v2925, %v2924
      %v2954 = vpack.c.b16 %v2927, %v2926
      %v2955 = vpack.c.b16 %v2929, %v2928
      %v2956 = vpack.c.b16 %v2931, %v2930
      %v2957 = vpack.c.b16 %v2933, %v2932
      %v2958 = vpack.c.b16 %v2935, %v2934
      %v2959 = vpack.c.b16 %v2937, %v2936
      %v2960 = vpack.c.b16 %v2939, %v2938
      %v2961 = vpack.c.b16 %v2941, %v2940
      %v2962 = vpack.c.b16 %v2943, %v2942
      %v2963 = vpack.c.b16 %v2945, %v2944
      %v2964 = vpack.c.b16 %v2947, %v2946
      %v2965 = vpack.c.b16 %v2949, %v2948
      %v2967 = vsel %vm689, %v2950, 0
      %v2970 = vsel %vm689, %v2951, 0
      %v2973 = vsel %vm689, %v2952, 0
      %v2976 = vsel %vm689, %v2953, 0
      %v2979 = vsel %vm689, %v2954, 0
      %v2982 = vsel %vm689, %v2955, 0
      %v2985 = vsel %vm689, %v2956, 0
      %v2988 = vsel %vm689, %v2957, 0
      %v2991 = vsel %vm689, %v2958, 0
      %v2994 = vsel %vm689, %v2959, 0
      %v2997 = vsel %vm689, %v2960, 0
      %v3000 = vsel %vm689, %v2961, 0
      %v3003 = vsel %vm689, %v2962, 0
      %v3006 = vsel %vm689, %v2963, 0
      %v3009 = vsel %vm689, %v2964, 0
      %v3012 = vsel %vm689, %v2965, 0
      %v3015 = vsel %vm738, %v2917, 0
      %3017 = vmatprep.subr.bf16.mxu0 0
      %3018 = vmatpush1.bf16.msra.mxu0 %v3015
      %3019 = vmatprep.subr.bf16.mxu0 0
      %3020 = vmatpush1.bf16.msra.mxu0 0
      %3021 = vmatprep.subr.bf16.mxu0 0
      %3022 = vmatpush1.bf16.msra.mxu0 0
      %3023 = vmatprep.subr.bf16.mxu0 0
      %3024 = vmatpush1.bf16.msra.mxu0 0
      %3025 = vmatprep.subr.bf16.mxu0 0
      %3026 = vmatpush1.bf16.msra.mxu0 0
      %3027 = vmatprep.subr.bf16.mxu0 0
      %3028 = vmatpush1.bf16.msra.mxu0 0
      %3029 = vmatprep.subr.bf16.mxu0 0
      %3030 = vmatpush1.bf16.msra.mxu0 0
      %3031 = vmatprep.subr.bf16.mxu0 0
      %3032 = vmatpush1.bf16.msra.mxu0 0
      %3033 = vmatprep.subr.bf16.mxu0 0
      %3034 = vmatpush1.bf16.msra.mxu0 0
      %3035 = vmatprep.subr.bf16.mxu0 0
      %3036 = vmatpush1.bf16.msra.mxu0 0
      %3037 = vmatprep.subr.bf16.mxu0 0
      %3038 = vmatpush1.bf16.msra.mxu0 0
      %3039 = vmatprep.subr.bf16.mxu0 0
      %3040 = vmatpush1.bf16.msra.mxu0 0
      %3041 = vmatprep.subr.bf16.mxu0 0
      %3042 = vmatpush1.bf16.msra.mxu0 0
      %3043 = vmatprep.subr.bf16.mxu0 0
      %3044 = vmatpush1.bf16.msra.mxu0 0
      %3045 = vmatprep.subr.bf16.mxu0 0
      %3046 = vmatpush1.bf16.msra.mxu0 0
      %3047 = vmatprep.subr.bf16.mxu0 0
      %3048 = vmatpush1.bf16.msra.mxu0 0
      %3049 = vmatprep.mubr.bf16.mxu0 0
      %3050 = vmatmul.mubr.bf16.gmra.mrb[0].mxu0 %v2967
      %v3051 = vpop.f32.mrb[0].mxu0
      %v3052 = vadd.f32 0.0, %v3051
      %v3053 = vpop.f32.mrb[0].mxu0
      %v3054 = vpop.f32.mrb[0].mxu0
      %v3055 = vadd.f32 0.0, %v3054
      %v3056 = vpop.f32.mrb[0].mxu0
      %3057 = vmatprep.mubr.bf16.mxu0 0
      %3058 = vmatmul.mubr.bf16.gmra.mrb[0].mxu0 %v2970
      %v3059 = vpop.f32.mrb[0].mxu0
      %v3060 = vadd.f32 0.0, %v3059
      %v3061 = vpop.f32.mrb[0].mxu0
      %v3062 = vpop.f32.mrb[0].mxu0
      %v3063 = vadd.f32 0.0, %v3062
      %v3064 = vpop.f32.mrb[0].mxu0
      %3065 = vmatprep.mubr.bf16.mxu0 0
      %3066 = vmatmul.mubr.bf16.gmra.mrb[0].mxu0 %v2973
      %v3067 = vpop.f32.mrb[0].mxu0
      %v3068 = vadd.f32 0.0, %v3067
      %v3069 = vpop.f32.mrb[0].mxu0
      %v3070 = vpop.f32.mrb[0].mxu0
      %v3071 = vadd.f32 0.0, %v3070
      %v3072 = vpop.f32.mrb[0].mxu0
      %3073 = vmatprep.mubr.bf16.mxu0 0
      %3074 = vmatmul.mubr.bf16.gmra.mrb[0].mxu0 %v2976
      %v3075 = vpop.f32.mrb[0].mxu0
      %v3076 = vadd.f32 0.0, %v3075
      %v3077 = vpop.f32.mrb[0].mxu0
      %v3078 = vpop.f32.mrb[0].mxu0
      %v3079 = vadd.f32 0.0, %v3078
      %v3080 = vpop.f32.mrb[0].mxu0
      %3081 = vmatprep.mubr.bf16.mxu0 0
      %3082 = vmatmul.mubr.bf16.gmra.mrb[0].mxu0 %v2979
      %v3083 = vpop.f32.mrb[0].mxu0
      %v3084 = vadd.f32 0.0, %v3083
      %v3085 = vpop.f32.mrb[0].mxu0
      %v3086 = vpop.f32.mrb[0].mxu0
      %v3087 = vadd.f32 0.0, %v3086
      %v3088 = vpop.f32.mrb[0].mxu0
      %3089 = vmatprep.mubr.bf16.mxu0 0
      %3090 = vmatmul.mubr.bf16.gmra.mrb[0].mxu0 %v2982
      %v3091 = vpop.f32.mrb[0].mxu0
      %v3092 = vadd.f32 0.0, %v3091
      %v3093 = vpop.f32.mrb[0].mxu0
      %v3094 = vpop.f32.mrb[0].mxu0
      %v3095 = vadd.f32 0.0, %v3094
      %v3096 = vpop.f32.mrb[0].mxu0
      %3097 = vmatprep.mubr.bf16.mxu0 0
      %3098 = vmatmul.mubr.bf16.gmra.mrb[0].mxu0 %v2985
      %v3099 = vpop.f32.mrb[0].mxu0
      %v3100 = vadd.f32 0.0, %v3099
      %v3101 = vpop.f32.mrb[0].mxu0
      %v3102 = vpop.f32.mrb[0].mxu0
      %v3103 = vadd.f32 0.0, %v3102
      %v3104 = vpop.f32.mrb[0].mxu0
      %3105 = vmatprep.mubr.bf16.mxu0 0
      %3106 = vmatmul.mubr.bf16.gmra.mrb[0].mxu0 %v2988
      %v3107 = vpop.f32.mrb[0].mxu0
      %v3108 = vadd.f32 0.0, %v3107
      %v3109 = vpop.f32.mrb[0].mxu0
      %v3110 = vpop.f32.mrb[0].mxu0
      %v3111 = vadd.f32 0.0, %v3110
      %v3112 = vpop.f32.mrb[0].mxu0
      %3113 = vmatprep.mubr.bf16.mxu0 0
      %3114 = vmatmul.mubr.bf16.gmra.mrb[0].mxu0 %v2991
      %v3115 = vpop.f32.mrb[0].mxu0
      %v3116 = vadd.f32 0.0, %v3115
      %v3117 = vpop.f32.mrb[0].mxu0
      %v3118 = vpop.f32.mrb[0].mxu0
      %v3119 = vadd.f32 0.0, %v3118
      %v3120 = vpop.f32.mrb[0].mxu0
      %3121 = vmatprep.mubr.bf16.mxu0 0
      %3122 = vmatmul.mubr.bf16.gmra.mrb[0].mxu0 %v2994
      %v3123 = vpop.f32.mrb[0].mxu0
      %v3124 = vadd.f32 0.0, %v3123
      %v3125 = vpop.f32.mrb[0].mxu0
      %v3126 = vpop.f32.mrb[0].mxu0
      %v3127 = vadd.f32 0.0, %v3126
      %v3128 = vpop.f32.mrb[0].mxu0
      %3129 = vmatprep.mubr.bf16.mxu0 0
      %3130 = vmatmul.mubr.bf16.gmra.mrb[0].mxu0 %v2997
      %v3131 = vpop.f32.mrb[0].mxu0
      %v3132 = vadd.f32 0.0, %v3131
      %v3133 = vpop.f32.mrb[0].mxu0
      %v3134 = vpop.f32.mrb[0].mxu0
      %v3135 = vadd.f32 0.0, %v3134
      %v3136 = vpop.f32.mrb[0].mxu0
      %3137 = vmatprep.mubr.bf16.mxu0 0
      %3138 = vmatmul.mubr.bf16.gmra.mrb[0].mxu0 %v3000
      %v3139 = vpop.f32.mrb[0].mxu0
      %v3140 = vadd.f32 0.0, %v3139
      %v3141 = vpop.f32.mrb[0].mxu0
      %v3142 = vpop.f32.mrb[0].mxu0
      %v3143 = vadd.f32 0.0, %v3142
      %v3144 = vpop.f32.mrb[0].mxu0
      %3145 = vmatprep.mubr.bf16.mxu0 0
      %3146 = vmatmul.mubr.bf16.gmra.mrb[0].mxu0 %v3003
      %v3147 = vpop.f32.mrb[0].mxu0
      %v3148 = vadd.f32 0.0, %v3147
      %v3149 = vpop.f32.mrb[0].mxu0
      %v3150 = vpop.f32.mrb[0].mxu0
      %v3151 = vadd.f32 0.0, %v3150
      %v3152 = vpop.f32.mrb[0].mxu0
      %3153 = vmatprep.mubr.bf16.mxu0 0
      %3154 = vmatmul.mubr.bf16.gmra.mrb[0].mxu0 %v3006
      %v3155 = vpop.f32.mrb[0].mxu0
      %v3156 = vadd.f32 0.0, %v3155
      %v3157 = vpop.f32.mrb[0].mxu0
      %v3158 = vpop.f32.mrb[0].mxu0
      %v3159 = vadd.f32 0.0, %v3158
      %v3160 = vpop.f32.mrb[0].mxu0
      %3161 = vmatprep.mubr.bf16.mxu0 0
      %3162 = vmatmul.mubr.bf16.gmra.mrb[0].mxu0 %v3009
      %v3163 = vpop.f32.mrb[0].mxu0
      %v3164 = vadd.f32 0.0, %v3163
      %v3165 = vpop.f32.mrb[0].mxu0
      %v3166 = vpop.f32.mrb[0].mxu0
      %v3167 = vadd.f32 0.0, %v3166
      %v3168 = vpop.f32.mrb[0].mxu0
      %3169 = vmatprep.mubr.bf16.mxu0 0
      %3170 = vmatmul.mubr.bf16.gmra.mrb[0].mxu0 %v3012
      %v3171 = vpop.f32.mrb[0].mxu0
      %v3172 = vadd.f32 0.0, %v3171
      %v3173 = vpop.f32.mrb[0].mxu0
      %v3174 = vpop.f32.mrb[0].mxu0
      %v3175 = vadd.f32 0.0, %v3174
      %v3176 = vpop.f32.mrb[0].mxu0
      %3177 = vdwg.mxu0
      %v3178 = vadd.f32 %v2708, %v3052
      %v3179 = vadd.f32 %v2709, %v3055
      %v3180 = vadd.f32 %v2710, %v3060
      %v3181 = vadd.f32 %v2711, %v3063
      %v3182 = vadd.f32 %v2712, %v3068
      %v3183 = vadd.f32 %v2713, %v3071
      %v3184 = vadd.f32 %v2714, %v3076
      %v3185 = vadd.f32 %v2715, %v3079
      %v3186 = vadd.f32 %v2716, %v3084
      %v3187 = vadd.f32 %v2717, %v3087
      %v3188 = vadd.f32 %v2718, %v3092
      %v3189 = vadd.f32 %v2719, %v3095
      %v3190 = vadd.f32 %v2720, %v3100
      %v3191 = vadd.f32 %v2721, %v3103
      %v3192 = vadd.f32 %v2722, %v3108
      %v3193 = vadd.f32 %v2723, %v3111
      %v3194 = vadd.f32 %v2724, %v3116
      %v3195 = vadd.f32 %v2725, %v3119
      %v3196 = vadd.f32 %v2726, %v3124
      %v3197 = vadd.f32 %v2727, %v3127
      %v3198 = vadd.f32 %v2728, %v3132
      %v3199 = vadd.f32 %v2729, %v3135
      %v3200 = vadd.f32 %v2730, %v3140
      %v3201 = vadd.f32 %v2731, %v3143
      %v3202 = vadd.f32 %v2732, %v3148
      %v3203 = vadd.f32 %v2733, %v3151
      %v3204 = vadd.f32 %v2734, %v3156
      %v3205 = vadd.f32 %v2735, %v3159
      %v3206 = vadd.f32 %v2736, %v3164
      %v3207 = vadd.f32 %v2737, %v3167
      %v3208 = vadd.f32 %v2738, %v3172
      %v3209 = vadd.f32 %v2739, %v3175
      %s3210 = sadd.s32 %s199, 2
      %s3211 = smul.u32 %s3210, 3
      %s3212 = smul.addr %s3211, 4
      %s3213 = scalar_lea.vmem %s187, %s3212
      %v3214 = vld [vmem:[%s3213] sm:$0xf]
      %v3215 = vld [vmem:[%s3213 + $0x4] sm:$0xf]
      %v3216 = vld [vmem:[%s3213 + $0xc] sm:$0xf]
      %v3217 = vld [vmem:[%s3213 + $0x10] sm:$0xf]
      %v3218 = vld [vmem:[%s3213 + $0x18] sm:$0xf]
      %v3219 = vld [vmem:[%s3213 + $0x1c] sm:$0xf]
      %v3220 = vld [vmem:[%s3213 + $0x24] sm:$0xf]
      %v3221 = vld [vmem:[%s3213 + $0x28] sm:$0xf]
      %v3222 = vld [vmem:[%s3213 + $0x30] sm:$0xf]
      %v3223 = vld [vmem:[%s3213 + $0x34] sm:$0xf]
      %v3224 = vld [vmem:[%s3213 + $0x3c] sm:$0xf]
      %v3225 = vld [vmem:[%s3213 + $0x40] sm:$0xf]
      %v3226 = vld [vmem:[%s3213 + $0x48] sm:$0xf]
      %v3227 = vld [vmem:[%s3213 + $0x4c] sm:$0xf]
      %v3228 = vld [vmem:[%s3213 + $0x54] sm:$0xf]
      %v3229 = vld [vmem:[%s3213 + $0x58] sm:$0xf]
      %v3230 = vld [vmem:[%s3213 + $0x60] sm:$0xf]
      %v3231 = vld [vmem:[%s3213 + $0x64] sm:$0xf]
      %v3232 = vld [vmem:[%s3213 + $0x6c] sm:$0xf]
      %v3233 = vld [vmem:[%s3213 + $0x70] sm:$0xf]
      %v3234 = vld [vmem:[%s3213 + $0x78] sm:$0xf]
      %v3235 = vld [vmem:[%s3213 + $0x7c] sm:$0xf]
      %v3236 = vld [vmem:[%s3213 + $0x84] sm:$0xf]
      %v3237 = vld [vmem:[%s3213 + $0x88] sm:$0xf]
      %v3238 = vld [vmem:[%s3213 + $0x90] sm:$0xf]
      %v3239 = vld [vmem:[%s3213 + $0x94] sm:$0xf]
      %v3240 = vld [vmem:[%s3213 + $0x9c] sm:$0xf]
      %v3241 = vld [vmem:[%s3213 + $0xa0] sm:$0xf]
      %v3242 = vld [vmem:[%s3213 + $0xa8] sm:$0xf]
      %v3243 = vld [vmem:[%s3213 + $0xac] sm:$0xf]
      %v3244 = vld [vmem:[%s3213 + $0xb4] sm:$0xf]
      %v3245 = vld [vmem:[%s3213 + $0xb8] sm:$0xf]
      %s3246 = scalar_lea.vmem %s1, 12
      %v3247 = vld [vmem:[%s3246] sm:$0x3]
      %v3280 = vunpack.c.l.b16 %v3214
      %v3281 = vunpack.c.l.b16 %v3215
      %v3282 = vunpack.c.l.b16 %v3216
      %v3283 = vunpack.c.l.b16 %v3217
      %v3284 = vunpack.c.l.b16 %v3218
      %v3285 = vunpack.c.l.b16 %v3219
      %v3286 = vunpack.c.l.b16 %v3220
      %v3287 = vunpack.c.l.b16 %v3221
      %v3288 = vunpack.c.l.b16 %v3222
      %v3289 = vunpack.c.l.b16 %v3223
      %v3290 = vunpack.c.l.b16 %v3224
      %v3291 = vunpack.c.l.b16 %v3225
      %v3292 = vunpack.c.l.b16 %v3226
      %v3293 = vunpack.c.l.b16 %v3227
      %v3294 = vunpack.c.l.b16 %v3228
      %v3295 = vunpack.c.l.b16 %v3229
      %v3296 = vunpack.c.l.b16 %v3230
      %v3297 = vunpack.c.l.b16 %v3231
      %v3298 = vunpack.c.l.b16 %v3232
      %v3299 = vunpack.c.l.b16 %v3233
      %v3300 = vunpack.c.l.b16 %v3234
      %v3301 = vunpack.c.l.b16 %v3235
      %v3302 = vunpack.c.l.b16 %v3236
      %v3303 = vunpack.c.l.b16 %v3237
      %v3304 = vunpack.c.l.b16 %v3238
      %v3305 = vunpack.c.l.b16 %v3239
      %v3306 = vunpack.c.l.b16 %v3240
      %v3307 = vunpack.c.l.b16 %v3241
      %v3308 = vunpack.c.l.b16 %v3242
      %v3309 = vunpack.c.l.b16 %v3243
      %v3310 = vunpack.c.l.b16 %v3244
      %v3311 = vunpack.c.l.b16 %v3245
      %v3312 = vpack.c.b16 %v3281, %v3280
      %v3313 = vpack.c.b16 %v3283, %v3282
      %v3314 = vpack.c.b16 %v3285, %v3284
      %v3315 = vpack.c.b16 %v3287, %v3286
      %v3316 = vpack.c.b16 %v3289, %v3288
      %v3317 = vpack.c.b16 %v3291, %v3290
      %v3318 = vpack.c.b16 %v3293, %v3292
      %v3319 = vpack.c.b16 %v3295, %v3294
      %v3320 = vpack.c.b16 %v3297, %v3296
      %v3321 = vpack.c.b16 %v3299, %v3298
      %v3322 = vpack.c.b16 %v3301, %v3300
      %v3323 = vpack.c.b16 %v3303, %v3302
      %v3324 = vpack.c.b16 %v3305, %v3304
      %v3325 = vpack.c.b16 %v3307, %v3306
      %v3326 = vpack.c.b16 %v3309, %v3308
      %v3327 = vpack.c.b16 %v3311, %v3310
      %v3329 = vsel %vm689, %v3312, 0
      %v3332 = vsel %vm689, %v3313, 0
      %v3335 = vsel %vm689, %v3314, 0
      %v3338 = vsel %vm689, %v3315, 0
      %v3341 = vsel %vm689, %v3316, 0
      %v3344 = vsel %vm689, %v3317, 0
      %v3347 = vsel %vm689, %v3318, 0
      %v3350 = vsel %vm689, %v3319, 0
      %v3353 = vsel %vm689, %v3320, 0
      %v3356 = vsel %vm689, %v3321, 0
      %v3359 = vsel %vm689, %v3322, 0
      %v3362 = vsel %vm689, %v3323, 0
      %v3365 = vsel %vm689, %v3324, 0
      %v3368 = vsel %vm689, %v3325, 0
      %v3371 = vsel %vm689, %v3326, 0
      %v3374 = vsel %vm689, %v3327, 0
      %v3377 = vsel %vm738, %v3247, 0
      %3379 = vmatprep.subr.bf16.mxu0 0
      %3380 = vmatpush1.bf16.msra.mxu0 %v3377
      %3381 = vmatprep.subr.bf16.mxu0 0
      %3382 = vmatpush1.bf16.msra.mxu0 0
      %3383 = vmatprep.subr.bf16.mxu0 0
      %3384 = vmatpush1.bf16.msra.mxu0 0
      %3385 = vmatprep.subr.bf16.mxu0 0
      %3386 = vmatpush1.bf16.msra.mxu0 0
      %3387 = vmatprep.subr.bf16.mxu0 0
      %3388 = vmatpush1.bf16.msra.mxu0 0
      %3389 = vmatprep.subr.bf16.mxu0 0
      %3390 = vmatpush1.bf16.msra.mxu0 0
      %3391 = vmatprep.subr.bf16.mxu0 0
      %3392 = vmatpush1.bf16.msra.mxu0 0
      %3393 = vmatprep.subr.bf16.mxu0 0
      %3394 = vmatpush1.bf16.msra.mxu0 0
      %3395 = vmatprep.subr.bf16.mxu0 0
      %3396 = vmatpush1.bf16.msra.mxu0 0
      %3397 = vmatprep.subr.bf16.mxu0 0
      %3398 = vmatpush1.bf16.msra.mxu0 0
      %3399 = vmatprep.subr.bf16.mxu0 0
      %3400 = vmatpush1.bf16.msra.mxu0 0
      %3401 = vmatprep.subr.bf16.mxu0 0
      %3402 = vmatpush1.bf16.msra.mxu0 0
      %3403 = vmatprep.subr.bf16.mxu0 0
      %3404 = vmatpush1.bf16.msra.mxu0 0
      %3405 = vmatprep.subr.bf16.mxu0 0
      %3406 = vmatpush1.bf16.msra.mxu0 0
      %3407 = vmatprep.subr.bf16.mxu0 0
      %3408 = vmatpush1.bf16.msra.mxu0 0
      %3409 = vmatprep.subr.bf16.mxu0 0
      %3410 = vmatpush1.bf16.msra.mxu0 0
      %3411 = vmatprep.mubr.bf16.mxu0 0
      %3412 = vmatmul.mubr.bf16.gmra.mrb[0].mxu0 %v3329
      %v3413 = vpop.f32.mrb[0].mxu0
      %v3414 = vadd.f32 0.0, %v3413
      %v3415 = vpop.f32.mrb[0].mxu0
      %v3416 = vpop.f32.mrb[0].mxu0
      %v3417 = vadd.f32 0.0, %v3416
      %v3418 = vpop.f32.mrb[0].mxu0
      %3419 = vmatprep.mubr.bf16.mxu0 0
      %3420 = vmatmul.mubr.bf16.gmra.mrb[0].mxu0 %v3332
      %v3421 = vpop.f32.mrb[0].mxu0
      %v3422 = vadd.f32 0.0, %v3421
      %v3423 = vpop.f32.mrb[0].mxu0
      %v3424 = vpop.f32.mrb[0].mxu0
      %v3425 = vadd.f32 0.0, %v3424
      %v3426 = vpop.f32.mrb[0].mxu0
      %3427 = vmatprep.mubr.bf16.mxu0 0
      %3428 = vmatmul.mubr.bf16.gmra.mrb[0].mxu0 %v3335
      %v3429 = vpop.f32.mrb[0].mxu0
      %v3430 = vadd.f32 0.0, %v3429
      %v3431 = vpop.f32.mrb[0].mxu0
      %v3432 = vpop.f32.mrb[0].mxu0
      %v3433 = vadd.f32 0.0, %v3432
      %v3434 = vpop.f32.mrb[0].mxu0
      %3435 = vmatprep.mubr.bf16.mxu0 0
      %3436 = vmatmul.mubr.bf16.gmra.mrb[0].mxu0 %v3338
      %v3437 = vpop.f32.mrb[0].mxu0
      %v3438 = vadd.f32 0.0, %v3437
      %v3439 = vpop.f32.mrb[0].mxu0
      %v3440 = vpop.f32.mrb[0].mxu0
      %v3441 = vadd.f32 0.0, %v3440
      %v3442 = vpop.f32.mrb[0].mxu0
      %3443 = vmatprep.mubr.bf16.mxu0 0
      %3444 = vmatmul.mubr.bf16.gmra.mrb[0].mxu0 %v3341
      %v3445 = vpop.f32.mrb[0].mxu0
      %v3446 = vadd.f32 0.0, %v3445
      %v3447 = vpop.f32.mrb[0].mxu0
      %v3448 = vpop.f32.mrb[0].mxu0
      %v3449 = vadd.f32 0.0, %v3448
      %v3450 = vpop.f32.mrb[0].mxu0
      %3451 = vmatprep.mubr.bf16.mxu0 0
      %3452 = vmatmul.mubr.bf16.gmra.mrb[0].mxu0 %v3344
      %v3453 = vpop.f32.mrb[0].mxu0
      %v3454 = vadd.f32 0.0, %v3453
      %v3455 = vpop.f32.mrb[0].mxu0
      %v3456 = vpop.f32.mrb[0].mxu0
      %v3457 = vadd.f32 0.0, %v3456
      %v3458 = vpop.f32.mrb[0].mxu0
      %3459 = vmatprep.mubr.bf16.mxu0 0
      %3460 = vmatmul.mubr.bf16.gmra.mrb[0].mxu0 %v3347
      %v3461 = vpop.f32.mrb[0].mxu0
      %v3462 = vadd.f32 0.0, %v3461
      %v3463 = vpop.f32.mrb[0].mxu0
      %v3464 = vpop.f32.mrb[0].mxu0
      %v3465 = vadd.f32 0.0, %v3464
      %v3466 = vpop.f32.mrb[0].mxu0
      %3467 = vmatprep.mubr.bf16.mxu0 0
      %3468 = vmatmul.mubr.bf16.gmra.mrb[0].mxu0 %v3350
      %v3469 = vpop.f32.mrb[0].mxu0
      %v3470 = vadd.f32 0.0, %v3469
      %v3471 = vpop.f32.mrb[0].mxu0
      %v3472 = vpop.f32.mrb[0].mxu0
      %v3473 = vadd.f32 0.0, %v3472
      %v3474 = vpop.f32.mrb[0].mxu0
      %3475 = vmatprep.mubr.bf16.mxu0 0
      %3476 = vmatmul.mubr.bf16.gmra.mrb[0].mxu0 %v3353
      %v3477 = vpop.f32.mrb[0].mxu0
      %v3478 = vadd.f32 0.0, %v3477
      %v3479 = vpop.f32.mrb[0].mxu0
      %v3480 = vpop.f32.mrb[0].mxu0
      %v3481 = vadd.f32 0.0, %v3480
      %v3482 = vpop.f32.mrb[0].mxu0
      %3483 = vmatprep.mubr.bf16.mxu0 0
      %3484 = vmatmul.mubr.bf16.gmra.mrb[0].mxu0 %v3356
      %v3485 = vpop.f32.mrb[0].mxu0
      %v3486 = vadd.f32 0.0, %v3485
      %v3487 = vpop.f32.mrb[0].mxu0
      %v3488 = vpop.f32.mrb[0].mxu0
      %v3489 = vadd.f32 0.0, %v3488
      %v3490 = vpop.f32.mrb[0].mxu0
      %3491 = vmatprep.mubr.bf16.mxu0 0
      %3492 = vmatmul.mubr.bf16.gmra.mrb[0].mxu0 %v3359
      %v3493 = vpop.f32.mrb[0].mxu0
      %v3494 = vadd.f32 0.0, %v3493
      %v3495 = vpop.f32.mrb[0].mxu0
      %v3496 = vpop.f32.mrb[0].mxu0
      %v3497 = vadd.f32 0.0, %v3496
      %v3498 = vpop.f32.mrb[0].mxu0
      %3499 = vmatprep.mubr.bf16.mxu0 0
      %3500 = vmatmul.mubr.bf16.gmra.mrb[0].mxu0 %v3362
      %v3501 = vpop.f32.mrb[0].mxu0
      %v3502 = vadd.f32 0.0, %v3501
      %v3503 = vpop.f32.mrb[0].mxu0
      %v3504 = vpop.f32.mrb[0].mxu0
      %v3505 = vadd.f32 0.0, %v3504
      %v3506 = vpop.f32.mrb[0].mxu0
      %3507 = vmatprep.mubr.bf16.mxu0 0
      %3508 = vmatmul.mubr.bf16.gmra.mrb[0].mxu0 %v3365
      %v3509 = vpop.f32.mrb[0].mxu0
      %v3510 = vadd.f32 0.0, %v3509
      %v3511 = vpop.f32.mrb[0].mxu0
      %v3512 = vpop.f32.mrb[0].mxu0
      %v3513 = vadd.f32 0.0, %v3512
      %v3514 = vpop.f32.mrb[0].mxu0
      %3515 = vmatprep.mubr.bf16.mxu0 0
      %3516 = vmatmul.mubr.bf16.gmra.mrb[0].mxu0 %v3368
      %v3517 = vpop.f32.mrb[0].mxu0
      %v3518 = vadd.f32 0.0, %v3517
      %v3519 = vpop.f32.mrb[0].mxu0
      %v3520 = vpop.f32.mrb[0].mxu0
      %v3521 = vadd.f32 0.0, %v3520
      %v3522 = vpop.f32.mrb[0].mxu0
      %3523 = vmatprep.mubr.bf16.mxu0 0
      %3524 = vmatmul.mubr.bf16.gmra.mrb[0].mxu0 %v3371
      %v3525 = vpop.f32.mrb[0].mxu0
      %v3526 = vadd.f32 0.0, %v3525
      %v3527 = vpop.f32.mrb[0].mxu0
      %v3528 = vpop.f32.mrb[0].mxu0
      %v3529 = vadd.f32 0.0, %v3528
      %v3530 = vpop.f32.mrb[0].mxu0
      %3531 = vmatprep.mubr.bf16.mxu0 0
      %3532 = vmatmul.mubr.bf16.gmra.mrb[0].mxu0 %v3374
      %v3533 = vpop.f32.mrb[0].mxu0
      %v3534 = vadd.f32 0.0, %v3533
      %v3535 = vpop.f32.mrb[0].mxu0
      %v3536 = vpop.f32.mrb[0].mxu0
      %v3537 = vadd.f32 0.0, %v3536
      %v3538 = vpop.f32.mrb[0].mxu0
      %3539 = vdwg.mxu0
      %v3540 = vadd.f32 %v3178, %v3414
      %v3541 = vadd.f32 %v3179, %v3417
      %v3542 = vadd.f32 %v3180, %v3422
      %v3543 = vadd.f32 %v3181, %v3425
      %v3544 = vadd.f32 %v3182, %v3430
      %v3545 = vadd.f32 %v3183, %v3433
      %v3546 = vadd.f32 %v3184, %v3438
      %v3547 = vadd.f32 %v3185, %v3441
      %v3548 = vadd.f32 %v3186, %v3446
      %v3549 = vadd.f32 %v3187, %v3449
      %v3550 = vadd.f32 %v3188, %v3454
      %v3551 = vadd.f32 %v3189, %v3457
      %v3552 = vadd.f32 %v3190, %v3462
      %v3553 = vadd.f32 %v3191, %v3465
      %v3554 = vadd.f32 %v3192, %v3470
      %v3555 = vadd.f32 %v3193, %v3473
      %v3556 = vadd.f32 %v3194, %v3478
      %v3557 = vadd.f32 %v3195, %v3481
      %v3558 = vadd.f32 %v3196, %v3486
      %v3559 = vadd.f32 %v3197, %v3489
      %v3560 = vadd.f32 %v3198, %v3494
      %v3561 = vadd.f32 %v3199, %v3497
      %v3562 = vadd.f32 %v3200, %v3502
      %v3563 = vadd.f32 %v3201, %v3505
      %v3564 = vadd.f32 %v3202, %v3510
      %v3565 = vadd.f32 %v3203, %v3513
      %v3566 = vadd.f32 %v3204, %v3518
      %v3567 = vadd.f32 %v3205, %v3521
      %v3568 = vadd.f32 %v3206, %v3526
      %v3569 = vadd.f32 %v3207, %v3529
      %v3570 = vadd.f32 %v3208, %v3534
      %v3571 = vadd.f32 %v3209, %v3537
      %v3572 = vld [vmem:[%s3213] sm:$0xf]
      %v3573 = vld [vmem:[%s3213 + $0x4] sm:$0xf]
      %v3574 = vld [vmem:[%s3213 + $0x8] sm:$0x1]
      %v3575 = vld [vmem:[%s3213 + $0xc] sm:$0xf]
      %v3576 = vld [vmem:[%s3213 + $0x10] sm:$0xf]
      %v3577 = vld [vmem:[%s3213 + $0x14] sm:$0x1]
      %v3578 = vld [vmem:[%s3213 + $0x18] sm:$0xf]
      %v3579 = vld [vmem:[%s3213 + $0x1c] sm:$0xf]
      %v3580 = vld [vmem:[%s3213 + $0x20] sm:$0x1]
      %v3581 = vld [vmem:[%s3213 + $0x24] sm:$0xf]
      %v3582 = vld [vmem:[%s3213 + $0x28] sm:$0xf]
      %v3583 = vld [vmem:[%s3213 + $0x2c] sm:$0x1]
      %v3584 = vld [vmem:[%s3213 + $0x30] sm:$0xf]
      %v3585 = vld [vmem:[%s3213 + $0x34] sm:$0xf]
      %v3586 = vld [vmem:[%s3213 + $0x38] sm:$0x1]
      %v3587 = vld [vmem:[%s3213 + $0x3c] sm:$0xf]
      %v3588 = vld [vmem:[%s3213 + $0x40] sm:$0xf]
      %v3589 = vld [vmem:[%s3213 + $0x44] sm:$0x1]
      %v3590 = vld [vmem:[%s3213 + $0x48] sm:$0xf]
      %v3591 = vld [vmem:[%s3213 + $0x4c] sm:$0xf]
      %v3592 = vld [vmem:[%s3213 + $0x50] sm:$0x1]
      %v3593 = vld [vmem:[%s3213 + $0x54] sm:$0xf]
      %v3594 = vld [vmem:[%s3213 + $0x58] sm:$0xf]
      %v3595 = vld [vmem:[%s3213 + $0x5c] sm:$0x1]
      %v3596 = vld [vmem:[%s3213 + $0x60] sm:$0xf]
      %v3597 = vld [vmem:[%s3213 + $0x64] sm:$0xf]
      %v3598 = vld [vmem:[%s3213 + $0x68] sm:$0x1]
      %v3599 = vld [vmem:[%s3213 + $0x6c] sm:$0xf]
      %v3600 = vld [vmem:[%s3213 + $0x70] sm:$0xf]
      %v3601 = vld [vmem:[%s3213 + $0x74] sm:$0x1]
      %v3602 = vld [vmem:[%s3213 + $0x78] sm:$0xf]
      %v3603 = vld [vmem:[%s3213 + $0x7c] sm:$0xf]
      %v3604 = vld [vmem:[%s3213 + $0x80] sm:$0x1]
      %v3605 = vld [vmem:[%s3213 + $0x84] sm:$0xf]
      %v3606 = vld [vmem:[%s3213 + $0x88] sm:$0xf]
      %v3607 = vld [vmem:[%s3213 + $0x8c] sm:$0x1]
      %v3608 = vld [vmem:[%s3213 + $0x90] sm:$0xf]
      %v3609 = vld [vmem:[%s3213 + $0x94] sm:$0xf]
      %v3610 = vld [vmem:[%s3213 + $0x98] sm:$0x1]
      %v3611 = vld [vmem:[%s3213 + $0x9c] sm:$0xf]
      %v3612 = vld [vmem:[%s3213 + $0xa0] sm:$0xf]
      %v3613 = vld [vmem:[%s3213 + $0xa4] sm:$0x1]
      %v3614 = vld [vmem:[%s3213 + $0xa8] sm:$0xf]
      %v3615 = vld [vmem:[%s3213 + $0xac] sm:$0xf]
      %v3616 = vld [vmem:[%s3213 + $0xb0] sm:$0x1]
      %v3617 = vld [vmem:[%s3213 + $0xb4] sm:$0xf]
      %v3618 = vld [vmem:[%s3213 + $0xb8] sm:$0xf]
      %v3619 = vld [vmem:[%s3213 + $0xbc] sm:$0x1]
      %v3621 = vshrl.u32 %v3572, 16
      %v3623 = vrot.slane %v3621, 4
      %v3624 = vshll.u32 %v3572, 16
      %v3626 = vrot.slane %v3624, 5
      %v3627 = vor.u32 %v3623, %v3626
      %v3628 = vrot.slane %v3627, 4
      %v3630 = vshll.u32 %v3573, 16
      %v3632 = vrot.slane %v3630, 5
      %v3633 = vsel %vm254, %v3628, %v3632
      %v3634 = vshrl.u32 %v3573, 16
      %v3636 = vrot.slane %v3634, 4
      %v3637 = vor.u32 %v3636, %v3632
      %v3638 = vrot.slane %v3637, 4
      %v3640 = vshll.u32 %v3574, 16
      %v3642 = vrot.slane %v3640, 5
      %v3643 = vsel %vm254, %v3638, %v3642
      %v3645 = vshrl.u32 %v3575, 16
      %v3647 = vrot.slane %v3645, 4
      %v3648 = vshll.u32 %v3575, 16
      %v3650 = vrot.slane %v3648, 5
      %v3651 = vor.u32 %v3647, %v3650
      %v3652 = vrot.slane %v3651, 4
      %v3654 = vshll.u32 %v3576, 16
      %v3656 = vrot.slane %v3654, 5
      %v3657 = vsel %vm254, %v3652, %v3656
      %v3658 = vshrl.u32 %v3576, 16
      %v3660 = vrot.slane %v3658, 4
      %v3661 = vor.u32 %v3660, %v3656
      %v3662 = vrot.slane %v3661, 4
      %v3664 = vshll.u32 %v3577, 16
      %v3666 = vrot.slane %v3664, 5
      %v3667 = vsel %vm254, %v3662, %v3666
      %v3669 = vshrl.u32 %v3578, 16
      %v3671 = vrot.slane %v3669, 4
      %v3672 = vshll.u32 %v3578, 16
      %v3674 = vrot.slane %v3672, 5
      %v3675 = vor.u32 %v3671, %v3674
      %v3676 = vrot.slane %v3675, 4
      %v3678 = vshll.u32 %v3579, 16
      %v3680 = vrot.slane %v3678, 5
      %v3681 = vsel %vm254, %v3676, %v3680
      %v3682 = vshrl.u32 %v3579, 16
      %v3684 = vrot.slane %v3682, 4
      %v3685 = vor.u32 %v3684, %v3680
      %v3686 = vrot.slane %v3685, 4
      %v3688 = vshll.u32 %v3580, 16
      %v3690 = vrot.slane %v3688, 5
      %v3691 = vsel %vm254, %v3686, %v3690
      %v3693 = vshrl.u32 %v3581, 16
      %v3695 = vrot.slane %v3693, 4
      %v3696 = vshll.u32 %v3581, 16
      %v3698 = vrot.slane %v3696, 5
      %v3699 = vor.u32 %v3695, %v3698
      %v3700 = vrot.slane %v3699, 4
      %v3702 = vshll.u32 %v3582, 16
      %v3704 = vrot.slane %v3702, 5
      %v3705 = vsel %vm254, %v3700, %v3704
      %v3706 = vshrl.u32 %v3582, 16
      %v3708 = vrot.slane %v3706, 4
      %v3709 = vor.u32 %v3708, %v3704
      %v3710 = vrot.slane %v3709, 4
      %v3712 = vshll.u32 %v3583, 16
      %v3714 = vrot.slane %v3712, 5
      %v3715 = vsel %vm254, %v3710, %v3714
      %v3717 = vshrl.u32 %v3584, 16
      %v3719 = vrot.slane %v3717, 4
      %v3720 = vshll.u32 %v3584, 16
      %v3722 = vrot.slane %v3720, 5
      %v3723 = vor.u32 %v3719, %v3722
      %v3724 = vrot.slane %v3723, 4
      %v3726 = vshll.u32 %v3585, 16
      %v3728 = vrot.slane %v3726, 5
      %v3729 = vsel %vm254, %v3724, %v3728
      %v3730 = vshrl.u32 %v3585, 16
      %v3732 = vrot.slane %v3730, 4
      %v3733 = vor.u32 %v3732, %v3728
      %v3734 = vrot.slane %v3733, 4
      %v3736 = vshll.u32 %v3586, 16
      %v3738 = vrot.slane %v3736, 5
      %v3739 = vsel %vm254, %v3734, %v3738
      %v3741 = vshrl.u32 %v3587, 16
      %v3743 = vrot.slane %v3741, 4
      %v3744 = vshll.u32 %v3587, 16
      %v3746 = vrot.slane %v3744, 5
      %v3747 = vor.u32 %v3743, %v3746
      %v3748 = vrot.slane %v3747, 4
      %v3750 = vshll.u32 %v3588, 16
      %v3752 = vrot.slane %v3750, 5
      %v3753 = vsel %vm254, %v3748, %v3752
      %v3754 = vshrl.u32 %v3588, 16
      %v3756 = vrot.slane %v3754, 4
      %v3757 = vor.u32 %v3756, %v3752
      %v3758 = vrot.slane %v3757, 4
      %v3760 = vshll.u32 %v3589, 16
      %v3762 = vrot.slane %v3760, 5
      %v3763 = vsel %vm254, %v3758, %v3762
      %v3765 = vshrl.u32 %v3590, 16
      %v3767 = vrot.slane %v3765, 4
      %v3768 = vshll.u32 %v3590, 16
      %v3770 = vrot.slane %v3768, 5
      %v3771 = vor.u32 %v3767, %v3770
      %v3772 = vrot.slane %v3771, 4
      %v3774 = vshll.u32 %v3591, 16
      %v3776 = vrot.slane %v3774, 5
      %v3777 = vsel %vm254, %v3772, %v3776
      %v3778 = vshrl.u32 %v3591, 16
      %v3780 = vrot.slane %v3778, 4
      %v3781 = vor.u32 %v3780, %v3776
      %v3782 = vrot.slane %v3781, 4
      %v3784 = vshll.u32 %v3592, 16
      %v3786 = vrot.slane %v3784, 5
      %v3787 = vsel %vm254, %v3782, %v3786
      %v3789 = vshrl.u32 %v3593, 16
      %v3791 = vrot.slane %v3789, 4
      %v3792 = vshll.u32 %v3593, 16
      %v3794 = vrot.slane %v3792, 5
      %v3795 = vor.u32 %v3791, %v3794
      %v3796 = vrot.slane %v3795, 4
      %v3798 = vshll.u32 %v3594, 16
      %v3800 = vrot.slane %v3798, 5
      %v3801 = vsel %vm254, %v3796, %v3800
      %v3802 = vshrl.u32 %v3594, 16
      %v3804 = vrot.slane %v3802, 4
      %v3805 = vor.u32 %v3804, %v3800
      %v3806 = vrot.slane %v3805, 4
      %v3808 = vshll.u32 %v3595, 16
      %v3810 = vrot.slane %v3808, 5
      %v3811 = vsel %vm254, %v3806, %v3810
      %v3813 = vshrl.u32 %v3596, 16
      %v3815 = vrot.slane %v3813, 4
      %v3816 = vshll.u32 %v3596, 16
      %v3818 = vrot.slane %v3816, 5
      %v3819 = vor.u32 %v3815, %v3818
      %v3820 = vrot.slane %v3819, 4
      %v3822 = vshll.u32 %v3597, 16
      %v3824 = vrot.slane %v3822, 5
      %v3825 = vsel %vm254, %v3820, %v3824
      %v3826 = vshrl.u32 %v3597, 16
      %v3828 = vrot.slane %v3826, 4
      %v3829 = vor.u32 %v3828, %v3824
      %v3830 = vrot.slane %v3829, 4
      %v3832 = vshll.u32 %v3598, 16
      %v3834 = vrot.slane %v3832, 5
      %v3835 = vsel %vm254, %v3830, %v3834
      %v3837 = vshrl.u32 %v3599, 16
      %v3839 = vrot.slane %v3837, 4
      %v3840 = vshll.u32 %v3599, 16
      %v3842 = vrot.slane %v3840, 5
      %v3843 = vor.u32 %v3839, %v3842
      %v3844 = vrot.slane %v3843, 4
      %v3846 = vshll.u32 %v3600, 16
      %v3848 = vrot.slane %v3846, 5
      %v3849 = vsel %vm254, %v3844, %v3848
      %v3850 = vshrl.u32 %v3600, 16
      %v3852 = vrot.slane %v3850, 4
      %v3853 = vor.u32 %v3852, %v3848
      %v3854 = vrot.slane %v3853, 4
      %v3856 = vshll.u32 %v3601, 16
      %v3858 = vrot.slane %v3856, 5
      %v3859 = vsel %vm254, %v3854, %v3858
      %v3861 = vshrl.u32 %v3602, 16
      %v3863 = vrot.slane %v3861, 4
      %v3864 = vshll.u32 %v3602, 16
      %v3866 = vrot.slane %v3864, 5
      %v3867 = vor.u32 %v3863, %v3866
      %v3868 = vrot.slane %v3867, 4
      %v3870 = vshll.u32 %v3603, 16
      %v3872 = vrot.slane %v3870, 5
      %v3873 = vsel %vm254, %v3868, %v3872
      %v3874 = vshrl.u32 %v3603, 16
      %v3876 = vrot.slane %v3874, 4
      %v3877 = vor.u32 %v3876, %v3872
      %v3878 = vrot.slane %v3877, 4
      %v3880 = vshll.u32 %v3604, 16
      %v3882 = vrot.slane %v3880, 5
      %v3883 = vsel %vm254, %v3878, %v3882
      %v3885 = vshrl.u32 %v3605, 16
      %v3887 = vrot.slane %v3885, 4
      %v3888 = vshll.u32 %v3605, 16
      %v3890 = vrot.slane %v3888, 5
      %v3891 = vor.u32 %v3887, %v3890
      %v3892 = vrot.slane %v3891, 4
      %v3894 = vshll.u32 %v3606, 16
      %v3896 = vrot.slane %v3894, 5
      %v3897 = vsel %vm254, %v3892, %v3896
      %v3898 = vshrl.u32 %v3606, 16
      %v3900 = vrot.slane %v3898, 4
      %v3901 = vor.u32 %v3900, %v3896
      %v3902 = vrot.slane %v3901, 4
      %v3904 = vshll.u32 %v3607, 16
      %v3906 = vrot.slane %v3904, 5
      %v3907 = vsel %vm254, %v3902, %v3906
      %v3909 = vshrl.u32 %v3608, 16
      %v3911 = vrot.slane %v3909, 4
      %v3912 = vshll.u32 %v3608, 16
      %v3914 = vrot.slane %v3912, 5
      %v3915 = vor.u32 %v3911, %v3914
      %v3916 = vrot.slane %v3915, 4
      %v3918 = vshll.u32 %v3609, 16
      %v3920 = vrot.slane %v3918, 5
      %v3921 = vsel %vm254, %v3916, %v3920
      %v3922 = vshrl.u32 %v3609, 16
      %v3924 = vrot.slane %v3922, 4
      %v3925 = vor.u32 %v3924, %v3920
      %v3926 = vrot.slane %v3925, 4
      %v3928 = vshll.u32 %v3610, 16
      %v3930 = vrot.slane %v3928, 5
      %v3931 = vsel %vm254, %v3926, %v3930
      %v3933 = vshrl.u32 %v3611, 16
      %v3935 = vrot.slane %v3933, 4
      %v3936 = vshll.u32 %v3611, 16
      %v3938 = vrot.slane %v3936, 5
      %v3939 = vor.u32 %v3935, %v3938
      %v3940 = vrot.slane %v3939, 4
      %v3942 = vshll.u32 %v3612, 16
      %v3944 = vrot.slane %v3942, 5
      %v3945 = vsel %vm254, %v3940, %v3944
      %v3946 = vshrl.u32 %v3612, 16
      %v3948 = vrot.slane %v3946, 4
      %v3949 = vor.u32 %v3948, %v3944
      %v3950 = vrot.slane %v3949, 4
      %v3952 = vshll.u32 %v3613, 16
      %v3954 = vrot.slane %v3952, 5
      %v3955 = vsel %vm254, %v3950, %v3954
      %v3957 = vshrl.u32 %v3614, 16
      %v3959 = vrot.slane %v3957, 4
      %v3960 = vshll.u32 %v3614, 16
      %v3962 = vrot.slane %v3960, 5
      %v3963 = vor.u32 %v3959, %v3962
      %v3964 = vrot.slane %v3963, 4
      %v3966 = vshll.u32 %v3615, 16
      %v3968 = vrot.slane %v3966, 5
      %v3969 = vsel %vm254, %v3964, %v3968
      %v3970 = vshrl.u32 %v3615, 16
      %v3972 = vrot.slane %v3970, 4
      %v3973 = vor.u32 %v3972, %v3968
      %v3974 = vrot.slane %v3973, 4
      %v3976 = vshll.u32 %v3616, 16
      %v3978 = vrot.slane %v3976, 5
      %v3979 = vsel %vm254, %v3974, %v3978
      %v3981 = vshrl.u32 %v3617, 16
      %v3983 = vrot.slane %v3981, 4
      %v3984 = vshll.u32 %v3617, 16
      %v3986 = vrot.slane %v3984, 5
      %v3987 = vor.u32 %v3983, %v3986
      %v3988 = vrot.slane %v3987, 4
      %v3990 = vshll.u32 %v3618, 16
      %v3992 = vrot.slane %v3990, 5
      %v3993 = vsel %vm254, %v3988, %v3992
      %v3994 = vshrl.u32 %v3618, 16
      %v3996 = vrot.slane %v3994, 4
      %v3997 = vor.u32 %v3996, %v3992
      %v3998 = vrot.slane %v3997, 4
      %v4000 = vshll.u32 %v3619, 16
      %v4002 = vrot.slane %v4000, 5
      %v4003 = vsel %vm254, %v3998, %v4002
      %s4004 = scalar_lea.vmem %s1, 14
      %v4005 = vld [vmem:[%s4004] sm:$0x3]
      %v4006 = vunpack.c.l.b16 %v3633
      %v4007 = vunpack.c.l.b16 %v3643
      %v4008 = vunpack.c.l.b16 %v3657
      %v4009 = vunpack.c.l.b16 %v3667
      %v4010 = vunpack.c.l.b16 %v3681
      %v4011 = vunpack.c.l.b16 %v3691
      %v4012 = vunpack.c.l.b16 %v3705
      %v4013 = vunpack.c.l.b16 %v3715
      %v4014 = vunpack.c.l.b16 %v3729
      %v4015 = vunpack.c.l.b16 %v3739
      %v4016 = vunpack.c.l.b16 %v3753
      %v4017 = vunpack.c.l.b16 %v3763
      %v4018 = vunpack.c.l.b16 %v3777
      %v4019 = vunpack.c.l.b16 %v3787
      %v4020 = vunpack.c.l.b16 %v3801
      %v4021 = vunpack.c.l.b16 %v3811
      %v4022 = vunpack.c.l.b16 %v3825
      %v4023 = vunpack.c.l.b16 %v3835
      %v4024 = vunpack.c.l.b16 %v3849
      %v4025 = vunpack.c.l.b16 %v3859
      %v4026 = vunpack.c.l.b16 %v3873
      %v4027 = vunpack.c.l.b16 %v3883
      %v4028 = vunpack.c.l.b16 %v3897
      %v4029 = vunpack.c.l.b16 %v3907
      %v4030 = vunpack.c.l.b16 %v3921
      %v4031 = vunpack.c.l.b16 %v3931
      %v4032 = vunpack.c.l.b16 %v3945
      %v4033 = vunpack.c.l.b16 %v3955
      %v4034 = vunpack.c.l.b16 %v3969
      %v4035 = vunpack.c.l.b16 %v3979
      %v4036 = vunpack.c.l.b16 %v3993
      %v4037 = vunpack.c.l.b16 %v4003
      %v4038 = vpack.c.b16 %v4007, %v4006
      %v4039 = vpack.c.b16 %v4009, %v4008
      %v4040 = vpack.c.b16 %v4011, %v4010
      %v4041 = vpack.c.b16 %v4013, %v4012
      %v4042 = vpack.c.b16 %v4015, %v4014
      %v4043 = vpack.c.b16 %v4017, %v4016
      %v4044 = vpack.c.b16 %v4019, %v4018
      %v4045 = vpack.c.b16 %v4021, %v4020
      %v4046 = vpack.c.b16 %v4023, %v4022
      %v4047 = vpack.c.b16 %v4025, %v4024
      %v4048 = vpack.c.b16 %v4027, %v4026
      %v4049 = vpack.c.b16 %v4029, %v4028
      %v4050 = vpack.c.b16 %v4031, %v4030
      %v4051 = vpack.c.b16 %v4033, %v4032
      %v4052 = vpack.c.b16 %v4035, %v4034
      %v4053 = vpack.c.b16 %v4037, %v4036
      %v4055 = vsel %vm689, %v4038, 0
      %v4058 = vsel %vm689, %v4039, 0
      %v4061 = vsel %vm689, %v4040, 0
      %v4064 = vsel %vm689, %v4041, 0
      %v4067 = vsel %vm689, %v4042, 0
      %v4070 = vsel %vm689, %v4043, 0
      %v4073 = vsel %vm689, %v4044, 0
      %v4076 = vsel %vm689, %v4045, 0
      %v4079 = vsel %vm689, %v4046, 0
      %v4082 = vsel %vm689, %v4047, 0
      %v4085 = vsel %vm689, %v4048, 0
      %v4088 = vsel %vm689, %v4049, 0
      %v4091 = vsel %vm689, %v4050, 0
      %v4094 = vsel %vm689, %v4051, 0
      %v4097 = vsel %vm689, %v4052, 0
      %v4100 = vsel %vm689, %v4053, 0
      %v4103 = vsel %vm738, %v4005, 0
      %4105 = vmatprep.subr.bf16.mxu0 0
      %4106 = vmatpush1.bf16.msra.mxu0 %v4103
      %4107 = vmatprep.subr.bf16.mxu0 0
      %4108 = vmatpush1.bf16.msra.mxu0 0
      %4109 = vmatprep.subr.bf16.mxu0 0
      %4110 = vmatpush1.bf16.msra.mxu0 0
      %4111 = vmatprep.subr.bf16.mxu0 0
      %4112 = vmatpush1.bf16.msra.mxu0 0
      %4113 = vmatprep.subr.bf16.mxu0 0
      %4114 = vmatpush1.bf16.msra.mxu0 0
      %4115 = vmatprep.subr.bf16.mxu0 0
      %4116 = vmatpush1.bf16.msra.mxu0 0
      %4117 = vmatprep.subr.bf16.mxu0 0
      %4118 = vmatpush1.bf16.msra.mxu0 0
      %4119 = vmatprep.subr.bf16.mxu0 0
      %4120 = vmatpush1.bf16.msra.mxu0 0
      %4121 = vmatprep.subr.bf16.mxu0 0
      %4122 = vmatpush1.bf16.msra.mxu0 0
      %4123 = vmatprep.subr.bf16.mxu0 0
      %4124 = vmatpush1.bf16.msra.mxu0 0
      %4125 = vmatprep.subr.bf16.mxu0 0
      %4126 = vmatpush1.bf16.msra.mxu0 0
      %4127 = vmatprep.subr.bf16.mxu0 0
      %4128 = vmatpush1.bf16.msra.mxu0 0
      %4129 = vmatprep.subr.bf16.mxu0 0
      %4130 = vmatpush1.bf16.msra.mxu0 0
      %4131 = vmatprep.subr.bf16.mxu0 0
      %4132 = vmatpush1.bf16.msra.mxu0 0
      %4133 = vmatprep.subr.bf16.mxu0 0
      %4134 = vmatpush1.bf16.msra.mxu0 0
      %4135 = vmatprep.subr.bf16.mxu0 0
      %4136 = vmatpush1.bf16.msra.mxu0 0
      %4137 = vmatprep.mubr.bf16.mxu0 0
      %4138 = vmatmul.mubr.bf16.gmra.mrb[0].mxu0 %v4055
      %v4139 = vpop.f32.mrb[0].mxu0
      %v4140 = vadd.f32 0.0, %v4139
      %v4141 = vpop.f32.mrb[0].mxu0
      %v4142 = vpop.f32.mrb[0].mxu0
      %v4143 = vadd.f32 0.0, %v4142
      %v4144 = vpop.f32.mrb[0].mxu0
      %4145 = vmatprep.mubr.bf16.mxu0 0
      %4146 = vmatmul.mubr.bf16.gmra.mrb[0].mxu0 %v4058
      %v4147 = vpop.f32.mrb[0].mxu0
      %v4148 = vadd.f32 0.0, %v4147
      %v4149 = vpop.f32.mrb[0].mxu0
      %v4150 = vpop.f32.mrb[0].mxu0
      %v4151 = vadd.f32 0.0, %v4150
      %v4152 = vpop.f32.mrb[0].mxu0
      %4153 = vmatprep.mubr.bf16.mxu0 0
      %4154 = vmatmul.mubr.bf16.gmra.mrb[0].mxu0 %v4061
      %v4155 = vpop.f32.mrb[0].mxu0
      %v4156 = vadd.f32 0.0, %v4155
      %v4157 = vpop.f32.mrb[0].mxu0
      %v4158 = vpop.f32.mrb[0].mxu0
      %v4159 = vadd.f32 0.0, %v4158
      %v4160 = vpop.f32.mrb[0].mxu0
      %4161 = vmatprep.mubr.bf16.mxu0 0
      %4162 = vmatmul.mubr.bf16.gmra.mrb[0].mxu0 %v4064
      %v4163 = vpop.f32.mrb[0].mxu0
      %v4164 = vadd.f32 0.0, %v4163
      %v4165 = vpop.f32.mrb[0].mxu0
      %v4166 = vpop.f32.mrb[0].mxu0
      %v4167 = vadd.f32 0.0, %v4166
      %v4168 = vpop.f32.mrb[0].mxu0
      %4169 = vmatprep.mubr.bf16.mxu0 0
      %4170 = vmatmul.mubr.bf16.gmra.mrb[0].mxu0 %v4067
      %v4171 = vpop.f32.mrb[0].mxu0
      %v4172 = vadd.f32 0.0, %v4171
      %v4173 = vpop.f32.mrb[0].mxu0
      %v4174 = vpop.f32.mrb[0].mxu0
      %v4175 = vadd.f32 0.0, %v4174
      %v4176 = vpop.f32.mrb[0].mxu0
      %4177 = vmatprep.mubr.bf16.mxu0 0
      %4178 = vmatmul.mubr.bf16.gmra.mrb[0].mxu0 %v4070
      %v4179 = vpop.f32.mrb[0].mxu0
      %v4180 = vadd.f32 0.0, %v4179
      %v4181 = vpop.f32.mrb[0].mxu0
      %v4182 = vpop.f32.mrb[0].mxu0
      %v4183 = vadd.f32 0.0, %v4182
      %v4184 = vpop.f32.mrb[0].mxu0
      %4185 = vmatprep.mubr.bf16.mxu0 0
      %4186 = vmatmul.mubr.bf16.gmra.mrb[0].mxu0 %v4073
      %v4187 = vpop.f32.mrb[0].mxu0
      %v4188 = vadd.f32 0.0, %v4187
      %v4189 = vpop.f32.mrb[0].mxu0
      %v4190 = vpop.f32.mrb[0].mxu0
      %v4191 = vadd.f32 0.0, %v4190
      %v4192 = vpop.f32.mrb[0].mxu0
      %4193 = vmatprep.mubr.bf16.mxu0 0
      %4194 = vmatmul.mubr.bf16.gmra.mrb[0].mxu0 %v4076
      %v4195 = vpop.f32.mrb[0].mxu0
      %v4196 = vadd.f32 0.0, %v4195
      %v4197 = vpop.f32.mrb[0].mxu0
      %v4198 = vpop.f32.mrb[0].mxu0
      %v4199 = vadd.f32 0.0, %v4198
      %v4200 = vpop.f32.mrb[0].mxu0
      %4201 = vmatprep.mubr.bf16.mxu0 0
      %4202 = vmatmul.mubr.bf16.gmra.mrb[0].mxu0 %v4079
      %v4203 = vpop.f32.mrb[0].mxu0
      %v4204 = vadd.f32 0.0, %v4203
      %v4205 = vpop.f32.mrb[0].mxu0
      %v4206 = vpop.f32.mrb[0].mxu0
      %v4207 = vadd.f32 0.0, %v4206
      %v4208 = vpop.f32.mrb[0].mxu0
      %4209 = vmatprep.mubr.bf16.mxu0 0
      %4210 = vmatmul.mubr.bf16.gmra.mrb[0].mxu0 %v4082
      %v4211 = vpop.f32.mrb[0].mxu0
      %v4212 = vadd.f32 0.0, %v4211
      %v4213 = vpop.f32.mrb[0].mxu0
      %v4214 = vpop.f32.mrb[0].mxu0
      %v4215 = vadd.f32 0.0, %v4214
      %v4216 = vpop.f32.mrb[0].mxu0
      %4217 = vmatprep.mubr.bf16.mxu0 0
      %4218 = vmatmul.mubr.bf16.gmra.mrb[0].mxu0 %v4085
      %v4219 = vpop.f32.mrb[0].mxu0
      %v4220 = vadd.f32 0.0, %v4219
      %v4221 = vpop.f32.mrb[0].mxu0
      %v4222 = vpop.f32.mrb[0].mxu0
      %v4223 = vadd.f32 0.0, %v4222
      %v4224 = vpop.f32.mrb[0].mxu0
      %4225 = vmatprep.mubr.bf16.mxu0 0
      %4226 = vmatmul.mubr.bf16.gmra.mrb[0].mxu0 %v4088
      %v4227 = vpop.f32.mrb[0].mxu0
      %v4228 = vadd.f32 0.0, %v4227
      %v4229 = vpop.f32.mrb[0].mxu0
      %v4230 = vpop.f32.mrb[0].mxu0
      %v4231 = vadd.f32 0.0, %v4230
      %v4232 = vpop.f32.mrb[0].mxu0
      %4233 = vmatprep.mubr.bf16.mxu0 0
      %4234 = vmatmul.mubr.bf16.gmra.mrb[0].mxu0 %v4091
      %v4235 = vpop.f32.mrb[0].mxu0
      %v4236 = vadd.f32 0.0, %v4235
      %v4237 = vpop.f32.mrb[0].mxu0
      %v4238 = vpop.f32.mrb[0].mxu0
      %v4239 = vadd.f32 0.0, %v4238
      %v4240 = vpop.f32.mrb[0].mxu0
      %4241 = vmatprep.mubr.bf16.mxu0 0
      %4242 = vmatmul.mubr.bf16.gmra.mrb[0].mxu0 %v4094
      %v4243 = vpop.f32.mrb[0].mxu0
      %v4244 = vadd.f32 0.0, %v4243
      %v4245 = vpop.f32.mrb[0].mxu0
      %v4246 = vpop.f32.mrb[0].mxu0
      %v4247 = vadd.f32 0.0, %v4246
      %v4248 = vpop.f32.mrb[0].mxu0
      %4249 = vmatprep.mubr.bf16.mxu0 0
      %4250 = vmatmul.mubr.bf16.gmra.mrb[0].mxu0 %v4097
      %v4251 = vpop.f32.mrb[0].mxu0
      %v4252 = vadd.f32 0.0, %v4251
      %v4253 = vpop.f32.mrb[0].mxu0
      %v4254 = vpop.f32.mrb[0].mxu0
      %v4255 = vadd.f32 0.0, %v4254
      %v4256 = vpop.f32.mrb[0].mxu0
      %4257 = vmatprep.mubr.bf16.mxu0 0
      %4258 = vmatmul.mubr.bf16.gmra.mrb[0].mxu0 %v4100
      %v4259 = vpop.f32.mrb[0].mxu0
      %v4260 = vadd.f32 0.0, %v4259
      %v4261 = vpop.f32.mrb[0].mxu0
      %v4262 = vpop.f32.mrb[0].mxu0
      %v4263 = vadd.f32 0.0, %v4262
      %v4264 = vpop.f32.mrb[0].mxu0
      %4265 = vdwg.mxu0
      %v4266 = vadd.f32 %v3540, %v4140
      %v4267 = vadd.f32 %v3541, %v4143
      %v4268 = vadd.f32 %v3542, %v4148
      %v4269 = vadd.f32 %v3543, %v4151
      %v4270 = vadd.f32 %v3544, %v4156
      %v4271 = vadd.f32 %v3545, %v4159
      %v4272 = vadd.f32 %v3546, %v4164
      %v4273 = vadd.f32 %v3547, %v4167
      %v4274 = vadd.f32 %v3548, %v4172
      %v4275 = vadd.f32 %v3549, %v4175
      %v4276 = vadd.f32 %v3550, %v4180
      %v4277 = vadd.f32 %v3551, %v4183
      %v4278 = vadd.f32 %v3552, %v4188
      %v4279 = vadd.f32 %v3553, %v4191
      %v4280 = vadd.f32 %v3554, %v4196
      %v4281 = vadd.f32 %v3555, %v4199
      %v4282 = vadd.f32 %v3556, %v4204
      %v4283 = vadd.f32 %v3557, %v4207
      %v4284 = vadd.f32 %v3558, %v4212
      %v4285 = vadd.f32 %v3559, %v4215
      %v4286 = vadd.f32 %v3560, %v4220
      %v4287 = vadd.f32 %v3561, %v4223
      %v4288 = vadd.f32 %v3562, %v4228
      %v4289 = vadd.f32 %v3563, %v4231
      %v4290 = vadd.f32 %v3564, %v4236
      %v4291 = vadd.f32 %v3565, %v4239
      %v4292 = vadd.f32 %v3566, %v4244
      %v4293 = vadd.f32 %v3567, %v4247
      %v4294 = vadd.f32 %v3568, %v4252
      %v4295 = vadd.f32 %v3569, %v4255
      %v4296 = vadd.f32 %v3570, %v4260
      %v4297 = vadd.f32 %v3571, %v4263
      %v4298 = vld [vmem:[%s3213] sm:$0xe]
      %v4299 = vld [vmem:[%s3213 + $0xc] sm:$0xe]
      %v4300 = vld [vmem:[%s3213 + $0x18] sm:$0xe]
      %v4301 = vld [vmem:[%s3213 + $0x24] sm:$0xe]
      %v4302 = vld [vmem:[%s3213 + $0x30] sm:$0xe]
      %v4303 = vld [vmem:[%s3213 + $0x3c] sm:$0xe]
      %v4304 = vld [vmem:[%s3213 + $0x48] sm:$0xe]
      %v4305 = vld [vmem:[%s3213 + $0x54] sm:$0xe]
      %v4306 = vld [vmem:[%s3213 + $0x60] sm:$0xe]
      %v4307 = vld [vmem:[%s3213 + $0x6c] sm:$0xe]
      %v4308 = vld [vmem:[%s3213 + $0x78] sm:$0xe]
      %v4309 = vld [vmem:[%s3213 + $0x84] sm:$0xe]
      %v4310 = vld [vmem:[%s3213 + $0x90] sm:$0xe]
      %v4311 = vld [vmem:[%s3213 + $0x9c] sm:$0xe]
      %v4312 = vld [vmem:[%s3213 + $0xa8] sm:$0xe]
      %v4313 = vld [vmem:[%s3213 + $0xb4] sm:$0xe]
      %v4362 = vrot.slane %v4298, 5
      %v4363 = vrot.slane %v4362, 4
      %v4364 = vrot.slane %v3573, 5
      %v4365 = vsel %vm1245, %v4363, %v4364
      %v4366 = vrot.slane %v4364, 4
      %v4367 = vrot.slane %v3574, 5
      %v4368 = vsel %vm1245, %v4366, %v4367
      %v4369 = vrot.slane %v4299, 5
      %v4370 = vrot.slane %v4369, 4
      %v4371 = vrot.slane %v3576, 5
      %v4372 = vsel %vm1245, %v4370, %v4371
      %v4373 = vrot.slane %v4371, 4
      %v4374 = vrot.slane %v3577, 5
      %v4375 = vsel %vm1245, %v4373, %v4374
      %v4376 = vrot.slane %v4300, 5
      %v4377 = vrot.slane %v4376, 4
      %v4378 = vrot.slane %v3579, 5
      %v4379 = vsel %vm1245, %v4377, %v4378
      %v4380 = vrot.slane %v4378, 4
      %v4381 = vrot.slane %v3580, 5
      %v4382 = vsel %vm1245, %v4380, %v4381
      %v4383 = vrot.slane %v4301, 5
      %v4384 = vrot.slane %v4383, 4
      %v4385 = vrot.slane %v3582, 5
      %v4386 = vsel %vm1245, %v4384, %v4385
      %v4387 = vrot.slane %v4385, 4
      %v4388 = vrot.slane %v3583, 5
      %v4389 = vsel %vm1245, %v4387, %v4388
      %v4390 = vrot.slane %v4302, 5
      %v4391 = vrot.slane %v4390, 4
      %v4392 = vrot.slane %v3585, 5
      %v4393 = vsel %vm1245, %v4391, %v4392
      %v4394 = vrot.slane %v4392, 4
      %v4395 = vrot.slane %v3586, 5
      %v4396 = vsel %vm1245, %v4394, %v4395
      %v4397 = vrot.slane %v4303, 5
      %v4398 = vrot.slane %v4397, 4
      %v4399 = vrot.slane %v3588, 5
      %v4400 = vsel %vm1245, %v4398, %v4399
      %v4401 = vrot.slane %v4399, 4
      %v4402 = vrot.slane %v3589, 5
      %v4403 = vsel %vm1245, %v4401, %v4402
      %v4404 = vrot.slane %v4304, 5
      %v4405 = vrot.slane %v4404, 4
      %v4406 = vrot.slane %v3591, 5
      %v4407 = vsel %vm1245, %v4405, %v4406
      %v4408 = vrot.slane %v4406, 4
      %v4409 = vrot.slane %v3592, 5
      %v4410 = vsel %vm1245, %v4408, %v4409
      %v4411 = vrot.slane %v4305, 5
      %v4412 = vrot.slane %v4411, 4
      %v4413 = vrot.slane %v3594, 5
      %v4414 = vsel %vm1245, %v4412, %v4413
      %v4415 = vrot.slane %v4413, 4
      %v4416 = vrot.slane %v3595, 5
      %v4417 = vsel %vm1245, %v4415, %v4416
      %v4418 = vrot.slane %v4306, 5
      %v4419 = vrot.slane %v4418, 4
      %v4420 = vrot.slane %v3597, 5
      %v4421 = vsel %vm1245, %v4419, %v4420
      %v4422 = vrot.slane %v4420, 4
      %v4423 = vrot.slane %v3598, 5
      %v4424 = vsel %vm1245, %v4422, %v4423
      %v4425 = vrot.slane %v4307, 5
      %v4426 = vrot.slane %v4425, 4
      %v4427 = vrot.slane %v3600, 5
      %v4428 = vsel %vm1245, %v4426, %v4427
      %v4429 = vrot.slane %v4427, 4
      %v4430 = vrot.slane %v3601, 5
      %v4431 = vsel %vm1245, %v4429, %v4430
      %v4432 = vrot.slane %v4308, 5
      %v4433 = vrot.slane %v4432, 4
      %v4434 = vrot.slane %v3603, 5
      %v4435 = vsel %vm1245, %v4433, %v4434
      %v4436 = vrot.slane %v4434, 4
      %v4437 = vrot.slane %v3604, 5
      %v4438 = vsel %vm1245, %v4436, %v4437
      %v4439 = vrot.slane %v4309, 5
      %v4440 = vrot.slane %v4439, 4
      %v4441 = vrot.slane %v3606, 5
      %v4442 = vsel %vm1245, %v4440, %v4441
      %v4443 = vrot.slane %v4441, 4
      %v4444 = vrot.slane %v3607, 5
      %v4445 = vsel %vm1245, %v4443, %v4444
      %v4446 = vrot.slane %v4310, 5
      %v4447 = vrot.slane %v4446, 4
      %v4448 = vrot.slane %v3609, 5
      %v4449 = vsel %vm1245, %v4447, %v4448
      %v4450 = vrot.slane %v4448, 4
      %v4451 = vrot.slane %v3610, 5
      %v4452 = vsel %vm1245, %v4450, %v4451
      %v4453 = vrot.slane %v4311, 5
      %v4454 = vrot.slane %v4453, 4
      %v4455 = vrot.slane %v3612, 5
      %v4456 = vsel %vm1245, %v4454, %v4455
      %v4457 = vrot.slane %v4455, 4
      %v4458 = vrot.slane %v3613, 5
      %v4459 = vsel %vm1245, %v4457, %v4458
      %v4460 = vrot.slane %v4312, 5
      %v4461 = vrot.slane %v4460, 4
      %v4462 = vrot.slane %v3615, 5
      %v4463 = vsel %vm1245, %v4461, %v4462
      %v4464 = vrot.slane %v4462, 4
      %v4465 = vrot.slane %v3616, 5
      %v4466 = vsel %vm1245, %v4464, %v4465
      %v4467 = vrot.slane %v4313, 5
      %v4468 = vrot.slane %v4467, 4
      %v4469 = vrot.slane %v3618, 5
      %v4470 = vsel %vm1245, %v4468, %v4469
      %v4471 = vrot.slane %v4469, 4
      %v4472 = vrot.slane %v3619, 5
      %v4473 = vsel %vm1245, %v4471, %v4472
      %s4474 = scalar_lea.vmem %s1, 16
      %v4475 = vld [vmem:[%s4474] sm:$0x3]
      %v4476 = vunpack.c.l.b16 %v4365
      %v4477 = vunpack.c.l.b16 %v4368
      %v4478 = vunpack.c.l.b16 %v4372
      %v4479 = vunpack.c.l.b16 %v4375
      %v4480 = vunpack.c.l.b16 %v4379
      %v4481 = vunpack.c.l.b16 %v4382
      %v4482 = vunpack.c.l.b16 %v4386
      %v4483 = vunpack.c.l.b16 %v4389
      %v4484 = vunpack.c.l.b16 %v4393
      %v4485 = vunpack.c.l.b16 %v4396
      %v4486 = vunpack.c.l.b16 %v4400
      %v4487 = vunpack.c.l.b16 %v4403
      %v4488 = vunpack.c.l.b16 %v4407
      %v4489 = vunpack.c.l.b16 %v4410
      %v4490 = vunpack.c.l.b16 %v4414
      %v4491 = vunpack.c.l.b16 %v4417
      %v4492 = vunpack.c.l.b16 %v4421
      %v4493 = vunpack.c.l.b16 %v4424
      %v4494 = vunpack.c.l.b16 %v4428
      %v4495 = vunpack.c.l.b16 %v4431
      %v4496 = vunpack.c.l.b16 %v4435
      %v4497 = vunpack.c.l.b16 %v4438
      %v4498 = vunpack.c.l.b16 %v4442
      %v4499 = vunpack.c.l.b16 %v4445
      %v4500 = vunpack.c.l.b16 %v4449
      %v4501 = vunpack.c.l.b16 %v4452
      %v4502 = vunpack.c.l.b16 %v4456
      %v4503 = vunpack.c.l.b16 %v4459
      %v4504 = vunpack.c.l.b16 %v4463
      %v4505 = vunpack.c.l.b16 %v4466
      %v4506 = vunpack.c.l.b16 %v4470
      %v4507 = vunpack.c.l.b16 %v4473
      %v4508 = vpack.c.b16 %v4477, %v4476
      %v4509 = vpack.c.b16 %v4479, %v4478
      %v4510 = vpack.c.b16 %v4481, %v4480
      %v4511 = vpack.c.b16 %v4483, %v4482
      %v4512 = vpack.c.b16 %v4485, %v4484
      %v4513 = vpack.c.b16 %v4487, %v4486
      %v4514 = vpack.c.b16 %v4489, %v4488
      %v4515 = vpack.c.b16 %v4491, %v4490
      %v4516 = vpack.c.b16 %v4493, %v4492
      %v4517 = vpack.c.b16 %v4495, %v4494
      %v4518 = vpack.c.b16 %v4497, %v4496
      %v4519 = vpack.c.b16 %v4499, %v4498
      %v4520 = vpack.c.b16 %v4501, %v4500
      %v4521 = vpack.c.b16 %v4503, %v4502
      %v4522 = vpack.c.b16 %v4505, %v4504
      %v4523 = vpack.c.b16 %v4507, %v4506
      %v4525 = vsel %vm689, %v4508, 0
      %v4528 = vsel %vm689, %v4509, 0
      %v4531 = vsel %vm689, %v4510, 0
      %v4534 = vsel %vm689, %v4511, 0
      %v4537 = vsel %vm689, %v4512, 0
      %v4540 = vsel %vm689, %v4513, 0
      %v4543 = vsel %vm689, %v4514, 0
      %v4546 = vsel %vm689, %v4515, 0
      %v4549 = vsel %vm689, %v4516, 0
      %v4552 = vsel %vm689, %v4517, 0
      %v4555 = vsel %vm689, %v4518, 0
      %v4558 = vsel %vm689, %v4519, 0
      %v4561 = vsel %vm689, %v4520, 0
      %v4564 = vsel %vm689, %v4521, 0
      %v4567 = vsel %vm689, %v4522, 0
      %v4570 = vsel %vm689, %v4523, 0
      %v4573 = vsel %vm738, %v4475, 0
      %4575 = vmatprep.subr.bf16.mxu0 0
      %4576 = vmatpush1.bf16.msra.mxu0 %v4573
      %4577 = vmatprep.subr.bf16.mxu0 0
      %4578 = vmatpush1.bf16.msra.mxu0 0
      %4579 = vmatprep.subr.bf16.mxu0 0
      %4580 = vmatpush1.bf16.msra.mxu0 0
      %4581 = vmatprep.subr.bf16.mxu0 0
      %4582 = vmatpush1.bf16.msra.mxu0 0
      %4583 = vmatprep.subr.bf16.mxu0 0
      %4584 = vmatpush1.bf16.msra.mxu0 0
      %4585 = vmatprep.subr.bf16.mxu0 0
      %4586 = vmatpush1.bf16.msra.mxu0 0
      %4587 = vmatprep.subr.bf16.mxu0 0
      %4588 = vmatpush1.bf16.msra.mxu0 0
      %4589 = vmatprep.subr.bf16.mxu0 0
      %4590 = vmatpush1.bf16.msra.mxu0 0
      %4591 = vmatprep.subr.bf16.mxu0 0
      %4592 = vmatpush1.bf16.msra.mxu0 0
      %4593 = vmatprep.subr.bf16.mxu0 0
      %4594 = vmatpush1.bf16.msra.mxu0 0
      %4595 = vmatprep.subr.bf16.mxu0 0
      %4596 = vmatpush1.bf16.msra.mxu0 0
      %4597 = vmatprep.subr.bf16.mxu0 0
      %4598 = vmatpush1.bf16.msra.mxu0 0
      %4599 = vmatprep.subr.bf16.mxu0 0
      %4600 = vmatpush1.bf16.msra.mxu0 0
      %4601 = vmatprep.subr.bf16.mxu0 0
      %4602 = vmatpush1.bf16.msra.mxu0 0
      %4603 = vmatprep.subr.bf16.mxu0 0
      %4604 = vmatpush1.bf16.msra.mxu0 0
      %4605 = vmatprep.subr.bf16.mxu0 0
      %4606 = vmatpush1.bf16.msra.mxu0 0
      %4607 = vmatprep.mubr.bf16.mxu0 0
      %4608 = vmatmul.mubr.bf16.gmra.mrb[0].mxu0 %v4525
      %v4609 = vpop.f32.mrb[0].mxu0
      %v4610 = vadd.f32 0.0, %v4609
      %v4611 = vpop.f32.mrb[0].mxu0
      %v4612 = vpop.f32.mrb[0].mxu0
      %v4613 = vadd.f32 0.0, %v4612
      %v4614 = vpop.f32.mrb[0].mxu0
      %4615 = vmatprep.mubr.bf16.mxu0 0
      %4616 = vmatmul.mubr.bf16.gmra.mrb[0].mxu0 %v4528
      %v4617 = vpop.f32.mrb[0].mxu0
      %v4618 = vadd.f32 0.0, %v4617
      %v4619 = vpop.f32.mrb[0].mxu0
      %v4620 = vpop.f32.mrb[0].mxu0
      %v4621 = vadd.f32 0.0, %v4620
      %v4622 = vpop.f32.mrb[0].mxu0
      %4623 = vmatprep.mubr.bf16.mxu0 0
      %4624 = vmatmul.mubr.bf16.gmra.mrb[0].mxu0 %v4531
      %v4625 = vpop.f32.mrb[0].mxu0
      %v4626 = vadd.f32 0.0, %v4625
      %v4627 = vpop.f32.mrb[0].mxu0
      %v4628 = vpop.f32.mrb[0].mxu0
      %v4629 = vadd.f32 0.0, %v4628
      %v4630 = vpop.f32.mrb[0].mxu0
      %4631 = vmatprep.mubr.bf16.mxu0 0
      %4632 = vmatmul.mubr.bf16.gmra.mrb[0].mxu0 %v4534
      %v4633 = vpop.f32.mrb[0].mxu0
      %v4634 = vadd.f32 0.0, %v4633
      %v4635 = vpop.f32.mrb[0].mxu0
      %v4636 = vpop.f32.mrb[0].mxu0
      %v4637 = vadd.f32 0.0, %v4636
      %v4638 = vpop.f32.mrb[0].mxu0
      %4639 = vmatprep.mubr.bf16.mxu0 0
      %4640 = vmatmul.mubr.bf16.gmra.mrb[0].mxu0 %v4537
      %v4641 = vpop.f32.mrb[0].mxu0
      %v4642 = vadd.f32 0.0, %v4641
      %v4643 = vpop.f32.mrb[0].mxu0
      %v4644 = vpop.f32.mrb[0].mxu0
      %v4645 = vadd.f32 0.0, %v4644
      %v4646 = vpop.f32.mrb[0].mxu0
      %4647 = vmatprep.mubr.bf16.mxu0 0
      %4648 = vmatmul.mubr.bf16.gmra.mrb[0].mxu0 %v4540
      %v4649 = vpop.f32.mrb[0].mxu0
      %v4650 = vadd.f32 0.0, %v4649
      %v4651 = vpop.f32.mrb[0].mxu0
      %v4652 = vpop.f32.mrb[0].mxu0
      %v4653 = vadd.f32 0.0, %v4652
      %v4654 = vpop.f32.mrb[0].mxu0
      %4655 = vmatprep.mubr.bf16.mxu0 0
      %4656 = vmatmul.mubr.bf16.gmra.mrb[0].mxu0 %v4543
      %v4657 = vpop.f32.mrb[0].mxu0
      %v4658 = vadd.f32 0.0, %v4657
      %v4659 = vpop.f32.mrb[0].mxu0
      %v4660 = vpop.f32.mrb[0].mxu0
      %v4661 = vadd.f32 0.0, %v4660
      %v4662 = vpop.f32.mrb[0].mxu0
      %4663 = vmatprep.mubr.bf16.mxu0 0
      %4664 = vmatmul.mubr.bf16.gmra.mrb[0].mxu0 %v4546
      %v4665 = vpop.f32.mrb[0].mxu0
      %v4666 = vadd.f32 0.0, %v4665
      %v4667 = vpop.f32.mrb[0].mxu0
      %v4668 = vpop.f32.mrb[0].mxu0
      %v4669 = vadd.f32 0.0, %v4668
      %v4670 = vpop.f32.mrb[0].mxu0
      %4671 = vmatprep.mubr.bf16.mxu0 0
      %4672 = vmatmul.mubr.bf16.gmra.mrb[0].mxu0 %v4549
      %v4673 = vpop.f32.mrb[0].mxu0
      %v4674 = vadd.f32 0.0, %v4673
      %v4675 = vpop.f32.mrb[0].mxu0
      %v4676 = vpop.f32.mrb[0].mxu0
      %v4677 = vadd.f32 0.0, %v4676
      %v4678 = vpop.f32.mrb[0].mxu0
      %4679 = vmatprep.mubr.bf16.mxu0 0
      %4680 = vmatmul.mubr.bf16.gmra.mrb[0].mxu0 %v4552
      %v4681 = vpop.f32.mrb[0].mxu0
      %v4682 = vadd.f32 0.0, %v4681
      %v4683 = vpop.f32.mrb[0].mxu0
      %v4684 = vpop.f32.mrb[0].mxu0
      %v4685 = vadd.f32 0.0, %v4684
      %v4686 = vpop.f32.mrb[0].mxu0
      %4687 = vmatprep.mubr.bf16.mxu0 0
      %4688 = vmatmul.mubr.bf16.gmra.mrb[0].mxu0 %v4555
      %v4689 = vpop.f32.mrb[0].mxu0
      %v4690 = vadd.f32 0.0, %v4689
      %v4691 = vpop.f32.mrb[0].mxu0
      %v4692 = vpop.f32.mrb[0].mxu0
      %v4693 = vadd.f32 0.0, %v4692
      %v4694 = vpop.f32.mrb[0].mxu0
      %4695 = vmatprep.mubr.bf16.mxu0 0
      %4696 = vmatmul.mubr.bf16.gmra.mrb[0].mxu0 %v4558
      %v4697 = vpop.f32.mrb[0].mxu0
      %v4698 = vadd.f32 0.0, %v4697
      %v4699 = vpop.f32.mrb[0].mxu0
      %v4700 = vpop.f32.mrb[0].mxu0
      %v4701 = vadd.f32 0.0, %v4700
      %v4702 = vpop.f32.mrb[0].mxu0
      %4703 = vmatprep.mubr.bf16.mxu0 0
      %4704 = vmatmul.mubr.bf16.gmra.mrb[0].mxu0 %v4561
      %v4705 = vpop.f32.mrb[0].mxu0
      %v4706 = vadd.f32 0.0, %v4705
      %v4707 = vpop.f32.mrb[0].mxu0
      %v4708 = vpop.f32.mrb[0].mxu0
      %v4709 = vadd.f32 0.0, %v4708
      %v4710 = vpop.f32.mrb[0].mxu0
      %4711 = vmatprep.mubr.bf16.mxu0 0
      %4712 = vmatmul.mubr.bf16.gmra.mrb[0].mxu0 %v4564
      %v4713 = vpop.f32.mrb[0].mxu0
      %v4714 = vadd.f32 0.0, %v4713
      %v4715 = vpop.f32.mrb[0].mxu0
      %v4716 = vpop.f32.mrb[0].mxu0
      %v4717 = vadd.f32 0.0, %v4716
      %v4718 = vpop.f32.mrb[0].mxu0
      %4719 = vmatprep.mubr.bf16.mxu0 0
      %4720 = vmatmul.mubr.bf16.gmra.mrb[0].mxu0 %v4567
      %v4721 = vpop.f32.mrb[0].mxu0
      %v4722 = vadd.f32 0.0, %v4721
      %v4723 = vpop.f32.mrb[0].mxu0
      %v4724 = vpop.f32.mrb[0].mxu0
      %v4725 = vadd.f32 0.0, %v4724
      %v4726 = vpop.f32.mrb[0].mxu0
      %4727 = vmatprep.mubr.bf16.mxu0 0
      %4728 = vmatmul.mubr.bf16.gmra.mrb[0].mxu0 %v4570
      %v4729 = vpop.f32.mrb[0].mxu0
      %v4730 = vadd.f32 0.0, %v4729
      %v4731 = vpop.f32.mrb[0].mxu0
      %v4732 = vpop.f32.mrb[0].mxu0
      %v4733 = vadd.f32 0.0, %v4732
      %v4734 = vpop.f32.mrb[0].mxu0
      %4735 = vdwg.mxu0
      %v4736 = vadd.f32 %v4266, %v4610
      %v4737 = vadd.f32 %v4267, %v4613
      %v4738 = vadd.f32 %v4268, %v4618
      %v4739 = vadd.f32 %v4269, %v4621
      %v4740 = vadd.f32 %v4270, %v4626
      %v4741 = vadd.f32 %v4271, %v4629
      %v4742 = vadd.f32 %v4272, %v4634
      %v4743 = vadd.f32 %v4273, %v4637
      %v4744 = vadd.f32 %v4274, %v4642
      %v4745 = vadd.f32 %v4275, %v4645
      %v4746 = vadd.f32 %v4276, %v4650
      %v4747 = vadd.f32 %v4277, %v4653
      %v4748 = vadd.f32 %v4278, %v4658
      %v4749 = vadd.f32 %v4279, %v4661
      %v4750 = vadd.f32 %v4280, %v4666
      %v4751 = vadd.f32 %v4281, %v4669
      %v4752 = vadd.f32 %v4282, %v4674
      %v4753 = vadd.f32 %v4283, %v4677
      %v4754 = vadd.f32 %v4284, %v4682
      %v4755 = vadd.f32 %v4285, %v4685
      %v4756 = vadd.f32 %v4286, %v4690
      %v4757 = vadd.f32 %v4287, %v4693
      %v4758 = vadd.f32 %v4288, %v4698
      %v4759 = vadd.f32 %v4289, %v4701
      %v4760 = vadd.f32 %v4290, %v4706
      %v4761 = vadd.f32 %v4291, %v4709
      %v4762 = vadd.f32 %v4292, %v4714
      %v4763 = vadd.f32 %v4293, %v4717
      %v4764 = vadd.f32 %v4294, %v4722
      %v4765 = vadd.f32 %v4295, %v4725
      %v4766 = vadd.f32 %v4296, %v4730
      %v4767 = vadd.f32 %v4297, %v4733
      %v4768 = vadd.f32 %v4736, %v4737
      %v4769 = vadd.f32 %v4768, %v4738
      %v4770 = vadd.f32 %v4769, %v4739
      %v4771 = vadd.f32 %v4770, %v4740
      %v4772 = vadd.f32 %v4771, %v4741
      %v4773 = vadd.f32 %v4772, %v4742
      %v4774 = vadd.f32 %v4773, %v4743
      %v4775 = vadd.f32 %v4774, %v4744
      %v4776 = vadd.f32 %v4775, %v4745
      %v4777 = vadd.f32 %v4776, %v4746
      %v4778 = vadd.f32 %v4777, %v4747
      %v4779 = vadd.f32 %v4778, %v4748
      %v4780 = vadd.f32 %v4779, %v4749
      %v4781 = vadd.f32 %v4780, %v4750
      %v4782 = vadd.f32 %v4781, %v4751
      %v4783 = vadd.f32 %v4782, %v4752
      %v4784 = vadd.f32 %v4783, %v4753
      %v4785 = vadd.f32 %v4784, %v4754
      %v4786 = vadd.f32 %v4785, %v4755
      %v4787 = vadd.f32 %v4786, %v4756
      %v4788 = vadd.f32 %v4787, %v4757
      %v4789 = vadd.f32 %v4788, %v4758
      %v4790 = vadd.f32 %v4789, %v4759
      %v4791 = vadd.f32 %v4790, %v4760
      %v4792 = vadd.f32 %v4791, %v4761
      %v4793 = vadd.f32 %v4792, %v4762
      %v4794 = vadd.f32 %v4793, %v4763
      %v4795 = vadd.f32 %v4794, %v4764
      %v4796 = vadd.f32 %v4795, %v4765
      %v4797 = vadd.f32 %v4796, %v4766
      %v4798 = vadd.f32 %v4797, %v4767
      %v4799 = vrot.slane %v4798, 4
      %v4800 = vadd.f32 %v4798, %v4799
      %v4801 = vrot.slane %v4800, 2
      %v4802 = vadd.f32 %v4800, %v4801
      %v4803 = vrot.slane %v4802, 1
      %v4804 = vadd.f32 %v4802, %v4803
      %4805 = vst [vmem:[%s191] sm:$0x1] %v4804
      %v4806 = vmul.f32 %v4736, %v4736
      %v4807 = vmul.f32 %v4737, %v4737
      %v4808 = vmul.f32 %v4738, %v4738
      %v4809 = vmul.f32 %v4739, %v4739
      %v4810 = vmul.f32 %v4740, %v4740
      %v4811 = vmul.f32 %v4741, %v4741
      %v4812 = vmul.f32 %v4742, %v4742
      %v4813 = vmul.f32 %v4743, %v4743
      %v4814 = vmul.f32 %v4744, %v4744
      %v4815 = vmul.f32 %v4745, %v4745
      %v4816 = vmul.f32 %v4746, %v4746
      %v4817 = vmul.f32 %v4747, %v4747
      %v4818 = vmul.f32 %v4748, %v4748
      %v4819 = vmul.f32 %v4749, %v4749
      %v4820 = vmul.f32 %v4750, %v4750
      %v4821 = vmul.f32 %v4751, %v4751
      %v4822 = vmul.f32 %v4752, %v4752
      %v4823 = vmul.f32 %v4753, %v4753
      %v4824 = vmul.f32 %v4754, %v4754
      %v4825 = vmul.f32 %v4755, %v4755
      %v4826 = vmul.f32 %v4756, %v4756
      %v4827 = vmul.f32 %v4757, %v4757
      %v4828 = vmul.f32 %v4758, %v4758
      %v4829 = vmul.f32 %v4759, %v4759
      %v4830 = vmul.f32 %v4760, %v4760
      %v4831 = vmul.f32 %v4761, %v4761
      %v4832 = vmul.f32 %v4762, %v4762
      %v4833 = vmul.f32 %v4763, %v4763
      %v4834 = vmul.f32 %v4764, %v4764
      %v4835 = vmul.f32 %v4765, %v4765
      %v4836 = vmul.f32 %v4766, %v4766
      %v4837 = vmul.f32 %v4767, %v4767
      %v4838 = vadd.f32 %v4806, %v4807
      %v4839 = vadd.f32 %v4838, %v4808
      %v4840 = vadd.f32 %v4839, %v4809
      %v4841 = vadd.f32 %v4840, %v4810
      %v4842 = vadd.f32 %v4841, %v4811
      %v4843 = vadd.f32 %v4842, %v4812
      %v4844 = vadd.f32 %v4843, %v4813
      %v4845 = vadd.f32 %v4844, %v4814
      %v4846 = vadd.f32 %v4845, %v4815
      %v4847 = vadd.f32 %v4846, %v4816
      %v4848 = vadd.f32 %v4847, %v4817
      %v4849 = vadd.f32 %v4848, %v4818
      %v4850 = vadd.f32 %v4849, %v4819
      %v4851 = vadd.f32 %v4850, %v4820
      %v4852 = vadd.f32 %v4851, %v4821
      %v4853 = vadd.f32 %v4852, %v4822
      %v4854 = vadd.f32 %v4853, %v4823
      %v4855 = vadd.f32 %v4854, %v4824
      %v4856 = vadd.f32 %v4855, %v4825
      %v4857 = vadd.f32 %v4856, %v4826
      %v4858 = vadd.f32 %v4857, %v4827
      %v4859 = vadd.f32 %v4858, %v4828
      %v4860 = vadd.f32 %v4859, %v4829
      %v4861 = vadd.f32 %v4860, %v4830
      %v4862 = vadd.f32 %v4861, %v4831
      %v4863 = vadd.f32 %v4862, %v4832
      %v4864 = vadd.f32 %v4863, %v4833
      %v4865 = vadd.f32 %v4864, %v4834
      %v4866 = vadd.f32 %v4865, %v4835
      %v4867 = vadd.f32 %v4866, %v4836
      %v4868 = vadd.f32 %v4867, %v4837
      %v4869 = vrot.slane %v4868, 4
      %v4870 = vadd.f32 %v4868, %v4869
      %v4871 = vrot.slane %v4870, 2
      %v4872 = vadd.f32 %v4870, %v4871
      %v4873 = vrot.slane %v4872, 1
      %v4874 = vadd.f32 %v4872, %v4873
      %4875 = vst [vmem:[%s196] sm:$0x1] %v4874
      %s4876 = sadd.s32 %s19, %s20
      %p4877 = scmp.lt.s32.totalorder %s4876, 1
      %s4878 = scalar_select %p4877, %s4876, 1
      %s4879 = scalar_lea.vmem %s2, %s4878
      %s4880 = sadd.s32 %s19, %s20
      %p4881 = scmp.lt.s32.totalorder %s4880, 1
      %s4882 = scalar_select %p4881, %s4880, 1
      %s4883 = scalar_lea.vmem %s3, %s4882
      // Predicated region
      $region29: #{conv2d_bn_tanh.2} parent=27 // pred_check
        %p4884 = pneg %p94
      $region30: #{conv2d_bn_tanh.2} parent=27 // pred_check_branch
        %4886 = sbr.rel (%p4884) target = $region32
      $region31: #{conv2d_bn_tanh.2} parent=27 // pred_region
        %s4887 = sadd.s32 %s19, %s20
      $region32: #{conv2d_bn_tanh.2} parent=27 // pred_fallthru
        _
      // Predicated region
      $region33: #{conv2d_bn_tanh.2} parent=27 // pred_check
        %p4888 = pneg %p122
      $region34: #{conv2d_bn_tanh.2} parent=27 // pred_check_branch
        %4890 = sbr.rel (%p4888) target = $region36
      $region35: #{conv2d_bn_tanh.2} parent=27 // pred_region
        %s4891 = sadd.s32 %s19, %s20
      $region36: #{conv2d_bn_tanh.2} parent=27 // pred_fallthru
        _
    $region28: #{conv2d_bn_tanh.2} parent=5 // pred_fallthru
      _
    %p4892 = scmp.le.s32.totalorder 2, %s10
    // Predicated region
    $region37: #{conv2d_bn_tanh.2} parent=5 // pred_check
      %p4893 = pneg %p4892
    $region38: #{conv2d_bn_tanh.2} parent=5 // pred_check_branch
      %4895 = sbr.rel (%p4893) target = $region40
    $region39: #{conv2d_bn_tanh.2} parent=5 // pred_region
      %s4896 = ssub.s32 %s10, 2
      // Predicated region
      $region41: #{conv2d_bn_tanh.2} parent=39 // pred_check
        %p4897 = pneg %p100
      $region42: #{conv2d_bn_tanh.2} parent=39 // pred_check_branch
        %4899 = sbr.rel (%p4897) target = $region44
      $region43: #{conv2d_bn_tanh.2} parent=39 // pred_region
        %s4900 = sadd.s32 %s21, %s22
        %p4901 = scmp.lt.s32.totalorder %s4900, 1
        %s4902 = scalar_select %p4901, %s4900, 1
        %s4903 = scalar_lea.vmem %s2, %s4902
      $region44: #{conv2d_bn_tanh.2} parent=39 // pred_fallthru
        _
      // Predicated region
      $region45: #{conv2d_bn_tanh.2} parent=39 // pred_check
        %p4904 = pneg %p128
      $region46: #{conv2d_bn_tanh.2} parent=39 // pred_check_branch
        %4906 = sbr.rel (%p4904) target = $region48
      $region47: #{conv2d_bn_tanh.2} parent=39 // pred_region
        %s4907 = sadd.s32 %s21, %s22
        %p4908 = scmp.lt.s32.totalorder %s4907, 1
        %s4909 = scalar_select %p4908, %s4907, 1
        %s4910 = scalar_lea.vmem %s3, %s4909
      $region48: #{conv2d_bn_tanh.2} parent=39 // pred_fallthru
        _
    $region40: #{conv2d_bn_tanh.2} parent=5 // pred_fallthru
      _
  $region6: #{conv2d_bn_tanh.2} parent=0 // loop_footer
    %s14 = sadd.s32 1, %s10
  $region7: #{conv2d_bn_tanh.2} parent=0 // loop_footer_branch
    %9 = sbr.rel target = $region3
  $region8: #{conv2d_bn_tanh.2} parent=0 // loop_exit
    _

// kernel: conv2d_bn_tanh.3
$region0: #{conv2d_bn_tanh.3}
  #allocation0 [shape = 'u32[]', space=smem, size = 0x4, offset = 0x4, fixed_abs, tag = 'smem constant byte address 0x4 - core index']
  #allocation1 [shape = 'u32[144,128]{1,0:T(1,128)}', space=vmem, size = 0x12000, scoped, tag = 'internal scratch']
  %s0 = inlined_call_operand.vmem [shape: bf16[2,18,18,4], index: 0, kind: input, shape index: {}]
  %s1 = inlined_call_operand.vmem [shape: bf16[3,3,4,128], index: 1, kind: input, shape index: {}]
  %s2 = inlined_call_operand.vmem [shape: f32[1,128], index: 2, kind: input, shape index: {}]
  %s3 = inlined_call_operand.vmem [shape: f32[1,128], index: 3, kind: input, shape index: {}]
  %s4 = inlined_call_operand.hbm [shape: f32[2,8,16,16], index: 4, kind: output, shape index: {}]
  %s5 = sld [smem:[#allocation0]]
  $region49: #{conv2d_bn_tanh.3} parent=0
    _
  %s7 = ssub.s32 1, %s5
  %s8 = scalar_select 0, %s7, %s5
  $region1: #{conv2d_bn_tanh.3} parent=0
    #allocation2 [shape = 'u8[131072]{0}', space=vmem, size = 0x20000, scoped, tag = 'output window, operand 0']
    #allocation3 [shape = 's32[2]{0}', space=sflag, size = 0x8, scoped, tag = 'scoped memory for conv2d_bn_tanh.3']
    %9 = vsyncpa [#allocation3], 0
    %s10 = scalar_lea.sflag [#allocation3], 1
    %11 = vsyncpa %s10, 0
    loop: start=0, step=1, limit=4
    $region2: #{conv2d_bn_tanh.3} parent=1 // loop_pre_header
      _
    $region3: #{conv2d_bn_tanh.3} parent=1 // loop_header
      %s13 = sphi 0, %s17
      %p14 = scmp.ge.s32.totalorder %s13, 4
      %s20 = sphi 0, %s32
      %s21 = sphi 0, %s28
      %s22 = sphi 0, %s20
      %s23 = sphi 0, %s21
      %s24 = sphi 0, %s22
      %s25 = sphi 0, %s23
      %s35 = sphi 0, %s37
      %s38 = sphi 0, %s35
      %s39 = sphi 0, %s38
      %s55 = sphi 0, %s39
      %s59 = sphi 0, %s59
      %s61 = sphi 0, %s59
      %s62 = sphi 0, %s61
      %s76 = sphi 0, %s62
      %s80 = sphi 0, %s80
      %s82 = sphi 0, %s80
      %s83 = sphi 0, %s82
      %s97 = sphi 0, %s83
      %s101 = sphi 0, %s101
      %s103 = sphi 0, %s101
      %s104 = sphi 0, %s103
      %s118 = sphi 0, %s104
      %s126 = sphi 0, %s128
      %s129 = sphi 0, %s126
      %s130 = sphi 0, %s129
      %s146 = sphi 0, %s130
    $region4: #{conv2d_bn_tanh.3} parent=1 // loop_header_branch
      %16 = sbr.rel (%p14) target = $region8
    $region5: #{conv2d_bn_tanh.3} parent=1 // loop_body
      %s18 = ssub.s32 %s13, 1
      %s19 = ssub.s32 %s13, 2
      %s26 = sadd.s32 1, %s21
      %p27 = scmp.ge.s32.totalorder %s26, 1
      %s28 = scalar_select %p27, 0, %s26
      %s29 = sadd.s32 1, %s20
      %s30 = scalar_select %p27, %s29, %s20
      %p31 = scmp.ge.s32.totalorder %s30, 2
      %s32 = scalar_select %p31, 0, %s30
      %s33 = ssub.s32 %s20, %s32
      %p34 = scmp.eq.s32.totalorder %s33, 0
      %s36 = sadd.s32 %s35, 1
      %s37 = scalar_select %p34, %s35, %s36
      %p40 = pneg %p34
      %p41 = scmp.eq.s32.totalorder %s13, 1
      %p42 = por %p40, %p41
      %p43 = scmp.ne.s32.totalorder %s35, %s38
      %p44 = scmp.eq.s32.totalorder %s13, 0
      %p45 = por %p43, %p44
      %p46 = scmp.ne.s32.totalorder %s35, %s38
      %p47 = scmp.eq.s32.totalorder %s18, 1
      %p48 = por %p46, %p47
      %p49 = scmp.ne.s32.totalorder %s38, %s39
      %p50 = scmp.eq.s32.totalorder %s18, 0
      %p51 = por %p49, %p50
      %p52 = scmp.ne.s32.totalorder %s38, %s39
      %p53 = scmp.eq.s32.totalorder %s19, 1
      %p54 = por %p52, %p53
      %p56 = scmp.ne.s32.totalorder %s39, %s55
      %p57 = scmp.eq.s32.totalorder %s19, 0
      %p58 = por %p56, %p57
      %s60 = sadd.s32 %s59, 1
      %p63 = scmp.eq.s32.totalorder %s13, 1
      %p64 = scmp.ne.s32.totalorder %s59, %s61
      %p65 = scmp.eq.s32.totalorder %s13, 0
      %p66 = por %p64, %p65
      %p67 = scmp.ne.s32.totalorder %s59, %s61
      %p68 = scmp.eq.s32.totalorder %s18, 1
      %p69 = por %p67, %p68
      %p70 = scmp.ne.s32.totalorder %s61, %s62
      %p71 = scmp.eq.s32.totalorder %s18, 0
      %p72 = por %p70, %p71
      %p73 = scmp.ne.s32.totalorder %s61, %s62
      %p74 = scmp.eq.s32.totalorder %s19, 1
      %p75 = por %p73, %p74
      %p77 = scmp.ne.s32.totalorder %s62, %s76
      %p78 = scmp.eq.s32.totalorder %s19, 0
      %p79 = por %p77, %p78
      %s81 = sadd.s32 %s80, 1
      %p84 = scmp.eq.s32.totalorder %s13, 1
      %p85 = scmp.ne.s32.totalorder %s80, %s82
      %p86 = scmp.eq.s32.totalorder %s13, 0
      %p87 = por %p85, %p86
      %p88 = scmp.ne.s32.totalorder %s80, %s82
      %p89 = scmp.eq.s32.totalorder %s18, 1
      %p90 = por %p88, %p89
      %p91 = scmp.ne.s32.totalorder %s82, %s83
      %p92 = scmp.eq.s32.totalorder %s18, 0
      %p93 = por %p91, %p92
      %p94 = scmp.ne.s32.totalorder %s82, %s83
      %p95 = scmp.eq.s32.totalorder %s19, 1
      %p96 = por %p94, %p95
      %p98 = scmp.ne.s32.totalorder %s83, %s97
      %p99 = scmp.eq.s32.totalorder %s19, 0
      %p100 = por %p98, %p99
      %s102 = sadd.s32 %s101, 1
      %p105 = scmp.eq.s32.totalorder %s13, 1
      %p106 = scmp.ne.s32.totalorder %s101, %s103
      %p107 = scmp.eq.s32.totalorder %s13, 0
      %p108 = por %p106, %p107
      %p109 = scmp.ne.s32.totalorder %s101, %s103
      %p110 = scmp.eq.s32.totalorder %s18, 1
      %p111 = por %p109, %p110
      %p112 = scmp.ne.s32.totalorder %s103, %s104
      %p113 = scmp.eq.s32.totalorder %s18, 0
      %p114 = por %p112, %p113
      %p115 = scmp.ne.s32.totalorder %s103, %s104
      %p116 = scmp.eq.s32.totalorder %s19, 1
      %p117 = por %p115, %p116
      %p119 = scmp.ne.s32.totalorder %s104, %s118
      %p120 = scmp.eq.s32.totalorder %s19, 0
      %p121 = por %p119, %p120
      %s122 = ssub.s32 %s20, %s32
      %s123 = ssub.s32 %s21, %s28
      %s124 = sor.u32 %s122, %s123
      %p125 = scmp.eq.s32.totalorder %s124, 0
      %s127 = sadd.s32 %s126, 1
      %s128 = scalar_select %p125, %s126, %s127
      %p131 = pneg %p125
      %p132 = scmp.eq.s32.totalorder %s13, 1
      %p133 = por %p131, %p132
      %p134 = scmp.ne.s32.totalorder %s126, %s129
      %p135 = scmp.eq.s32.totalorder %s13, 0
      %p136 = por %p134, %p135
      %p137 = scmp.ne.s32.totalorder %s126, %s129
      %p138 = scmp.eq.s32.totalorder %s18, 1
      %p139 = por %p137, %p138
      %p140 = scmp.ne.s32.totalorder %s129, %s130
      %p141 = scmp.eq.s32.totalorder %s18, 0
      %p142 = por %p140, %p141
      %p143 = scmp.ne.s32.totalorder %s129, %s130
      %p144 = scmp.eq.s32.totalorder %s19, 1
      %p145 = por %p143, %p144
      %p147 = scmp.ne.s32.totalorder %s130, %s146
      %p148 = scmp.eq.s32.totalorder %s19, 0
      %p149 = por %p147, %p148
      %p150 = scmp.le.s32.totalorder 1, %s13
      %p151 = scmp.lt.s32.totalorder %s13, 3
      %p152 = pnand %p150, %p151
      %p153 = pneg %p152
      // Predicated region
      $region9: #{conv2d_bn_tanh.3} parent=5 // pred_check
        _
      $region10: #{conv2d_bn_tanh.3} parent=5 // pred_check_branch
        %155 = sbr.rel (%p152) target = $region12
      $region11: #{conv2d_bn_tanh.3} parent=5 // pred_region
        %s156 = ssub.s32 %s13, 1
        // Predicated region
        $region13: #{conv2d_bn_tanh.3} parent=11 // pred_check
          %p157 = pneg %p72
        $region14: #{conv2d_bn_tanh.3} parent=11 // pred_check_branch
          %159 = sbr.rel (%p157) target = $region16
        $region15: #{conv2d_bn_tanh.3} parent=11 // pred_region
          _
        $region16: #{conv2d_bn_tanh.3} parent=11 // pred_fallthru
          _
        // Predicated region
        $region17: #{conv2d_bn_tanh.3} parent=11 // pred_check
          %p160 = pneg %p93
        $region18: #{conv2d_bn_tanh.3} parent=11 // pred_check_branch
          %162 = sbr.rel (%p160) target = $region20
        $region19: #{conv2d_bn_tanh.3} parent=11 // pred_region
          _
        $region20: #{conv2d_bn_tanh.3} parent=11 // pred_fallthru
          _
        // Predicated region
        $region21: #{conv2d_bn_tanh.3} parent=11 // pred_check
          %p163 = pneg %p114
        $region22: #{conv2d_bn_tanh.3} parent=11 // pred_check_branch
          %165 = sbr.rel (%p163) target = $region24
        $region23: #{conv2d_bn_tanh.3} parent=11 // pred_region
          _
        $region24: #{conv2d_bn_tanh.3} parent=11 // pred_fallthru
          _
      $region12: #{conv2d_bn_tanh.3} parent=5 // pred_fallthru
        _
      %p166 = scmp.lt.s32.totalorder %s13, 2
      // Predicated region
      $region25: #{conv2d_bn_tanh.3} parent=5 // pred_check
        %p167 = pneg %p166
      $region26: #{conv2d_bn_tanh.3} parent=5 // pred_check_branch
        %169 = sbr.rel (%p167) target = $region28
      $region27: #{conv2d_bn_tanh.3} parent=5 // pred_region
        // Predicated region
        $region29: #{conv2d_bn_tanh.3} parent=27 // pred_check
          %p170 = pneg %p45
        $region30: #{conv2d_bn_tanh.3} parent=27 // pred_check_branch
          %172 = sbr.rel (%p170) target = $region32
        $region31: #{conv2d_bn_tanh.3} parent=27 // pred_region
          %p173 = scmp.lt.s32.totalorder %s20, 1
          %s174 = scalar_select %p173, %s20, 1
          %s175 = smul.addr %s174, 54
          %s176 = smul.addr %s175, 4
          %s177 = scalar_lea.vmem %s0, %s176
        $region32: #{conv2d_bn_tanh.3} parent=27 // pred_fallthru
          _
      $region28: #{conv2d_bn_tanh.3} parent=5 // pred_fallthru
        _
      %p178 = scmp.le.s32.totalorder 1, %s13
      %p179 = scmp.lt.s32.totalorder %s13, 3
      %p180 = pnand %p178, %p179
      %p181 = pneg %p180
      // Predicated region
      $region33: #{conv2d_bn_tanh.3} parent=5 // pred_check
        _
      $region34: #{conv2d_bn_tanh.3} parent=5 // pred_check_branch
        %183 = sbr.rel (%p180) target = $region36
      $region35: #{conv2d_bn_tanh.3} parent=5 // pred_region
        %s184 = ssub.s32 %s13, 1
        %p185 = scmp.lt.s32.totalorder %s22, 1
        %s186 = scalar_select %p185, %s22, 1
        %s187 = smul.addr %s186, 54
        %s188 = smul.addr %s187, 4
        %s189 = scalar_lea.vmem %s0, %s188
        %p190 = pneg %p51
        %p191 = pneg %p48
        %p192 = pneg %p72
        %p193 = pneg %p69
        %p194 = pneg %p93
        %p195 = pneg %p90
        %p196 = pneg %p114
        %p197 = pneg %p111
        %p198 = pneg %p142
        %p199 = pneg %p139
        %s200 = sand.u32 %s129, 1
        %s201 = scalar_lea.sflag [#allocation3], %s200
        %s202 = sand.u32 %s129, 1
        %s203 = smul.addr %s202, 128
        %s204 = scalar_lea.vmem [#allocation2], %s203
        %p205 = scmp.lt.s32.totalorder %s22, 1
        %s206 = scalar_select %p205, %s22, 1
        %s207 = smul.addr %s206, 54
        %s208 = smul.addr %s207, 4
        %s209 = scalar_lea.vmem %s0, %s208
        %s210 = smul.u32 2, %s23
        %s212 = smul.u32 %s23, 16
        %s213 = smul.u32 %s212, 3
        %s214 = smul.addr %s213, 4
        %s215 = scalar_lea.vmem %s209, %s214
        %v216 = vld [vmem:[%s215] sm:$0xf]
        %v217 = vld [vmem:[%s215 + $0x4] sm:$0xf]
        %v218 = vld [vmem:[%s215 + $0xc] sm:$0xf]
        %v219 = vld [vmem:[%s215 + $0x10] sm:$0xf]
        %v220 = vld [vmem:[%s215 + $0x18] sm:$0xf]
        %v221 = vld [vmem:[%s215 + $0x1c] sm:$0xf]
        %v222 = vld [vmem:[%s215 + $0x24] sm:$0xf]
        %v223 = vld [vmem:[%s215 + $0x28] sm:$0xf]
        %v224 = vld [vmem:[%s215 + $0x30] sm:$0xf]
        %v225 = vld [vmem:[%s215 + $0x34] sm:$0xf]
        %v226 = vld [vmem:[%s215 + $0x3c] sm:$0xf]
        %v227 = vld [vmem:[%s215 + $0x40] sm:$0xf]
        %v228 = vld [vmem:[%s215 + $0x48] sm:$0xf]
        %v229 = vld [vmem:[%s215 + $0x4c] sm:$0xf]
        %v230 = vld [vmem:[%s215 + $0x54] sm:$0xf]
        %v231 = vld [vmem:[%s215 + $0x58] sm:$0xf]
        %v232 = vld [vmem:[%s215 + $0x60] sm:$0xf]
        %v233 = vld [vmem:[%s215 + $0x64] sm:$0xf]
        %v234 = vld [vmem:[%s215 + $0x6c] sm:$0xf]
        %v235 = vld [vmem:[%s215 + $0x70] sm:$0xf]
        %v236 = vld [vmem:[%s215 + $0x78] sm:$0xf]
        %v237 = vld [vmem:[%s215 + $0x7c] sm:$0xf]
        %v238 = vld [vmem:[%s215 + $0x84] sm:$0xf]
        %v239 = vld [vmem:[%s215 + $0x88] sm:$0xf]
        %v240 = vld [vmem:[%s215 + $0x90] sm:$0xf]
        %v241 = vld [vmem:[%s215 + $0x94] sm:$0xf]
        %v242 = vld [vmem:[%s215 + $0x9c] sm:$0xf]
        %v243 = vld [vmem:[%s215 + $0xa0] sm:$0xf]
        %v244 = vld [vmem:[%s215 + $0xa8] sm:$0xf]
        %v245 = vld [vmem:[%s215 + $0xac] sm:$0xf]
        %v246 = vld [vmem:[%s215 + $0xb4] sm:$0xf]
        %v247 = vld [vmem:[%s215 + $0xb8] sm:$0xf]
        %v248 = vld [vmem:[%s1] sm:$0x3]
        %v249 = vld [vmem:[%s215 + $0x8] sm:$0x1]
        %v250 = vld [vmem:[%s215 + $0x14] sm:$0x1]
        %v251 = vld [vmem:[%s215 + $0x20] sm:$0x1]
        %v252 = vld [vmem:[%s215 + $0x2c] sm:$0x1]
        %v253 = vld [vmem:[%s215 + $0x38] sm:$0x1]
        %v254 = vld [vmem:[%s215 + $0x44] sm:$0x1]
        %v255 = vld [vmem:[%s215 + $0x50] sm:$0x1]
        %v256 = vld [vmem:[%s215 + $0x5c] sm:$0x1]
        %v257 = vld [vmem:[%s215 + $0x68] sm:$0x1]
        %v258 = vld [vmem:[%s215 + $0x74] sm:$0x1]
        %v259 = vld [vmem:[%s215 + $0x80] sm:$0x1]
        %v260 = vld [vmem:[%s215 + $0x8c] sm:$0x1]
        %v261 = vld [vmem:[%s215 + $0x98] sm:$0x1]
        %v262 = vld [vmem:[%s215 + $0xa4] sm:$0x1]
        %v263 = vld [vmem:[%s215 + $0xb0] sm:$0x1]
        %v264 = vld [vmem:[%s215 + $0xbc] sm:$0x1]
        %vm265 = vsmask.f32 3328
        %vm266 = vsmask.f32 7440
        %vm267 = vmor %vm265, %vm266
        %v269 = vshrl.u32 %v216, 16
        %v271 = vrot.slane %v269, 4
        %v272 = vshll.u32 %v216, 16
        %v274 = vrot.slane %v272, 5
        %v275 = vor.u32 %v271, %v274
        %v276 = vrot.slane %v275, 4
        %v278 = vshll.u32 %v217, 16
        %v280 = vrot.slane %v278, 5
        %v281 = vsel %vm267, %v276, %v280
        %v282 = vshrl.u32 %v217, 16
        %v284 = vrot.slane %v282, 4
        %v285 = vor.u32 %v284, %v280
        %v286 = vrot.slane %v285, 4
        %v288 = vshll.u32 %v249, 16
        %v290 = vrot.slane %v288, 5
        %v291 = vsel %vm267, %v286, %v290
        %v293 = vshrl.u32 %v218, 16
        %v295 = vrot.slane %v293, 4
        %v296 = vshll.u32 %v218, 16
        %v298 = vrot.slane %v296, 5
        %v299 = vor.u32 %v295, %v298
        %v300 = vrot.slane %v299, 4
        %v302 = vshll.u32 %v219, 16
        %v304 = vrot.slane %v302, 5
        %v305 = vsel %vm267, %v300, %v304
        %v306 = vshrl.u32 %v219, 16
        %v308 = vrot.slane %v306, 4
        %v309 = vor.u32 %v308, %v304
        %v310 = vrot.slane %v309, 4
        %v312 = vshll.u32 %v250, 16
        %v314 = vrot.slane %v312, 5
        %v315 = vsel %vm267, %v310, %v314
        %v317 = vshrl.u32 %v220, 16
        %v319 = vrot.slane %v317, 4
        %v320 = vshll.u32 %v220, 16
        %v322 = vrot.slane %v320, 5
        %v323 = vor.u32 %v319, %v322
        %v324 = vrot.slane %v323, 4
        %v326 = vshll.u32 %v221, 16
        %v328 = vrot.slane %v326, 5
        %v329 = vsel %vm267, %v324, %v328
        %v330 = vshrl.u32 %v221, 16
        %v332 = vrot.slane %v330, 4
        %v333 = vor.u32 %v332, %v328
        %v334 = vrot.slane %v333, 4
        %v336 = vshll.u32 %v251, 16
        %v338 = vrot.slane %v336, 5
        %v339 = vsel %vm267, %v334, %v338
        %v341 = vshrl.u32 %v222, 16
        %v343 = vrot.slane %v341, 4
        %v344 = vshll.u32 %v222, 16
        %v346 = vrot.slane %v344, 5
        %v347 = vor.u32 %v343, %v346
        %v348 = vrot.slane %v347, 4
        %v350 = vshll.u32 %v223, 16
        %v352 = vrot.slane %v350, 5
        %v353 = vsel %vm267, %v348, %v352
        %v354 = vshrl.u32 %v223, 16
        %v356 = vrot.slane %v354, 4
        %v357 = vor.u32 %v356, %v352
        %v358 = vrot.slane %v357, 4
        %v360 = vshll.u32 %v252, 16
        %v362 = vrot.slane %v360, 5
        %v363 = vsel %vm267, %v358, %v362
        %v365 = vshrl.u32 %v224, 16
        %v367 = vrot.slane %v365, 4
        %v368 = vshll.u32 %v224, 16
        %v370 = vrot.slane %v368, 5
        %v371 = vor.u32 %v367, %v370
        %v372 = vrot.slane %v371, 4
        %v374 = vshll.u32 %v225, 16
        %v376 = vrot.slane %v374, 5
        %v377 = vsel %vm267, %v372, %v376
        %v378 = vshrl.u32 %v225, 16
        %v380 = vrot.slane %v378, 4
        %v381 = vor.u32 %v380, %v376
        %v382 = vrot.slane %v381, 4
        %v384 = vshll.u32 %v253, 16
        %v386 = vrot.slane %v384, 5
        %v387 = vsel %vm267, %v382, %v386
        %v389 = vshrl.u32 %v226, 16
        %v391 = vrot.slane %v389, 4
        %v392 = vshll.u32 %v226, 16
        %v394 = vrot.slane %v392, 5
        %v395 = vor.u32 %v391, %v394
        %v396 = vrot.slane %v395, 4
        %v398 = vshll.u32 %v227, 16
        %v400 = vrot.slane %v398, 5
        %v401 = vsel %vm267, %v396, %v400
        %v402 = vshrl.u32 %v227, 16
        %v404 = vrot.slane %v402, 4
        %v405 = vor.u32 %v404, %v400
        %v406 = vrot.slane %v405, 4
        %v408 = vshll.u32 %v254, 16
        %v410 = vrot.slane %v408, 5
        %v411 = vsel %vm267, %v406, %v410
        %v413 = vshrl.u32 %v228, 16
        %v415 = vrot.slane %v413, 4
        %v416 = vshll.u32 %v228, 16
        %v418 = vrot.slane %v416, 5
        %v419 = vor.u32 %v415, %v418
        %v420 = vrot.slane %v419, 4
        %v422 = vshll.u32 %v229, 16
        %v424 = vrot.slane %v422, 5
        %v425 = vsel %vm267, %v420, %v424
        %v426 = vshrl.u32 %v229, 16
        %v428 = vrot.slane %v426, 4
        %v429 = vor.u32 %v428, %v424
        %v430 = vrot.slane %v429, 4
        %v432 = vshll.u32 %v255, 16
        %v434 = vrot.slane %v432, 5
        %v435 = vsel %vm267, %v430, %v434
        %v437 = vshrl.u32 %v230, 16
        %v439 = vrot.slane %v437, 4
        %v440 = vshll.u32 %v230, 16
        %v442 = vrot.slane %v440, 5
        %v443 = vor.u32 %v439, %v442
        %v444 = vrot.slane %v443, 4
        %v446 = vshll.u32 %v231, 16
        %v448 = vrot.slane %v446, 5
        %v449 = vsel %vm267, %v444, %v448
        %v450 = vshrl.u32 %v231, 16
        %v452 = vrot.slane %v450, 4
        %v453 = vor.u32 %v452, %v448
        %v454 = vrot.slane %v453, 4
        %v456 = vshll.u32 %v256, 16
        %v458 = vrot.slane %v456, 5
        %v459 = vsel %vm267, %v454, %v458
        %v461 = vshrl.u32 %v232, 16
        %v463 = vrot.slane %v461, 4
        %v464 = vshll.u32 %v232, 16
        %v466 = vrot.slane %v464, 5
        %v467 = vor.u32 %v463, %v466
        %v468 = vrot.slane %v467, 4
        %v470 = vshll.u32 %v233, 16
        %v472 = vrot.slane %v470, 5
        %v473 = vsel %vm267, %v468, %v472
        %v474 = vshrl.u32 %v233, 16
        %v476 = vrot.slane %v474, 4
        %v477 = vor.u32 %v476, %v472
        %v478 = vrot.slane %v477, 4
        %v480 = vshll.u32 %v257, 16
        %v482 = vrot.slane %v480, 5
        %v483 = vsel %vm267, %v478, %v482
        %v485 = vshrl.u32 %v234, 16
        %v487 = vrot.slane %v485, 4
        %v488 = vshll.u32 %v234, 16
        %v490 = vrot.slane %v488, 5
        %v491 = vor.u32 %v487, %v490
        %v492 = vrot.slane %v491, 4
        %v494 = vshll.u32 %v235, 16
        %v496 = vrot.slane %v494, 5
        %v497 = vsel %vm267, %v492, %v496
        %v498 = vshrl.u32 %v235, 16
        %v500 = vrot.slane %v498, 4
        %v501 = vor.u32 %v500, %v496
        %v502 = vrot.slane %v501, 4
        %v504 = vshll.u32 %v258, 16
        %v506 = vrot.slane %v504, 5
        %v507 = vsel %vm267, %v502, %v506
        %v509 = vshrl.u32 %v236, 16
        %v511 = vrot.slane %v509, 4
        %v512 = vshll.u32 %v236, 16
        %v514 = vrot.slane %v512, 5
        %v515 = vor.u32 %v511, %v514
        %v516 = vrot.slane %v515, 4
        %v518 = vshll.u32 %v237, 16
        %v520 = vrot.slane %v518, 5
        %v521 = vsel %vm267, %v516, %v520
        %v522 = vshrl.u32 %v237, 16
        %v524 = vrot.slane %v522, 4
        %v525 = vor.u32 %v524, %v520
        %v526 = vrot.slane %v525, 4
        %v528 = vshll.u32 %v259, 16
        %v530 = vrot.slane %v528, 5
        %v531 = vsel %vm267, %v526, %v530
        %v533 = vshrl.u32 %v238, 16
        %v535 = vrot.slane %v533, 4
        %v536 = vshll.u32 %v238, 16
        %v538 = vrot.slane %v536, 5
        %v539 = vor.u32 %v535, %v538
        %v540 = vrot.slane %v539, 4
        %v542 = vshll.u32 %v239, 16
        %v544 = vrot.slane %v542, 5
        %v545 = vsel %vm267, %v540, %v544
        %v546 = vshrl.u32 %v239, 16
        %v548 = vrot.slane %v546, 4
        %v549 = vor.u32 %v548, %v544
        %v550 = vrot.slane %v549, 4
        %v552 = vshll.u32 %v260, 16
        %v554 = vrot.slane %v552, 5
        %v555 = vsel %vm267, %v550, %v554
        %v557 = vshrl.u32 %v240, 16
        %v559 = vrot.slane %v557, 4
        %v560 = vshll.u32 %v240, 16
        %v562 = vrot.slane %v560, 5
        %v563 = vor.u32 %v559, %v562
        %v564 = vrot.slane %v563, 4
        %v566 = vshll.u32 %v241, 16
        %v568 = vrot.slane %v566, 5
        %v569 = vsel %vm267, %v564, %v568
        %v570 = vshrl.u32 %v241, 16
        %v572 = vrot.slane %v570, 4
        %v573 = vor.u32 %v572, %v568
        %v574 = vrot.slane %v573, 4
        %v576 = vshll.u32 %v261, 16
        %v578 = vrot.slane %v576, 5
        %v579 = vsel %vm267, %v574, %v578
        %v581 = vshrl.u32 %v242, 16
        %v583 = vrot.slane %v581, 4
        %v584 = vshll.u32 %v242, 16
        %v586 = vrot.slane %v584, 5
        %v587 = vor.u32 %v583, %v586
        %v588 = vrot.slane %v587, 4
        %v590 = vshll.u32 %v243, 16
        %v592 = vrot.slane %v590, 5
        %v593 = vsel %vm267, %v588, %v592
        %v594 = vshrl.u32 %v243, 16
        %v596 = vrot.slane %v594, 4
        %v597 = vor.u32 %v596, %v592
        %v598 = vrot.slane %v597, 4
        %v600 = vshll.u32 %v262, 16
        %v602 = vrot.slane %v600, 5
        %v603 = vsel %vm267, %v598, %v602
        %v605 = vshrl.u32 %v244, 16
        %v607 = vrot.slane %v605, 4
        %v608 = vshll.u32 %v244, 16
        %v610 = vrot.slane %v608, 5
        %v611 = vor.u32 %v607, %v610
        %v612 = vrot.slane %v611, 4
        %v614 = vshll.u32 %v245, 16
        %v616 = vrot.slane %v614, 5
        %v617 = vsel %vm267, %v612, %v616
        %v618 = vshrl.u32 %v245, 16
        %v620 = vrot.slane %v618, 4
        %v621 = vor.u32 %v620, %v616
        %v622 = vrot.slane %v621, 4
        %v624 = vshll.u32 %v263, 16
        %v626 = vrot.slane %v624, 5
        %v627 = vsel %vm267, %v622, %v626
        %v629 = vshrl.u32 %v246, 16
        %v631 = vrot.slane %v629, 4
        %v632 = vshll.u32 %v246, 16
        %v634 = vrot.slane %v632, 5
        %v635 = vor.u32 %v631, %v634
        %v636 = vrot.slane %v635, 4
        %v638 = vshll.u32 %v247, 16
        %v640 = vrot.slane %v638, 5
        %v641 = vsel %vm267, %v636, %v640
        %v642 = vshrl.u32 %v247, 16
        %v644 = vrot.slane %v642, 4
        %v645 = vor.u32 %v644, %v640
        %v646 = vrot.slane %v645, 4
        %v648 = vshll.u32 %v264, 16
        %v650 = vrot.slane %v648, 5
        %v651 = vsel %vm267, %v646, %v650
        %s652 = scalar_lea.vmem %s1, 2
        %v653 = vld [vmem:[%s652] sm:$0x3]
        %v654 = vunpack.c.l.b16 %v281
        %v655 = vunpack.c.l.b16 %v291
        %v656 = vunpack.c.l.b16 %v305
        %v657 = vunpack.c.l.b16 %v315
        %v658 = vunpack.c.l.b16 %v329
        %v659 = vunpack.c.l.b16 %v339
        %v660 = vunpack.c.l.b16 %v353
        %v661 = vunpack.c.l.b16 %v363
        %v662 = vunpack.c.l.b16 %v377
        %v663 = vunpack.c.l.b16 %v387
        %v664 = vunpack.c.l.b16 %v401
        %v665 = vunpack.c.l.b16 %v411
        %v666 = vunpack.c.l.b16 %v425
        %v667 = vunpack.c.l.b16 %v435
        %v668 = vunpack.c.l.b16 %v449
        %v669 = vunpack.c.l.b16 %v459
        %v670 = vunpack.c.l.b16 %v473
        %v671 = vunpack.c.l.b16 %v483
        %v672 = vunpack.c.l.b16 %v497
        %v673 = vunpack.c.l.b16 %v507
        %v674 = vunpack.c.l.b16 %v521
        %v675 = vunpack.c.l.b16 %v531
        %v676 = vunpack.c.l.b16 %v545
        %v677 = vunpack.c.l.b16 %v555
        %v678 = vunpack.c.l.b16 %v569
        %v679 = vunpack.c.l.b16 %v579
        %v680 = vunpack.c.l.b16 %v593
        %v681 = vunpack.c.l.b16 %v603
        %v682 = vunpack.c.l.b16 %v617
        %v683 = vunpack.c.l.b16 %v627
        %v684 = vunpack.c.l.b16 %v641
        %v685 = vunpack.c.l.b16 %v651
        %v686 = vpack.c.b16 %v655, %v654
        %v687 = vpack.c.b16 %v657, %v656
        %v688 = vpack.c.b16 %v659, %v658
        %v689 = vpack.c.b16 %v661, %v660
        %v690 = vpack.c.b16 %v663, %v662
        %v691 = vpack.c.b16 %v665, %v664
        %v692 = vpack.c.b16 %v667, %v666
        %v693 = vpack.c.b16 %v669, %v668
        %v694 = vpack.c.b16 %v671, %v670
        %v695 = vpack.c.b16 %v673, %v672
        %v696 = vpack.c.b16 %v675, %v674
        %v697 = vpack.c.b16 %v677, %v676
        %v698 = vpack.c.b16 %v679, %v678
        %v699 = vpack.c.b16 %v681, %v680
        %v700 = vpack.c.b16 %v683, %v682
        %v701 = vpack.c.b16 %v685, %v684
        %vm702 = vcmask 31744
        %v704 = vsel %vm702, %v686, 0
        %v707 = vsel %vm702, %v687, 0
        %v710 = vsel %vm702, %v688, 0
        %v713 = vsel %vm702, %v689, 0
        %v716 = vsel %vm702, %v690, 0
        %v719 = vsel %vm702, %v691, 0
        %v722 = vsel %vm702, %v692, 0
        %v725 = vsel %vm702, %v693, 0
        %v728 = vsel %vm702, %v694, 0
        %v731 = vsel %vm702, %v695, 0
        %v734 = vsel %vm702, %v696, 0
        %v737 = vsel %vm702, %v697, 0
        %v740 = vsel %vm702, %v698, 0
        %v743 = vsel %vm702, %v699, 0
        %v746 = vsel %vm702, %v700, 0
        %v749 = vsel %vm702, %v701, 0
        %vm751 = vcmask 1041408
        %v753 = vsel %vm751, %v653, 0
        %755 = vmatprep.subr.bf16.mxu0 0
        %756 = vmatpush1.bf16.msra.mxu0 %v753
        %757 = vmatprep.subr.bf16.mxu0 0
        %758 = vmatpush1.bf16.msra.mxu0 0
        %759 = vmatprep.subr.bf16.mxu0 0
        %760 = vmatpush1.bf16.msra.mxu0 0
        %761 = vmatprep.subr.bf16.mxu0 0
        %762 = vmatpush1.bf16.msra.mxu0 0
        %763 = vmatprep.subr.bf16.mxu0 0
        %764 = vmatpush1.bf16.msra.mxu0 0
        %765 = vmatprep.subr.bf16.mxu0 0
        %766 = vmatpush1.bf16.msra.mxu0 0
        %767 = vmatprep.subr.bf16.mxu0 0
        %768 = vmatpush1.bf16.msra.mxu0 0
        %769 = vmatprep.subr.bf16.mxu0 0
        %770 = vmatpush1.bf16.msra.mxu0 0
        %771 = vmatprep.subr.bf16.mxu0 0
        %772 = vmatpush1.bf16.msra.mxu0 0
        %773 = vmatprep.subr.bf16.mxu0 0
        %774 = vmatpush1.bf16.msra.mxu0 0
        %775 = vmatprep.subr.bf16.mxu0 0
        %776 = vmatpush1.bf16.msra.mxu0 0
        %777 = vmatprep.subr.bf16.mxu0 0
        %778 = vmatpush1.bf16.msra.mxu0 0
        %779 = vmatprep.subr.bf16.mxu0 0
        %780 = vmatpush1.bf16.msra.mxu0 0
        %781 = vmatprep.subr.bf16.mxu0 0
        %782 = vmatpush1.bf16.msra.mxu0 0
        %783 = vmatprep.subr.bf16.mxu0 0
        %784 = vmatpush1.bf16.msra.mxu0 0
        %785 = vmatprep.subr.bf16.mxu0 0
        %786 = vmatpush1.bf16.msra.mxu0 0
        %787 = vmatprep.mubr.bf16.mxu0 0
        %788 = vmatmul.mubr.bf16.gmra.mrb[0].mxu0 %v704
        %v789 = vpop.f32.mrb[0].mxu0
        %v790 = vadd.f32 0.0, %v789
        %v791 = vpop.f32.mrb[0].mxu0
        %v792 = vpop.f32.mrb[0].mxu0
        %v793 = vadd.f32 0.0, %v792
        %v794 = vpop.f32.mrb[0].mxu0
        %795 = vmatprep.mubr.bf16.mxu0 0
        %796 = vmatmul.mubr.bf16.gmra.mrb[0].mxu0 %v707
        %v797 = vpop.f32.mrb[0].mxu0
        %v798 = vadd.f32 0.0, %v797
        %v799 = vpop.f32.mrb[0].mxu0
        %v800 = vpop.f32.mrb[0].mxu0
        %v801 = vadd.f32 0.0, %v800
        %v802 = vpop.f32.mrb[0].mxu0
        %803 = vmatprep.mubr.bf16.mxu0 0
        %804 = vmatmul.mubr.bf16.gmra.mrb[0].mxu0 %v710
        %v805 = vpop.f32.mrb[0].mxu0
        %v806 = vadd.f32 0.0, %v805
        %v807 = vpop.f32.mrb[0].mxu0
        %v808 = vpop.f32.mrb[0].mxu0
        %v809 = vadd.f32 0.0, %v808
        %v810 = vpop.f32.mrb[0].mxu0
        %811 = vmatprep.mubr.bf16.mxu0 0
        %812 = vmatmul.mubr.bf16.gmra.mrb[0].mxu0 %v713
        %v813 = vpop.f32.mrb[0].mxu0
        %v814 = vadd.f32 0.0, %v813
        %v815 = vpop.f32.mrb[0].mxu0
        %v816 = vpop.f32.mrb[0].mxu0
        %v817 = vadd.f32 0.0, %v816
        %v818 = vpop.f32.mrb[0].mxu0
        %819 = vmatprep.mubr.bf16.mxu0 0
        %820 = vmatmul.mubr.bf16.gmra.mrb[0].mxu0 %v716
        %v821 = vpop.f32.mrb[0].mxu0
        %v822 = vadd.f32 0.0, %v821
        %v823 = vpop.f32.mrb[0].mxu0
        %v824 = vpop.f32.mrb[0].mxu0
        %v825 = vadd.f32 0.0, %v824
        %v826 = vpop.f32.mrb[0].mxu0
        %827 = vmatprep.mubr.bf16.mxu0 0
        %828 = vmatmul.mubr.bf16.gmra.mrb[0].mxu0 %v719
        %v829 = vpop.f32.mrb[0].mxu0
        %v830 = vadd.f32 0.0, %v829
        %v831 = vpop.f32.mrb[0].mxu0
        %v832 = vpop.f32.mrb[0].mxu0
        %v833 = vadd.f32 0.0, %v832
        %v834 = vpop.f32.mrb[0].mxu0
        %835 = vmatprep.mubr.bf16.mxu0 0
        %836 = vmatmul.mubr.bf16.gmra.mrb[0].mxu0 %v722
        %v837 = vpop.f32.mrb[0].mxu0
        %v838 = vadd.f32 0.0, %v837
        %v839 = vpop.f32.mrb[0].mxu0
        %v840 = vpop.f32.mrb[0].mxu0
        %v841 = vadd.f32 0.0, %v840
        %v842 = vpop.f32.mrb[0].mxu0
        %843 = vmatprep.mubr.bf16.mxu0 0
        %844 = vmatmul.mubr.bf16.gmra.mrb[0].mxu0 %v725
        %v845 = vpop.f32.mrb[0].mxu0
        %v846 = vadd.f32 0.0, %v845
        %v847 = vpop.f32.mrb[0].mxu0
        %v848 = vpop.f32.mrb[0].mxu0
        %v849 = vadd.f32 0.0, %v848
        %v850 = vpop.f32.mrb[0].mxu0
        %851 = vmatprep.mubr.bf16.mxu0 0
        %852 = vmatmul.mubr.bf16.gmra.mrb[0].mxu0 %v728
        %v853 = vpop.f32.mrb[0].mxu0
        %v854 = vadd.f32 0.0, %v853
        %v855 = vpop.f32.mrb[0].mxu0
        %v856 = vpop.f32.mrb[0].mxu0
        %v857 = vadd.f32 0.0, %v856
        %v858 = vpop.f32.mrb[0].mxu0
        %859 = vmatprep.mubr.bf16.mxu0 0
        %860 = vmatmul.mubr.bf16.gmra.mrb[0].mxu0 %v731
        %v861 = vpop.f32.mrb[0].mxu0
        %v862 = vadd.f32 0.0, %v861
        %v863 = vpop.f32.mrb[0].mxu0
        %v864 = vpop.f32.mrb[0].mxu0
        %v865 = vadd.f32 0.0, %v864
        %v866 = vpop.f32.mrb[0].mxu0
        %867 = vmatprep.mubr.bf16.mxu0 0
        %868 = vmatmul.mubr.bf16.gmra.mrb[0].mxu0 %v734
        %v869 = vpop.f32.mrb[0].mxu0
        %v870 = vadd.f32 0.0, %v869
        %v871 = vpop.f32.mrb[0].mxu0
        %v872 = vpop.f32.mrb[0].mxu0
        %v873 = vadd.f32 0.0, %v872
        %v874 = vpop.f32.mrb[0].mxu0
        %875 = vmatprep.mubr.bf16.mxu0 0
        %876 = vmatmul.mubr.bf16.gmra.mrb[0].mxu0 %v737
        %v877 = vpop.f32.mrb[0].mxu0
        %v878 = vadd.f32 0.0, %v877
        %v879 = vpop.f32.mrb[0].mxu0
        %v880 = vpop.f32.mrb[0].mxu0
        %v881 = vadd.f32 0.0, %v880
        %v882 = vpop.f32.mrb[0].mxu0
        %883 = vmatprep.mubr.bf16.mxu0 0
        %884 = vmatmul.mubr.bf16.gmra.mrb[0].mxu0 %v740
        %v885 = vpop.f32.mrb[0].mxu0
        %v886 = vadd.f32 0.0, %v885
        %v887 = vpop.f32.mrb[0].mxu0
        %v888 = vpop.f32.mrb[0].mxu0
        %v889 = vadd.f32 0.0, %v888
        %v890 = vpop.f32.mrb[0].mxu0
        %891 = vmatprep.mubr.bf16.mxu0 0
        %892 = vmatmul.mubr.bf16.gmra.mrb[0].mxu0 %v743
        %v893 = vpop.f32.mrb[0].mxu0
        %v894 = vadd.f32 0.0, %v893
        %v895 = vpop.f32.mrb[0].mxu0
        %v896 = vpop.f32.mrb[0].mxu0
        %v897 = vadd.f32 0.0, %v896
        %v898 = vpop.f32.mrb[0].mxu0
        %899 = vmatprep.mubr.bf16.mxu0 0
        %900 = vmatmul.mubr.bf16.gmra.mrb[0].mxu0 %v746
        %v901 = vpop.f32.mrb[0].mxu0
        %v902 = vadd.f32 0.0, %v901
        %v903 = vpop.f32.mrb[0].mxu0
        %v904 = vpop.f32.mrb[0].mxu0
        %v905 = vadd.f32 0.0, %v904
        %v906 = vpop.f32.mrb[0].mxu0
        %907 = vmatprep.mubr.bf16.mxu0 0
        %908 = vmatmul.mubr.bf16.gmra.mrb[0].mxu0 %v749
        %v909 = vpop.f32.mrb[0].mxu0
        %v910 = vadd.f32 0.0, %v909
        %v911 = vpop.f32.mrb[0].mxu0
        %v912 = vpop.f32.mrb[0].mxu0
        %v913 = vadd.f32 0.0, %v912
        %v914 = vpop.f32.mrb[0].mxu0
        %915 = vdwg.mxu0
        %v948 = vunpack.c.l.b16 %v216
        %v949 = vunpack.c.l.b16 %v217
        %v950 = vunpack.c.l.b16 %v218
        %v951 = vunpack.c.l.b16 %v219
        %v952 = vunpack.c.l.b16 %v220
        %v953 = vunpack.c.l.b16 %v221
        %v954 = vunpack.c.l.b16 %v222
        %v955 = vunpack.c.l.b16 %v223
        %v956 = vunpack.c.l.b16 %v224
        %v957 = vunpack.c.l.b16 %v225
        %v958 = vunpack.c.l.b16 %v226
        %v959 = vunpack.c.l.b16 %v227
        %v960 = vunpack.c.l.b16 %v228
        %v961 = vunpack.c.l.b16 %v229
        %v962 = vunpack.c.l.b16 %v230
        %v963 = vunpack.c.l.b16 %v231
        %v964 = vunpack.c.l.b16 %v232
        %v965 = vunpack.c.l.b16 %v233
        %v966 = vunpack.c.l.b16 %v234
        %v967 = vunpack.c.l.b16 %v235
        %v968 = vunpack.c.l.b16 %v236
        %v969 = vunpack.c.l.b16 %v237
        %v970 = vunpack.c.l.b16 %v238
        %v971 = vunpack.c.l.b16 %v239
        %v972 = vunpack.c.l.b16 %v240
        %v973 = vunpack.c.l.b16 %v241
        %v974 = vunpack.c.l.b16 %v242
        %v975 = vunpack.c.l.b16 %v243
        %v976 = vunpack.c.l.b16 %v244
        %v977 = vunpack.c.l.b16 %v245
        %v978 = vunpack.c.l.b16 %v246
        %v979 = vunpack.c.l.b16 %v247
        %v980 = vpack.c.b16 %v949, %v948
        %v981 = vpack.c.b16 %v951, %v950
        %v982 = vpack.c.b16 %v953, %v952
        %v983 = vpack.c.b16 %v955, %v954
        %v984 = vpack.c.b16 %v957, %v956
        %v985 = vpack.c.b16 %v959, %v958
        %v986 = vpack.c.b16 %v961, %v960
        %v987 = vpack.c.b16 %v963, %v962
        %v988 = vpack.c.b16 %v965, %v964
        %v989 = vpack.c.b16 %v967, %v966
        %v990 = vpack.c.b16 %v969, %v968
        %v991 = vpack.c.b16 %v971, %v970
        %v992 = vpack.c.b16 %v973, %v972
        %v993 = vpack.c.b16 %v975, %v974
        %v994 = vpack.c.b16 %v977, %v976
        %v995 = vpack.c.b16 %v979, %v978
        %v997 = vsel %vm702, %v980, 0
        %v1000 = vsel %vm702, %v981, 0
        %v1003 = vsel %vm702, %v982, 0
        %v1006 = vsel %vm702, %v983, 0
        %v1009 = vsel %vm702, %v984, 0
        %v1012 = vsel %vm702, %v985, 0
        %v1015 = vsel %vm702, %v986, 0
        %v1018 = vsel %vm702, %v987, 0
        %v1021 = vsel %vm702, %v988, 0
        %v1024 = vsel %vm702, %v989, 0
        %v1027 = vsel %vm702, %v990, 0
        %v1030 = vsel %vm702, %v991, 0
        %v1033 = vsel %vm702, %v992, 0
        %v1036 = vsel %vm702, %v993, 0
        %v1039 = vsel %vm702, %v994, 0
        %v1042 = vsel %vm702, %v995, 0
        %v1045 = vsel %vm751, %v248, 0
        %1047 = vmatprep.subr.bf16.mxu0 0
        %1048 = vmatpush1.bf16.msra.mxu0 %v1045
        %1049 = vmatprep.subr.bf16.mxu0 0
        %1050 = vmatpush1.bf16.msra.mxu0 0
        %1051 = vmatprep.subr.bf16.mxu0 0
        %1052 = vmatpush1.bf16.msra.mxu0 0
        %1053 = vmatprep.subr.bf16.mxu0 0
        %1054 = vmatpush1.bf16.msra.mxu0 0
        %1055 = vmatprep.subr.bf16.mxu0 0
        %1056 = vmatpush1.bf16.msra.mxu0 0
        %1057 = vmatprep.subr.bf16.mxu0 0
        %1058 = vmatpush1.bf16.msra.mxu0 0
        %1059 = vmatprep.subr.bf16.mxu0 0
        %1060 = vmatpush1.bf16.msra.mxu0 0
        %1061 = vmatprep.subr.bf16.mxu0 0
        %1062 = vmatpush1.bf16.msra.mxu0 0
        %1063 = vmatprep.subr.bf16.mxu0 0
        %1064 = vmatpush1.bf16.msra.mxu0 0
        %1065 = vmatprep.subr.bf16.mxu0 0
        %1066 = vmatpush1.bf16.msra.mxu0 0
        %1067 = vmatprep.subr.bf16.mxu0 0
        %1068 = vmatpush1.bf16.msra.mxu0 0
        %1069 = vmatprep.subr.bf16.mxu0 0
        %1070 = vmatpush1.bf16.msra.mxu0 0
        %1071 = vmatprep.subr.bf16.mxu0 0
        %1072 = vmatpush1.bf16.msra.mxu0 0
        %1073 = vmatprep.subr.bf16.mxu0 0
        %1074 = vmatpush1.bf16.msra.mxu0 0
        %1075 = vmatprep.subr.bf16.mxu0 0
        %1076 = vmatpush1.bf16.msra.mxu0 0
        %1077 = vmatprep.subr.bf16.mxu0 0
        %1078 = vmatpush1.bf16.msra.mxu0 0
        %1079 = vmatprep.mubr.bf16.mxu0 0
        %1080 = vmatmul.mubr.bf16.gmra.mrb[0].mxu0 %v997
        %v1081 = vpop.f32.mrb[0].mxu0
        %v1082 = vadd.f32 %v790, %v1081
        %v1083 = vpop.f32.mrb[0].mxu0
        %v1084 = vpop.f32.mrb[0].mxu0
        %v1085 = vadd.f32 %v793, %v1084
        %v1086 = vpop.f32.mrb[0].mxu0
        %1087 = vmatprep.mubr.bf16.mxu0 0
        %1088 = vmatmul.mubr.bf16.gmra.mrb[0].mxu0 %v1000
        %v1089 = vpop.f32.mrb[0].mxu0
        %v1090 = vadd.f32 %v798, %v1089
        %v1091 = vpop.f32.mrb[0].mxu0
        %v1092 = vpop.f32.mrb[0].mxu0
        %v1093 = vadd.f32 %v801, %v1092
        %v1094 = vpop.f32.mrb[0].mxu0
        %1095 = vmatprep.mubr.bf16.mxu0 0
        %1096 = vmatmul.mubr.bf16.gmra.mrb[0].mxu0 %v1003
        %v1097 = vpop.f32.mrb[0].mxu0
        %v1098 = vadd.f32 %v806, %v1097
        %v1099 = vpop.f32.mrb[0].mxu0
        %v1100 = vpop.f32.mrb[0].mxu0
        %v1101 = vadd.f32 %v809, %v1100
        %v1102 = vpop.f32.mrb[0].mxu0
        %1103 = vmatprep.mubr.bf16.mxu0 0
        %1104 = vmatmul.mubr.bf16.gmra.mrb[0].mxu0 %v1006
        %v1105 = vpop.f32.mrb[0].mxu0
        %v1106 = vadd.f32 %v814, %v1105
        %v1107 = vpop.f32.mrb[0].mxu0
        %v1108 = vpop.f32.mrb[0].mxu0
        %v1109 = vadd.f32 %v817, %v1108
        %v1110 = vpop.f32.mrb[0].mxu0
        %1111 = vmatprep.mubr.bf16.mxu0 0
        %1112 = vmatmul.mubr.bf16.gmra.mrb[0].mxu0 %v1009
        %v1113 = vpop.f32.mrb[0].mxu0
        %v1114 = vadd.f32 %v822, %v1113
        %v1115 = vpop.f32.mrb[0].mxu0
        %v1116 = vpop.f32.mrb[0].mxu0
        %v1117 = vadd.f32 %v825, %v1116
        %v1118 = vpop.f32.mrb[0].mxu0
        %1119 = vmatprep.mubr.bf16.mxu0 0
        %1120 = vmatmul.mubr.bf16.gmra.mrb[0].mxu0 %v1012
        %v1121 = vpop.f32.mrb[0].mxu0
        %v1122 = vadd.f32 %v830, %v1121
        %v1123 = vpop.f32.mrb[0].mxu0
        %v1124 = vpop.f32.mrb[0].mxu0
        %v1125 = vadd.f32 %v833, %v1124
        %v1126 = vpop.f32.mrb[0].mxu0
        %1127 = vmatprep.mubr.bf16.mxu0 0
        %1128 = vmatmul.mubr.bf16.gmra.mrb[0].mxu0 %v1015
        %v1129 = vpop.f32.mrb[0].mxu0
        %v1130 = vadd.f32 %v838, %v1129
        %v1131 = vpop.f32.mrb[0].mxu0
        %v1132 = vpop.f32.mrb[0].mxu0
        %v1133 = vadd.f32 %v841, %v1132
        %v1134 = vpop.f32.mrb[0].mxu0
        %1135 = vmatprep.mubr.bf16.mxu0 0
        %1136 = vmatmul.mubr.bf16.gmra.mrb[0].mxu0 %v1018
        %v1137 = vpop.f32.mrb[0].mxu0
        %v1138 = vadd.f32 %v846, %v1137
        %v1139 = vpop.f32.mrb[0].mxu0
        %v1140 = vpop.f32.mrb[0].mxu0
        %v1141 = vadd.f32 %v849, %v1140
        %v1142 = vpop.f32.mrb[0].mxu0
        %1143 = vmatprep.mubr.bf16.mxu0 0
        %1144 = vmatmul.mubr.bf16.gmra.mrb[0].mxu0 %v1021
        %v1145 = vpop.f32.mrb[0].mxu0
        %v1146 = vadd.f32 %v854, %v1145
        %v1147 = vpop.f32.mrb[0].mxu0
        %v1148 = vpop.f32.mrb[0].mxu0
        %v1149 = vadd.f32 %v857, %v1148
        %v1150 = vpop.f32.mrb[0].mxu0
        %1151 = vmatprep.mubr.bf16.mxu0 0
        %1152 = vmatmul.mubr.bf16.gmra.mrb[0].mxu0 %v1024
        %v1153 = vpop.f32.mrb[0].mxu0
        %v1154 = vadd.f32 %v862, %v1153
        %v1155 = vpop.f32.mrb[0].mxu0
        %v1156 = vpop.f32.mrb[0].mxu0
        %v1157 = vadd.f32 %v865, %v1156
        %v1158 = vpop.f32.mrb[0].mxu0
        %1159 = vmatprep.mubr.bf16.mxu0 0
        %1160 = vmatmul.mubr.bf16.gmra.mrb[0].mxu0 %v1027
        %v1161 = vpop.f32.mrb[0].mxu0
        %v1162 = vadd.f32 %v870, %v1161
        %v1163 = vpop.f32.mrb[0].mxu0
        %v1164 = vpop.f32.mrb[0].mxu0
        %v1165 = vadd.f32 %v873, %v1164
        %v1166 = vpop.f32.mrb[0].mxu0
        %1167 = vmatprep.mubr.bf16.mxu0 0
        %1168 = vmatmul.mubr.bf16.gmra.mrb[0].mxu0 %v1030
        %v1169 = vpop.f32.mrb[0].mxu0
        %v1170 = vadd.f32 %v878, %v1169
        %v1171 = vpop.f32.mrb[0].mxu0
        %v1172 = vpop.f32.mrb[0].mxu0
        %v1173 = vadd.f32 %v881, %v1172
        %v1174 = vpop.f32.mrb[0].mxu0
        %1175 = vmatprep.mubr.bf16.mxu0 0
        %1176 = vmatmul.mubr.bf16.gmra.mrb[0].mxu0 %v1033
        %v1177 = vpop.f32.mrb[0].mxu0
        %v1178 = vadd.f32 %v886, %v1177
        %v1179 = vpop.f32.mrb[0].mxu0
        %v1180 = vpop.f32.mrb[0].mxu0
        %v1181 = vadd.f32 %v889, %v1180
        %v1182 = vpop.f32.mrb[0].mxu0
        %1183 = vmatprep.mubr.bf16.mxu0 0
        %1184 = vmatmul.mubr.bf16.gmra.mrb[0].mxu0 %v1036
        %v1185 = vpop.f32.mrb[0].mxu0
        %v1186 = vadd.f32 %v894, %v1185
        %v1187 = vpop.f32.mrb[0].mxu0
        %v1188 = vpop.f32.mrb[0].mxu0
        %v1189 = vadd.f32 %v897, %v1188
        %v1190 = vpop.f32.mrb[0].mxu0
        %1191 = vmatprep.mubr.bf16.mxu0 0
        %1192 = vmatmul.mubr.bf16.gmra.mrb[0].mxu0 %v1039
        %v1193 = vpop.f32.mrb[0].mxu0
        %v1194 = vadd.f32 %v902, %v1193
        %v1195 = vpop.f32.mrb[0].mxu0
        %v1196 = vpop.f32.mrb[0].mxu0
        %v1197 = vadd.f32 %v905, %v1196
        %v1198 = vpop.f32.mrb[0].mxu0
        %1199 = vmatprep.mubr.bf16.mxu0 0
        %1200 = vmatmul.mubr.bf16.gmra.mrb[0].mxu0 %v1042
        %v1201 = vpop.f32.mrb[0].mxu0
        %v1202 = vadd.f32 %v910, %v1201
        %v1203 = vpop.f32.mrb[0].mxu0
        %v1204 = vpop.f32.mrb[0].mxu0
        %v1205 = vadd.f32 %v913, %v1204
        %v1206 = vpop.f32.mrb[0].mxu0
        %1207 = vdwg.mxu0
        %v1208 = vld [vmem:[%s215] sm:$0xe]
        %v1209 = vld [vmem:[%s215 + $0xc] sm:$0xe]
        %v1210 = vld [vmem:[%s215 + $0x18] sm:$0xe]
        %v1211 = vld [vmem:[%s215 + $0x24] sm:$0xe]
        %v1212 = vld [vmem:[%s215 + $0x30] sm:$0xe]
        %v1213 = vld [vmem:[%s215 + $0x3c] sm:$0xe]
        %v1214 = vld [vmem:[%s215 + $0x48] sm:$0xe]
        %v1215 = vld [vmem:[%s215 + $0x54] sm:$0xe]
        %v1216 = vld [vmem:[%s215 + $0x60] sm:$0xe]
        %v1217 = vld [vmem:[%s215 + $0x6c] sm:$0xe]
        %v1218 = vld [vmem:[%s215 + $0x78] sm:$0xe]
        %v1219 = vld [vmem:[%s215 + $0x84] sm:$0xe]
        %v1220 = vld [vmem:[%s215 + $0x90] sm:$0xe]
        %v1221 = vld [vmem:[%s215 + $0x9c] sm:$0xe]
        %v1222 = vld [vmem:[%s215 + $0xa8] sm:$0xe]
        %v1223 = vld [vmem:[%s215 + $0xb4] sm:$0xe]
        %vm1256 = vcmask 1042432
        %vm1257 = vcmask 1046532
        %vm1258 = vmor %vm1256, %vm1257
        %v1259 = vrot.slane %v1208, 5
        %v1260 = vrot.slane %v1259, 4
        %v1261 = vrot.slane %v217, 5
        %v1262 = vsel %vm1258, %v1260, %v1261
        %v1263 = vrot.slane %v1261, 4
        %v1264 = vrot.slane %v249, 5
        %v1265 = vsel %vm1258, %v1263, %v1264
        %v1266 = vrot.slane %v1209, 5
        %v1267 = vrot.slane %v1266, 4
        %v1268 = vrot.slane %v219, 5
        %v1269 = vsel %vm1258, %v1267, %v1268
        %v1270 = vrot.slane %v1268, 4
        %v1271 = vrot.slane %v250, 5
        %v1272 = vsel %vm1258, %v1270, %v1271
        %v1273 = vrot.slane %v1210, 5
        %v1274 = vrot.slane %v1273, 4
        %v1275 = vrot.slane %v221, 5
        %v1276 = vsel %vm1258, %v1274, %v1275
        %v1277 = vrot.slane %v1275, 4
        %v1278 = vrot.slane %v251, 5
        %v1279 = vsel %vm1258, %v1277, %v1278
        %v1280 = vrot.slane %v1211, 5
        %v1281 = vrot.slane %v1280, 4
        %v1282 = vrot.slane %v223, 5
        %v1283 = vsel %vm1258, %v1281, %v1282
        %v1284 = vrot.slane %v1282, 4
        %v1285 = vrot.slane %v252, 5
        %v1286 = vsel %vm1258, %v1284, %v1285
        %v1287 = vrot.slane %v1212, 5
        %v1288 = vrot.slane %v1287, 4
        %v1289 = vrot.slane %v225, 5
        %v1290 = vsel %vm1258, %v1288, %v1289
        %v1291 = vrot.slane %v1289, 4
        %v1292 = vrot.slane %v253, 5
        %v1293 = vsel %vm1258, %v1291, %v1292
        %v1294 = vrot.slane %v1213, 5
        %v1295 = vrot.slane %v1294, 4
        %v1296 = vrot.slane %v227, 5
        %v1297 = vsel %vm1258, %v1295, %v1296
        %v1298 = vrot.slane %v1296, 4
        %v1299 = vrot.slane %v254, 5
        %v1300 = vsel %vm1258, %v1298, %v1299
        %v1301 = vrot.slane %v1214, 5
        %v1302 = vrot.slane %v1301, 4
        %v1303 = vrot.slane %v229, 5
        %v1304 = vsel %vm1258, %v1302, %v1303
        %v1305 = vrot.slane %v1303, 4
        %v1306 = vrot.slane %v255, 5
        %v1307 = vsel %vm1258, %v1305, %v1306
        %v1308 = vrot.slane %v1215, 5
        %v1309 = vrot.slane %v1308, 4
        %v1310 = vrot.slane %v231, 5
        %v1311 = vsel %vm1258, %v1309, %v1310
        %v1312 = vrot.slane %v1310, 4
        %v1313 = vrot.slane %v256, 5
        %v1314 = vsel %vm1258, %v1312, %v1313
        %v1315 = vrot.slane %v1216, 5
        %v1316 = vrot.slane %v1315, 4
        %v1317 = vrot.slane %v233, 5
        %v1318 = vsel %vm1258, %v1316, %v1317
        %v1319 = vrot.slane %v1317, 4
        %v1320 = vrot.slane %v257, 5
        %v1321 = vsel %vm1258, %v1319, %v1320
        %v1322 = vrot.slane %v1217, 5
        %v1323 = vrot.slane %v1322, 4
        %v1324 = vrot.slane %v235, 5
        %v1325 = vsel %vm1258, %v1323, %v1324
        %v1326 = vrot.slane %v1324, 4
        %v1327 = vrot.slane %v258, 5
        %v1328 = vsel %vm1258, %v1326, %v1327
        %v1329 = vrot.slane %v1218, 5
        %v1330 = vrot.slane %v1329, 4
        %v1331 = vrot.slane %v237, 5
        %v1332 = vsel %vm1258, %v1330, %v1331
        %v1333 = vrot.slane %v1331, 4
        %v1334 = vrot.slane %v259, 5
        %v1335 = vsel %vm1258, %v1333, %v1334
        %v1336 = vrot.slane %v1219, 5
        %v1337 = vrot.slane %v1336, 4
        %v1338 = vrot.slane %v239, 5
        %v1339 = vsel %vm1258, %v1337, %v1338
        %v1340 = vrot.slane %v1338, 4
        %v1341 = vrot.slane %v260, 5
        %v1342 = vsel %vm1258, %v1340, %v1341
        %v1343 = vrot.slane %v1220, 5
        %v1344 = vrot.slane %v1343, 4
        %v1345 = vrot.slane %v241, 5
        %v1346 = vsel %vm1258, %v1344, %v1345
        %v1347 = vrot.slane %v1345, 4
        %v1348 = vrot.slane %v261, 5
        %v1349 = vsel %vm1258, %v1347, %v1348
        %v1350 = vrot.slane %v1221, 5
        %v1351 = vrot.slane %v1350, 4
        %v1352 = vrot.slane %v243, 5
        %v1353 = vsel %vm1258, %v1351, %v1352
        %v1354 = vrot.slane %v1352, 4
        %v1355 = vrot.slane %v262, 5
        %v1356 = vsel %vm1258, %v1354, %v1355
        %v1357 = vrot.slane %v1222, 5
        %v1358 = vrot.slane %v1357, 4
        %v1359 = vrot.slane %v245, 5
        %v1360 = vsel %vm1258, %v1358, %v1359
        %v1361 = vrot.slane %v1359, 4
        %v1362 = vrot.slane %v263, 5
        %v1363 = vsel %vm1258, %v1361, %v1362
        %v1364 = vrot.slane %v1223, 5
        %v1365 = vrot.slane %v1364, 4
        %v1366 = vrot.slane %v247, 5
        %v1367 = vsel %vm1258, %v1365, %v1366
        %v1368 = vrot.slane %v1366, 4
        %v1369 = vrot.slane %v264, 5
        %v1370 = vsel %vm1258, %v1368, %v1369
        %s1371 = scalar_lea.vmem %s1, 4
        %v1372 = vld [vmem:[%s1371] sm:$0x3]
        %v1373 = vunpack.c.l.b16 %v1262
        %v1374 = vunpack.c.l.b16 %v1265
        %v1375 = vunpack.c.l.b16 %v1269
        %v1376 = vunpack.c.l.b16 %v1272
        %v1377 = vunpack.c.l.b16 %v1276
        %v1378 = vunpack.c.l.b16 %v1279
        %v1379 = vunpack.c.l.b16 %v1283
        %v1380 = vunpack.c.l.b16 %v1286
        %v1381 = vunpack.c.l.b16 %v1290
        %v1382 = vunpack.c.l.b16 %v1293
        %v1383 = vunpack.c.l.b16 %v1297
        %v1384 = vunpack.c.l.b16 %v1300
        %v1385 = vunpack.c.l.b16 %v1304
        %v1386 = vunpack.c.l.b16 %v1307
        %v1387 = vunpack.c.l.b16 %v1311
        %v1388 = vunpack.c.l.b16 %v1314
        %v1389 = vunpack.c.l.b16 %v1318
        %v1390 = vunpack.c.l.b16 %v1321
        %v1391 = vunpack.c.l.b16 %v1325
        %v1392 = vunpack.c.l.b16 %v1328
        %v1393 = vunpack.c.l.b16 %v1332
        %v1394 = vunpack.c.l.b16 %v1335
        %v1395 = vunpack.c.l.b16 %v1339
        %v1396 = vunpack.c.l.b16 %v1342
        %v1397 = vunpack.c.l.b16 %v1346
        %v1398 = vunpack.c.l.b16 %v1349
        %v1399 = vunpack.c.l.b16 %v1353
        %v1400 = vunpack.c.l.b16 %v1356
        %v1401 = vunpack.c.l.b16 %v1360
        %v1402 = vunpack.c.l.b16 %v1363
        %v1403 = vunpack.c.l.b16 %v1367
        %v1404 = vunpack.c.l.b16 %v1370
        %v1405 = vpack.c.b16 %v1374, %v1373
        %v1406 = vpack.c.b16 %v1376, %v1375
        %v1407 = vpack.c.b16 %v1378, %v1377
        %v1408 = vpack.c.b16 %v1380, %v1379
        %v1409 = vpack.c.b16 %v1382, %v1381
        %v1410 = vpack.c.b16 %v1384, %v1383
        %v1411 = vpack.c.b16 %v1386, %v1385
        %v1412 = vpack.c.b16 %v1388, %v1387
        %v1413 = vpack.c.b16 %v1390, %v1389
        %v1414 = vpack.c.b16 %v1392, %v1391
        %v1415 = vpack.c.b16 %v1394, %v1393
        %v1416 = vpack.c.b16 %v1396, %v1395
        %v1417 = vpack.c.b16 %v1398, %v1397
        %v1418 = vpack.c.b16 %v1400, %v1399
        %v1419 = vpack.c.b16 %v1402, %v1401
        %v1420 = vpack.c.b16 %v1404, %v1403
        %v1422 = vsel %vm702, %v1405, 0
        %v1425 = vsel %vm702, %v1406, 0
        %v1428 = vsel %vm702, %v1407, 0
        %v1431 = vsel %vm702, %v1408, 0
        %v1434 = vsel %vm702, %v1409, 0
        %v1437 = vsel %vm702, %v1410, 0
        %v1440 = vsel %vm702, %v1411, 0
        %v1443 = vsel %vm702, %v1412, 0
        %v1446 = vsel %vm702, %v1413, 0
        %v1449 = vsel %vm702, %v1414, 0
        %v1452 = vsel %vm702, %v1415, 0
        %v1455 = vsel %vm702, %v1416, 0
        %v1458 = vsel %vm702, %v1417, 0
        %v1461 = vsel %vm702, %v1418, 0
        %v1464 = vsel %vm702, %v1419, 0
        %v1467 = vsel %vm702, %v1420, 0
        %v1470 = vsel %vm751, %v1372, 0
        %1472 = vmatprep.subr.bf16.mxu0 0
        %1473 = vmatpush1.bf16.msra.mxu0 %v1470
        %1474 = vmatprep.subr.bf16.mxu0 0
        %1475 = vmatpush1.bf16.msra.mxu0 0
        %1476 = vmatprep.subr.bf16.mxu0 0
        %1477 = vmatpush1.bf16.msra.mxu0 0
        %1478 = vmatprep.subr.bf16.mxu0 0
        %1479 = vmatpush1.bf16.msra.mxu0 0
        %1480 = vmatprep.subr.bf16.mxu0 0
        %1481 = vmatpush1.bf16.msra.mxu0 0
        %1482 = vmatprep.subr.bf16.mxu0 0
        %1483 = vmatpush1.bf16.msra.mxu0 0
        %1484 = vmatprep.subr.bf16.mxu0 0
        %1485 = vmatpush1.bf16.msra.mxu0 0
        %1486 = vmatprep.subr.bf16.mxu0 0
        %1487 = vmatpush1.bf16.msra.mxu0 0
        %1488 = vmatprep.subr.bf16.mxu0 0
        %1489 = vmatpush1.bf16.msra.mxu0 0
        %1490 = vmatprep.subr.bf16.mxu0 0
        %1491 = vmatpush1.bf16.msra.mxu0 0
        %1492 = vmatprep.subr.bf16.mxu0 0
        %1493 = vmatpush1.bf16.msra.mxu0 0
        %1494 = vmatprep.subr.bf16.mxu0 0
        %1495 = vmatpush1.bf16.msra.mxu0 0
        %1496 = vmatprep.subr.bf16.mxu0 0
        %1497 = vmatpush1.bf16.msra.mxu0 0
        %1498 = vmatprep.subr.bf16.mxu0 0
        %1499 = vmatpush1.bf16.msra.mxu0 0
        %1500 = vmatprep.subr.bf16.mxu0 0
        %1501 = vmatpush1.bf16.msra.mxu0 0
        %1502 = vmatprep.subr.bf16.mxu0 0
        %1503 = vmatpush1.bf16.msra.mxu0 0
        %1504 = vmatprep.mubr.bf16.mxu0 0
        %1505 = vmatmul.mubr.bf16.gmra.mrb[0].mxu0 %v1422
        %v1506 = vpop.f32.mrb[0].mxu0
        %v1507 = vadd.f32 0.0, %v1506
        %v1508 = vpop.f32.mrb[0].mxu0
        %v1509 = vpop.f32.mrb[0].mxu0
        %v1510 = vadd.f32 0.0, %v1509
        %v1511 = vpop.f32.mrb[0].mxu0
        %1512 = vmatprep.mubr.bf16.mxu0 0
        %1513 = vmatmul.mubr.bf16.gmra.mrb[0].mxu0 %v1425
        %v1514 = vpop.f32.mrb[0].mxu0
        %v1515 = vadd.f32 0.0, %v1514
        %v1516 = vpop.f32.mrb[0].mxu0
        %v1517 = vpop.f32.mrb[0].mxu0
        %v1518 = vadd.f32 0.0, %v1517
        %v1519 = vpop.f32.mrb[0].mxu0
        %1520 = vmatprep.mubr.bf16.mxu0 0
        %1521 = vmatmul.mubr.bf16.gmra.mrb[0].mxu0 %v1428
        %v1522 = vpop.f32.mrb[0].mxu0
        %v1523 = vadd.f32 0.0, %v1522
        %v1524 = vpop.f32.mrb[0].mxu0
        %v1525 = vpop.f32.mrb[0].mxu0
        %v1526 = vadd.f32 0.0, %v1525
        %v1527 = vpop.f32.mrb[0].mxu0
        %1528 = vmatprep.mubr.bf16.mxu0 0
        %1529 = vmatmul.mubr.bf16.gmra.mrb[0].mxu0 %v1431
        %v1530 = vpop.f32.mrb[0].mxu0
        %v1531 = vadd.f32 0.0, %v1530
        %v1532 = vpop.f32.mrb[0].mxu0
        %v1533 = vpop.f32.mrb[0].mxu0
        %v1534 = vadd.f32 0.0, %v1533
        %v1535 = vpop.f32.mrb[0].mxu0
        %1536 = vmatprep.mubr.bf16.mxu0 0
        %1537 = vmatmul.mubr.bf16.gmra.mrb[0].mxu0 %v1434
        %v1538 = vpop.f32.mrb[0].mxu0
        %v1539 = vadd.f32 0.0, %v1538
        %v1540 = vpop.f32.mrb[0].mxu0
        %v1541 = vpop.f32.mrb[0].mxu0
        %v1542 = vadd.f32 0.0, %v1541
        %v1543 = vpop.f32.mrb[0].mxu0
        %1544 = vmatprep.mubr.bf16.mxu0 0
        %1545 = vmatmul.mubr.bf16.gmra.mrb[0].mxu0 %v1437
        %v1546 = vpop.f32.mrb[0].mxu0
        %v1547 = vadd.f32 0.0, %v1546
        %v1548 = vpop.f32.mrb[0].mxu0
        %v1549 = vpop.f32.mrb[0].mxu0
        %v1550 = vadd.f32 0.0, %v1549
        %v1551 = vpop.f32.mrb[0].mxu0
        %1552 = vmatprep.mubr.bf16.mxu0 0
        %1553 = vmatmul.mubr.bf16.gmra.mrb[0].mxu0 %v1440
        %v1554 = vpop.f32.mrb[0].mxu0
        %v1555 = vadd.f32 0.0, %v1554
        %v1556 = vpop.f32.mrb[0].mxu0
        %v1557 = vpop.f32.mrb[0].mxu0
        %v1558 = vadd.f32 0.0, %v1557
        %v1559 = vpop.f32.mrb[0].mxu0
        %1560 = vmatprep.mubr.bf16.mxu0 0
        %1561 = vmatmul.mubr.bf16.gmra.mrb[0].mxu0 %v1443
        %v1562 = vpop.f32.mrb[0].mxu0
        %v1563 = vadd.f32 0.0, %v1562
        %v1564 = vpop.f32.mrb[0].mxu0
        %v1565 = vpop.f32.mrb[0].mxu0
        %v1566 = vadd.f32 0.0, %v1565
        %v1567 = vpop.f32.mrb[0].mxu0
        %1568 = vmatprep.mubr.bf16.mxu0 0
        %1569 = vmatmul.mubr.bf16.gmra.mrb[0].mxu0 %v1446
        %v1570 = vpop.f32.mrb[0].mxu0
        %v1571 = vadd.f32 0.0, %v1570
        %v1572 = vpop.f32.mrb[0].mxu0
        %v1573 = vpop.f32.mrb[0].mxu0
        %v1574 = vadd.f32 0.0, %v1573
        %v1575 = vpop.f32.mrb[0].mxu0
        %1576 = vmatprep.mubr.bf16.mxu0 0
        %1577 = vmatmul.mubr.bf16.gmra.mrb[0].mxu0 %v1449
        %v1578 = vpop.f32.mrb[0].mxu0
        %v1579 = vadd.f32 0.0, %v1578
        %v1580 = vpop.f32.mrb[0].mxu0
        %v1581 = vpop.f32.mrb[0].mxu0
        %v1582 = vadd.f32 0.0, %v1581
        %v1583 = vpop.f32.mrb[0].mxu0
        %1584 = vmatprep.mubr.bf16.mxu0 0
        %1585 = vmatmul.mubr.bf16.gmra.mrb[0].mxu0 %v1452
        %v1586 = vpop.f32.mrb[0].mxu0
        %v1587 = vadd.f32 0.0, %v1586
        %v1588 = vpop.f32.mrb[0].mxu0
        %v1589 = vpop.f32.mrb[0].mxu0
        %v1590 = vadd.f32 0.0, %v1589
        %v1591 = vpop.f32.mrb[0].mxu0
        %1592 = vmatprep.mubr.bf16.mxu0 0
        %1593 = vmatmul.mubr.bf16.gmra.mrb[0].mxu0 %v1455
        %v1594 = vpop.f32.mrb[0].mxu0
        %v1595 = vadd.f32 0.0, %v1594
        %v1596 = vpop.f32.mrb[0].mxu0
        %v1597 = vpop.f32.mrb[0].mxu0
        %v1598 = vadd.f32 0.0, %v1597
        %v1599 = vpop.f32.mrb[0].mxu0
        %1600 = vmatprep.mubr.bf16.mxu0 0
        %1601 = vmatmul.mubr.bf16.gmra.mrb[0].mxu0 %v1458
        %v1602 = vpop.f32.mrb[0].mxu0
        %v1603 = vadd.f32 0.0, %v1602
        %v1604 = vpop.f32.mrb[0].mxu0
        %v1605 = vpop.f32.mrb[0].mxu0
        %v1606 = vadd.f32 0.0, %v1605
        %v1607 = vpop.f32.mrb[0].mxu0
        %1608 = vmatprep.mubr.bf16.mxu0 0
        %1609 = vmatmul.mubr.bf16.gmra.mrb[0].mxu0 %v1461
        %v1610 = vpop.f32.mrb[0].mxu0
        %v1611 = vadd.f32 0.0, %v1610
        %v1612 = vpop.f32.mrb[0].mxu0
        %v1613 = vpop.f32.mrb[0].mxu0
        %v1614 = vadd.f32 0.0, %v1613
        %v1615 = vpop.f32.mrb[0].mxu0
        %1616 = vmatprep.mubr.bf16.mxu0 0
        %1617 = vmatmul.mubr.bf16.gmra.mrb[0].mxu0 %v1464
        %v1618 = vpop.f32.mrb[0].mxu0
        %v1619 = vadd.f32 0.0, %v1618
        %v1620 = vpop.f32.mrb[0].mxu0
        %v1621 = vpop.f32.mrb[0].mxu0
        %v1622 = vadd.f32 0.0, %v1621
        %v1623 = vpop.f32.mrb[0].mxu0
        %1624 = vmatprep.mubr.bf16.mxu0 0
        %1625 = vmatmul.mubr.bf16.gmra.mrb[0].mxu0 %v1467
        %v1626 = vpop.f32.mrb[0].mxu0
        %v1627 = vadd.f32 0.0, %v1626
        %v1628 = vpop.f32.mrb[0].mxu0
        %v1629 = vpop.f32.mrb[0].mxu0
        %v1630 = vadd.f32 0.0, %v1629
        %v1631 = vpop.f32.mrb[0].mxu0
        %1632 = vdwg.mxu0
        %v1633 = vadd.f32 %v1082, %v1507
        %v1634 = vadd.f32 %v1085, %v1510
        %v1635 = vadd.f32 %v1090, %v1515
        %v1636 = vadd.f32 %v1093, %v1518
        %v1637 = vadd.f32 %v1098, %v1523
        %v1638 = vadd.f32 %v1101, %v1526
        %v1639 = vadd.f32 %v1106, %v1531
        %v1640 = vadd.f32 %v1109, %v1534
        %v1641 = vadd.f32 %v1114, %v1539
        %v1642 = vadd.f32 %v1117, %v1542
        %v1643 = vadd.f32 %v1122, %v1547
        %v1644 = vadd.f32 %v1125, %v1550
        %v1645 = vadd.f32 %v1130, %v1555
        %v1646 = vadd.f32 %v1133, %v1558
        %v1647 = vadd.f32 %v1138, %v1563
        %v1648 = vadd.f32 %v1141, %v1566
        %v1649 = vadd.f32 %v1146, %v1571
        %v1650 = vadd.f32 %v1149, %v1574
        %v1651 = vadd.f32 %v1154, %v1579
        %v1652 = vadd.f32 %v1157, %v1582
        %v1653 = vadd.f32 %v1162, %v1587
        %v1654 = vadd.f32 %v1165, %v1590
        %v1655 = vadd.f32 %v1170, %v1595
        %v1656 = vadd.f32 %v1173, %v1598
        %v1657 = vadd.f32 %v1178, %v1603
        %v1658 = vadd.f32 %v1181, %v1606
        %v1659 = vadd.f32 %v1186, %v1611
        %v1660 = vadd.f32 %v1189, %v1614
        %v1661 = vadd.f32 %v1194, %v1619
        %v1662 = vadd.f32 %v1197, %v1622
        %v1663 = vadd.f32 %v1202, %v1627
        %v1664 = vadd.f32 %v1205, %v1630
        %s1665 = sadd.s32 %s212, 1
        %s1666 = smul.u32 %s1665, 3
        %s1667 = smul.addr %s1666, 4
        %s1668 = scalar_lea.vmem %s209, %s1667
        %v1669 = vld [vmem:[%s1668] sm:$0xf]
        %v1670 = vld [vmem:[%s1668 + $0x4] sm:$0xf]
        %v1671 = vld [vmem:[%s1668 + $0xc] sm:$0xf]
        %v1672 = vld [vmem:[%s1668 + $0x10] sm:$0xf]
        %v1673 = vld [vmem:[%s1668 + $0x18] sm:$0xf]
        %v1674 = vld [vmem:[%s1668 + $0x1c] sm:$0xf]
        %v1675 = vld [vmem:[%s1668 + $0x24] sm:$0xf]
        %v1676 = vld [vmem:[%s1668 + $0x28] sm:$0xf]
        %v1677 = vld [vmem:[%s1668 + $0x30] sm:$0xf]
        %v1678 = vld [vmem:[%s1668 + $0x34] sm:$0xf]
        %v1679 = vld [vmem:[%s1668 + $0x3c] sm:$0xf]
        %v1680 = vld [vmem:[%s1668 + $0x40] sm:$0xf]
        %v1681 = vld [vmem:[%s1668 + $0x48] sm:$0xf]
        %v1682 = vld [vmem:[%s1668 + $0x4c] sm:$0xf]
        %v1683 = vld [vmem:[%s1668 + $0x54] sm:$0xf]
        %v1684 = vld [vmem:[%s1668 + $0x58] sm:$0xf]
        %v1685 = vld [vmem:[%s1668 + $0x60] sm:$0xf]
        %v1686 = vld [vmem:[%s1668 + $0x64] sm:$0xf]
        %v1687 = vld [vmem:[%s1668 + $0x6c] sm:$0xf]
        %v1688 = vld [vmem:[%s1668 + $0x70] sm:$0xf]
        %v1689 = vld [vmem:[%s1668 + $0x78] sm:$0xf]
        %v1690 = vld [vmem:[%s1668 + $0x7c] sm:$0xf]
        %v1691 = vld [vmem:[%s1668 + $0x84] sm:$0xf]
        %v1692 = vld [vmem:[%s1668 + $0x88] sm:$0xf]
        %v1693 = vld [vmem:[%s1668 + $0x90] sm:$0xf]
        %v1694 = vld [vmem:[%s1668 + $0x94] sm:$0xf]
        %v1695 = vld [vmem:[%s1668 + $0x9c] sm:$0xf]
        %v1696 = vld [vmem:[%s1668 + $0xa0] sm:$0xf]
        %v1697 = vld [vmem:[%s1668 + $0xa8] sm:$0xf]
        %v1698 = vld [vmem:[%s1668 + $0xac] sm:$0xf]
        %v1699 = vld [vmem:[%s1668 + $0xb4] sm:$0xf]
        %v1700 = vld [vmem:[%s1668 + $0xb8] sm:$0xf]
        %s1701 = scalar_lea.vmem %s1, 6
        %v1702 = vld [vmem:[%s1701] sm:$0x3]
        %v1735 = vunpack.c.l.b16 %v1669
        %v1736 = vunpack.c.l.b16 %v1670
        %v1737 = vunpack.c.l.b16 %v1671
        %v1738 = vunpack.c.l.b16 %v1672
        %v1739 = vunpack.c.l.b16 %v1673
        %v1740 = vunpack.c.l.b16 %v1674
        %v1741 = vunpack.c.l.b16 %v1675
        %v1742 = vunpack.c.l.b16 %v1676
        %v1743 = vunpack.c.l.b16 %v1677
        %v1744 = vunpack.c.l.b16 %v1678
        %v1745 = vunpack.c.l.b16 %v1679
        %v1746 = vunpack.c.l.b16 %v1680
        %v1747 = vunpack.c.l.b16 %v1681
        %v1748 = vunpack.c.l.b16 %v1682
        %v1749 = vunpack.c.l.b16 %v1683
        %v1750 = vunpack.c.l.b16 %v1684
        %v1751 = vunpack.c.l.b16 %v1685
        %v1752 = vunpack.c.l.b16 %v1686
        %v1753 = vunpack.c.l.b16 %v1687
        %v1754 = vunpack.c.l.b16 %v1688
        %v1755 = vunpack.c.l.b16 %v1689
        %v1756 = vunpack.c.l.b16 %v1690
        %v1757 = vunpack.c.l.b16 %v1691
        %v1758 = vunpack.c.l.b16 %v1692
        %v1759 = vunpack.c.l.b16 %v1693
        %v1760 = vunpack.c.l.b16 %v1694
        %v1761 = vunpack.c.l.b16 %v1695
        %v1762 = vunpack.c.l.b16 %v1696
        %v1763 = vunpack.c.l.b16 %v1697
        %v1764 = vunpack.c.l.b16 %v1698
        %v1765 = vunpack.c.l.b16 %v1699
        %v1766 = vunpack.c.l.b16 %v1700
        %v1767 = vpack.c.b16 %v1736, %v1735
        %v1768 = vpack.c.b16 %v1738, %v1737
        %v1769 = vpack.c.b16 %v1740, %v1739
        %v1770 = vpack.c.b16 %v1742, %v1741
        %v1771 = vpack.c.b16 %v1744, %v1743
        %v1772 = vpack.c.b16 %v1746, %v1745
        %v1773 = vpack.c.b16 %v1748, %v1747
        %v1774 = vpack.c.b16 %v1750, %v1749
        %v1775 = vpack.c.b16 %v1752, %v1751
        %v1776 = vpack.c.b16 %v1754, %v1753
        %v1777 = vpack.c.b16 %v1756, %v1755
        %v1778 = vpack.c.b16 %v1758, %v1757
        %v1779 = vpack.c.b16 %v1760, %v1759
        %v1780 = vpack.c.b16 %v1762, %v1761
        %v1781 = vpack.c.b16 %v1764, %v1763
        %v1782 = vpack.c.b16 %v1766, %v1765
        %v1784 = vsel %vm702, %v1767, 0
        %v1787 = vsel %vm702, %v1768, 0
        %v1790 = vsel %vm702, %v1769, 0
        %v1793 = vsel %vm702, %v1770, 0
        %v1796 = vsel %vm702, %v1771, 0
        %v1799 = vsel %vm702, %v1772, 0
        %v1802 = vsel %vm702, %v1773, 0
        %v1805 = vsel %vm702, %v1774, 0
        %v1808 = vsel %vm702, %v1775, 0
        %v1811 = vsel %vm702, %v1776, 0
        %v1814 = vsel %vm702, %v1777, 0
        %v1817 = vsel %vm702, %v1778, 0
        %v1820 = vsel %vm702, %v1779, 0
        %v1823 = vsel %vm702, %v1780, 0
        %v1826 = vsel %vm702, %v1781, 0
        %v1829 = vsel %vm702, %v1782, 0
        %v1832 = vsel %vm751, %v1702, 0
        %1834 = vmatprep.subr.bf16.mxu0 0
        %1835 = vmatpush1.bf16.msra.mxu0 %v1832
        %1836 = vmatprep.subr.bf16.mxu0 0
        %1837 = vmatpush1.bf16.msra.mxu0 0
        %1838 = vmatprep.subr.bf16.mxu0 0
        %1839 = vmatpush1.bf16.msra.mxu0 0
        %1840 = vmatprep.subr.bf16.mxu0 0
        %1841 = vmatpush1.bf16.msra.mxu0 0
        %1842 = vmatprep.subr.bf16.mxu0 0
        %1843 = vmatpush1.bf16.msra.mxu0 0
        %1844 = vmatprep.subr.bf16.mxu0 0
        %1845 = vmatpush1.bf16.msra.mxu0 0
        %1846 = vmatprep.subr.bf16.mxu0 0
        %1847 = vmatpush1.bf16.msra.mxu0 0
        %1848 = vmatprep.subr.bf16.mxu0 0
        %1849 = vmatpush1.bf16.msra.mxu0 0
        %1850 = vmatprep.subr.bf16.mxu0 0
        %1851 = vmatpush1.bf16.msra.mxu0 0
        %1852 = vmatprep.subr.bf16.mxu0 0
        %1853 = vmatpush1.bf16.msra.mxu0 0
        %1854 = vmatprep.subr.bf16.mxu0 0
        %1855 = vmatpush1.bf16.msra.mxu0 0
        %1856 = vmatprep.subr.bf16.mxu0 0
        %1857 = vmatpush1.bf16.msra.mxu0 0
        %1858 = vmatprep.subr.bf16.mxu0 0
        %1859 = vmatpush1.bf16.msra.mxu0 0
        %1860 = vmatprep.subr.bf16.mxu0 0
        %1861 = vmatpush1.bf16.msra.mxu0 0
        %1862 = vmatprep.subr.bf16.mxu0 0
        %1863 = vmatpush1.bf16.msra.mxu0 0
        %1864 = vmatprep.subr.bf16.mxu0 0
        %1865 = vmatpush1.bf16.msra.mxu0 0
        %1866 = vmatprep.mubr.bf16.mxu0 0
        %1867 = vmatmul.mubr.bf16.gmra.mrb[0].mxu0 %v1784
        %v1868 = vpop.f32.mrb[0].mxu0
        %v1869 = vadd.f32 0.0, %v1868
        %v1870 = vpop.f32.mrb[0].mxu0
        %v1871 = vpop.f32.mrb[0].mxu0
        %v1872 = vadd.f32 0.0, %v1871
        %v1873 = vpop.f32.mrb[0].mxu0
        %1874 = vmatprep.mubr.bf16.mxu0 0
        %1875 = vmatmul.mubr.bf16.gmra.mrb[0].mxu0 %v1787
        %v1876 = vpop.f32.mrb[0].mxu0
        %v1877 = vadd.f32 0.0, %v1876
        %v1878 = vpop.f32.mrb[0].mxu0
        %v1879 = vpop.f32.mrb[0].mxu0
        %v1880 = vadd.f32 0.0, %v1879
        %v1881 = vpop.f32.mrb[0].mxu0
        %1882 = vmatprep.mubr.bf16.mxu0 0
        %1883 = vmatmul.mubr.bf16.gmra.mrb[0].mxu0 %v1790
        %v1884 = vpop.f32.mrb[0].mxu0
        %v1885 = vadd.f32 0.0, %v1884
        %v1886 = vpop.f32.mrb[0].mxu0
        %v1887 = vpop.f32.mrb[0].mxu0
        %v1888 = vadd.f32 0.0, %v1887
        %v1889 = vpop.f32.mrb[0].mxu0
        %1890 = vmatprep.mubr.bf16.mxu0 0
        %1891 = vmatmul.mubr.bf16.gmra.mrb[0].mxu0 %v1793
        %v1892 = vpop.f32.mrb[0].mxu0
        %v1893 = vadd.f32 0.0, %v1892
        %v1894 = vpop.f32.mrb[0].mxu0
        %v1895 = vpop.f32.mrb[0].mxu0
        %v1896 = vadd.f32 0.0, %v1895
        %v1897 = vpop.f32.mrb[0].mxu0
        %1898 = vmatprep.mubr.bf16.mxu0 0
        %1899 = vmatmul.mubr.bf16.gmra.mrb[0].mxu0 %v1796
        %v1900 = vpop.f32.mrb[0].mxu0
        %v1901 = vadd.f32 0.0, %v1900
        %v1902 = vpop.f32.mrb[0].mxu0
        %v1903 = vpop.f32.mrb[0].mxu0
        %v1904 = vadd.f32 0.0, %v1903
        %v1905 = vpop.f32.mrb[0].mxu0
        %1906 = vmatprep.mubr.bf16.mxu0 0
        %1907 = vmatmul.mubr.bf16.gmra.mrb[0].mxu0 %v1799
        %v1908 = vpop.f32.mrb[0].mxu0
        %v1909 = vadd.f32 0.0, %v1908
        %v1910 = vpop.f32.mrb[0].mxu0
        %v1911 = vpop.f32.mrb[0].mxu0
        %v1912 = vadd.f32 0.0, %v1911
        %v1913 = vpop.f32.mrb[0].mxu0
        %1914 = vmatprep.mubr.bf16.mxu0 0
        %1915 = vmatmul.mubr.bf16.gmra.mrb[0].mxu0 %v1802
        %v1916 = vpop.f32.mrb[0].mxu0
        %v1917 = vadd.f32 0.0, %v1916
        %v1918 = vpop.f32.mrb[0].mxu0
        %v1919 = vpop.f32.mrb[0].mxu0
        %v1920 = vadd.f32 0.0, %v1919
        %v1921 = vpop.f32.mrb[0].mxu0
        %1922 = vmatprep.mubr.bf16.mxu0 0
        %1923 = vmatmul.mubr.bf16.gmra.mrb[0].mxu0 %v1805
        %v1924 = vpop.f32.mrb[0].mxu0
        %v1925 = vadd.f32 0.0, %v1924
        %v1926 = vpop.f32.mrb[0].mxu0
        %v1927 = vpop.f32.mrb[0].mxu0
        %v1928 = vadd.f32 0.0, %v1927
        %v1929 = vpop.f32.mrb[0].mxu0
        %1930 = vmatprep.mubr.bf16.mxu0 0
        %1931 = vmatmul.mubr.bf16.gmra.mrb[0].mxu0 %v1808
        %v1932 = vpop.f32.mrb[0].mxu0
        %v1933 = vadd.f32 0.0, %v1932
        %v1934 = vpop.f32.mrb[0].mxu0
        %v1935 = vpop.f32.mrb[0].mxu0
        %v1936 = vadd.f32 0.0, %v1935
        %v1937 = vpop.f32.mrb[0].mxu0
        %1938 = vmatprep.mubr.bf16.mxu0 0
        %1939 = vmatmul.mubr.bf16.gmra.mrb[0].mxu0 %v1811
        %v1940 = vpop.f32.mrb[0].mxu0
        %v1941 = vadd.f32 0.0, %v1940
        %v1942 = vpop.f32.mrb[0].mxu0
        %v1943 = vpop.f32.mrb[0].mxu0
        %v1944 = vadd.f32 0.0, %v1943
        %v1945 = vpop.f32.mrb[0].mxu0
        %1946 = vmatprep.mubr.bf16.mxu0 0
        %1947 = vmatmul.mubr.bf16.gmra.mrb[0].mxu0 %v1814
        %v1948 = vpop.f32.mrb[0].mxu0
        %v1949 = vadd.f32 0.0, %v1948
        %v1950 = vpop.f32.mrb[0].mxu0
        %v1951 = vpop.f32.mrb[0].mxu0
        %v1952 = vadd.f32 0.0, %v1951
        %v1953 = vpop.f32.mrb[0].mxu0
        %1954 = vmatprep.mubr.bf16.mxu0 0
        %1955 = vmatmul.mubr.bf16.gmra.mrb[0].mxu0 %v1817
        %v1956 = vpop.f32.mrb[0].mxu0
        %v1957 = vadd.f32 0.0, %v1956
        %v1958 = vpop.f32.mrb[0].mxu0
        %v1959 = vpop.f32.mrb[0].mxu0
        %v1960 = vadd.f32 0.0, %v1959
        %v1961 = vpop.f32.mrb[0].mxu0
        %1962 = vmatprep.mubr.bf16.mxu0 0
        %1963 = vmatmul.mubr.bf16.gmra.mrb[0].mxu0 %v1820
        %v1964 = vpop.f32.mrb[0].mxu0
        %v1965 = vadd.f32 0.0, %v1964
        %v1966 = vpop.f32.mrb[0].mxu0
        %v1967 = vpop.f32.mrb[0].mxu0
        %v1968 = vadd.f32 0.0, %v1967
        %v1969 = vpop.f32.mrb[0].mxu0
        %1970 = vmatprep.mubr.bf16.mxu0 0
        %1971 = vmatmul.mubr.bf16.gmra.mrb[0].mxu0 %v1823
        %v1972 = vpop.f32.mrb[0].mxu0
        %v1973 = vadd.f32 0.0, %v1972
        %v1974 = vpop.f32.mrb[0].mxu0
        %v1975 = vpop.f32.mrb[0].mxu0
        %v1976 = vadd.f32 0.0, %v1975
        %v1977 = vpop.f32.mrb[0].mxu0
        %1978 = vmatprep.mubr.bf16.mxu0 0
        %1979 = vmatmul.mubr.bf16.gmra.mrb[0].mxu0 %v1826
        %v1980 = vpop.f32.mrb[0].mxu0
        %v1981 = vadd.f32 0.0, %v1980
        %v1982 = vpop.f32.mrb[0].mxu0
        %v1983 = vpop.f32.mrb[0].mxu0
        %v1984 = vadd.f32 0.0, %v1983
        %v1985 = vpop.f32.mrb[0].mxu0
        %1986 = vmatprep.mubr.bf16.mxu0 0
        %1987 = vmatmul.mubr.bf16.gmra.mrb[0].mxu0 %v1829
        %v1988 = vpop.f32.mrb[0].mxu0
        %v1989 = vadd.f32 0.0, %v1988
        %v1990 = vpop.f32.mrb[0].mxu0
        %v1991 = vpop.f32.mrb[0].mxu0
        %v1992 = vadd.f32 0.0, %v1991
        %v1993 = vpop.f32.mrb[0].mxu0
        %1994 = vdwg.mxu0
        %v1995 = vadd.f32 %v1633, %v1869
        %v1996 = vadd.f32 %v1634, %v1872
        %v1997 = vadd.f32 %v1635, %v1877
        %v1998 = vadd.f32 %v1636, %v1880
        %v1999 = vadd.f32 %v1637, %v1885
        %v2000 = vadd.f32 %v1638, %v1888
        %v2001 = vadd.f32 %v1639, %v1893
        %v2002 = vadd.f32 %v1640, %v1896
        %v2003 = vadd.f32 %v1641, %v1901
        %v2004 = vadd.f32 %v1642, %v1904
        %v2005 = vadd.f32 %v1643, %v1909
        %v2006 = vadd.f32 %v1644, %v1912
        %v2007 = vadd.f32 %v1645, %v1917
        %v2008 = vadd.f32 %v1646, %v1920
        %v2009 = vadd.f32 %v1647, %v1925
        %v2010 = vadd.f32 %v1648, %v1928
        %v2011 = vadd.f32 %v1649, %v1933
        %v2012 = vadd.f32 %v1650, %v1936
        %v2013 = vadd.f32 %v1651, %v1941
        %v2014 = vadd.f32 %v1652, %v1944
        %v2015 = vadd.f32 %v1653, %v1949
        %v2016 = vadd.f32 %v1654, %v1952
        %v2017 = vadd.f32 %v1655, %v1957
        %v2018 = vadd.f32 %v1656, %v1960
        %v2019 = vadd.f32 %v1657, %v1965
        %v2020 = vadd.f32 %v1658, %v1968
        %v2021 = vadd.f32 %v1659, %v1973
        %v2022 = vadd.f32 %v1660, %v1976
        %v2023 = vadd.f32 %v1661, %v1981
        %v2024 = vadd.f32 %v1662, %v1984
        %v2025 = vadd.f32 %v1663, %v1989
        %v2026 = vadd.f32 %v1664, %v1992
        %v2027 = vld [vmem:[%s1668] sm:$0xf]
        %v2028 = vld [vmem:[%s1668 + $0x4] sm:$0xf]
        %v2029 = vld [vmem:[%s1668 + $0x8] sm:$0x1]
        %v2030 = vld [vmem:[%s1668 + $0xc] sm:$0xf]
        %v2031 = vld [vmem:[%s1668 + $0x10] sm:$0xf]
        %v2032 = vld [vmem:[%s1668 + $0x14] sm:$0x1]
        %v2033 = vld [vmem:[%s1668 + $0x18] sm:$0xf]
        %v2034 = vld [vmem:[%s1668 + $0x1c] sm:$0xf]
        %v2035 = vld [vmem:[%s1668 + $0x20] sm:$0x1]
        %v2036 = vld [vmem:[%s1668 + $0x24] sm:$0xf]
        %v2037 = vld [vmem:[%s1668 + $0x28] sm:$0xf]
        %v2038 = vld [vmem:[%s1668 + $0x2c] sm:$0x1]
        %v2039 = vld [vmem:[%s1668 + $0x30] sm:$0xf]
        %v2040 = vld [vmem:[%s1668 + $0x34] sm:$0xf]
        %v2041 = vld [vmem:[%s1668 + $0x38] sm:$0x1]
        %v2042 = vld [vmem:[%s1668 + $0x3c] sm:$0xf]
        %v2043 = vld [vmem:[%s1668 + $0x40] sm:$0xf]
        %v2044 = vld [vmem:[%s1668 + $0x44] sm:$0x1]
        %v2045 = vld [vmem:[%s1668 + $0x48] sm:$0xf]
        %v2046 = vld [vmem:[%s1668 + $0x4c] sm:$0xf]
        %v2047 = vld [vmem:[%s1668 + $0x50] sm:$0x1]
        %v2048 = vld [vmem:[%s1668 + $0x54] sm:$0xf]
        %v2049 = vld [vmem:[%s1668 + $0x58] sm:$0xf]
        %v2050 = vld [vmem:[%s1668 + $0x5c] sm:$0x1]
        %v2051 = vld [vmem:[%s1668 + $0x60] sm:$0xf]
        %v2052 = vld [vmem:[%s1668 + $0x64] sm:$0xf]
        %v2053 = vld [vmem:[%s1668 + $0x68] sm:$0x1]
        %v2054 = vld [vmem:[%s1668 + $0x6c] sm:$0xf]
        %v2055 = vld [vmem:[%s1668 + $0x70] sm:$0xf]
        %v2056 = vld [vmem:[%s1668 + $0x74] sm:$0x1]
        %v2057 = vld [vmem:[%s1668 + $0x78] sm:$0xf]
        %v2058 = vld [vmem:[%s1668 + $0x7c] sm:$0xf]
        %v2059 = vld [vmem:[%s1668 + $0x80] sm:$0x1]
        %v2060 = vld [vmem:[%s1668 + $0x84] sm:$0xf]
        %v2061 = vld [vmem:[%s1668 + $0x88] sm:$0xf]
        %v2062 = vld [vmem:[%s1668 + $0x8c] sm:$0x1]
        %v2063 = vld [vmem:[%s1668 + $0x90] sm:$0xf]
        %v2064 = vld [vmem:[%s1668 + $0x94] sm:$0xf]
        %v2065 = vld [vmem:[%s1668 + $0x98] sm:$0x1]
        %v2066 = vld [vmem:[%s1668 + $0x9c] sm:$0xf]
        %v2067 = vld [vmem:[%s1668 + $0xa0] sm:$0xf]
        %v2068 = vld [vmem:[%s1668 + $0xa4] sm:$0x1]
        %v2069 = vld [vmem:[%s1668 + $0xa8] sm:$0xf]
        %v2070 = vld [vmem:[%s1668 + $0xac] sm:$0xf]
        %v2071 = vld [vmem:[%s1668 + $0xb0] sm:$0x1]
        %v2072 = vld [vmem:[%s1668 + $0xb4] sm:$0xf]
        %v2073 = vld [vmem:[%s1668 + $0xb8] sm:$0xf]
        %v2074 = vld [vmem:[%s1668 + $0xbc] sm:$0x1]
        %v2076 = vshrl.u32 %v2027, 16
        %v2078 = vrot.slane %v2076, 4
        %v2079 = vshll.u32 %v2027, 16
        %v2081 = vrot.slane %v2079, 5
        %v2082 = vor.u32 %v2078, %v2081
        %v2083 = vrot.slane %v2082, 4
        %v2085 = vshll.u32 %v2028, 16
        %v2087 = vrot.slane %v2085, 5
        %v2088 = vsel %vm267, %v2083, %v2087
        %v2089 = vshrl.u32 %v2028, 16
        %v2091 = vrot.slane %v2089, 4
        %v2092 = vor.u32 %v2091, %v2087
        %v2093 = vrot.slane %v2092, 4
        %v2095 = vshll.u32 %v2029, 16
        %v2097 = vrot.slane %v2095, 5
        %v2098 = vsel %vm267, %v2093, %v2097
        %v2100 = vshrl.u32 %v2030, 16
        %v2102 = vrot.slane %v2100, 4
        %v2103 = vshll.u32 %v2030, 16
        %v2105 = vrot.slane %v2103, 5
        %v2106 = vor.u32 %v2102, %v2105
        %v2107 = vrot.slane %v2106, 4
        %v2109 = vshll.u32 %v2031, 16
        %v2111 = vrot.slane %v2109, 5
        %v2112 = vsel %vm267, %v2107, %v2111
        %v2113 = vshrl.u32 %v2031, 16
        %v2115 = vrot.slane %v2113, 4
        %v2116 = vor.u32 %v2115, %v2111
        %v2117 = vrot.slane %v2116, 4
        %v2119 = vshll.u32 %v2032, 16
        %v2121 = vrot.slane %v2119, 5
        %v2122 = vsel %vm267, %v2117, %v2121
        %v2124 = vshrl.u32 %v2033, 16
        %v2126 = vrot.slane %v2124, 4
        %v2127 = vshll.u32 %v2033, 16
        %v2129 = vrot.slane %v2127, 5
        %v2130 = vor.u32 %v2126, %v2129
        %v2131 = vrot.slane %v2130, 4
        %v2133 = vshll.u32 %v2034, 16
        %v2135 = vrot.slane %v2133, 5
        %v2136 = vsel %vm267, %v2131, %v2135
        %v2137 = vshrl.u32 %v2034, 16
        %v2139 = vrot.slane %v2137, 4
        %v2140 = vor.u32 %v2139, %v2135
        %v2141 = vrot.slane %v2140, 4
        %v2143 = vshll.u32 %v2035, 16
        %v2145 = vrot.slane %v2143, 5
        %v2146 = vsel %vm267, %v2141, %v2145
        %v2148 = vshrl.u32 %v2036, 16
        %v2150 = vrot.slane %v2148, 4
        %v2151 = vshll.u32 %v2036, 16
        %v2153 = vrot.slane %v2151, 5
        %v2154 = vor.u32 %v2150, %v2153
        %v2155 = vrot.slane %v2154, 4
        %v2157 = vshll.u32 %v2037, 16
        %v2159 = vrot.slane %v2157, 5
        %v2160 = vsel %vm267, %v2155, %v2159
        %v2161 = vshrl.u32 %v2037, 16
        %v2163 = vrot.slane %v2161, 4
        %v2164 = vor.u32 %v2163, %v2159
        %v2165 = vrot.slane %v2164, 4
        %v2167 = vshll.u32 %v2038, 16
        %v2169 = vrot.slane %v2167, 5
        %v2170 = vsel %vm267, %v2165, %v2169
        %v2172 = vshrl.u32 %v2039, 16
        %v2174 = vrot.slane %v2172, 4
        %v2175 = vshll.u32 %v2039, 16
        %v2177 = vrot.slane %v2175, 5
        %v2178 = vor.u32 %v2174, %v2177
        %v2179 = vrot.slane %v2178, 4
        %v2181 = vshll.u32 %v2040, 16
        %v2183 = vrot.slane %v2181, 5
        %v2184 = vsel %vm267, %v2179, %v2183
        %v2185 = vshrl.u32 %v2040, 16
        %v2187 = vrot.slane %v2185, 4
        %v2188 = vor.u32 %v2187, %v2183
        %v2189 = vrot.slane %v2188, 4
        %v2191 = vshll.u32 %v2041, 16
        %v2193 = vrot.slane %v2191, 5
        %v2194 = vsel %vm267, %v2189, %v2193
        %v2196 = vshrl.u32 %v2042, 16
        %v2198 = vrot.slane %v2196, 4
        %v2199 = vshll.u32 %v2042, 16
        %v2201 = vrot.slane %v2199, 5
        %v2202 = vor.u32 %v2198, %v2201
        %v2203 = vrot.slane %v2202, 4
        %v2205 = vshll.u32 %v2043, 16
        %v2207 = vrot.slane %v2205, 5
        %v2208 = vsel %vm267, %v2203, %v2207
        %v2209 = vshrl.u32 %v2043, 16
        %v2211 = vrot.slane %v2209, 4
        %v2212 = vor.u32 %v2211, %v2207
        %v2213 = vrot.slane %v2212, 4
        %v2215 = vshll.u32 %v2044, 16
        %v2217 = vrot.slane %v2215, 5
        %v2218 = vsel %vm267, %v2213, %v2217
        %v2220 = vshrl.u32 %v2045, 16
        %v2222 = vrot.slane %v2220, 4
        %v2223 = vshll.u32 %v2045, 16
        %v2225 = vrot.slane %v2223, 5
        %v2226 = vor.u32 %v2222, %v2225
        %v2227 = vrot.slane %v2226, 4
        %v2229 = vshll.u32 %v2046, 16
        %v2231 = vrot.slane %v2229, 5
        %v2232 = vsel %vm267, %v2227, %v2231
        %v2233 = vshrl.u32 %v2046, 16
        %v2235 = vrot.slane %v2233, 4
        %v2236 = vor.u32 %v2235, %v2231
        %v2237 = vrot.slane %v2236, 4
        %v2239 = vshll.u32 %v2047, 16
        %v2241 = vrot.slane %v2239, 5
        %v2242 = vsel %vm267, %v2237, %v2241
        %v2244 = vshrl.u32 %v2048, 16
        %v2246 = vrot.slane %v2244, 4
        %v2247 = vshll.u32 %v2048, 16
        %v2249 = vrot.slane %v2247, 5
        %v2250 = vor.u32 %v2246, %v2249
        %v2251 = vrot.slane %v2250, 4
        %v2253 = vshll.u32 %v2049, 16
        %v2255 = vrot.slane %v2253, 5
        %v2256 = vsel %vm267, %v2251, %v2255
        %v2257 = vshrl.u32 %v2049, 16
        %v2259 = vrot.slane %v2257, 4
        %v2260 = vor.u32 %v2259, %v2255
        %v2261 = vrot.slane %v2260, 4
        %v2263 = vshll.u32 %v2050, 16
        %v2265 = vrot.slane %v2263, 5
        %v2266 = vsel %vm267, %v2261, %v2265
        %v2268 = vshrl.u32 %v2051, 16
        %v2270 = vrot.slane %v2268, 4
        %v2271 = vshll.u32 %v2051, 16
        %v2273 = vrot.slane %v2271, 5
        %v2274 = vor.u32 %v2270, %v2273
        %v2275 = vrot.slane %v2274, 4
        %v2277 = vshll.u32 %v2052, 16
        %v2279 = vrot.slane %v2277, 5
        %v2280 = vsel %vm267, %v2275, %v2279
        %v2281 = vshrl.u32 %v2052, 16
        %v2283 = vrot.slane %v2281, 4
        %v2284 = vor.u32 %v2283, %v2279
        %v2285 = vrot.slane %v2284, 4
        %v2287 = vshll.u32 %v2053, 16
        %v2289 = vrot.slane %v2287, 5
        %v2290 = vsel %vm267, %v2285, %v2289
        %v2292 = vshrl.u32 %v2054, 16
        %v2294 = vrot.slane %v2292, 4
        %v2295 = vshll.u32 %v2054, 16
        %v2297 = vrot.slane %v2295, 5
        %v2298 = vor.u32 %v2294, %v2297
        %v2299 = vrot.slane %v2298, 4
        %v2301 = vshll.u32 %v2055, 16
        %v2303 = vrot.slane %v2301, 5
        %v2304 = vsel %vm267, %v2299, %v2303
        %v2305 = vshrl.u32 %v2055, 16
        %v2307 = vrot.slane %v2305, 4
        %v2308 = vor.u32 %v2307, %v2303
        %v2309 = vrot.slane %v2308, 4
        %v2311 = vshll.u32 %v2056, 16
        %v2313 = vrot.slane %v2311, 5
        %v2314 = vsel %vm267, %v2309, %v2313
        %v2316 = vshrl.u32 %v2057, 16
        %v2318 = vrot.slane %v2316, 4
        %v2319 = vshll.u32 %v2057, 16
        %v2321 = vrot.slane %v2319, 5
        %v2322 = vor.u32 %v2318, %v2321
        %v2323 = vrot.slane %v2322, 4
        %v2325 = vshll.u32 %v2058, 16
        %v2327 = vrot.slane %v2325, 5
        %v2328 = vsel %vm267, %v2323, %v2327
        %v2329 = vshrl.u32 %v2058, 16
        %v2331 = vrot.slane %v2329, 4
        %v2332 = vor.u32 %v2331, %v2327
        %v2333 = vrot.slane %v2332, 4
        %v2335 = vshll.u32 %v2059, 16
        %v2337 = vrot.slane %v2335, 5
        %v2338 = vsel %vm267, %v2333, %v2337
        %v2340 = vshrl.u32 %v2060, 16
        %v2342 = vrot.slane %v2340, 4
        %v2343 = vshll.u32 %v2060, 16
        %v2345 = vrot.slane %v2343, 5
        %v2346 = vor.u32 %v2342, %v2345
        %v2347 = vrot.slane %v2346, 4
        %v2349 = vshll.u32 %v2061, 16
        %v2351 = vrot.slane %v2349, 5
        %v2352 = vsel %vm267, %v2347, %v2351
        %v2353 = vshrl.u32 %v2061, 16
        %v2355 = vrot.slane %v2353, 4
        %v2356 = vor.u32 %v2355, %v2351
        %v2357 = vrot.slane %v2356, 4
        %v2359 = vshll.u32 %v2062, 16
        %v2361 = vrot.slane %v2359, 5
        %v2362 = vsel %vm267, %v2357, %v2361
        %v2364 = vshrl.u32 %v2063, 16
        %v2366 = vrot.slane %v2364, 4
        %v2367 = vshll.u32 %v2063, 16
        %v2369 = vrot.slane %v2367, 5
        %v2370 = vor.u32 %v2366, %v2369
        %v2371 = vrot.slane %v2370, 4
        %v2373 = vshll.u32 %v2064, 16
        %v2375 = vrot.slane %v2373, 5
        %v2376 = vsel %vm267, %v2371, %v2375
        %v2377 = vshrl.u32 %v2064, 16
        %v2379 = vrot.slane %v2377, 4
        %v2380 = vor.u32 %v2379, %v2375
        %v2381 = vrot.slane %v2380, 4
        %v2383 = vshll.u32 %v2065, 16
        %v2385 = vrot.slane %v2383, 5
        %v2386 = vsel %vm267, %v2381, %v2385
        %v2388 = vshrl.u32 %v2066, 16
        %v2390 = vrot.slane %v2388, 4
        %v2391 = vshll.u32 %v2066, 16
        %v2393 = vrot.slane %v2391, 5
        %v2394 = vor.u32 %v2390, %v2393
        %v2395 = vrot.slane %v2394, 4
        %v2397 = vshll.u32 %v2067, 16
        %v2399 = vrot.slane %v2397, 5
        %v2400 = vsel %vm267, %v2395, %v2399
        %v2401 = vshrl.u32 %v2067, 16
        %v2403 = vrot.slane %v2401, 4
        %v2404 = vor.u32 %v2403, %v2399
        %v2405 = vrot.slane %v2404, 4
        %v2407 = vshll.u32 %v2068, 16
        %v2409 = vrot.slane %v2407, 5
        %v2410 = vsel %vm267, %v2405, %v2409
        %v2412 = vshrl.u32 %v2069, 16
        %v2414 = vrot.slane %v2412, 4
        %v2415 = vshll.u32 %v2069, 16
        %v2417 = vrot.slane %v2415, 5
        %v2418 = vor.u32 %v2414, %v2417
        %v2419 = vrot.slane %v2418, 4
        %v2421 = vshll.u32 %v2070, 16
        %v2423 = vrot.slane %v2421, 5
        %v2424 = vsel %vm267, %v2419, %v2423
        %v2425 = vshrl.u32 %v2070, 16
        %v2427 = vrot.slane %v2425, 4
        %v2428 = vor.u32 %v2427, %v2423
        %v2429 = vrot.slane %v2428, 4
        %v2431 = vshll.u32 %v2071, 16
        %v2433 = vrot.slane %v2431, 5
        %v2434 = vsel %vm267, %v2429, %v2433
        %v2436 = vshrl.u32 %v2072, 16
        %v2438 = vrot.slane %v2436, 4
        %v2439 = vshll.u32 %v2072, 16
        %v2441 = vrot.slane %v2439, 5
        %v2442 = vor.u32 %v2438, %v2441
        %v2443 = vrot.slane %v2442, 4
        %v2445 = vshll.u32 %v2073, 16
        %v2447 = vrot.slane %v2445, 5
        %v2448 = vsel %vm267, %v2443, %v2447
        %v2449 = vshrl.u32 %v2073, 16
        %v2451 = vrot.slane %v2449, 4
        %v2452 = vor.u32 %v2451, %v2447
        %v2453 = vrot.slane %v2452, 4
        %v2455 = vshll.u32 %v2074, 16
        %v2457 = vrot.slane %v2455, 5
        %v2458 = vsel %vm267, %v2453, %v2457
        %s2459 = scalar_lea.vmem %s1, 8
        %v2460 = vld [vmem:[%s2459] sm:$0x3]
        %v2461 = vunpack.c.l.b16 %v2088
        %v2462 = vunpack.c.l.b16 %v2098
        %v2463 = vunpack.c.l.b16 %v2112
        %v2464 = vunpack.c.l.b16 %v2122
        %v2465 = vunpack.c.l.b16 %v2136
        %v2466 = vunpack.c.l.b16 %v2146
        %v2467 = vunpack.c.l.b16 %v2160
        %v2468 = vunpack.c.l.b16 %v2170
        %v2469 = vunpack.c.l.b16 %v2184
        %v2470 = vunpack.c.l.b16 %v2194
        %v2471 = vunpack.c.l.b16 %v2208
        %v2472 = vunpack.c.l.b16 %v2218
        %v2473 = vunpack.c.l.b16 %v2232
        %v2474 = vunpack.c.l.b16 %v2242
        %v2475 = vunpack.c.l.b16 %v2256
        %v2476 = vunpack.c.l.b16 %v2266
        %v2477 = vunpack.c.l.b16 %v2280
        %v2478 = vunpack.c.l.b16 %v2290
        %v2479 = vunpack.c.l.b16 %v2304
        %v2480 = vunpack.c.l.b16 %v2314
        %v2481 = vunpack.c.l.b16 %v2328
        %v2482 = vunpack.c.l.b16 %v2338
        %v2483 = vunpack.c.l.b16 %v2352
        %v2484 = vunpack.c.l.b16 %v2362
        %v2485 = vunpack.c.l.b16 %v2376
        %v2486 = vunpack.c.l.b16 %v2386
        %v2487 = vunpack.c.l.b16 %v2400
        %v2488 = vunpack.c.l.b16 %v2410
        %v2489 = vunpack.c.l.b16 %v2424
        %v2490 = vunpack.c.l.b16 %v2434
        %v2491 = vunpack.c.l.b16 %v2448
        %v2492 = vunpack.c.l.b16 %v2458
        %v2493 = vpack.c.b16 %v2462, %v2461
        %v2494 = vpack.c.b16 %v2464, %v2463
        %v2495 = vpack.c.b16 %v2466, %v2465
        %v2496 = vpack.c.b16 %v2468, %v2467
        %v2497 = vpack.c.b16 %v2470, %v2469
        %v2498 = vpack.c.b16 %v2472, %v2471
        %v2499 = vpack.c.b16 %v2474, %v2473
        %v2500 = vpack.c.b16 %v2476, %v2475
        %v2501 = vpack.c.b16 %v2478, %v2477
        %v2502 = vpack.c.b16 %v2480, %v2479
        %v2503 = vpack.c.b16 %v2482, %v2481
        %v2504 = vpack.c.b16 %v2484, %v2483
        %v2505 = vpack.c.b16 %v2486, %v2485
        %v2506 = vpack.c.b16 %v2488, %v2487
        %v2507 = vpack.c.b16 %v2490, %v2489
        %v2508 = vpack.c.b16 %v2492, %v2491
        %v2510 = vsel %vm702, %v2493, 0
        %v2513 = vsel %vm702, %v2494, 0
        %v2516 = vsel %vm702, %v2495, 0
        %v2519 = vsel %vm702, %v2496, 0
        %v2522 = vsel %vm702, %v2497, 0
        %v2525 = vsel %vm702, %v2498, 0
        %v2528 = vsel %vm702, %v2499, 0
        %v2531 = vsel %vm702, %v2500, 0
        %v2534 = vsel %vm702, %v2501, 0
        %v2537 = vsel %vm702, %v2502, 0
        %v2540 = vsel %vm702, %v2503, 0
        %v2543 = vsel %vm702, %v2504, 0
        %v2546 = vsel %vm702, %v2505, 0
        %v2549 = vsel %vm702, %v2506, 0
        %v2552 = vsel %vm702, %v2507, 0
        %v2555 = vsel %vm702, %v2508, 0
        %v2558 = vsel %vm751, %v2460, 0
        %2560 = vmatprep.subr.bf16.mxu0 0
        %2561 = vmatpush1.bf16.msra.mxu0 %v2558
        %2562 = vmatprep.subr.bf16.mxu0 0
        %2563 = vmatpush1.bf16.msra.mxu0 0
        %2564 = vmatprep.subr.bf16.mxu0 0
        %2565 = vmatpush1.bf16.msra.mxu0 0
        %2566 = vmatprep.subr.bf16.mxu0 0
        %2567 = vmatpush1.bf16.msra.mxu0 0
        %2568 = vmatprep.subr.bf16.mxu0 0
        %2569 = vmatpush1.bf16.msra.mxu0 0
        %2570 = vmatprep.subr.bf16.mxu0 0
        %2571 = vmatpush1.bf16.msra.mxu0 0
        %2572 = vmatprep.subr.bf16.mxu0 0
        %2573 = vmatpush1.bf16.msra.mxu0 0
        %2574 = vmatprep.subr.bf16.mxu0 0
        %2575 = vmatpush1.bf16.msra.mxu0 0
        %2576 = vmatprep.subr.bf16.mxu0 0
        %2577 = vmatpush1.bf16.msra.mxu0 0
        %2578 = vmatprep.subr.bf16.mxu0 0
        %2579 = vmatpush1.bf16.msra.mxu0 0
        %2580 = vmatprep.subr.bf16.mxu0 0
        %2581 = vmatpush1.bf16.msra.mxu0 0
        %2582 = vmatprep.subr.bf16.mxu0 0
        %2583 = vmatpush1.bf16.msra.mxu0 0
        %2584 = vmatprep.subr.bf16.mxu0 0
        %2585 = vmatpush1.bf16.msra.mxu0 0
        %2586 = vmatprep.subr.bf16.mxu0 0
        %2587 = vmatpush1.bf16.msra.mxu0 0
        %2588 = vmatprep.subr.bf16.mxu0 0
        %2589 = vmatpush1.bf16.msra.mxu0 0
        %2590 = vmatprep.subr.bf16.mxu0 0
        %2591 = vmatpush1.bf16.msra.mxu0 0
        %2592 = vmatprep.mubr.bf16.mxu0 0
        %2593 = vmatmul.mubr.bf16.gmra.mrb[0].mxu0 %v2510
        %v2594 = vpop.f32.mrb[0].mxu0
        %v2595 = vadd.f32 0.0, %v2594
        %v2596 = vpop.f32.mrb[0].mxu0
        %v2597 = vpop.f32.mrb[0].mxu0
        %v2598 = vadd.f32 0.0, %v2597
        %v2599 = vpop.f32.mrb[0].mxu0
        %2600 = vmatprep.mubr.bf16.mxu0 0
        %2601 = vmatmul.mubr.bf16.gmra.mrb[0].mxu0 %v2513
        %v2602 = vpop.f32.mrb[0].mxu0
        %v2603 = vadd.f32 0.0, %v2602
        %v2604 = vpop.f32.mrb[0].mxu0
        %v2605 = vpop.f32.mrb[0].mxu0
        %v2606 = vadd.f32 0.0, %v2605
        %v2607 = vpop.f32.mrb[0].mxu0
        %2608 = vmatprep.mubr.bf16.mxu0 0
        %2609 = vmatmul.mubr.bf16.gmra.mrb[0].mxu0 %v2516
        %v2610 = vpop.f32.mrb[0].mxu0
        %v2611 = vadd.f32 0.0, %v2610
        %v2612 = vpop.f32.mrb[0].mxu0
        %v2613 = vpop.f32.mrb[0].mxu0
        %v2614 = vadd.f32 0.0, %v2613
        %v2615 = vpop.f32.mrb[0].mxu0
        %2616 = vmatprep.mubr.bf16.mxu0 0
        %2617 = vmatmul.mubr.bf16.gmra.mrb[0].mxu0 %v2519
        %v2618 = vpop.f32.mrb[0].mxu0
        %v2619 = vadd.f32 0.0, %v2618
        %v2620 = vpop.f32.mrb[0].mxu0
        %v2621 = vpop.f32.mrb[0].mxu0
        %v2622 = vadd.f32 0.0, %v2621
        %v2623 = vpop.f32.mrb[0].mxu0
        %2624 = vmatprep.mubr.bf16.mxu0 0
        %2625 = vmatmul.mubr.bf16.gmra.mrb[0].mxu0 %v2522
        %v2626 = vpop.f32.mrb[0].mxu0
        %v2627 = vadd.f32 0.0, %v2626
        %v2628 = vpop.f32.mrb[0].mxu0
        %v2629 = vpop.f32.mrb[0].mxu0
        %v2630 = vadd.f32 0.0, %v2629
        %v2631 = vpop.f32.mrb[0].mxu0
        %2632 = vmatprep.mubr.bf16.mxu0 0
        %2633 = vmatmul.mubr.bf16.gmra.mrb[0].mxu0 %v2525
        %v2634 = vpop.f32.mrb[0].mxu0
        %v2635 = vadd.f32 0.0, %v2634
        %v2636 = vpop.f32.mrb[0].mxu0
        %v2637 = vpop.f32.mrb[0].mxu0
        %v2638 = vadd.f32 0.0, %v2637
        %v2639 = vpop.f32.mrb[0].mxu0
        %2640 = vmatprep.mubr.bf16.mxu0 0
        %2641 = vmatmul.mubr.bf16.gmra.mrb[0].mxu0 %v2528
        %v2642 = vpop.f32.mrb[0].mxu0
        %v2643 = vadd.f32 0.0, %v2642
        %v2644 = vpop.f32.mrb[0].mxu0
        %v2645 = vpop.f32.mrb[0].mxu0
        %v2646 = vadd.f32 0.0, %v2645
        %v2647 = vpop.f32.mrb[0].mxu0
        %2648 = vmatprep.mubr.bf16.mxu0 0
        %2649 = vmatmul.mubr.bf16.gmra.mrb[0].mxu0 %v2531
        %v2650 = vpop.f32.mrb[0].mxu0
        %v2651 = vadd.f32 0.0, %v2650
        %v2652 = vpop.f32.mrb[0].mxu0
        %v2653 = vpop.f32.mrb[0].mxu0
        %v2654 = vadd.f32 0.0, %v2653
        %v2655 = vpop.f32.mrb[0].mxu0
        %2656 = vmatprep.mubr.bf16.mxu0 0
        %2657 = vmatmul.mubr.bf16.gmra.mrb[0].mxu0 %v2534
        %v2658 = vpop.f32.mrb[0].mxu0
        %v2659 = vadd.f32 0.0, %v2658
        %v2660 = vpop.f32.mrb[0].mxu0
        %v2661 = vpop.f32.mrb[0].mxu0
        %v2662 = vadd.f32 0.0, %v2661
        %v2663 = vpop.f32.mrb[0].mxu0
        %2664 = vmatprep.mubr.bf16.mxu0 0
        %2665 = vmatmul.mubr.bf16.gmra.mrb[0].mxu0 %v2537
        %v2666 = vpop.f32.mrb[0].mxu0
        %v2667 = vadd.f32 0.0, %v2666
        %v2668 = vpop.f32.mrb[0].mxu0
        %v2669 = vpop.f32.mrb[0].mxu0
        %v2670 = vadd.f32 0.0, %v2669
        %v2671 = vpop.f32.mrb[0].mxu0
        %2672 = vmatprep.mubr.bf16.mxu0 0
        %2673 = vmatmul.mubr.bf16.gmra.mrb[0].mxu0 %v2540
        %v2674 = vpop.f32.mrb[0].mxu0
        %v2675 = vadd.f32 0.0, %v2674
        %v2676 = vpop.f32.mrb[0].mxu0
        %v2677 = vpop.f32.mrb[0].mxu0
        %v2678 = vadd.f32 0.0, %v2677
        %v2679 = vpop.f32.mrb[0].mxu0
        %2680 = vmatprep.mubr.bf16.mxu0 0
        %2681 = vmatmul.mubr.bf16.gmra.mrb[0].mxu0 %v2543
        %v2682 = vpop.f32.mrb[0].mxu0
        %v2683 = vadd.f32 0.0, %v2682
        %v2684 = vpop.f32.mrb[0].mxu0
        %v2685 = vpop.f32.mrb[0].mxu0
        %v2686 = vadd.f32 0.0, %v2685
        %v2687 = vpop.f32.mrb[0].mxu0
        %2688 = vmatprep.mubr.bf16.mxu0 0
        %2689 = vmatmul.mubr.bf16.gmra.mrb[0].mxu0 %v2546
        %v2690 = vpop.f32.mrb[0].mxu0
        %v2691 = vadd.f32 0.0, %v2690
        %v2692 = vpop.f32.mrb[0].mxu0
        %v2693 = vpop.f32.mrb[0].mxu0
        %v2694 = vadd.f32 0.0, %v2693
        %v2695 = vpop.f32.mrb[0].mxu0
        %2696 = vmatprep.mubr.bf16.mxu0 0
        %2697 = vmatmul.mubr.bf16.gmra.mrb[0].mxu0 %v2549
        %v2698 = vpop.f32.mrb[0].mxu0
        %v2699 = vadd.f32 0.0, %v2698
        %v2700 = vpop.f32.mrb[0].mxu0
        %v2701 = vpop.f32.mrb[0].mxu0
        %v2702 = vadd.f32 0.0, %v2701
        %v2703 = vpop.f32.mrb[0].mxu0
        %2704 = vmatprep.mubr.bf16.mxu0 0
        %2705 = vmatmul.mubr.bf16.gmra.mrb[0].mxu0 %v2552
        %v2706 = vpop.f32.mrb[0].mxu0
        %v2707 = vadd.f32 0.0, %v2706
        %v2708 = vpop.f32.mrb[0].mxu0
        %v2709 = vpop.f32.mrb[0].mxu0
        %v2710 = vadd.f32 0.0, %v2709
        %v2711 = vpop.f32.mrb[0].mxu0
        %2712 = vmatprep.mubr.bf16.mxu0 0
        %2713 = vmatmul.mubr.bf16.gmra.mrb[0].mxu0 %v2555
        %v2714 = vpop.f32.mrb[0].mxu0
        %v2715 = vadd.f32 0.0, %v2714
        %v2716 = vpop.f32.mrb[0].mxu0
        %v2717 = vpop.f32.mrb[0].mxu0
        %v2718 = vadd.f32 0.0, %v2717
        %v2719 = vpop.f32.mrb[0].mxu0
        %2720 = vdwg.mxu0
        %v2721 = vadd.f32 %v1995, %v2595
        %v2722 = vadd.f32 %v1996, %v2598
        %v2723 = vadd.f32 %v1997, %v2603
        %v2724 = vadd.f32 %v1998, %v2606
        %v2725 = vadd.f32 %v1999, %v2611
        %v2726 = vadd.f32 %v2000, %v2614
        %v2727 = vadd.f32 %v2001, %v2619
        %v2728 = vadd.f32 %v2002, %v2622
        %v2729 = vadd.f32 %v2003, %v2627
        %v2730 = vadd.f32 %v2004, %v2630
        %v2731 = vadd.f32 %v2005, %v2635
        %v2732 = vadd.f32 %v2006, %v2638
        %v2733 = vadd.f32 %v2007, %v2643
        %v2734 = vadd.f32 %v2008, %v2646
        %v2735 = vadd.f32 %v2009, %v2651
        %v2736 = vadd.f32 %v2010, %v2654
        %v2737 = vadd.f32 %v2011, %v2659
        %v2738 = vadd.f32 %v2012, %v2662
        %v2739 = vadd.f32 %v2013, %v2667
        %v2740 = vadd.f32 %v2014, %v2670
        %v2741 = vadd.f32 %v2015, %v2675
        %v2742 = vadd.f32 %v2016, %v2678
        %v2743 = vadd.f32 %v2017, %v2683
        %v2744 = vadd.f32 %v2018, %v2686
        %v2745 = vadd.f32 %v2019, %v2691
        %v2746 = vadd.f32 %v2020, %v2694
        %v2747 = vadd.f32 %v2021, %v2699
        %v2748 = vadd.f32 %v2022, %v2702
        %v2749 = vadd.f32 %v2023, %v2707
        %v2750 = vadd.f32 %v2024, %v2710
        %v2751 = vadd.f32 %v2025, %v2715
        %v2752 = vadd.f32 %v2026, %v2718
        %v2753 = vld [vmem:[%s1668] sm:$0xe]
        %v2754 = vld [vmem:[%s1668 + $0xc] sm:$0xe]
        %v2755 = vld [vmem:[%s1668 + $0x18] sm:$0xe]
        %v2756 = vld [vmem:[%s1668 + $0x24] sm:$0xe]
        %v2757 = vld [vmem:[%s1668 + $0x30] sm:$0xe]
        %v2758 = vld [vmem:[%s1668 + $0x3c] sm:$0xe]
        %v2759 = vld [vmem:[%s1668 + $0x48] sm:$0xe]
        %v2760 = vld [vmem:[%s1668 + $0x54] sm:$0xe]
        %v2761 = vld [vmem:[%s1668 + $0x60] sm:$0xe]
        %v2762 = vld [vmem:[%s1668 + $0x6c] sm:$0xe]
        %v2763 = vld [vmem:[%s1668 + $0x78] sm:$0xe]
        %v2764 = vld [vmem:[%s1668 + $0x84] sm:$0xe]
        %v2765 = vld [vmem:[%s1668 + $0x90] sm:$0xe]
        %v2766 = vld [vmem:[%s1668 + $0x9c] sm:$0xe]
        %v2767 = vld [vmem:[%s1668 + $0xa8] sm:$0xe]
        %v2768 = vld [vmem:[%s1668 + $0xb4] sm:$0xe]
        %v2817 = vrot.slane %v2753, 5
        %v2818 = vrot.slane %v2817, 4
        %v2819 = vrot.slane %v2028, 5
        %v2820 = vsel %vm1258, %v2818, %v2819
        %v2821 = vrot.slane %v2819, 4
        %v2822 = vrot.slane %v2029, 5
        %v2823 = vsel %vm1258, %v2821, %v2822
        %v2824 = vrot.slane %v2754, 5
        %v2825 = vrot.slane %v2824, 4
        %v2826 = vrot.slane %v2031, 5
        %v2827 = vsel %vm1258, %v2825, %v2826
        %v2828 = vrot.slane %v2826, 4
        %v2829 = vrot.slane %v2032, 5
        %v2830 = vsel %vm1258, %v2828, %v2829
        %v2831 = vrot.slane %v2755, 5
        %v2832 = vrot.slane %v2831, 4
        %v2833 = vrot.slane %v2034, 5
        %v2834 = vsel %vm1258, %v2832, %v2833
        %v2835 = vrot.slane %v2833, 4
        %v2836 = vrot.slane %v2035, 5
        %v2837 = vsel %vm1258, %v2835, %v2836
        %v2838 = vrot.slane %v2756, 5
        %v2839 = vrot.slane %v2838, 4
        %v2840 = vrot.slane %v2037, 5
        %v2841 = vsel %vm1258, %v2839, %v2840
        %v2842 = vrot.slane %v2840, 4
        %v2843 = vrot.slane %v2038, 5
        %v2844 = vsel %vm1258, %v2842, %v2843
        %v2845 = vrot.slane %v2757, 5
        %v2846 = vrot.slane %v2845, 4
        %v2847 = vrot.slane %v2040, 5
        %v2848 = vsel %vm1258, %v2846, %v2847
        %v2849 = vrot.slane %v2847, 4
        %v2850 = vrot.slane %v2041, 5
        %v2851 = vsel %vm1258, %v2849, %v2850
        %v2852 = vrot.slane %v2758, 5
        %v2853 = vrot.slane %v2852, 4
        %v2854 = vrot.slane %v2043, 5
        %v2855 = vsel %vm1258, %v2853, %v2854
        %v2856 = vrot.slane %v2854, 4
        %v2857 = vrot.slane %v2044, 5
        %v2858 = vsel %vm1258, %v2856, %v2857
        %v2859 = vrot.slane %v2759, 5
        %v2860 = vrot.slane %v2859, 4
        %v2861 = vrot.slane %v2046, 5
        %v2862 = vsel %vm1258, %v2860, %v2861
        %v2863 = vrot.slane %v2861, 4
        %v2864 = vrot.slane %v2047, 5
        %v2865 = vsel %vm1258, %v2863, %v2864
        %v2866 = vrot.slane %v2760, 5
        %v2867 = vrot.slane %v2866, 4
        %v2868 = vrot.slane %v2049, 5
        %v2869 = vsel %vm1258, %v2867, %v2868
        %v2870 = vrot.slane %v2868, 4
        %v2871 = vrot.slane %v2050, 5
        %v2872 = vsel %vm1258, %v2870, %v2871
        %v2873 = vrot.slane %v2761, 5
        %v2874 = vrot.slane %v2873, 4
        %v2875 = vrot.slane %v2052, 5
        %v2876 = vsel %vm1258, %v2874, %v2875
        %v2877 = vrot.slane %v2875, 4
        %v2878 = vrot.slane %v2053, 5
        %v2879 = vsel %vm1258, %v2877, %v2878
        %v2880 = vrot.slane %v2762, 5
        %v2881 = vrot.slane %v2880, 4
        %v2882 = vrot.slane %v2055, 5
        %v2883 = vsel %vm1258, %v2881, %v2882
        %v2884 = vrot.slane %v2882, 4
        %v2885 = vrot.slane %v2056, 5
        %v2886 = vsel %vm1258, %v2884, %v2885
        %v2887 = vrot.slane %v2763, 5
        %v2888 = vrot.slane %v2887, 4
        %v2889 = vrot.slane %v2058, 5
        %v2890 = vsel %vm1258, %v2888, %v2889
        %v2891 = vrot.slane %v2889, 4
        %v2892 = vrot.slane %v2059, 5
        %v2893 = vsel %vm1258, %v2891, %v2892
        %v2894 = vrot.slane %v2764, 5
        %v2895 = vrot.slane %v2894, 4
        %v2896 = vrot.slane %v2061, 5
        %v2897 = vsel %vm1258, %v2895, %v2896
        %v2898 = vrot.slane %v2896, 4
        %v2899 = vrot.slane %v2062, 5
        %v2900 = vsel %vm1258, %v2898, %v2899
        %v2901 = vrot.slane %v2765, 5
        %v2902 = vrot.slane %v2901, 4
        %v2903 = vrot.slane %v2064, 5
        %v2904 = vsel %vm1258, %v2902, %v2903
        %v2905 = vrot.slane %v2903, 4
        %v2906 = vrot.slane %v2065, 5
        %v2907 = vsel %vm1258, %v2905, %v2906
        %v2908 = vrot.slane %v2766, 5
        %v2909 = vrot.slane %v2908, 4
        %v2910 = vrot.slane %v2067, 5
        %v2911 = vsel %vm1258, %v2909, %v2910
        %v2912 = vrot.slane %v2910, 4
        %v2913 = vrot.slane %v2068, 5
        %v2914 = vsel %vm1258, %v2912, %v2913
        %v2915 = vrot.slane %v2767, 5
        %v2916 = vrot.slane %v2915, 4
        %v2917 = vrot.slane %v2070, 5
        %v2918 = vsel %vm1258, %v2916, %v2917
        %v2919 = vrot.slane %v2917, 4
        %v2920 = vrot.slane %v2071, 5
        %v2921 = vsel %vm1258, %v2919, %v2920
        %v2922 = vrot.slane %v2768, 5
        %v2923 = vrot.slane %v2922, 4
        %v2924 = vrot.slane %v2073, 5
        %v2925 = vsel %vm1258, %v2923, %v2924
        %v2926 = vrot.slane %v2924, 4
        %v2927 = vrot.slane %v2074, 5
        %v2928 = vsel %vm1258, %v2926, %v2927
        %s2929 = scalar_lea.vmem %s1, 10
        %v2930 = vld [vmem:[%s2929] sm:$0x3]
        %v2931 = vunpack.c.l.b16 %v2820
        %v2932 = vunpack.c.l.b16 %v2823
        %v2933 = vunpack.c.l.b16 %v2827
        %v2934 = vunpack.c.l.b16 %v2830
        %v2935 = vunpack.c.l.b16 %v2834
        %v2936 = vunpack.c.l.b16 %v2837
        %v2937 = vunpack.c.l.b16 %v2841
        %v2938 = vunpack.c.l.b16 %v2844
        %v2939 = vunpack.c.l.b16 %v2848
        %v2940 = vunpack.c.l.b16 %v2851
        %v2941 = vunpack.c.l.b16 %v2855
        %v2942 = vunpack.c.l.b16 %v2858
        %v2943 = vunpack.c.l.b16 %v2862
        %v2944 = vunpack.c.l.b16 %v2865
        %v2945 = vunpack.c.l.b16 %v2869
        %v2946 = vunpack.c.l.b16 %v2872
        %v2947 = vunpack.c.l.b16 %v2876
        %v2948 = vunpack.c.l.b16 %v2879
        %v2949 = vunpack.c.l.b16 %v2883
        %v2950 = vunpack.c.l.b16 %v2886
        %v2951 = vunpack.c.l.b16 %v2890
        %v2952 = vunpack.c.l.b16 %v2893
        %v2953 = vunpack.c.l.b16 %v2897
        %v2954 = vunpack.c.l.b16 %v2900
        %v2955 = vunpack.c.l.b16 %v2904
        %v2956 = vunpack.c.l.b16 %v2907
        %v2957 = vunpack.c.l.b16 %v2911
        %v2958 = vunpack.c.l.b16 %v2914
        %v2959 = vunpack.c.l.b16 %v2918
        %v2960 = vunpack.c.l.b16 %v2921
        %v2961 = vunpack.c.l.b16 %v2925
        %v2962 = vunpack.c.l.b16 %v2928
        %v2963 = vpack.c.b16 %v2932, %v2931
        %v2964 = vpack.c.b16 %v2934, %v2933
        %v2965 = vpack.c.b16 %v2936, %v2935
        %v2966 = vpack.c.b16 %v2938, %v2937
        %v2967 = vpack.c.b16 %v2940, %v2939
        %v2968 = vpack.c.b16 %v2942, %v2941
        %v2969 = vpack.c.b16 %v2944, %v2943
        %v2970 = vpack.c.b16 %v2946, %v2945
        %v2971 = vpack.c.b16 %v2948, %v2947
        %v2972 = vpack.c.b16 %v2950, %v2949
        %v2973 = vpack.c.b16 %v2952, %v2951
        %v2974 = vpack.c.b16 %v2954, %v2953
        %v2975 = vpack.c.b16 %v2956, %v2955
        %v2976 = vpack.c.b16 %v2958, %v2957
        %v2977 = vpack.c.b16 %v2960, %v2959
        %v2978 = vpack.c.b16 %v2962, %v2961
        %v2980 = vsel %vm702, %v2963, 0
        %v2983 = vsel %vm702, %v2964, 0
        %v2986 = vsel %vm702, %v2965, 0
        %v2989 = vsel %vm702, %v2966, 0
        %v2992 = vsel %vm702, %v2967, 0
        %v2995 = vsel %vm702, %v2968, 0
        %v2998 = vsel %vm702, %v2969, 0
        %v3001 = vsel %vm702, %v2970, 0
        %v3004 = vsel %vm702, %v2971, 0
        %v3007 = vsel %vm702, %v2972, 0
        %v3010 = vsel %vm702, %v2973, 0
        %v3013 = vsel %vm702, %v2974, 0
        %v3016 = vsel %vm702, %v2975, 0
        %v3019 = vsel %vm702, %v2976, 0
        %v3022 = vsel %vm702, %v2977, 0
        %v3025 = vsel %vm702, %v2978, 0
        %v3028 = vsel %vm751, %v2930, 0
        %3030 = vmatprep.subr.bf16.mxu0 0
        %3031 = vmatpush1.bf16.msra.mxu0 %v3028
        %3032 = vmatprep.subr.bf16.mxu0 0
        %3033 = vmatpush1.bf16.msra.mxu0 0
        %3034 = vmatprep.subr.bf16.mxu0 0
        %3035 = vmatpush1.bf16.msra.mxu0 0
        %3036 = vmatprep.subr.bf16.mxu0 0
        %3037 = vmatpush1.bf16.msra.mxu0 0
        %3038 = vmatprep.subr.bf16.mxu0 0
        %3039 = vmatpush1.bf16.msra.mxu0 0
        %3040 = vmatprep.subr.bf16.mxu0 0
        %3041 = vmatpush1.bf16.msra.mxu0 0
        %3042 = vmatprep.subr.bf16.mxu0 0
        %3043 = vmatpush1.bf16.msra.mxu0 0
        %3044 = vmatprep.subr.bf16.mxu0 0
        %3045 = vmatpush1.bf16.msra.mxu0 0
        %3046 = vmatprep.subr.bf16.mxu0 0
        %3047 = vmatpush1.bf16.msra.mxu0 0
        %3048 = vmatprep.subr.bf16.mxu0 0
        %3049 = vmatpush1.bf16.msra.mxu0 0
        %3050 = vmatprep.subr.bf16.mxu0 0
        %3051 = vmatpush1.bf16.msra.mxu0 0
        %3052 = vmatprep.subr.bf16.mxu0 0
        %3053 = vmatpush1.bf16.msra.mxu0 0
        %3054 = vmatprep.subr.bf16.mxu0 0
        %3055 = vmatpush1.bf16.msra.mxu0 0
        %3056 = vmatprep.subr.bf16.mxu0 0
        %3057 = vmatpush1.bf16.msra.mxu0 0
        %3058 = vmatprep.subr.bf16.mxu0 0
        %3059 = vmatpush1.bf16.msra.mxu0 0
        %3060 = vmatprep.subr.bf16.mxu0 0
        %3061 = vmatpush1.bf16.msra.mxu0 0
        %3062 = vmatprep.mubr.bf16.mxu0 0
        %3063 = vmatmul.mubr.bf16.gmra.mrb[0].mxu0 %v2980
        %v3064 = vpop.f32.mrb[0].mxu0
        %v3065 = vadd.f32 0.0, %v3064
        %v3066 = vpop.f32.mrb[0].mxu0
        %v3067 = vpop.f32.mrb[0].mxu0
        %v3068 = vadd.f32 0.0, %v3067
        %v3069 = vpop.f32.mrb[0].mxu0
        %3070 = vmatprep.mubr.bf16.mxu0 0
        %3071 = vmatmul.mubr.bf16.gmra.mrb[0].mxu0 %v2983
        %v3072 = vpop.f32.mrb[0].mxu0
        %v3073 = vadd.f32 0.0, %v3072
        %v3074 = vpop.f32.mrb[0].mxu0
        %v3075 = vpop.f32.mrb[0].mxu0
        %v3076 = vadd.f32 0.0, %v3075
        %v3077 = vpop.f32.mrb[0].mxu0
        %3078 = vmatprep.mubr.bf16.mxu0 0
        %3079 = vmatmul.mubr.bf16.gmra.mrb[0].mxu0 %v2986
        %v3080 = vpop.f32.mrb[0].mxu0
        %v3081 = vadd.f32 0.0, %v3080
        %v3082 = vpop.f32.mrb[0].mxu0
        %v3083 = vpop.f32.mrb[0].mxu0
        %v3084 = vadd.f32 0.0, %v3083
        %v3085 = vpop.f32.mrb[0].mxu0
        %3086 = vmatprep.mubr.bf16.mxu0 0
        %3087 = vmatmul.mubr.bf16.gmra.mrb[0].mxu0 %v2989
        %v3088 = vpop.f32.mrb[0].mxu0
        %v3089 = vadd.f32 0.0, %v3088
        %v3090 = vpop.f32.mrb[0].mxu0
        %v3091 = vpop.f32.mrb[0].mxu0
        %v3092 = vadd.f32 0.0, %v3091
        %v3093 = vpop.f32.mrb[0].mxu0
        %3094 = vmatprep.mubr.bf16.mxu0 0
        %3095 = vmatmul.mubr.bf16.gmra.mrb[0].mxu0 %v2992
        %v3096 = vpop.f32.mrb[0].mxu0
        %v3097 = vadd.f32 0.0, %v3096
        %v3098 = vpop.f32.mrb[0].mxu0
        %v3099 = vpop.f32.mrb[0].mxu0
        %v3100 = vadd.f32 0.0, %v3099
        %v3101 = vpop.f32.mrb[0].mxu0
        %3102 = vmatprep.mubr.bf16.mxu0 0
        %3103 = vmatmul.mubr.bf16.gmra.mrb[0].mxu0 %v2995
        %v3104 = vpop.f32.mrb[0].mxu0
        %v3105 = vadd.f32 0.0, %v3104
        %v3106 = vpop.f32.mrb[0].mxu0
        %v3107 = vpop.f32.mrb[0].mxu0
        %v3108 = vadd.f32 0.0, %v3107
        %v3109 = vpop.f32.mrb[0].mxu0
        %3110 = vmatprep.mubr.bf16.mxu0 0
        %3111 = vmatmul.mubr.bf16.gmra.mrb[0].mxu0 %v2998
        %v3112 = vpop.f32.mrb[0].mxu0
        %v3113 = vadd.f32 0.0, %v3112
        %v3114 = vpop.f32.mrb[0].mxu0
        %v3115 = vpop.f32.mrb[0].mxu0
        %v3116 = vadd.f32 0.0, %v3115
        %v3117 = vpop.f32.mrb[0].mxu0
        %3118 = vmatprep.mubr.bf16.mxu0 0
        %3119 = vmatmul.mubr.bf16.gmra.mrb[0].mxu0 %v3001
        %v3120 = vpop.f32.mrb[0].mxu0
        %v3121 = vadd.f32 0.0, %v3120
        %v3122 = vpop.f32.mrb[0].mxu0
        %v3123 = vpop.f32.mrb[0].mxu0
        %v3124 = vadd.f32 0.0, %v3123
        %v3125 = vpop.f32.mrb[0].mxu0
        %3126 = vmatprep.mubr.bf16.mxu0 0
        %3127 = vmatmul.mubr.bf16.gmra.mrb[0].mxu0 %v3004
        %v3128 = vpop.f32.mrb[0].mxu0
        %v3129 = vadd.f32 0.0, %v3128
        %v3130 = vpop.f32.mrb[0].mxu0
        %v3131 = vpop.f32.mrb[0].mxu0
        %v3132 = vadd.f32 0.0, %v3131
        %v3133 = vpop.f32.mrb[0].mxu0
        %3134 = vmatprep.mubr.bf16.mxu0 0
        %3135 = vmatmul.mubr.bf16.gmra.mrb[0].mxu0 %v3007
        %v3136 = vpop.f32.mrb[0].mxu0
        %v3137 = vadd.f32 0.0, %v3136
        %v3138 = vpop.f32.mrb[0].mxu0
        %v3139 = vpop.f32.mrb[0].mxu0
        %v3140 = vadd.f32 0.0, %v3139
        %v3141 = vpop.f32.mrb[0].mxu0
        %3142 = vmatprep.mubr.bf16.mxu0 0
        %3143 = vmatmul.mubr.bf16.gmra.mrb[0].mxu0 %v3010
        %v3144 = vpop.f32.mrb[0].mxu0
        %v3145 = vadd.f32 0.0, %v3144
        %v3146 = vpop.f32.mrb[0].mxu0
        %v3147 = vpop.f32.mrb[0].mxu0
        %v3148 = vadd.f32 0.0, %v3147
        %v3149 = vpop.f32.mrb[0].mxu0
        %3150 = vmatprep.mubr.bf16.mxu0 0
        %3151 = vmatmul.mubr.bf16.gmra.mrb[0].mxu0 %v3013
        %v3152 = vpop.f32.mrb[0].mxu0
        %v3153 = vadd.f32 0.0, %v3152
        %v3154 = vpop.f32.mrb[0].mxu0
        %v3155 = vpop.f32.mrb[0].mxu0
        %v3156 = vadd.f32 0.0, %v3155
        %v3157 = vpop.f32.mrb[0].mxu0
        %3158 = vmatprep.mubr.bf16.mxu0 0
        %3159 = vmatmul.mubr.bf16.gmra.mrb[0].mxu0 %v3016
        %v3160 = vpop.f32.mrb[0].mxu0
        %v3161 = vadd.f32 0.0, %v3160
        %v3162 = vpop.f32.mrb[0].mxu0
        %v3163 = vpop.f32.mrb[0].mxu0
        %v3164 = vadd.f32 0.0, %v3163
        %v3165 = vpop.f32.mrb[0].mxu0
        %3166 = vmatprep.mubr.bf16.mxu0 0
        %3167 = vmatmul.mubr.bf16.gmra.mrb[0].mxu0 %v3019
        %v3168 = vpop.f32.mrb[0].mxu0
        %v3169 = vadd.f32 0.0, %v3168
        %v3170 = vpop.f32.mrb[0].mxu0
        %v3171 = vpop.f32.mrb[0].mxu0
        %v3172 = vadd.f32 0.0, %v3171
        %v3173 = vpop.f32.mrb[0].mxu0
        %3174 = vmatprep.mubr.bf16.mxu0 0
        %3175 = vmatmul.mubr.bf16.gmra.mrb[0].mxu0 %v3022
        %v3176 = vpop.f32.mrb[0].mxu0
        %v3177 = vadd.f32 0.0, %v3176
        %v3178 = vpop.f32.mrb[0].mxu0
        %v3179 = vpop.f32.mrb[0].mxu0
        %v3180 = vadd.f32 0.0, %v3179
        %v3181 = vpop.f32.mrb[0].mxu0
        %3182 = vmatprep.mubr.bf16.mxu0 0
        %3183 = vmatmul.mubr.bf16.gmra.mrb[0].mxu0 %v3025
        %v3184 = vpop.f32.mrb[0].mxu0
        %v3185 = vadd.f32 0.0, %v3184
        %v3186 = vpop.f32.mrb[0].mxu0
        %v3187 = vpop.f32.mrb[0].mxu0
        %v3188 = vadd.f32 0.0, %v3187
        %v3189 = vpop.f32.mrb[0].mxu0
        %3190 = vdwg.mxu0
        %v3191 = vadd.f32 %v2721, %v3065
        %v3192 = vadd.f32 %v2722, %v3068
        %v3193 = vadd.f32 %v2723, %v3073
        %v3194 = vadd.f32 %v2724, %v3076
        %v3195 = vadd.f32 %v2725, %v3081
        %v3196 = vadd.f32 %v2726, %v3084
        %v3197 = vadd.f32 %v2727, %v3089
        %v3198 = vadd.f32 %v2728, %v3092
        %v3199 = vadd.f32 %v2729, %v3097
        %v3200 = vadd.f32 %v2730, %v3100
        %v3201 = vadd.f32 %v2731, %v3105
        %v3202 = vadd.f32 %v2732, %v3108
        %v3203 = vadd.f32 %v2733, %v3113
        %v3204 = vadd.f32 %v2734, %v3116
        %v3205 = vadd.f32 %v2735, %v3121
        %v3206 = vadd.f32 %v2736, %v3124
        %v3207 = vadd.f32 %v2737, %v3129
        %v3208 = vadd.f32 %v2738, %v3132
        %v3209 = vadd.f32 %v2739, %v3137
        %v3210 = vadd.f32 %v2740, %v3140
        %v3211 = vadd.f32 %v2741, %v3145
        %v3212 = vadd.f32 %v2742, %v3148
        %v3213 = vadd.f32 %v2743, %v3153
        %v3214 = vadd.f32 %v2744, %v3156
        %v3215 = vadd.f32 %v2745, %v3161
        %v3216 = vadd.f32 %v2746, %v3164
        %v3217 = vadd.f32 %v2747, %v3169
        %v3218 = vadd.f32 %v2748, %v3172
        %v3219 = vadd.f32 %v2749, %v3177
        %v3220 = vadd.f32 %v2750, %v3180
        %v3221 = vadd.f32 %v2751, %v3185
        %v3222 = vadd.f32 %v2752, %v3188
        %s3223 = sadd.s32 %s212, 2
        %s3224 = smul.u32 %s3223, 3
        %s3225 = smul.addr %s3224, 4
        %s3226 = scalar_lea.vmem %s209, %s3225
        %v3227 = vld [vmem:[%s3226] sm:$0xf]
        %v3228 = vld [vmem:[%s3226 + $0x4] sm:$0xf]
        %v3229 = vld [vmem:[%s3226 + $0xc] sm:$0xf]
        %v3230 = vld [vmem:[%s3226 + $0x10] sm:$0xf]
        %v3231 = vld [vmem:[%s3226 + $0x18] sm:$0xf]
        %v3232 = vld [vmem:[%s3226 + $0x1c] sm:$0xf]
        %v3233 = vld [vmem:[%s3226 + $0x24] sm:$0xf]
        %v3234 = vld [vmem:[%s3226 + $0x28] sm:$0xf]
        %v3235 = vld [vmem:[%s3226 + $0x30] sm:$0xf]
        %v3236 = vld [vmem:[%s3226 + $0x34] sm:$0xf]
        %v3237 = vld [vmem:[%s3226 + $0x3c] sm:$0xf]
        %v3238 = vld [vmem:[%s3226 + $0x40] sm:$0xf]
        %v3239 = vld [vmem:[%s3226 + $0x48] sm:$0xf]
        %v3240 = vld [vmem:[%s3226 + $0x4c] sm:$0xf]
        %v3241 = vld [vmem:[%s3226 + $0x54] sm:$0xf]
        %v3242 = vld [vmem:[%s3226 + $0x58] sm:$0xf]
        %v3243 = vld [vmem:[%s3226 + $0x60] sm:$0xf]
        %v3244 = vld [vmem:[%s3226 + $0x64] sm:$0xf]
        %v3245 = vld [vmem:[%s3226 + $0x6c] sm:$0xf]
        %v3246 = vld [vmem:[%s3226 + $0x70] sm:$0xf]
        %v3247 = vld [vmem:[%s3226 + $0x78] sm:$0xf]
        %v3248 = vld [vmem:[%s3226 + $0x7c] sm:$0xf]
        %v3249 = vld [vmem:[%s3226 + $0x84] sm:$0xf]
        %v3250 = vld [vmem:[%s3226 + $0x88] sm:$0xf]
        %v3251 = vld [vmem:[%s3226 + $0x90] sm:$0xf]
        %v3252 = vld [vmem:[%s3226 + $0x94] sm:$0xf]
        %v3253 = vld [vmem:[%s3226 + $0x9c] sm:$0xf]
        %v3254 = vld [vmem:[%s3226 + $0xa0] sm:$0xf]
        %v3255 = vld [vmem:[%s3226 + $0xa8] sm:$0xf]
        %v3256 = vld [vmem:[%s3226 + $0xac] sm:$0xf]
        %v3257 = vld [vmem:[%s3226 + $0xb4] sm:$0xf]
        %v3258 = vld [vmem:[%s3226 + $0xb8] sm:$0xf]
        %s3259 = scalar_lea.vmem %s1, 12
        %v3260 = vld [vmem:[%s3259] sm:$0x3]
        %v3293 = vunpack.c.l.b16 %v3227
        %v3294 = vunpack.c.l.b16 %v3228
        %v3295 = vunpack.c.l.b16 %v3229
        %v3296 = vunpack.c.l.b16 %v3230
        %v3297 = vunpack.c.l.b16 %v3231
        %v3298 = vunpack.c.l.b16 %v3232
        %v3299 = vunpack.c.l.b16 %v3233
        %v3300 = vunpack.c.l.b16 %v3234
        %v3301 = vunpack.c.l.b16 %v3235
        %v3302 = vunpack.c.l.b16 %v3236
        %v3303 = vunpack.c.l.b16 %v3237
        %v3304 = vunpack.c.l.b16 %v3238
        %v3305 = vunpack.c.l.b16 %v3239
        %v3306 = vunpack.c.l.b16 %v3240
        %v3307 = vunpack.c.l.b16 %v3241
        %v3308 = vunpack.c.l.b16 %v3242
        %v3309 = vunpack.c.l.b16 %v3243
        %v3310 = vunpack.c.l.b16 %v3244
        %v3311 = vunpack.c.l.b16 %v3245
        %v3312 = vunpack.c.l.b16 %v3246
        %v3313 = vunpack.c.l.b16 %v3247
        %v3314 = vunpack.c.l.b16 %v3248
        %v3315 = vunpack.c.l.b16 %v3249
        %v3316 = vunpack.c.l.b16 %v3250
        %v3317 = vunpack.c.l.b16 %v3251
        %v3318 = vunpack.c.l.b16 %v3252
        %v3319 = vunpack.c.l.b16 %v3253
        %v3320 = vunpack.c.l.b16 %v3254
        %v3321 = vunpack.c.l.b16 %v3255
        %v3322 = vunpack.c.l.b16 %v3256
        %v3323 = vunpack.c.l.b16 %v3257
        %v3324 = vunpack.c.l.b16 %v3258
        %v3325 = vpack.c.b16 %v3294, %v3293
        %v3326 = vpack.c.b16 %v3296, %v3295
        %v3327 = vpack.c.b16 %v3298, %v3297
        %v3328 = vpack.c.b16 %v3300, %v3299
        %v3329 = vpack.c.b16 %v3302, %v3301
        %v3330 = vpack.c.b16 %v3304, %v3303
        %v3331 = vpack.c.b16 %v3306, %v3305
        %v3332 = vpack.c.b16 %v3308, %v3307
        %v3333 = vpack.c.b16 %v3310, %v3309
        %v3334 = vpack.c.b16 %v3312, %v3311
        %v3335 = vpack.c.b16 %v3314, %v3313
        %v3336 = vpack.c.b16 %v3316, %v3315
        %v3337 = vpack.c.b16 %v3318, %v3317
        %v3338 = vpack.c.b16 %v3320, %v3319
        %v3339 = vpack.c.b16 %v3322, %v3321
        %v3340 = vpack.c.b16 %v3324, %v3323
        %v3342 = vsel %vm702, %v3325, 0
        %v3345 = vsel %vm702, %v3326, 0
        %v3348 = vsel %vm702, %v3327, 0
        %v3351 = vsel %vm702, %v3328, 0
        %v3354 = vsel %vm702, %v3329, 0
        %v3357 = vsel %vm702, %v3330, 0
        %v3360 = vsel %vm702, %v3331, 0
        %v3363 = vsel %vm702, %v3332, 0
        %v3366 = vsel %vm702, %v3333, 0
        %v3369 = vsel %vm702, %v3334, 0
        %v3372 = vsel %vm702, %v3335, 0
        %v3375 = vsel %vm702, %v3336, 0
        %v3378 = vsel %vm702, %v3337, 0
        %v3381 = vsel %vm702, %v3338, 0
        %v3384 = vsel %vm702, %v3339, 0
        %v3387 = vsel %vm702, %v3340, 0
        %v3390 = vsel %vm751, %v3260, 0
        %3392 = vmatprep.subr.bf16.mxu0 0
        %3393 = vmatpush1.bf16.msra.mxu0 %v3390
        %3394 = vmatprep.subr.bf16.mxu0 0
        %3395 = vmatpush1.bf16.msra.mxu0 0
        %3396 = vmatprep.subr.bf16.mxu0 0
        %3397 = vmatpush1.bf16.msra.mxu0 0
        %3398 = vmatprep.subr.bf16.mxu0 0
        %3399 = vmatpush1.bf16.msra.mxu0 0
        %3400 = vmatprep.subr.bf16.mxu0 0
        %3401 = vmatpush1.bf16.msra.mxu0 0
        %3402 = vmatprep.subr.bf16.mxu0 0
        %3403 = vmatpush1.bf16.msra.mxu0 0
        %3404 = vmatprep.subr.bf16.mxu0 0
        %3405 = vmatpush1.bf16.msra.mxu0 0
        %3406 = vmatprep.subr.bf16.mxu0 0
        %3407 = vmatpush1.bf16.msra.mxu0 0
        %3408 = vmatprep.subr.bf16.mxu0 0
        %3409 = vmatpush1.bf16.msra.mxu0 0
        %3410 = vmatprep.subr.bf16.mxu0 0
        %3411 = vmatpush1.bf16.msra.mxu0 0
        %3412 = vmatprep.subr.bf16.mxu0 0
        %3413 = vmatpush1.bf16.msra.mxu0 0
        %3414 = vmatprep.subr.bf16.mxu0 0
        %3415 = vmatpush1.bf16.msra.mxu0 0
        %3416 = vmatprep.subr.bf16.mxu0 0
        %3417 = vmatpush1.bf16.msra.mxu0 0
        %3418 = vmatprep.subr.bf16.mxu0 0
        %3419 = vmatpush1.bf16.msra.mxu0 0
        %3420 = vmatprep.subr.bf16.mxu0 0
        %3421 = vmatpush1.bf16.msra.mxu0 0
        %3422 = vmatprep.subr.bf16.mxu0 0
        %3423 = vmatpush1.bf16.msra.mxu0 0
        %3424 = vmatprep.mubr.bf16.mxu0 0
        %3425 = vmatmul.mubr.bf16.gmra.mrb[0].mxu0 %v3342
        %v3426 = vpop.f32.mrb[0].mxu0
        %v3427 = vadd.f32 0.0, %v3426
        %v3428 = vpop.f32.mrb[0].mxu0
        %v3429 = vpop.f32.mrb[0].mxu0
        %v3430 = vadd.f32 0.0, %v3429
        %v3431 = vpop.f32.mrb[0].mxu0
        %3432 = vmatprep.mubr.bf16.mxu0 0
        %3433 = vmatmul.mubr.bf16.gmra.mrb[0].mxu0 %v3345
        %v3434 = vpop.f32.mrb[0].mxu0
        %v3435 = vadd.f32 0.0, %v3434
        %v3436 = vpop.f32.mrb[0].mxu0
        %v3437 = vpop.f32.mrb[0].mxu0
        %v3438 = vadd.f32 0.0, %v3437
        %v3439 = vpop.f32.mrb[0].mxu0
        %3440 = vmatprep.mubr.bf16.mxu0 0
        %3441 = vmatmul.mubr.bf16.gmra.mrb[0].mxu0 %v3348
        %v3442 = vpop.f32.mrb[0].mxu0
        %v3443 = vadd.f32 0.0, %v3442
        %v3444 = vpop.f32.mrb[0].mxu0
        %v3445 = vpop.f32.mrb[0].mxu0
        %v3446 = vadd.f32 0.0, %v3445
        %v3447 = vpop.f32.mrb[0].mxu0
        %3448 = vmatprep.mubr.bf16.mxu0 0
        %3449 = vmatmul.mubr.bf16.gmra.mrb[0].mxu0 %v3351
        %v3450 = vpop.f32.mrb[0].mxu0
        %v3451 = vadd.f32 0.0, %v3450
        %v3452 = vpop.f32.mrb[0].mxu0
        %v3453 = vpop.f32.mrb[0].mxu0
        %v3454 = vadd.f32 0.0, %v3453
        %v3455 = vpop.f32.mrb[0].mxu0
        %3456 = vmatprep.mubr.bf16.mxu0 0
        %3457 = vmatmul.mubr.bf16.gmra.mrb[0].mxu0 %v3354
        %v3458 = vpop.f32.mrb[0].mxu0
        %v3459 = vadd.f32 0.0, %v3458
        %v3460 = vpop.f32.mrb[0].mxu0
        %v3461 = vpop.f32.mrb[0].mxu0
        %v3462 = vadd.f32 0.0, %v3461
        %v3463 = vpop.f32.mrb[0].mxu0
        %3464 = vmatprep.mubr.bf16.mxu0 0
        %3465 = vmatmul.mubr.bf16.gmra.mrb[0].mxu0 %v3357
        %v3466 = vpop.f32.mrb[0].mxu0
        %v3467 = vadd.f32 0.0, %v3466
        %v3468 = vpop.f32.mrb[0].mxu0
        %v3469 = vpop.f32.mrb[0].mxu0
        %v3470 = vadd.f32 0.0, %v3469
        %v3471 = vpop.f32.mrb[0].mxu0
        %3472 = vmatprep.mubr.bf16.mxu0 0
        %3473 = vmatmul.mubr.bf16.gmra.mrb[0].mxu0 %v3360
        %v3474 = vpop.f32.mrb[0].mxu0
        %v3475 = vadd.f32 0.0, %v3474
        %v3476 = vpop.f32.mrb[0].mxu0
        %v3477 = vpop.f32.mrb[0].mxu0
        %v3478 = vadd.f32 0.0, %v3477
        %v3479 = vpop.f32.mrb[0].mxu0
        %3480 = vmatprep.mubr.bf16.mxu0 0
        %3481 = vmatmul.mubr.bf16.gmra.mrb[0].mxu0 %v3363
        %v3482 = vpop.f32.mrb[0].mxu0
        %v3483 = vadd.f32 0.0, %v3482
        %v3484 = vpop.f32.mrb[0].mxu0
        %v3485 = vpop.f32.mrb[0].mxu0
        %v3486 = vadd.f32 0.0, %v3485
        %v3487 = vpop.f32.mrb[0].mxu0
        %3488 = vmatprep.mubr.bf16.mxu0 0
        %3489 = vmatmul.mubr.bf16.gmra.mrb[0].mxu0 %v3366
        %v3490 = vpop.f32.mrb[0].mxu0
        %v3491 = vadd.f32 0.0, %v3490
        %v3492 = vpop.f32.mrb[0].mxu0
        %v3493 = vpop.f32.mrb[0].mxu0
        %v3494 = vadd.f32 0.0, %v3493
        %v3495 = vpop.f32.mrb[0].mxu0
        %3496 = vmatprep.mubr.bf16.mxu0 0
        %3497 = vmatmul.mubr.bf16.gmra.mrb[0].mxu0 %v3369
        %v3498 = vpop.f32.mrb[0].mxu0
        %v3499 = vadd.f32 0.0, %v3498
        %v3500 = vpop.f32.mrb[0].mxu0
        %v3501 = vpop.f32.mrb[0].mxu0
        %v3502 = vadd.f32 0.0, %v3501
        %v3503 = vpop.f32.mrb[0].mxu0
        %3504 = vmatprep.mubr.bf16.mxu0 0
        %3505 = vmatmul.mubr.bf16.gmra.mrb[0].mxu0 %v3372
        %v3506 = vpop.f32.mrb[0].mxu0
        %v3507 = vadd.f32 0.0, %v3506
        %v3508 = vpop.f32.mrb[0].mxu0
        %v3509 = vpop.f32.mrb[0].mxu0
        %v3510 = vadd.f32 0.0, %v3509
        %v3511 = vpop.f32.mrb[0].mxu0
        %3512 = vmatprep.mubr.bf16.mxu0 0
        %3513 = vmatmul.mubr.bf16.gmra.mrb[0].mxu0 %v3375
        %v3514 = vpop.f32.mrb[0].mxu0
        %v3515 = vadd.f32 0.0, %v3514
        %v3516 = vpop.f32.mrb[0].mxu0
        %v3517 = vpop.f32.mrb[0].mxu0
        %v3518 = vadd.f32 0.0, %v3517
        %v3519 = vpop.f32.mrb[0].mxu0
        %3520 = vmatprep.mubr.bf16.mxu0 0
        %3521 = vmatmul.mubr.bf16.gmra.mrb[0].mxu0 %v3378
        %v3522 = vpop.f32.mrb[0].mxu0
        %v3523 = vadd.f32 0.0, %v3522
        %v3524 = vpop.f32.mrb[0].mxu0
        %v3525 = vpop.f32.mrb[0].mxu0
        %v3526 = vadd.f32 0.0, %v3525
        %v3527 = vpop.f32.mrb[0].mxu0
        %3528 = vmatprep.mubr.bf16.mxu0 0
        %3529 = vmatmul.mubr.bf16.gmra.mrb[0].mxu0 %v3381
        %v3530 = vpop.f32.mrb[0].mxu0
        %v3531 = vadd.f32 0.0, %v3530
        %v3532 = vpop.f32.mrb[0].mxu0
        %v3533 = vpop.f32.mrb[0].mxu0
        %v3534 = vadd.f32 0.0, %v3533
        %v3535 = vpop.f32.mrb[0].mxu0
        %3536 = vmatprep.mubr.bf16.mxu0 0
        %3537 = vmatmul.mubr.bf16.gmra.mrb[0].mxu0 %v3384
        %v3538 = vpop.f32.mrb[0].mxu0
        %v3539 = vadd.f32 0.0, %v3538
        %v3540 = vpop.f32.mrb[0].mxu0
        %v3541 = vpop.f32.mrb[0].mxu0
        %v3542 = vadd.f32 0.0, %v3541
        %v3543 = vpop.f32.mrb[0].mxu0
        %3544 = vmatprep.mubr.bf16.mxu0 0
        %3545 = vmatmul.mubr.bf16.gmra.mrb[0].mxu0 %v3387
        %v3546 = vpop.f32.mrb[0].mxu0
        %v3547 = vadd.f32 0.0, %v3546
        %v3548 = vpop.f32.mrb[0].mxu0
        %v3549 = vpop.f32.mrb[0].mxu0
        %v3550 = vadd.f32 0.0, %v3549
        %v3551 = vpop.f32.mrb[0].mxu0
        %3552 = vdwg.mxu0
        %v3553 = vadd.f32 %v3191, %v3427
        %v3554 = vadd.f32 %v3192, %v3430
        %v3555 = vadd.f32 %v3193, %v3435
        %v3556 = vadd.f32 %v3194, %v3438
        %v3557 = vadd.f32 %v3195, %v3443
        %v3558 = vadd.f32 %v3196, %v3446
        %v3559 = vadd.f32 %v3197, %v3451
        %v3560 = vadd.f32 %v3198, %v3454
        %v3561 = vadd.f32 %v3199, %v3459
        %v3562 = vadd.f32 %v3200, %v3462
        %v3563 = vadd.f32 %v3201, %v3467
        %v3564 = vadd.f32 %v3202, %v3470
        %v3565 = vadd.f32 %v3203, %v3475
        %v3566 = vadd.f32 %v3204, %v3478
        %v3567 = vadd.f32 %v3205, %v3483
        %v3568 = vadd.f32 %v3206, %v3486
        %v3569 = vadd.f32 %v3207, %v3491
        %v3570 = vadd.f32 %v3208, %v3494
        %v3571 = vadd.f32 %v3209, %v3499
        %v3572 = vadd.f32 %v3210, %v3502
        %v3573 = vadd.f32 %v3211, %v3507
        %v3574 = vadd.f32 %v3212, %v3510
        %v3575 = vadd.f32 %v3213, %v3515
        %v3576 = vadd.f32 %v3214, %v3518
        %v3577 = vadd.f32 %v3215, %v3523
        %v3578 = vadd.f32 %v3216, %v3526
        %v3579 = vadd.f32 %v3217, %v3531
        %v3580 = vadd.f32 %v3218, %v3534
        %v3581 = vadd.f32 %v3219, %v3539
        %v3582 = vadd.f32 %v3220, %v3542
        %v3583 = vadd.f32 %v3221, %v3547
        %v3584 = vadd.f32 %v3222, %v3550
        %v3585 = vld [vmem:[%s3226] sm:$0xf]
        %v3586 = vld [vmem:[%s3226 + $0x4] sm:$0xf]
        %v3587 = vld [vmem:[%s3226 + $0x8] sm:$0x1]
        %v3588 = vld [vmem:[%s3226 + $0xc] sm:$0xf]
        %v3589 = vld [vmem:[%s3226 + $0x10] sm:$0xf]
        %v3590 = vld [vmem:[%s3226 + $0x14] sm:$0x1]
        %v3591 = vld [vmem:[%s3226 + $0x18] sm:$0xf]
        %v3592 = vld [vmem:[%s3226 + $0x1c] sm:$0xf]
        %v3593 = vld [vmem:[%s3226 + $0x20] sm:$0x1]
        %v3594 = vld [vmem:[%s3226 + $0x24] sm:$0xf]
        %v3595 = vld [vmem:[%s3226 + $0x28] sm:$0xf]
        %v3596 = vld [vmem:[%s3226 + $0x2c] sm:$0x1]
        %v3597 = vld [vmem:[%s3226 + $0x30] sm:$0xf]
        %v3598 = vld [vmem:[%s3226 + $0x34] sm:$0xf]
        %v3599 = vld [vmem:[%s3226 + $0x38] sm:$0x1]
        %v3600 = vld [vmem:[%s3226 + $0x3c] sm:$0xf]
        %v3601 = vld [vmem:[%s3226 + $0x40] sm:$0xf]
        %v3602 = vld [vmem:[%s3226 + $0x44] sm:$0x1]
        %v3603 = vld [vmem:[%s3226 + $0x48] sm:$0xf]
        %v3604 = vld [vmem:[%s3226 + $0x4c] sm:$0xf]
        %v3605 = vld [vmem:[%s3226 + $0x50] sm:$0x1]
        %v3606 = vld [vmem:[%s3226 + $0x54] sm:$0xf]
        %v3607 = vld [vmem:[%s3226 + $0x58] sm:$0xf]
        %v3608 = vld [vmem:[%s3226 + $0x5c] sm:$0x1]
        %v3609 = vld [vmem:[%s3226 + $0x60] sm:$0xf]
        %v3610 = vld [vmem:[%s3226 + $0x64] sm:$0xf]
        %v3611 = vld [vmem:[%s3226 + $0x68] sm:$0x1]
        %v3612 = vld [vmem:[%s3226 + $0x6c] sm:$0xf]
        %v3613 = vld [vmem:[%s3226 + $0x70] sm:$0xf]
        %v3614 = vld [vmem:[%s3226 + $0x74] sm:$0x1]
        %v3615 = vld [vmem:[%s3226 + $0x78] sm:$0xf]
        %v3616 = vld [vmem:[%s3226 + $0x7c] sm:$0xf]
        %v3617 = vld [vmem:[%s3226 + $0x80] sm:$0x1]
        %v3618 = vld [vmem:[%s3226 + $0x84] sm:$0xf]
        %v3619 = vld [vmem:[%s3226 + $0x88] sm:$0xf]
        %v3620 = vld [vmem:[%s3226 + $0x8c] sm:$0x1]
        %v3621 = vld [vmem:[%s3226 + $0x90] sm:$0xf]
        %v3622 = vld [vmem:[%s3226 + $0x94] sm:$0xf]
        %v3623 = vld [vmem:[%s3226 + $0x98] sm:$0x1]
        %v3624 = vld [vmem:[%s3226 + $0x9c] sm:$0xf]
        %v3625 = vld [vmem:[%s3226 + $0xa0] sm:$0xf]
        %v3626 = vld [vmem:[%s3226 + $0xa4] sm:$0x1]
        %v3627 = vld [vmem:[%s3226 + $0xa8] sm:$0xf]
        %v3628 = vld [vmem:[%s3226 + $0xac] sm:$0xf]
        %v3629 = vld [vmem:[%s3226 + $0xb0] sm:$0x1]
        %v3630 = vld [vmem:[%s3226 + $0xb4] sm:$0xf]
        %v3631 = vld [vmem:[%s3226 + $0xb8] sm:$0xf]
        %v3632 = vld [vmem:[%s3226 + $0xbc] sm:$0x1]
        %v3634 = vshrl.u32 %v3585, 16
        %v3636 = vrot.slane %v3634, 4
        %v3637 = vshll.u32 %v3585, 16
        %v3639 = vrot.slane %v3637, 5
        %v3640 = vor.u32 %v3636, %v3639
        %v3641 = vrot.slane %v3640, 4
        %v3643 = vshll.u32 %v3586, 16
        %v3645 = vrot.slane %v3643, 5
        %v3646 = vsel %vm267, %v3641, %v3645
        %v3647 = vshrl.u32 %v3586, 16
        %v3649 = vrot.slane %v3647, 4
        %v3650 = vor.u32 %v3649, %v3645
        %v3651 = vrot.slane %v3650, 4
        %v3653 = vshll.u32 %v3587, 16
        %v3655 = vrot.slane %v3653, 5
        %v3656 = vsel %vm267, %v3651, %v3655
        %v3658 = vshrl.u32 %v3588, 16
        %v3660 = vrot.slane %v3658, 4
        %v3661 = vshll.u32 %v3588, 16
        %v3663 = vrot.slane %v3661, 5
        %v3664 = vor.u32 %v3660, %v3663
        %v3665 = vrot.slane %v3664, 4
        %v3667 = vshll.u32 %v3589, 16
        %v3669 = vrot.slane %v3667, 5
        %v3670 = vsel %vm267, %v3665, %v3669
        %v3671 = vshrl.u32 %v3589, 16
        %v3673 = vrot.slane %v3671, 4
        %v3674 = vor.u32 %v3673, %v3669
        %v3675 = vrot.slane %v3674, 4
        %v3677 = vshll.u32 %v3590, 16
        %v3679 = vrot.slane %v3677, 5
        %v3680 = vsel %vm267, %v3675, %v3679
        %v3682 = vshrl.u32 %v3591, 16
        %v3684 = vrot.slane %v3682, 4
        %v3685 = vshll.u32 %v3591, 16
        %v3687 = vrot.slane %v3685, 5
        %v3688 = vor.u32 %v3684, %v3687
        %v3689 = vrot.slane %v3688, 4
        %v3691 = vshll.u32 %v3592, 16
        %v3693 = vrot.slane %v3691, 5
        %v3694 = vsel %vm267, %v3689, %v3693
        %v3695 = vshrl.u32 %v3592, 16
        %v3697 = vrot.slane %v3695, 4
        %v3698 = vor.u32 %v3697, %v3693
        %v3699 = vrot.slane %v3698, 4
        %v3701 = vshll.u32 %v3593, 16
        %v3703 = vrot.slane %v3701, 5
        %v3704 = vsel %vm267, %v3699, %v3703
        %v3706 = vshrl.u32 %v3594, 16
        %v3708 = vrot.slane %v3706, 4
        %v3709 = vshll.u32 %v3594, 16
        %v3711 = vrot.slane %v3709, 5
        %v3712 = vor.u32 %v3708, %v3711
        %v3713 = vrot.slane %v3712, 4
        %v3715 = vshll.u32 %v3595, 16
        %v3717 = vrot.slane %v3715, 5
        %v3718 = vsel %vm267, %v3713, %v3717
        %v3719 = vshrl.u32 %v3595, 16
        %v3721 = vrot.slane %v3719, 4
        %v3722 = vor.u32 %v3721, %v3717
        %v3723 = vrot.slane %v3722, 4
        %v3725 = vshll.u32 %v3596, 16
        %v3727 = vrot.slane %v3725, 5
        %v3728 = vsel %vm267, %v3723, %v3727
        %v3730 = vshrl.u32 %v3597, 16
        %v3732 = vrot.slane %v3730, 4
        %v3733 = vshll.u32 %v3597, 16
        %v3735 = vrot.slane %v3733, 5
        %v3736 = vor.u32 %v3732, %v3735
        %v3737 = vrot.slane %v3736, 4
        %v3739 = vshll.u32 %v3598, 16
        %v3741 = vrot.slane %v3739, 5
        %v3742 = vsel %vm267, %v3737, %v3741
        %v3743 = vshrl.u32 %v3598, 16
        %v3745 = vrot.slane %v3743, 4
        %v3746 = vor.u32 %v3745, %v3741
        %v3747 = vrot.slane %v3746, 4
        %v3749 = vshll.u32 %v3599, 16
        %v3751 = vrot.slane %v3749, 5
        %v3752 = vsel %vm267, %v3747, %v3751
        %v3754 = vshrl.u32 %v3600, 16
        %v3756 = vrot.slane %v3754, 4
        %v3757 = vshll.u32 %v3600, 16
        %v3759 = vrot.slane %v3757, 5
        %v3760 = vor.u32 %v3756, %v3759
        %v3761 = vrot.slane %v3760, 4
        %v3763 = vshll.u32 %v3601, 16
        %v3765 = vrot.slane %v3763, 5
        %v3766 = vsel %vm267, %v3761, %v3765
        %v3767 = vshrl.u32 %v3601, 16
        %v3769 = vrot.slane %v3767, 4
        %v3770 = vor.u32 %v3769, %v3765
        %v3771 = vrot.slane %v3770, 4
        %v3773 = vshll.u32 %v3602, 16
        %v3775 = vrot.slane %v3773, 5
        %v3776 = vsel %vm267, %v3771, %v3775
        %v3778 = vshrl.u32 %v3603, 16
        %v3780 = vrot.slane %v3778, 4
        %v3781 = vshll.u32 %v3603, 16
        %v3783 = vrot.slane %v3781, 5
        %v3784 = vor.u32 %v3780, %v3783
        %v3785 = vrot.slane %v3784, 4
        %v3787 = vshll.u32 %v3604, 16
        %v3789 = vrot.slane %v3787, 5
        %v3790 = vsel %vm267, %v3785, %v3789
        %v3791 = vshrl.u32 %v3604, 16
        %v3793 = vrot.slane %v3791, 4
        %v3794 = vor.u32 %v3793, %v3789
        %v3795 = vrot.slane %v3794, 4
        %v3797 = vshll.u32 %v3605, 16
        %v3799 = vrot.slane %v3797, 5
        %v3800 = vsel %vm267, %v3795, %v3799
        %v3802 = vshrl.u32 %v3606, 16
        %v3804 = vrot.slane %v3802, 4
        %v3805 = vshll.u32 %v3606, 16
        %v3807 = vrot.slane %v3805, 5
        %v3808 = vor.u32 %v3804, %v3807
        %v3809 = vrot.slane %v3808, 4
        %v3811 = vshll.u32 %v3607, 16
        %v3813 = vrot.slane %v3811, 5
        %v3814 = vsel %vm267, %v3809, %v3813
        %v3815 = vshrl.u32 %v3607, 16
        %v3817 = vrot.slane %v3815, 4
        %v3818 = vor.u32 %v3817, %v3813
        %v3819 = vrot.slane %v3818, 4
        %v3821 = vshll.u32 %v3608, 16
        %v3823 = vrot.slane %v3821, 5
        %v3824 = vsel %vm267, %v3819, %v3823
        %v3826 = vshrl.u32 %v3609, 16
        %v3828 = vrot.slane %v3826, 4
        %v3829 = vshll.u32 %v3609, 16
        %v3831 = vrot.slane %v3829, 5
        %v3832 = vor.u32 %v3828, %v3831
        %v3833 = vrot.slane %v3832, 4
        %v3835 = vshll.u32 %v3610, 16
        %v3837 = vrot.slane %v3835, 5
        %v3838 = vsel %vm267, %v3833, %v3837
        %v3839 = vshrl.u32 %v3610, 16
        %v3841 = vrot.slane %v3839, 4
        %v3842 = vor.u32 %v3841, %v3837
        %v3843 = vrot.slane %v3842, 4
        %v3845 = vshll.u32 %v3611, 16
        %v3847 = vrot.slane %v3845, 5
        %v3848 = vsel %vm267, %v3843, %v3847
        %v3850 = vshrl.u32 %v3612, 16
        %v3852 = vrot.slane %v3850, 4
        %v3853 = vshll.u32 %v3612, 16
        %v3855 = vrot.slane %v3853, 5
        %v3856 = vor.u32 %v3852, %v3855
        %v3857 = vrot.slane %v3856, 4
        %v3859 = vshll.u32 %v3613, 16
        %v3861 = vrot.slane %v3859, 5
        %v3862 = vsel %vm267, %v3857, %v3861
        %v3863 = vshrl.u32 %v3613, 16
        %v3865 = vrot.slane %v3863, 4
        %v3866 = vor.u32 %v3865, %v3861
        %v3867 = vrot.slane %v3866, 4
        %v3869 = vshll.u32 %v3614, 16
        %v3871 = vrot.slane %v3869, 5
        %v3872 = vsel %vm267, %v3867, %v3871
        %v3874 = vshrl.u32 %v3615, 16
        %v3876 = vrot.slane %v3874, 4
        %v3877 = vshll.u32 %v3615, 16
        %v3879 = vrot.slane %v3877, 5
        %v3880 = vor.u32 %v3876, %v3879
        %v3881 = vrot.slane %v3880, 4
        %v3883 = vshll.u32 %v3616, 16
        %v3885 = vrot.slane %v3883, 5
        %v3886 = vsel %vm267, %v3881, %v3885
        %v3887 = vshrl.u32 %v3616, 16
        %v3889 = vrot.slane %v3887, 4
        %v3890 = vor.u32 %v3889, %v3885
        %v3891 = vrot.slane %v3890, 4
        %v3893 = vshll.u32 %v3617, 16
        %v3895 = vrot.slane %v3893, 5
        %v3896 = vsel %vm267, %v3891, %v3895
        %v3898 = vshrl.u32 %v3618, 16
        %v3900 = vrot.slane %v3898, 4
        %v3901 = vshll.u32 %v3618, 16
        %v3903 = vrot.slane %v3901, 5
        %v3904 = vor.u32 %v3900, %v3903
        %v3905 = vrot.slane %v3904, 4
        %v3907 = vshll.u32 %v3619, 16
        %v3909 = vrot.slane %v3907, 5
        %v3910 = vsel %vm267, %v3905, %v3909
        %v3911 = vshrl.u32 %v3619, 16
        %v3913 = vrot.slane %v3911, 4
        %v3914 = vor.u32 %v3913, %v3909
        %v3915 = vrot.slane %v3914, 4
        %v3917 = vshll.u32 %v3620, 16
        %v3919 = vrot.slane %v3917, 5
        %v3920 = vsel %vm267, %v3915, %v3919
        %v3922 = vshrl.u32 %v3621, 16
        %v3924 = vrot.slane %v3922, 4
        %v3925 = vshll.u32 %v3621, 16
        %v3927 = vrot.slane %v3925, 5
        %v3928 = vor.u32 %v3924, %v3927
        %v3929 = vrot.slane %v3928, 4
        %v3931 = vshll.u32 %v3622, 16
        %v3933 = vrot.slane %v3931, 5
        %v3934 = vsel %vm267, %v3929, %v3933
        %v3935 = vshrl.u32 %v3622, 16
        %v3937 = vrot.slane %v3935, 4
        %v3938 = vor.u32 %v3937, %v3933
        %v3939 = vrot.slane %v3938, 4
        %v3941 = vshll.u32 %v3623, 16
        %v3943 = vrot.slane %v3941, 5
        %v3944 = vsel %vm267, %v3939, %v3943
        %v3946 = vshrl.u32 %v3624, 16
        %v3948 = vrot.slane %v3946, 4
        %v3949 = vshll.u32 %v3624, 16
        %v3951 = vrot.slane %v3949, 5
        %v3952 = vor.u32 %v3948, %v3951
        %v3953 = vrot.slane %v3952, 4
        %v3955 = vshll.u32 %v3625, 16
        %v3957 = vrot.slane %v3955, 5
        %v3958 = vsel %vm267, %v3953, %v3957
        %v3959 = vshrl.u32 %v3625, 16
        %v3961 = vrot.slane %v3959, 4
        %v3962 = vor.u32 %v3961, %v3957
        %v3963 = vrot.slane %v3962, 4
        %v3965 = vshll.u32 %v3626, 16
        %v3967 = vrot.slane %v3965, 5
        %v3968 = vsel %vm267, %v3963, %v3967
        %v3970 = vshrl.u32 %v3627, 16
        %v3972 = vrot.slane %v3970, 4
        %v3973 = vshll.u32 %v3627, 16
        %v3975 = vrot.slane %v3973, 5
        %v3976 = vor.u32 %v3972, %v3975
        %v3977 = vrot.slane %v3976, 4
        %v3979 = vshll.u32 %v3628, 16
        %v3981 = vrot.slane %v3979, 5
        %v3982 = vsel %vm267, %v3977, %v3981
        %v3983 = vshrl.u32 %v3628, 16
        %v3985 = vrot.slane %v3983, 4
        %v3986 = vor.u32 %v3985, %v3981
        %v3987 = vrot.slane %v3986, 4
        %v3989 = vshll.u32 %v3629, 16
        %v3991 = vrot.slane %v3989, 5
        %v3992 = vsel %vm267, %v3987, %v3991
        %v3994 = vshrl.u32 %v3630, 16
        %v3996 = vrot.slane %v3994, 4
        %v3997 = vshll.u32 %v3630, 16
        %v3999 = vrot.slane %v3997, 5
        %v4000 = vor.u32 %v3996, %v3999
        %v4001 = vrot.slane %v4000, 4
        %v4003 = vshll.u32 %v3631, 16
        %v4005 = vrot.slane %v4003, 5
        %v4006 = vsel %vm267, %v4001, %v4005
        %v4007 = vshrl.u32 %v3631, 16
        %v4009 = vrot.slane %v4007, 4
        %v4010 = vor.u32 %v4009, %v4005
        %v4011 = vrot.slane %v4010, 4
        %v4013 = vshll.u32 %v3632, 16
        %v4015 = vrot.slane %v4013, 5
        %v4016 = vsel %vm267, %v4011, %v4015
        %s4017 = scalar_lea.vmem %s1, 14
        %v4018 = vld [vmem:[%s4017] sm:$0x3]
        %v4019 = vunpack.c.l.b16 %v3646
        %v4020 = vunpack.c.l.b16 %v3656
        %v4021 = vunpack.c.l.b16 %v3670
        %v4022 = vunpack.c.l.b16 %v3680
        %v4023 = vunpack.c.l.b16 %v3694
        %v4024 = vunpack.c.l.b16 %v3704
        %v4025 = vunpack.c.l.b16 %v3718
        %v4026 = vunpack.c.l.b16 %v3728
        %v4027 = vunpack.c.l.b16 %v3742
        %v4028 = vunpack.c.l.b16 %v3752
        %v4029 = vunpack.c.l.b16 %v3766
        %v4030 = vunpack.c.l.b16 %v3776
        %v4031 = vunpack.c.l.b16 %v3790
        %v4032 = vunpack.c.l.b16 %v3800
        %v4033 = vunpack.c.l.b16 %v3814
        %v4034 = vunpack.c.l.b16 %v3824
        %v4035 = vunpack.c.l.b16 %v3838
        %v4036 = vunpack.c.l.b16 %v3848
        %v4037 = vunpack.c.l.b16 %v3862
        %v4038 = vunpack.c.l.b16 %v3872
        %v4039 = vunpack.c.l.b16 %v3886
        %v4040 = vunpack.c.l.b16 %v3896
        %v4041 = vunpack.c.l.b16 %v3910
        %v4042 = vunpack.c.l.b16 %v3920
        %v4043 = vunpack.c.l.b16 %v3934
        %v4044 = vunpack.c.l.b16 %v3944
        %v4045 = vunpack.c.l.b16 %v3958
        %v4046 = vunpack.c.l.b16 %v3968
        %v4047 = vunpack.c.l.b16 %v3982
        %v4048 = vunpack.c.l.b16 %v3992
        %v4049 = vunpack.c.l.b16 %v4006
        %v4050 = vunpack.c.l.b16 %v4016
        %v4051 = vpack.c.b16 %v4020, %v4019
        %v4052 = vpack.c.b16 %v4022, %v4021
        %v4053 = vpack.c.b16 %v4024, %v4023
        %v4054 = vpack.c.b16 %v4026, %v4025
        %v4055 = vpack.c.b16 %v4028, %v4027
        %v4056 = vpack.c.b16 %v4030, %v4029
        %v4057 = vpack.c.b16 %v4032, %v4031
        %v4058 = vpack.c.b16 %v4034, %v4033
        %v4059 = vpack.c.b16 %v4036, %v4035
        %v4060 = vpack.c.b16 %v4038, %v4037
        %v4061 = vpack.c.b16 %v4040, %v4039
        %v4062 = vpack.c.b16 %v4042, %v4041
        %v4063 = vpack.c.b16 %v4044, %v4043
        %v4064 = vpack.c.b16 %v4046, %v4045
        %v4065 = vpack.c.b16 %v4048, %v4047
        %v4066 = vpack.c.b16 %v4050, %v4049
        %v4068 = vsel %vm702, %v4051, 0
        %v4071 = vsel %vm702, %v4052, 0
        %v4074 = vsel %vm702, %v4053, 0
        %v4077 = vsel %vm702, %v4054, 0
        %v4080 = vsel %vm702, %v4055, 0
        %v4083 = vsel %vm702, %v4056, 0
        %v4086 = vsel %vm702, %v4057, 0
        %v4089 = vsel %vm702, %v4058, 0
        %v4092 = vsel %vm702, %v4059, 0
        %v4095 = vsel %vm702, %v4060, 0
        %v4098 = vsel %vm702, %v4061, 0
        %v4101 = vsel %vm702, %v4062, 0
        %v4104 = vsel %vm702, %v4063, 0
        %v4107 = vsel %vm702, %v4064, 0
        %v4110 = vsel %vm702, %v4065, 0
        %v4113 = vsel %vm702, %v4066, 0
        %v4116 = vsel %vm751, %v4018, 0
        %4118 = vmatprep.subr.bf16.mxu0 0
        %4119 = vmatpush1.bf16.msra.mxu0 %v4116
        %4120 = vmatprep.subr.bf16.mxu0 0
        %4121 = vmatpush1.bf16.msra.mxu0 0
        %4122 = vmatprep.subr.bf16.mxu0 0
        %4123 = vmatpush1.bf16.msra.mxu0 0
        %4124 = vmatprep.subr.bf16.mxu0 0
        %4125 = vmatpush1.bf16.msra.mxu0 0
        %4126 = vmatprep.subr.bf16.mxu0 0
        %4127 = vmatpush1.bf16.msra.mxu0 0
        %4128 = vmatprep.subr.bf16.mxu0 0
        %4129 = vmatpush1.bf16.msra.mxu0 0
        %4130 = vmatprep.subr.bf16.mxu0 0
        %4131 = vmatpush1.bf16.msra.mxu0 0
        %4132 = vmatprep.subr.bf16.mxu0 0
        %4133 = vmatpush1.bf16.msra.mxu0 0
        %4134 = vmatprep.subr.bf16.mxu0 0
        %4135 = vmatpush1.bf16.msra.mxu0 0
        %4136 = vmatprep.subr.bf16.mxu0 0
        %4137 = vmatpush1.bf16.msra.mxu0 0
        %4138 = vmatprep.subr.bf16.mxu0 0
        %4139 = vmatpush1.bf16.msra.mxu0 0
        %4140 = vmatprep.subr.bf16.mxu0 0
        %4141 = vmatpush1.bf16.msra.mxu0 0
        %4142 = vmatprep.subr.bf16.mxu0 0
        %4143 = vmatpush1.bf16.msra.mxu0 0
        %4144 = vmatprep.subr.bf16.mxu0 0
        %4145 = vmatpush1.bf16.msra.mxu0 0
        %4146 = vmatprep.subr.bf16.mxu0 0
        %4147 = vmatpush1.bf16.msra.mxu0 0
        %4148 = vmatprep.subr.bf16.mxu0 0
        %4149 = vmatpush1.bf16.msra.mxu0 0
        %4150 = vmatprep.mubr.bf16.mxu0 0
        %4151 = vmatmul.mubr.bf16.gmra.mrb[0].mxu0 %v4068
        %v4152 = vpop.f32.mrb[0].mxu0
        %v4153 = vadd.f32 0.0, %v4152
        %v4154 = vpop.f32.mrb[0].mxu0
        %v4155 = vpop.f32.mrb[0].mxu0
        %v4156 = vadd.f32 0.0, %v4155
        %v4157 = vpop.f32.mrb[0].mxu0
        %4158 = vmatprep.mubr.bf16.mxu0 0
        %4159 = vmatmul.mubr.bf16.gmra.mrb[0].mxu0 %v4071
        %v4160 = vpop.f32.mrb[0].mxu0
        %v4161 = vadd.f32 0.0, %v4160
        %v4162 = vpop.f32.mrb[0].mxu0
        %v4163 = vpop.f32.mrb[0].mxu0
        %v4164 = vadd.f32 0.0, %v4163
        %v4165 = vpop.f32.mrb[0].mxu0
        %4166 = vmatprep.mubr.bf16.mxu0 0
        %4167 = vmatmul.mubr.bf16.gmra.mrb[0].mxu0 %v4074
        %v4168 = vpop.f32.mrb[0].mxu0
        %v4169 = vadd.f32 0.0, %v4168
        %v4170 = vpop.f32.mrb[0].mxu0
        %v4171 = vpop.f32.mrb[0].mxu0
        %v4172 = vadd.f32 0.0, %v4171
        %v4173 = vpop.f32.mrb[0].mxu0
        %4174 = vmatprep.mubr.bf16.mxu0 0
        %4175 = vmatmul.mubr.bf16.gmra.mrb[0].mxu0 %v4077
        %v4176 = vpop.f32.mrb[0].mxu0
        %v4177 = vadd.f32 0.0, %v4176
        %v4178 = vpop.f32.mrb[0].mxu0
        %v4179 = vpop.f32.mrb[0].mxu0
        %v4180 = vadd.f32 0.0, %v4179
        %v4181 = vpop.f32.mrb[0].mxu0
        %4182 = vmatprep.mubr.bf16.mxu0 0
        %4183 = vmatmul.mubr.bf16.gmra.mrb[0].mxu0 %v4080
        %v4184 = vpop.f32.mrb[0].mxu0
        %v4185 = vadd.f32 0.0, %v4184
        %v4186 = vpop.f32.mrb[0].mxu0
        %v4187 = vpop.f32.mrb[0].mxu0
        %v4188 = vadd.f32 0.0, %v4187
        %v4189 = vpop.f32.mrb[0].mxu0
        %4190 = vmatprep.mubr.bf16.mxu0 0
        %4191 = vmatmul.mubr.bf16.gmra.mrb[0].mxu0 %v4083
        %v4192 = vpop.f32.mrb[0].mxu0
        %v4193 = vadd.f32 0.0, %v4192
        %v4194 = vpop.f32.mrb[0].mxu0
        %v4195 = vpop.f32.mrb[0].mxu0
        %v4196 = vadd.f32 0.0, %v4195
        %v4197 = vpop.f32.mrb[0].mxu0
        %4198 = vmatprep.mubr.bf16.mxu0 0
        %4199 = vmatmul.mubr.bf16.gmra.mrb[0].mxu0 %v4086
        %v4200 = vpop.f32.mrb[0].mxu0
        %v4201 = vadd.f32 0.0, %v4200
        %v4202 = vpop.f32.mrb[0].mxu0
        %v4203 = vpop.f32.mrb[0].mxu0
        %v4204 = vadd.f32 0.0, %v4203
        %v4205 = vpop.f32.mrb[0].mxu0
        %4206 = vmatprep.mubr.bf16.mxu0 0
        %4207 = vmatmul.mubr.bf16.gmra.mrb[0].mxu0 %v4089
        %v4208 = vpop.f32.mrb[0].mxu0
        %v4209 = vadd.f32 0.0, %v4208
        %v4210 = vpop.f32.mrb[0].mxu0
        %v4211 = vpop.f32.mrb[0].mxu0
        %v4212 = vadd.f32 0.0, %v4211
        %v4213 = vpop.f32.mrb[0].mxu0
        %4214 = vmatprep.mubr.bf16.mxu0 0
        %4215 = vmatmul.mubr.bf16.gmra.mrb[0].mxu0 %v4092
        %v4216 = vpop.f32.mrb[0].mxu0
        %v4217 = vadd.f32 0.0, %v4216
        %v4218 = vpop.f32.mrb[0].mxu0
        %v4219 = vpop.f32.mrb[0].mxu0
        %v4220 = vadd.f32 0.0, %v4219
        %v4221 = vpop.f32.mrb[0].mxu0
        %4222 = vmatprep.mubr.bf16.mxu0 0
        %4223 = vmatmul.mubr.bf16.gmra.mrb[0].mxu0 %v4095
        %v4224 = vpop.f32.mrb[0].mxu0
        %v4225 = vadd.f32 0.0, %v4224
        %v4226 = vpop.f32.mrb[0].mxu0
        %v4227 = vpop.f32.mrb[0].mxu0
        %v4228 = vadd.f32 0.0, %v4227
        %v4229 = vpop.f32.mrb[0].mxu0
        %4230 = vmatprep.mubr.bf16.mxu0 0
        %4231 = vmatmul.mubr.bf16.gmra.mrb[0].mxu0 %v4098
        %v4232 = vpop.f32.mrb[0].mxu0
        %v4233 = vadd.f32 0.0, %v4232
        %v4234 = vpop.f32.mrb[0].mxu0
        %v4235 = vpop.f32.mrb[0].mxu0
        %v4236 = vadd.f32 0.0, %v4235
        %v4237 = vpop.f32.mrb[0].mxu0
        %4238 = vmatprep.mubr.bf16.mxu0 0
        %4239 = vmatmul.mubr.bf16.gmra.mrb[0].mxu0 %v4101
        %v4240 = vpop.f32.mrb[0].mxu0
        %v4241 = vadd.f32 0.0, %v4240
        %v4242 = vpop.f32.mrb[0].mxu0
        %v4243 = vpop.f32.mrb[0].mxu0
        %v4244 = vadd.f32 0.0, %v4243
        %v4245 = vpop.f32.mrb[0].mxu0
        %4246 = vmatprep.mubr.bf16.mxu0 0
        %4247 = vmatmul.mubr.bf16.gmra.mrb[0].mxu0 %v4104
        %v4248 = vpop.f32.mrb[0].mxu0
        %v4249 = vadd.f32 0.0, %v4248
        %v4250 = vpop.f32.mrb[0].mxu0
        %v4251 = vpop.f32.mrb[0].mxu0
        %v4252 = vadd.f32 0.0, %v4251
        %v4253 = vpop.f32.mrb[0].mxu0
        %4254 = vmatprep.mubr.bf16.mxu0 0
        %4255 = vmatmul.mubr.bf16.gmra.mrb[0].mxu0 %v4107
        %v4256 = vpop.f32.mrb[0].mxu0
        %v4257 = vadd.f32 0.0, %v4256
        %v4258 = vpop.f32.mrb[0].mxu0
        %v4259 = vpop.f32.mrb[0].mxu0
        %v4260 = vadd.f32 0.0, %v4259
        %v4261 = vpop.f32.mrb[0].mxu0
        %4262 = vmatprep.mubr.bf16.mxu0 0
        %4263 = vmatmul.mubr.bf16.gmra.mrb[0].mxu0 %v4110
        %v4264 = vpop.f32.mrb[0].mxu0
        %v4265 = vadd.f32 0.0, %v4264
        %v4266 = vpop.f32.mrb[0].mxu0
        %v4267 = vpop.f32.mrb[0].mxu0
        %v4268 = vadd.f32 0.0, %v4267
        %v4269 = vpop.f32.mrb[0].mxu0
        %4270 = vmatprep.mubr.bf16.mxu0 0
        %4271 = vmatmul.mubr.bf16.gmra.mrb[0].mxu0 %v4113
        %v4272 = vpop.f32.mrb[0].mxu0
        %v4273 = vadd.f32 0.0, %v4272
        %v4274 = vpop.f32.mrb[0].mxu0
        %v4275 = vpop.f32.mrb[0].mxu0
        %v4276 = vadd.f32 0.0, %v4275
        %v4277 = vpop.f32.mrb[0].mxu0
        %4278 = vdwg.mxu0
        %v4279 = vadd.f32 %v3553, %v4153
        %v4280 = vadd.f32 %v3554, %v4156
        %v4281 = vadd.f32 %v3555, %v4161
        %v4282 = vadd.f32 %v3556, %v4164
        %v4283 = vadd.f32 %v3557, %v4169
        %v4284 = vadd.f32 %v3558, %v4172
        %v4285 = vadd.f32 %v3559, %v4177
        %v4286 = vadd.f32 %v3560, %v4180
        %v4287 = vadd.f32 %v3561, %v4185
        %v4288 = vadd.f32 %v3562, %v4188
        %v4289 = vadd.f32 %v3563, %v4193
        %v4290 = vadd.f32 %v3564, %v4196
        %v4291 = vadd.f32 %v3565, %v4201
        %v4292 = vadd.f32 %v3566, %v4204
        %v4293 = vadd.f32 %v3567, %v4209
        %v4294 = vadd.f32 %v3568, %v4212
        %v4295 = vadd.f32 %v3569, %v4217
        %v4296 = vadd.f32 %v3570, %v4220
        %v4297 = vadd.f32 %v3571, %v4225
        %v4298 = vadd.f32 %v3572, %v4228
        %v4299 = vadd.f32 %v3573, %v4233
        %v4300 = vadd.f32 %v3574, %v4236
        %v4301 = vadd.f32 %v3575, %v4241
        %v4302 = vadd.f32 %v3576, %v4244
        %v4303 = vadd.f32 %v3577, %v4249
        %v4304 = vadd.f32 %v3578, %v4252
        %v4305 = vadd.f32 %v3579, %v4257
        %v4306 = vadd.f32 %v3580, %v4260
        %v4307 = vadd.f32 %v3581, %v4265
        %v4308 = vadd.f32 %v3582, %v4268
        %v4309 = vadd.f32 %v3583, %v4273
        %v4310 = vadd.f32 %v3584, %v4276
        %v4311 = vld [vmem:[%s3226] sm:$0xe]
        %v4312 = vld [vmem:[%s3226 + $0xc] sm:$0xe]
        %v4313 = vld [vmem:[%s3226 + $0x18] sm:$0xe]
        %v4314 = vld [vmem:[%s3226 + $0x24] sm:$0xe]
        %v4315 = vld [vmem:[%s3226 + $0x30] sm:$0xe]
        %v4316 = vld [vmem:[%s3226 + $0x3c] sm:$0xe]
        %v4317 = vld [vmem:[%s3226 + $0x48] sm:$0xe]
        %v4318 = vld [vmem:[%s3226 + $0x54] sm:$0xe]
        %v4319 = vld [vmem:[%s3226 + $0x60] sm:$0xe]
        %v4320 = vld [vmem:[%s3226 + $0x6c] sm:$0xe]
        %v4321 = vld [vmem:[%s3226 + $0x78] sm:$0xe]
        %v4322 = vld [vmem:[%s3226 + $0x84] sm:$0xe]
        %v4323 = vld [vmem:[%s3226 + $0x90] sm:$0xe]
        %v4324 = vld [vmem:[%s3226 + $0x9c] sm:$0xe]
        %v4325 = vld [vmem:[%s3226 + $0xa8] sm:$0xe]
        %v4326 = vld [vmem:[%s3226 + $0xb4] sm:$0xe]
        %v4375 = vrot.slane %v4311, 5
        %v4376 = vrot.slane %v4375, 4
        %v4377 = vrot.slane %v3586, 5
        %v4378 = vsel %vm1258, %v4376, %v4377
        %v4379 = vrot.slane %v4377, 4
        %v4380 = vrot.slane %v3587, 5
        %v4381 = vsel %vm1258, %v4379, %v4380
        %v4382 = vrot.slane %v4312, 5
        %v4383 = vrot.slane %v4382, 4
        %v4384 = vrot.slane %v3589, 5
        %v4385 = vsel %vm1258, %v4383, %v4384
        %v4386 = vrot.slane %v4384, 4
        %v4387 = vrot.slane %v3590, 5
        %v4388 = vsel %vm1258, %v4386, %v4387
        %v4389 = vrot.slane %v4313, 5
        %v4390 = vrot.slane %v4389, 4
        %v4391 = vrot.slane %v3592, 5
        %v4392 = vsel %vm1258, %v4390, %v4391
        %v4393 = vrot.slane %v4391, 4
        %v4394 = vrot.slane %v3593, 5
        %v4395 = vsel %vm1258, %v4393, %v4394
        %v4396 = vrot.slane %v4314, 5
        %v4397 = vrot.slane %v4396, 4
        %v4398 = vrot.slane %v3595, 5
        %v4399 = vsel %vm1258, %v4397, %v4398
        %v4400 = vrot.slane %v4398, 4
        %v4401 = vrot.slane %v3596, 5
        %v4402 = vsel %vm1258, %v4400, %v4401
        %v4403 = vrot.slane %v4315, 5
        %v4404 = vrot.slane %v4403, 4
        %v4405 = vrot.slane %v3598, 5
        %v4406 = vsel %vm1258, %v4404, %v4405
        %v4407 = vrot.slane %v4405, 4
        %v4408 = vrot.slane %v3599, 5
        %v4409 = vsel %vm1258, %v4407, %v4408
        %v4410 = vrot.slane %v4316, 5
        %v4411 = vrot.slane %v4410, 4
        %v4412 = vrot.slane %v3601, 5
        %v4413 = vsel %vm1258, %v4411, %v4412
        %v4414 = vrot.slane %v4412, 4
        %v4415 = vrot.slane %v3602, 5
        %v4416 = vsel %vm1258, %v4414, %v4415
        %v4417 = vrot.slane %v4317, 5
        %v4418 = vrot.slane %v4417, 4
        %v4419 = vrot.slane %v3604, 5
        %v4420 = vsel %vm1258, %v4418, %v4419
        %v4421 = vrot.slane %v4419, 4
        %v4422 = vrot.slane %v3605, 5
        %v4423 = vsel %vm1258, %v4421, %v4422
        %v4424 = vrot.slane %v4318, 5
        %v4425 = vrot.slane %v4424, 4
        %v4426 = vrot.slane %v3607, 5
        %v4427 = vsel %vm1258, %v4425, %v4426
        %v4428 = vrot.slane %v4426, 4
        %v4429 = vrot.slane %v3608, 5
        %v4430 = vsel %vm1258, %v4428, %v4429
        %v4431 = vrot.slane %v4319, 5
        %v4432 = vrot.slane %v4431, 4
        %v4433 = vrot.slane %v3610, 5
        %v4434 = vsel %vm1258, %v4432, %v4433
        %v4435 = vrot.slane %v4433, 4
        %v4436 = vrot.slane %v3611, 5
        %v4437 = vsel %vm1258, %v4435, %v4436
        %v4438 = vrot.slane %v4320, 5
        %v4439 = vrot.slane %v4438, 4
        %v4440 = vrot.slane %v3613, 5
        %v4441 = vsel %vm1258, %v4439, %v4440
        %v4442 = vrot.slane %v4440, 4
        %v4443 = vrot.slane %v3614, 5
        %v4444 = vsel %vm1258, %v4442, %v4443
        %v4445 = vrot.slane %v4321, 5
        %v4446 = vrot.slane %v4445, 4
        %v4447 = vrot.slane %v3616, 5
        %v4448 = vsel %vm1258, %v4446, %v4447
        %v4449 = vrot.slane %v4447, 4
        %v4450 = vrot.slane %v3617, 5
        %v4451 = vsel %vm1258, %v4449, %v4450
        %v4452 = vrot.slane %v4322, 5
        %v4453 = vrot.slane %v4452, 4
        %v4454 = vrot.slane %v3619, 5
        %v4455 = vsel %vm1258, %v4453, %v4454
        %v4456 = vrot.slane %v4454, 4
        %v4457 = vrot.slane %v3620, 5
        %v4458 = vsel %vm1258, %v4456, %v4457
        %v4459 = vrot.slane %v4323, 5
        %v4460 = vrot.slane %v4459, 4
        %v4461 = vrot.slane %v3622, 5
        %v4462 = vsel %vm1258, %v4460, %v4461
        %v4463 = vrot.slane %v4461, 4
        %v4464 = vrot.slane %v3623, 5
        %v4465 = vsel %vm1258, %v4463, %v4464
        %v4466 = vrot.slane %v4324, 5
        %v4467 = vrot.slane %v4466, 4
        %v4468 = vrot.slane %v3625, 5
        %v4469 = vsel %vm1258, %v4467, %v4468
        %v4470 = vrot.slane %v4468, 4
        %v4471 = vrot.slane %v3626, 5
        %v4472 = vsel %vm1258, %v4470, %v4471
        %v4473 = vrot.slane %v4325, 5
        %v4474 = vrot.slane %v4473, 4
        %v4475 = vrot.slane %v3628, 5
        %v4476 = vsel %vm1258, %v4474, %v4475
        %v4477 = vrot.slane %v4475, 4
        %v4478 = vrot.slane %v3629, 5
        %v4479 = vsel %vm1258, %v4477, %v4478
        %v4480 = vrot.slane %v4326, 5
        %v4481 = vrot.slane %v4480, 4
        %v4482 = vrot.slane %v3631, 5
        %v4483 = vsel %vm1258, %v4481, %v4482
        %v4484 = vrot.slane %v4482, 4
        %v4485 = vrot.slane %v3632, 5
        %v4486 = vsel %vm1258, %v4484, %v4485
        %s4487 = scalar_lea.vmem %s1, 16
        %v4488 = vld [vmem:[%s4487] sm:$0x3]
        %v4489 = vunpack.c.l.b16 %v4378
        %v4490 = vunpack.c.l.b16 %v4381
        %v4491 = vunpack.c.l.b16 %v4385
        %v4492 = vunpack.c.l.b16 %v4388
        %v4493 = vunpack.c.l.b16 %v4392
        %v4494 = vunpack.c.l.b16 %v4395
        %v4495 = vunpack.c.l.b16 %v4399
        %v4496 = vunpack.c.l.b16 %v4402
        %v4497 = vunpack.c.l.b16 %v4406
        %v4498 = vunpack.c.l.b16 %v4409
        %v4499 = vunpack.c.l.b16 %v4413
        %v4500 = vunpack.c.l.b16 %v4416
        %v4501 = vunpack.c.l.b16 %v4420
        %v4502 = vunpack.c.l.b16 %v4423
        %v4503 = vunpack.c.l.b16 %v4427
        %v4504 = vunpack.c.l.b16 %v4430
        %v4505 = vunpack.c.l.b16 %v4434
        %v4506 = vunpack.c.l.b16 %v4437
        %v4507 = vunpack.c.l.b16 %v4441
        %v4508 = vunpack.c.l.b16 %v4444
        %v4509 = vunpack.c.l.b16 %v4448
        %v4510 = vunpack.c.l.b16 %v4451
        %v4511 = vunpack.c.l.b16 %v4455
        %v4512 = vunpack.c.l.b16 %v4458
        %v4513 = vunpack.c.l.b16 %v4462
        %v4514 = vunpack.c.l.b16 %v4465
        %v4515 = vunpack.c.l.b16 %v4469
        %v4516 = vunpack.c.l.b16 %v4472
        %v4517 = vunpack.c.l.b16 %v4476
        %v4518 = vunpack.c.l.b16 %v4479
        %v4519 = vunpack.c.l.b16 %v4483
        %v4520 = vunpack.c.l.b16 %v4486
        %v4521 = vpack.c.b16 %v4490, %v4489
        %v4522 = vpack.c.b16 %v4492, %v4491
        %v4523 = vpack.c.b16 %v4494, %v4493
        %v4524 = vpack.c.b16 %v4496, %v4495
        %v4525 = vpack.c.b16 %v4498, %v4497
        %v4526 = vpack.c.b16 %v4500, %v4499
        %v4527 = vpack.c.b16 %v4502, %v4501
        %v4528 = vpack.c.b16 %v4504, %v4503
        %v4529 = vpack.c.b16 %v4506, %v4505
        %v4530 = vpack.c.b16 %v4508, %v4507
        %v4531 = vpack.c.b16 %v4510, %v4509
        %v4532 = vpack.c.b16 %v4512, %v4511
        %v4533 = vpack.c.b16 %v4514, %v4513
        %v4534 = vpack.c.b16 %v4516, %v4515
        %v4535 = vpack.c.b16 %v4518, %v4517
        %v4536 = vpack.c.b16 %v4520, %v4519
        %v4538 = vsel %vm702, %v4521, 0
        %v4541 = vsel %vm702, %v4522, 0
        %v4544 = vsel %vm702, %v4523, 0
        %v4547 = vsel %vm702, %v4524, 0
        %v4550 = vsel %vm702, %v4525, 0
        %v4553 = vsel %vm702, %v4526, 0
        %v4556 = vsel %vm702, %v4527, 0
        %v4559 = vsel %vm702, %v4528, 0
        %v4562 = vsel %vm702, %v4529, 0
        %v4565 = vsel %vm702, %v4530, 0
        %v4568 = vsel %vm702, %v4531, 0
        %v4571 = vsel %vm702, %v4532, 0
        %v4574 = vsel %vm702, %v4533, 0
        %v4577 = vsel %vm702, %v4534, 0
        %v4580 = vsel %vm702, %v4535, 0
        %v4583 = vsel %vm702, %v4536, 0
        %v4586 = vsel %vm751, %v4488, 0
        %4588 = vmatprep.subr.bf16.mxu0 0
        %4589 = vmatpush1.bf16.msra.mxu0 %v4586
        %4590 = vmatprep.subr.bf16.mxu0 0
        %4591 = vmatpush1.bf16.msra.mxu0 0
        %4592 = vmatprep.subr.bf16.mxu0 0
        %4593 = vmatpush1.bf16.msra.mxu0 0
        %4594 = vmatprep.subr.bf16.mxu0 0
        %4595 = vmatpush1.bf16.msra.mxu0 0
        %4596 = vmatprep.subr.bf16.mxu0 0
        %4597 = vmatpush1.bf16.msra.mxu0 0
        %4598 = vmatprep.subr.bf16.mxu0 0
        %4599 = vmatpush1.bf16.msra.mxu0 0
        %4600 = vmatprep.subr.bf16.mxu0 0
        %4601 = vmatpush1.bf16.msra.mxu0 0
        %4602 = vmatprep.subr.bf16.mxu0 0
        %4603 = vmatpush1.bf16.msra.mxu0 0
        %4604 = vmatprep.subr.bf16.mxu0 0
        %4605 = vmatpush1.bf16.msra.mxu0 0
        %4606 = vmatprep.subr.bf16.mxu0 0
        %4607 = vmatpush1.bf16.msra.mxu0 0
        %4608 = vmatprep.subr.bf16.mxu0 0
        %4609 = vmatpush1.bf16.msra.mxu0 0
        %4610 = vmatprep.subr.bf16.mxu0 0
        %4611 = vmatpush1.bf16.msra.mxu0 0
        %4612 = vmatprep.subr.bf16.mxu0 0
        %4613 = vmatpush1.bf16.msra.mxu0 0
        %4614 = vmatprep.subr.bf16.mxu0 0
        %4615 = vmatpush1.bf16.msra.mxu0 0
        %4616 = vmatprep.subr.bf16.mxu0 0
        %4617 = vmatpush1.bf16.msra.mxu0 0
        %4618 = vmatprep.subr.bf16.mxu0 0
        %4619 = vmatpush1.bf16.msra.mxu0 0
        %4620 = vmatprep.mubr.bf16.mxu0 0
        %4621 = vmatmul.mubr.bf16.gmra.mrb[0].mxu0 %v4538
        %v4622 = vpop.f32.mrb[0].mxu0
        %v4623 = vadd.f32 0.0, %v4622
        %v4624 = vpop.f32.mrb[0].mxu0
        %v4625 = vpop.f32.mrb[0].mxu0
        %v4626 = vadd.f32 0.0, %v4625
        %v4627 = vpop.f32.mrb[0].mxu0
        %4628 = vmatprep.mubr.bf16.mxu0 0
        %4629 = vmatmul.mubr.bf16.gmra.mrb[0].mxu0 %v4541
        %v4630 = vpop.f32.mrb[0].mxu0
        %v4631 = vadd.f32 0.0, %v4630
        %v4632 = vpop.f32.mrb[0].mxu0
        %v4633 = vpop.f32.mrb[0].mxu0
        %v4634 = vadd.f32 0.0, %v4633
        %v4635 = vpop.f32.mrb[0].mxu0
        %4636 = vmatprep.mubr.bf16.mxu0 0
        %4637 = vmatmul.mubr.bf16.gmra.mrb[0].mxu0 %v4544
        %v4638 = vpop.f32.mrb[0].mxu0
        %v4639 = vadd.f32 0.0, %v4638
        %v4640 = vpop.f32.mrb[0].mxu0
        %v4641 = vpop.f32.mrb[0].mxu0
        %v4642 = vadd.f32 0.0, %v4641
        %v4643 = vpop.f32.mrb[0].mxu0
        %4644 = vmatprep.mubr.bf16.mxu0 0
        %4645 = vmatmul.mubr.bf16.gmra.mrb[0].mxu0 %v4547
        %v4646 = vpop.f32.mrb[0].mxu0
        %v4647 = vadd.f32 0.0, %v4646
        %v4648 = vpop.f32.mrb[0].mxu0
        %v4649 = vpop.f32.mrb[0].mxu0
        %v4650 = vadd.f32 0.0, %v4649
        %v4651 = vpop.f32.mrb[0].mxu0
        %4652 = vmatprep.mubr.bf16.mxu0 0
        %4653 = vmatmul.mubr.bf16.gmra.mrb[0].mxu0 %v4550
        %v4654 = vpop.f32.mrb[0].mxu0
        %v4655 = vadd.f32 0.0, %v4654
        %v4656 = vpop.f32.mrb[0].mxu0
        %v4657 = vpop.f32.mrb[0].mxu0
        %v4658 = vadd.f32 0.0, %v4657
        %v4659 = vpop.f32.mrb[0].mxu0
        %4660 = vmatprep.mubr.bf16.mxu0 0
        %4661 = vmatmul.mubr.bf16.gmra.mrb[0].mxu0 %v4553
        %v4662 = vpop.f32.mrb[0].mxu0
        %v4663 = vadd.f32 0.0, %v4662
        %v4664 = vpop.f32.mrb[0].mxu0
        %v4665 = vpop.f32.mrb[0].mxu0
        %v4666 = vadd.f32 0.0, %v4665
        %v4667 = vpop.f32.mrb[0].mxu0
        %4668 = vmatprep.mubr.bf16.mxu0 0
        %4669 = vmatmul.mubr.bf16.gmra.mrb[0].mxu0 %v4556
        %v4670 = vpop.f32.mrb[0].mxu0
        %v4671 = vadd.f32 0.0, %v4670
        %v4672 = vpop.f32.mrb[0].mxu0
        %v4673 = vpop.f32.mrb[0].mxu0
        %v4674 = vadd.f32 0.0, %v4673
        %v4675 = vpop.f32.mrb[0].mxu0
        %4676 = vmatprep.mubr.bf16.mxu0 0
        %4677 = vmatmul.mubr.bf16.gmra.mrb[0].mxu0 %v4559
        %v4678 = vpop.f32.mrb[0].mxu0
        %v4679 = vadd.f32 0.0, %v4678
        %v4680 = vpop.f32.mrb[0].mxu0
        %v4681 = vpop.f32.mrb[0].mxu0
        %v4682 = vadd.f32 0.0, %v4681
        %v4683 = vpop.f32.mrb[0].mxu0
        %4684 = vmatprep.mubr.bf16.mxu0 0
        %4685 = vmatmul.mubr.bf16.gmra.mrb[0].mxu0 %v4562
        %v4686 = vpop.f32.mrb[0].mxu0
        %v4687 = vadd.f32 0.0, %v4686
        %v4688 = vpop.f32.mrb[0].mxu0
        %v4689 = vpop.f32.mrb[0].mxu0
        %v4690 = vadd.f32 0.0, %v4689
        %v4691 = vpop.f32.mrb[0].mxu0
        %4692 = vmatprep.mubr.bf16.mxu0 0
        %4693 = vmatmul.mubr.bf16.gmra.mrb[0].mxu0 %v4565
        %v4694 = vpop.f32.mrb[0].mxu0
        %v4695 = vadd.f32 0.0, %v4694
        %v4696 = vpop.f32.mrb[0].mxu0
        %v4697 = vpop.f32.mrb[0].mxu0
        %v4698 = vadd.f32 0.0, %v4697
        %v4699 = vpop.f32.mrb[0].mxu0
        %4700 = vmatprep.mubr.bf16.mxu0 0
        %4701 = vmatmul.mubr.bf16.gmra.mrb[0].mxu0 %v4568
        %v4702 = vpop.f32.mrb[0].mxu0
        %v4703 = vadd.f32 0.0, %v4702
        %v4704 = vpop.f32.mrb[0].mxu0
        %v4705 = vpop.f32.mrb[0].mxu0
        %v4706 = vadd.f32 0.0, %v4705
        %v4707 = vpop.f32.mrb[0].mxu0
        %4708 = vmatprep.mubr.bf16.mxu0 0
        %4709 = vmatmul.mubr.bf16.gmra.mrb[0].mxu0 %v4571
        %v4710 = vpop.f32.mrb[0].mxu0
        %v4711 = vadd.f32 0.0, %v4710
        %v4712 = vpop.f32.mrb[0].mxu0
        %v4713 = vpop.f32.mrb[0].mxu0
        %v4714 = vadd.f32 0.0, %v4713
        %v4715 = vpop.f32.mrb[0].mxu0
        %4716 = vmatprep.mubr.bf16.mxu0 0
        %4717 = vmatmul.mubr.bf16.gmra.mrb[0].mxu0 %v4574
        %v4718 = vpop.f32.mrb[0].mxu0
        %v4719 = vadd.f32 0.0, %v4718
        %v4720 = vpop.f32.mrb[0].mxu0
        %v4721 = vpop.f32.mrb[0].mxu0
        %v4722 = vadd.f32 0.0, %v4721
        %v4723 = vpop.f32.mrb[0].mxu0
        %4724 = vmatprep.mubr.bf16.mxu0 0
        %4725 = vmatmul.mubr.bf16.gmra.mrb[0].mxu0 %v4577
        %v4726 = vpop.f32.mrb[0].mxu0
        %v4727 = vadd.f32 0.0, %v4726
        %v4728 = vpop.f32.mrb[0].mxu0
        %v4729 = vpop.f32.mrb[0].mxu0
        %v4730 = vadd.f32 0.0, %v4729
        %v4731 = vpop.f32.mrb[0].mxu0
        %4732 = vmatprep.mubr.bf16.mxu0 0
        %4733 = vmatmul.mubr.bf16.gmra.mrb[0].mxu0 %v4580
        %v4734 = vpop.f32.mrb[0].mxu0
        %v4735 = vadd.f32 0.0, %v4734
        %v4736 = vpop.f32.mrb[0].mxu0
        %v4737 = vpop.f32.mrb[0].mxu0
        %v4738 = vadd.f32 0.0, %v4737
        %v4739 = vpop.f32.mrb[0].mxu0
        %4740 = vmatprep.mubr.bf16.mxu0 0
        %4741 = vmatmul.mubr.bf16.gmra.mrb[0].mxu0 %v4583
        %v4742 = vpop.f32.mrb[0].mxu0
        %v4743 = vadd.f32 0.0, %v4742
        %v4744 = vpop.f32.mrb[0].mxu0
        %v4745 = vpop.f32.mrb[0].mxu0
        %v4746 = vadd.f32 0.0, %v4745
        %v4747 = vpop.f32.mrb[0].mxu0
        %4748 = vdwg.mxu0
        %v4749 = vadd.f32 %v4279, %v4623
        %v4750 = vadd.f32 %v4280, %v4626
        %v4751 = vadd.f32 %v4281, %v4631
        %v4752 = vadd.f32 %v4282, %v4634
        %v4753 = vadd.f32 %v4283, %v4639
        %v4754 = vadd.f32 %v4284, %v4642
        %v4755 = vadd.f32 %v4285, %v4647
        %v4756 = vadd.f32 %v4286, %v4650
        %v4757 = vadd.f32 %v4287, %v4655
        %v4758 = vadd.f32 %v4288, %v4658
        %v4759 = vadd.f32 %v4289, %v4663
        %v4760 = vadd.f32 %v4290, %v4666
        %v4761 = vadd.f32 %v4291, %v4671
        %v4762 = vadd.f32 %v4292, %v4674
        %v4763 = vadd.f32 %v4293, %v4679
        %v4764 = vadd.f32 %v4294, %v4682
        %v4765 = vadd.f32 %v4295, %v4687
        %v4766 = vadd.f32 %v4296, %v4690
        %v4767 = vadd.f32 %v4297, %v4695
        %v4768 = vadd.f32 %v4298, %v4698
        %v4769 = vadd.f32 %v4299, %v4703
        %v4770 = vadd.f32 %v4300, %v4706
        %v4771 = vadd.f32 %v4301, %v4711
        %v4772 = vadd.f32 %v4302, %v4714
        %v4773 = vadd.f32 %v4303, %v4719
        %v4774 = vadd.f32 %v4304, %v4722
        %v4775 = vadd.f32 %v4305, %v4727
        %v4776 = vadd.f32 %v4306, %v4730
        %v4777 = vadd.f32 %v4307, %v4735
        %v4778 = vadd.f32 %v4308, %v4738
        %v4779 = vadd.f32 %v4309, %v4743
        %v4780 = vadd.f32 %v4310, %v4746
        %v4781 = vld [vmem:[%s2] sm:$0x1]
        %v4783 = vlaneseq
        %v4784 = vshrl.u32 %v4783, 7
        %v4785 = vsub.s32 0, %v4784
        %v4786 = vrot.slane %v4781, %v4785
        %v4788 = vmul.f32 %v4749, %v4786
        %v4789 = vmul.f32 %v4750, %v4786
        %v4790 = vmul.f32 %v4751, %v4786
        %v4791 = vmul.f32 %v4752, %v4786
        %v4792 = vmul.f32 %v4753, %v4786
        %v4793 = vmul.f32 %v4754, %v4786
        %v4794 = vmul.f32 %v4755, %v4786
        %v4795 = vmul.f32 %v4756, %v4786
        %v4796 = vmul.f32 %v4757, %v4786
        %v4797 = vmul.f32 %v4758, %v4786
        %v4798 = vmul.f32 %v4759, %v4786
        %v4799 = vmul.f32 %v4760, %v4786
        %v4800 = vmul.f32 %v4761, %v4786
        %v4801 = vmul.f32 %v4762, %v4786
        %v4802 = vmul.f32 %v4763, %v4786
        %v4803 = vmul.f32 %v4764, %v4786
        %v4804 = vmul.f32 %v4765, %v4786
        %v4805 = vmul.f32 %v4766, %v4786
        %v4806 = vmul.f32 %v4767, %v4786
        %v4807 = vmul.f32 %v4768, %v4786
        %v4808 = vmul.f32 %v4769, %v4786
        %v4809 = vmul.f32 %v4770, %v4786
        %v4810 = vmul.f32 %v4771, %v4786
        %v4811 = vmul.f32 %v4772, %v4786
        %v4812 = vmul.f32 %v4773, %v4786
        %v4813 = vmul.f32 %v4774, %v4786
        %v4814 = vmul.f32 %v4775, %v4786
        %v4815 = vmul.f32 %v4776, %v4786
        %v4816 = vmul.f32 %v4777, %v4786
        %v4817 = vmul.f32 %v4778, %v4786
        %v4818 = vmul.f32 %v4779, %v4786
        %v4819 = vmul.f32 %v4780, %v4786
        %v4820 = vld [vmem:[%s3] sm:$0x1]
        %v4822 = vlaneseq
        %v4823 = vshrl.u32 %v4822, 7
        %v4824 = vsub.s32 0, %v4823
        %v4825 = vrot.slane %v4820, %v4824
        %v4827 = vadd.f32 %v4788, %v4825
        %v4828 = vadd.f32 %v4789, %v4825
        %v4829 = vadd.f32 %v4790, %v4825
        %v4830 = vadd.f32 %v4791, %v4825
        %v4831 = vadd.f32 %v4792, %v4825
        %v4832 = vadd.f32 %v4793, %v4825
        %v4833 = vadd.f32 %v4794, %v4825
        %v4834 = vadd.f32 %v4795, %v4825
        %v4835 = vadd.f32 %v4796, %v4825
        %v4836 = vadd.f32 %v4797, %v4825
        %v4837 = vadd.f32 %v4798, %v4825
        %v4838 = vadd.f32 %v4799, %v4825
        %v4839 = vadd.f32 %v4800, %v4825
        %v4840 = vadd.f32 %v4801, %v4825
        %v4841 = vadd.f32 %v4802, %v4825
        %v4842 = vadd.f32 %v4803, %v4825
        %v4843 = vadd.f32 %v4804, %v4825
        %v4844 = vadd.f32 %v4805, %v4825
        %v4845 = vadd.f32 %v4806, %v4825
        %v4846 = vadd.f32 %v4807, %v4825
        %v4847 = vadd.f32 %v4808, %v4825
        %v4848 = vadd.f32 %v4809, %v4825
        %v4849 = vadd.f32 %v4810, %v4825
        %v4850 = vadd.f32 %v4811, %v4825
        %v4851 = vadd.f32 %v4812, %v4825
        %v4852 = vadd.f32 %v4813, %v4825
        %v4853 = vadd.f32 %v4814, %v4825
        %v4854 = vadd.f32 %v4815, %v4825
        %v4855 = vadd.f32 %v4816, %v4825
        %v4856 = vadd.f32 %v4817, %v4825
        %v4857 = vadd.f32 %v4818, %v4825
        %v4858 = vadd.f32 %v4819, %v4825
        %v4859 = vtanh.pop %v4827
        %v4860 = vtanh.pop %v4828
        %v4861 = vtanh.pop %v4829
        %v4862 = vtanh.pop %v4830
        %v4863 = vtanh.pop %v4831
        %v4864 = vtanh.pop %v4832
        %v4865 = vtanh.pop %v4833
        %v4866 = vtanh.pop %v4834
        %v4867 = vtanh.pop %v4835
        %v4868 = vtanh.pop %v4836
        %v4869 = vtanh.pop %v4837
        %v4870 = vtanh.pop %v4838
        %v4871 = vtanh.pop %v4839
        %v4872 = vtanh.pop %v4840
        %v4873 = vtanh.pop %v4841
        %v4874 = vtanh.pop %v4842
        %v4875 = vtanh.pop %v4843
        %v4876 = vtanh.pop %v4844
        %v4877 = vtanh.pop %v4845
        %v4878 = vtanh.pop %v4846
        %v4879 = vtanh.pop %v4847
        %v4880 = vtanh.pop %v4848
        %v4881 = vtanh.pop %v4849
        %v4882 = vtanh.pop %v4850
        %v4883 = vtanh.pop %v4851
        %v4884 = vtanh.pop %v4852
        %v4885 = vtanh.pop %v4853
        %v4886 = vtanh.pop %v4854
        %v4887 = vtanh.pop %v4855
        %v4888 = vtanh.pop %v4856
        %v4889 = vtanh.pop %v4857
        %v4890 = vtanh.pop %v4858
        %4891 = vxpose.xlu0.b32.start [1/16] %v4859, 128
        %4892 = vxpose.xlu0.b32.cont [2/16] %v4860, 128
        %4893 = vxpose.xlu0.b32.cont [3/16] %v4861, 128
        %4894 = vxpose.xlu0.b32.cont [4/16] %v4862, 128
        %4895 = vxpose.xlu0.b32.cont [5/16] %v4863, 128
        %4896 = vxpose.xlu0.b32.cont [6/16] %v4864, 128
        %4897 = vxpose.xlu0.b32.cont [7/16] %v4865, 128
        %4898 = vxpose.xlu0.b32.cont [8/16] %v4866, 128
        %4899 = vxpose.xlu0.b32.cont [9/16] %v4867, 128
        %4900 = vxpose.xlu0.b32.cont [10/16] %v4868, 128
        %4901 = vxpose.xlu0.b32.cont [11/16] %v4869, 128
        %4902 = vxpose.xlu0.b32.cont [12/16] %v4870, 128
        %4903 = vxpose.xlu0.b32.cont [13/16] %v4871, 128
        %4904 = vxpose.xlu0.b32.cont [14/16] %v4872, 128
        %4905 = vxpose.xlu0.b32.cont [15/16] %v4873, 128
        %4906 = vxpose.xlu0.b32.end [16/16] %v4874, 128
        %v4907 = vpop.trf.xlu0
        %v4908 = vpop.trf.xlu0
        %v4909 = vpop.trf.xlu0
        %v4910 = vpop.trf.xlu0
        %v4911 = vpop.trf.xlu0
        %v4912 = vpop.trf.xlu0
        %v4913 = vpop.trf.xlu0
        %v4914 = vpop.trf.xlu0
        %v4915 = vpop.trf.xlu0
        %v4916 = vpop.trf.xlu0
        %v4917 = vpop.trf.xlu0
        %v4918 = vpop.trf.xlu0
        %v4919 = vpop.trf.xlu0
        %v4920 = vpop.trf.xlu0
        %v4921 = vpop.trf.xlu0
        %v4922 = vpop.trf.xlu0
        %4923 = vxpose.xlu0.b32.start [1/16] %v4875, 128
        %4924 = vxpose.xlu0.b32.cont [2/16] %v4876, 128
        %4925 = vxpose.xlu0.b32.cont [3/16] %v4877, 128
        %4926 = vxpose.xlu0.b32.cont [4/16] %v4878, 128
        %4927 = vxpose.xlu0.b32.cont [5/16] %v4879, 128
        %4928 = vxpose.xlu0.b32.cont [6/16] %v4880, 128
        %4929 = vxpose.xlu0.b32.cont [7/16] %v4881, 128
        %4930 = vxpose.xlu0.b32.cont [8/16] %v4882, 128
        %4931 = vxpose.xlu0.b32.cont [9/16] %v4883, 128
        %4932 = vxpose.xlu0.b32.cont [10/16] %v4884, 128
        %4933 = vxpose.xlu0.b32.cont [11/16] %v4885, 128
        %4934 = vxpose.xlu0.b32.cont [12/16] %v4886, 128
        %4935 = vxpose.xlu0.b32.cont [13/16] %v4887, 128
        %4936 = vxpose.xlu0.b32.cont [14/16] %v4888, 128
        %4937 = vxpose.xlu0.b32.cont [15/16] %v4889, 128
        %4938 = vxpose.xlu0.b32.end [16/16] %v4890, 128
        %v4939 = vpop.trf.xlu0
        %v4940 = vpop.trf.xlu0
        %v4941 = vpop.trf.xlu0
        %v4942 = vpop.trf.xlu0
        %v4943 = vpop.trf.xlu0
        %v4944 = vpop.trf.xlu0
        %v4945 = vpop.trf.xlu0
        %v4946 = vpop.trf.xlu0
        %v4947 = vpop.trf.xlu0
        %v4948 = vpop.trf.xlu0
        %v4949 = vpop.trf.xlu0
        %v4950 = vpop.trf.xlu0
        %v4951 = vpop.trf.xlu0
        %v4952 = vpop.trf.xlu0
        %v4953 = vpop.trf.xlu0
        %v4954 = vpop.trf.xlu0
        %v4956 = vcombine.high %v4907, %v4907
        %v4958 = vunpack.c.l.s4 1966171168
        %v4959 = vunpack.c.0.s8 %v4958
        %v4960 = vlaneseq
        %v4961 = vshrl.u32 %v4960, 7
        %v4962 = vsub.s32 %v4959, %v4961
        %v4963 = vrot.slane %v4907, %v4962
        %v4965 = vunpack.c.l.s4 1966171168
        %v4966 = vunpack.c.0.s8 %v4965
        %v4967 = vlaneseq
        %v4968 = vshrl.u32 %v4967, 7
        %v4969 = vsub.s32 %v4966, %v4968
        %v4970 = vrot.slane %v4956, %v4969
        %v4971 = vcombine.high %v4963, %v4963
        %v4972 = vcombine.high %v4970, %v4970
        %v4974 = vunpack.c.l.s4 1966171168
        %v4975 = vunpack.c.0.s8 %v4974
        %v4976 = vlaneseq
        %v4977 = vshrl.u32 %v4976, 7
        %v4978 = vsub.s32 %v4975, %v4977
        %v4979 = vrot.slane %v4963, %v4978
        %v4981 = vunpack.c.l.s4 1966171168
        %v4982 = vunpack.c.0.s8 %v4981
        %v4983 = vlaneseq
        %v4984 = vshrl.u32 %v4983, 7
        %v4985 = vsub.s32 %v4982, %v4984
        %v4986 = vrot.slane %v4970, %v4985
        %v4988 = vunpack.c.l.s4 1966171168
        %v4989 = vunpack.c.0.s8 %v4988
        %v4990 = vlaneseq
        %v4991 = vshrl.u32 %v4990, 7
        %v4992 = vsub.s32 %v4989, %v4991
        %v4993 = vrot.slane %v4971, %v4992
        %v4995 = vunpack.c.l.s4 1966171168
        %v4996 = vunpack.c.0.s8 %v4995
        %v4997 = vlaneseq
        %v4998 = vshrl.u32 %v4997, 7
        %v4999 = vsub.s32 %v4996, %v4998
        %v5000 = vrot.slane %v4972, %v4999
        %v5001 = vcombine.high %v4979, %v4979
        %v5002 = vcombine.high %v4986, %v4986
        %v5003 = vcombine.high %v4993, %v4993
        %v5004 = vcombine.high %v5000, %v5000
        %vm5013 = vcmask 122880
        %5014 = vst.msk [vmem:[%s204] sm:$0x1] %vm5013, %v4979
        %5015 = vst.msk [vmem:[%s204 + $0x10] sm:$0x1] %vm5013, %v4993
        %5016 = vst.msk [vmem:[%s204 + $0x20] sm:$0x1] %vm5013, %v5001
        %5017 = vst.msk [vmem:[%s204 + $0x30] sm:$0x1] %vm5013, %v5003
        %5018 = vst.msk [vmem:[%s204 + $0x40] sm:$0x1] %vm5013, %v4986
        %5019 = vst.msk [vmem:[%s204 + $0x50] sm:$0x1] %vm5013, %v5000
        %5020 = vst.msk [vmem:[%s204 + $0x60] sm:$0x1] %vm5013, %v5002
        %5021 = vst.msk [vmem:[%s204 + $0x70] sm:$0x1] %vm5013, %v5004
        %v5022 = vlaneseq
        %v5023 = vshrl.u32 %v5022, 7
        %v5024 = vsub.s32 0, %v5023
        %v5025 = vrot.slane %v4979, %v5024
        %v5026 = vlaneseq
        %v5027 = vshrl.u32 %v5026, 7
        %v5028 = vsub.s32 0, %v5027
        %v5029 = vrot.slane %v4993, %v5028
        %v5030 = vlaneseq
        %v5031 = vshrl.u32 %v5030, 7
        %v5032 = vsub.s32 0, %v5031
        %v5033 = vrot.slane %v5001, %v5032
        %v5034 = vlaneseq
        %v5035 = vshrl.u32 %v5034, 7
        %v5036 = vsub.s32 0, %v5035
        %v5037 = vrot.slane %v5003, %v5036
        %v5038 = vlaneseq
        %v5039 = vshrl.u32 %v5038, 7
        %v5040 = vsub.s32 0, %v5039
        %v5041 = vrot.slane %v4986, %v5040
        %v5042 = vlaneseq
        %v5043 = vshrl.u32 %v5042, 7
        %v5044 = vsub.s32 0, %v5043
        %v5045 = vrot.slane %v5000, %v5044
        %v5046 = vlaneseq
        %v5047 = vshrl.u32 %v5046, 7
        %v5048 = vsub.s32 0, %v5047
        %v5049 = vrot.slane %v5002, %v5048
        %v5050 = vlaneseq
        %v5051 = vshrl.u32 %v5050, 7
        %v5052 = vsub.s32 0, %v5051
        %v5053 = vrot.slane %v5004, %v5052
        %5054 = vrot.lane.b32.xlu0 %v5025, 112
        %v5055 = vpop.permute.xlu0 %5054
        %5056 = vrot.lane.b32.xlu0 %v5029, 112
        %v5057 = vpop.permute.xlu0 %5056
        %5058 = vrot.lane.b32.xlu0 %v5033, 112
        %v5059 = vpop.permute.xlu0 %5058
        %5060 = vrot.lane.b32.xlu0 %v5037, 112
        %v5061 = vpop.permute.xlu0 %5060
        %5062 = vrot.lane.b32.xlu0 %v5041, 112
        %v5063 = vpop.permute.xlu0 %5062
        %5064 = vrot.lane.b32.xlu0 %v5045, 112
        %v5065 = vpop.permute.xlu0 %5064
        %5066 = vrot.lane.b32.xlu0 %v5049, 112
        %v5067 = vpop.permute.xlu0 %5066
        %5068 = vrot.lane.b32.xlu0 %v5053, 112
        %v5069 = vpop.permute.xlu0 %5068
        %5078 = vst.msk [vmem:[%s204 + $0x1] sm:$0x1] %vm5013, %v5055
        %5079 = vst.msk [vmem:[%s204 + $0x11] sm:$0x1] %vm5013, %v5057
        %5080 = vst.msk [vmem:[%s204 + $0x21] sm:$0x1] %vm5013, %v5059
        %5081 = vst.msk [vmem:[%s204 + $0x31] sm:$0x1] %vm5013, %v5061
        %5082 = vst.msk [vmem:[%s204 + $0x41] sm:$0x1] %vm5013, %v5063
        %5083 = vst.msk [vmem:[%s204 + $0x51] sm:$0x1] %vm5013, %v5065
        %5084 = vst.msk [vmem:[%s204 + $0x61] sm:$0x1] %vm5013, %v5067
        %5085 = vst.msk [vmem:[%s204 + $0x71] sm:$0x1] %vm5013, %v5069
        %5086 = vrot.lane.b32.xlu0 %v5025, 96
        %v5087 = vpop.permute.xlu0 %5086
        %5088 = vrot.lane.b32.xlu0 %v5029, 96
        %v5089 = vpop.permute.xlu0 %5088
        %5090 = vrot.lane.b32.xlu0 %v5033, 96
        %v5091 = vpop.permute.xlu0 %5090
        %5092 = vrot.lane.b32.xlu0 %v5037, 96
        %v5093 = vpop.permute.xlu0 %5092
        %5094 = vrot.lane.b32.xlu0 %v5041, 96
        %v5095 = vpop.permute.xlu0 %5094
        %5096 = vrot.lane.b32.xlu0 %v5045, 96
        %v5097 = vpop.permute.xlu0 %5096
        %5098 = vrot.lane.b32.xlu0 %v5049, 96
        %v5099 = vpop.permute.xlu0 %5098
        %5100 = vrot.lane.b32.xlu0 %v5053, 96
        %v5101 = vpop.permute.xlu0 %5100
        %5110 = vst.msk [vmem:[%s204 + $0x2] sm:$0x1] %vm5013, %v5087
        %5111 = vst.msk [vmem:[%s204 + $0x12] sm:$0x1] %vm5013, %v5089
        %5112 = vst.msk [vmem:[%s204 + $0x22] sm:$0x1] %vm5013, %v5091
        %5113 = vst.msk [vmem:[%s204 + $0x32] sm:$0x1] %vm5013, %v5093
        %5114 = vst.msk [vmem:[%s204 + $0x42] sm:$0x1] %vm5013, %v5095
        %5115 = vst.msk [vmem:[%s204 + $0x52] sm:$0x1] %vm5013, %v5097
        %5116 = vst.msk [vmem:[%s204 + $0x62] sm:$0x1] %vm5013, %v5099
        %5117 = vst.msk [vmem:[%s204 + $0x72] sm:$0x1] %vm5013, %v5101
        %5118 = vrot.lane.b32.xlu0 %v5025, 80
        %v5119 = vpop.permute.xlu0 %5118
        %5120 = vrot.lane.b32.xlu0 %v5029, 80
        %v5121 = vpop.permute.xlu0 %5120
        %5122 = vrot.lane.b32.xlu0 %v5033, 80
        %v5123 = vpop.permute.xlu0 %5122
        %5124 = vrot.lane.b32.xlu0 %v5037, 80
        %v5125 = vpop.permute.xlu0 %5124
        %5126 = vrot.lane.b32.xlu0 %v5041, 80
        %v5127 = vpop.permute.xlu0 %5126
        %5128 = vrot.lane.b32.xlu0 %v5045, 80
        %v5129 = vpop.permute.xlu0 %5128
        %5130 = vrot.lane.b32.xlu0 %v5049, 80
        %v5131 = vpop.permute.xlu0 %5130
        %5132 = vrot.lane.b32.xlu0 %v5053, 80
        %v5133 = vpop.permute.xlu0 %5132
        %5142 = vst.msk [vmem:[%s204 + $0x3] sm:$0x1] %vm5013, %v5119
        %5143 = vst.msk [vmem:[%s204 + $0x13] sm:$0x1] %vm5013, %v5121
        %5144 = vst.msk [vmem:[%s204 + $0x23] sm:$0x1] %vm5013, %v5123
        %5145 = vst.msk [vmem:[%s204 + $0x33] sm:$0x1] %vm5013, %v5125
        %5146 = vst.msk [vmem:[%s204 + $0x43] sm:$0x1] %vm5013, %v5127
        %5147 = vst.msk [vmem:[%s204 + $0x53] sm:$0x1] %vm5013, %v5129
        %5148 = vst.msk [vmem:[%s204 + $0x63] sm:$0x1] %vm5013, %v5131
        %5149 = vst.msk [vmem:[%s204 + $0x73] sm:$0x1] %vm5013, %v5133
        %5150 = vrot.lane.b32.xlu0 %v5025, 64
        %v5151 = vpop.permute.xlu0 %5150
        %5152 = vrot.lane.b32.xlu0 %v5029, 64
        %v5153 = vpop.permute.xlu0 %5152
        %5154 = vrot.lane.b32.xlu0 %v5033, 64
        %v5155 = vpop.permute.xlu0 %5154
        %5156 = vrot.lane.b32.xlu0 %v5037, 64
        %v5157 = vpop.permute.xlu0 %5156
        %5158 = vrot.lane.b32.xlu0 %v5041, 64
        %v5159 = vpop.permute.xlu0 %5158
        %5160 = vrot.lane.b32.xlu0 %v5045, 64
        %v5161 = vpop.permute.xlu0 %5160
        %5162 = vrot.lane.b32.xlu0 %v5049, 64
        %v5163 = vpop.permute.xlu0 %5162
        %5164 = vrot.lane.b32.xlu0 %v5053, 64
        %v5165 = vpop.permute.xlu0 %5164
        %5174 = vst.msk [vmem:[%s204 + $0x4] sm:$0x1] %vm5013, %v5151
        %5175 = vst.msk [vmem:[%s204 + $0x14] sm:$0x1] %vm5013, %v5153
        %5176 = vst.msk [vmem:[%s204 + $0x24] sm:$0x1] %vm5013, %v5155
        %5177 = vst.msk [vmem:[%s204 + $0x34] sm:$0x1] %vm5013, %v5157
        %5178 = vst.msk [vmem:[%s204 + $0x44] sm:$0x1] %vm5013, %v5159
        %5179 = vst.msk [vmem:[%s204 + $0x54] sm:$0x1] %vm5013, %v5161
        %5180 = vst.msk [vmem:[%s204 + $0x64] sm:$0x1] %vm5013, %v5163
        %5181 = vst.msk [vmem:[%s204 + $0x74] sm:$0x1] %vm5013, %v5165
        %5182 = vrot.lane.b32.xlu0 %v5025, 48
        %v5183 = vpop.permute.xlu0 %5182
        %5184 = vrot.lane.b32.xlu0 %v5029, 48
        %v5185 = vpop.permute.xlu0 %5184
        %5186 = vrot.lane.b32.xlu0 %v5033, 48
        %v5187 = vpop.permute.xlu0 %5186
        %5188 = vrot.lane.b32.xlu0 %v5037, 48
        %v5189 = vpop.permute.xlu0 %5188
        %5190 = vrot.lane.b32.xlu0 %v5041, 48
        %v5191 = vpop.permute.xlu0 %5190
        %5192 = vrot.lane.b32.xlu0 %v5045, 48
        %v5193 = vpop.permute.xlu0 %5192
        %5194 = vrot.lane.b32.xlu0 %v5049, 48
        %v5195 = vpop.permute.xlu0 %5194
        %5196 = vrot.lane.b32.xlu0 %v5053, 48
        %v5197 = vpop.permute.xlu0 %5196
        %5206 = vst.msk [vmem:[%s204 + $0x5] sm:$0x1] %vm5013, %v5183
        %5207 = vst.msk [vmem:[%s204 + $0x15] sm:$0x1] %vm5013, %v5185
        %5208 = vst.msk [vmem:[%s204 + $0x25] sm:$0x1] %vm5013, %v5187
        %5209 = vst.msk [vmem:[%s204 + $0x35] sm:$0x1] %vm5013, %v5189
        %5210 = vst.msk [vmem:[%s204 + $0x45] sm:$0x1] %vm5013, %v5191
        %5211 = vst.msk [vmem:[%s204 + $0x55] sm:$0x1] %vm5013, %v5193
        %5212 = vst.msk [vmem:[%s204 + $0x65] sm:$0x1] %vm5013, %v5195
        %5213 = vst.msk [vmem:[%s204 + $0x75] sm:$0x1] %vm5013, %v5197
        %5214 = vrot.lane.b32.xlu0 %v5025, 32
        %v5215 = vpop.permute.xlu0 %5214
        %5216 = vrot.lane.b32.xlu0 %v5029, 32
        %v5217 = vpop.permute.xlu0 %5216
        %5218 = vrot.lane.b32.xlu0 %v5033, 32
        %v5219 = vpop.permute.xlu0 %5218
        %5220 = vrot.lane.b32.xlu0 %v5037, 32
        %v5221 = vpop.permute.xlu0 %5220
        %5222 = vrot.lane.b32.xlu0 %v5041, 32
        %v5223 = vpop.permute.xlu0 %5222
        %5224 = vrot.lane.b32.xlu0 %v5045, 32
        %v5225 = vpop.permute.xlu0 %5224
        %5226 = vrot.lane.b32.xlu0 %v5049, 32
        %v5227 = vpop.permute.xlu0 %5226
        %5228 = vrot.lane.b32.xlu0 %v5053, 32
        %v5229 = vpop.permute.xlu0 %5228
        %5238 = vst.msk [vmem:[%s204 + $0x6] sm:$0x1] %vm5013, %v5215
        %5239 = vst.msk [vmem:[%s204 + $0x16] sm:$0x1] %vm5013, %v5217
        %5240 = vst.msk [vmem:[%s204 + $0x26] sm:$0x1] %vm5013, %v5219
        %5241 = vst.msk [vmem:[%s204 + $0x36] sm:$0x1] %vm5013, %v5221
        %5242 = vst.msk [vmem:[%s204 + $0x46] sm:$0x1] %vm5013, %v5223
        %5243 = vst.msk [vmem:[%s204 + $0x56] sm:$0x1] %vm5013, %v5225
        %5244 = vst.msk [vmem:[%s204 + $0x66] sm:$0x1] %vm5013, %v5227
        %5245 = vst.msk [vmem:[%s204 + $0x76] sm:$0x1] %vm5013, %v5229
        %5246 = vrot.lane.b32.xlu0 %v5025, 16
        %v5247 = vpop.permute.xlu0 %5246
        %5248 = vrot.lane.b32.xlu0 %v5029, 16
        %v5249 = vpop.permute.xlu0 %5248
        %5250 = vrot.lane.b32.xlu0 %v5033, 16
        %v5251 = vpop.permute.xlu0 %5250
        %5252 = vrot.lane.b32.xlu0 %v5037, 16
        %v5253 = vpop.permute.xlu0 %5252
        %5254 = vrot.lane.b32.xlu0 %v5041, 16
        %v5255 = vpop.permute.xlu0 %5254
        %5256 = vrot.lane.b32.xlu0 %v5045, 16
        %v5257 = vpop.permute.xlu0 %5256
        %5258 = vrot.lane.b32.xlu0 %v5049, 16
        %v5259 = vpop.permute.xlu0 %5258
        %5260 = vrot.lane.b32.xlu0 %v5053, 16
        %v5261 = vpop.permute.xlu0 %5260
        %5270 = vst.msk [vmem:[%s204 + $0x7] sm:$0x1] %vm5013, %v5247
        %5271 = vst.msk [vmem:[%s204 + $0x17] sm:$0x1] %vm5013, %v5249
        %5272 = vst.msk [vmem:[%s204 + $0x27] sm:$0x1] %vm5013, %v5251
        %5273 = vst.msk [vmem:[%s204 + $0x37] sm:$0x1] %vm5013, %v5253
        %5274 = vst.msk [vmem:[%s204 + $0x47] sm:$0x1] %vm5013, %v5255
        %5275 = vst.msk [vmem:[%s204 + $0x57] sm:$0x1] %vm5013, %v5257
        %5276 = vst.msk [vmem:[%s204 + $0x67] sm:$0x1] %vm5013, %v5259
        %5277 = vst.msk [vmem:[%s204 + $0x77] sm:$0x1] %vm5013, %v5261
        %v5279 = vcombine.high %v4939, %v4939
        %v5281 = vunpack.c.l.s4 1966171168
        %v5282 = vunpack.c.0.s8 %v5281
        %v5283 = vlaneseq
        %v5284 = vshrl.u32 %v5283, 7
        %v5285 = vsub.s32 %v5282, %v5284
        %v5286 = vrot.slane %v4939, %v5285
        %v5288 = vunpack.c.l.s4 1966171168
        %v5289 = vunpack.c.0.s8 %v5288
        %v5290 = vlaneseq
        %v5291 = vshrl.u32 %v5290, 7
        %v5292 = vsub.s32 %v5289, %v5291
        %v5293 = vrot.slane %v5279, %v5292
        %v5294 = vcombine.high %v5286, %v5286
        %v5295 = vcombine.high %v5293, %v5293
        %v5297 = vunpack.c.l.s4 1966171168
        %v5298 = vunpack.c.0.s8 %v5297
        %v5299 = vlaneseq
        %v5300 = vshrl.u32 %v5299, 7
        %v5301 = vsub.s32 %v5298, %v5300
        %v5302 = vrot.slane %v5286, %v5301
        %v5304 = vunpack.c.l.s4 1966171168
        %v5305 = vunpack.c.0.s8 %v5304
        %v5306 = vlaneseq
        %v5307 = vshrl.u32 %v5306, 7
        %v5308 = vsub.s32 %v5305, %v5307
        %v5309 = vrot.slane %v5293, %v5308
        %v5311 = vunpack.c.l.s4 1966171168
        %v5312 = vunpack.c.0.s8 %v5311
        %v5313 = vlaneseq
        %v5314 = vshrl.u32 %v5313, 7
        %v5315 = vsub.s32 %v5312, %v5314
        %v5316 = vrot.slane %v5294, %v5315
        %v5318 = vunpack.c.l.s4 1966171168
        %v5319 = vunpack.c.0.s8 %v5318
        %v5320 = vlaneseq
        %v5321 = vshrl.u32 %v5320, 7
        %v5322 = vsub.s32 %v5319, %v5321
        %v5323 = vrot.slane %v5295, %v5322
        %v5324 = vcombine.high %v5302, %v5302
        %v5325 = vcombine.high %v5309, %v5309
        %v5326 = vcombine.high %v5316, %v5316
        %v5327 = vcombine.high %v5323, %v5323
        %5336 = vst.msk [vmem:[%s204 + $0x8] sm:$0x1] %vm5013, %v5302
        %5337 = vst.msk [vmem:[%s204 + $0x18] sm:$0x1] %vm5013, %v5316
        %5338 = vst.msk [vmem:[%s204 + $0x28] sm:$0x1] %vm5013, %v5324
        %5339 = vst.msk [vmem:[%s204 + $0x38] sm:$0x1] %vm5013, %v5326
        %5340 = vst.msk [vmem:[%s204 + $0x48] sm:$0x1] %vm5013, %v5309
        %5341 = vst.msk [vmem:[%s204 + $0x58] sm:$0x1] %vm5013, %v5323
        %5342 = vst.msk [vmem:[%s204 + $0x68] sm:$0x1] %vm5013, %v5325
        %5343 = vst.msk [vmem:[%s204 + $0x78] sm:$0x1] %vm5013, %v5327
        %v5344 = vlaneseq
        %v5345 = vshrl.u32 %v5344, 7
        %v5346 = vsub.s32 0, %v5345
        %v5347 = vrot.slane %v5302, %v5346
        %v5348 = vlaneseq
        %v5349 = vshrl.u32 %v5348, 7
        %v5350 = vsub.s32 0, %v5349
        %v5351 = vrot.slane %v5316, %v5350
        %v5352 = vlaneseq
        %v5353 = vshrl.u32 %v5352, 7
        %v5354 = vsub.s32 0, %v5353
        %v5355 = vrot.slane %v5324, %v5354
        %v5356 = vlaneseq
        %v5357 = vshrl.u32 %v5356, 7
        %v5358 = vsub.s32 0, %v5357
        %v5359 = vrot.slane %v5326, %v5358
        %v5360 = vlaneseq
        %v5361 = vshrl.u32 %v5360, 7
        %v5362 = vsub.s32 0, %v5361
        %v5363 = vrot.slane %v5309, %v5362
        %v5364 = vlaneseq
        %v5365 = vshrl.u32 %v5364, 7
        %v5366 = vsub.s32 0, %v5365
        %v5367 = vrot.slane %v5323, %v5366
        %v5368 = vlaneseq
        %v5369 = vshrl.u32 %v5368, 7
        %v5370 = vsub.s32 0, %v5369
        %v5371 = vrot.slane %v5325, %v5370
        %v5372 = vlaneseq
        %v5373 = vshrl.u32 %v5372, 7
        %v5374 = vsub.s32 0, %v5373
        %v5375 = vrot.slane %v5327, %v5374
        %5376 = vrot.lane.b32.xlu0 %v5347, 112
        %v5377 = vpop.permute.xlu0 %5376
        %5378 = vrot.lane.b32.xlu0 %v5351, 112
        %v5379 = vpop.permute.xlu0 %5378
        %5380 = vrot.lane.b32.xlu0 %v5355, 112
        %v5381 = vpop.permute.xlu0 %5380
        %5382 = vrot.lane.b32.xlu0 %v5359, 112
        %v5383 = vpop.permute.xlu0 %5382
        %5384 = vrot.lane.b32.xlu0 %v5363, 112
        %v5385 = vpop.permute.xlu0 %5384
        %5386 = vrot.lane.b32.xlu0 %v5367, 112
        %v5387 = vpop.permute.xlu0 %5386
        %5388 = vrot.lane.b32.xlu0 %v5371, 112
        %v5389 = vpop.permute.xlu0 %5388
        %5390 = vrot.lane.b32.xlu0 %v5375, 112
        %v5391 = vpop.permute.xlu0 %5390
        %5400 = vst.msk [vmem:[%s204 + $0x9] sm:$0x1] %vm5013, %v5377
        %5401 = vst.msk [vmem:[%s204 + $0x19] sm:$0x1] %vm5013, %v5379
        %5402 = vst.msk [vmem:[%s204 + $0x29] sm:$0x1] %vm5013, %v5381
        %5403 = vst.msk [vmem:[%s204 + $0x39] sm:$0x1] %vm5013, %v5383
        %5404 = vst.msk [vmem:[%s204 + $0x49] sm:$0x1] %vm5013, %v5385
        %5405 = vst.msk [vmem:[%s204 + $0x59] sm:$0x1] %vm5013, %v5387
        %5406 = vst.msk [vmem:[%s204 + $0x69] sm:$0x1] %vm5013, %v5389
        %5407 = vst.msk [vmem:[%s204 + $0x79] sm:$0x1] %vm5013, %v5391
        %5408 = vrot.lane.b32.xlu0 %v5347, 96
        %v5409 = vpop.permute.xlu0 %5408
        %5410 = vrot.lane.b32.xlu0 %v5351, 96
        %v5411 = vpop.permute.xlu0 %5410
        %5412 = vrot.lane.b32.xlu0 %v5355, 96
        %v5413 = vpop.permute.xlu0 %5412
        %5414 = vrot.lane.b32.xlu0 %v5359, 96
        %v5415 = vpop.permute.xlu0 %5414
        %5416 = vrot.lane.b32.xlu0 %v5363, 96
        %v5417 = vpop.permute.xlu0 %5416
        %5418 = vrot.lane.b32.xlu0 %v5367, 96
        %v5419 = vpop.permute.xlu0 %5418
        %5420 = vrot.lane.b32.xlu0 %v5371, 96
        %v5421 = vpop.permute.xlu0 %5420
        %5422 = vrot.lane.b32.xlu0 %v5375, 96
        %v5423 = vpop.permute.xlu0 %5422
        %5432 = vst.msk [vmem:[%s204 + $0xa] sm:$0x1] %vm5013, %v5409
        %5433 = vst.msk [vmem:[%s204 + $0x1a] sm:$0x1] %vm5013, %v5411
        %5434 = vst.msk [vmem:[%s204 + $0x2a] sm:$0x1] %vm5013, %v5413
        %5435 = vst.msk [vmem:[%s204 + $0x3a] sm:$0x1] %vm5013, %v5415
        %5436 = vst.msk [vmem:[%s204 + $0x4a] sm:$0x1] %vm5013, %v5417
        %5437 = vst.msk [vmem:[%s204 + $0x5a] sm:$0x1] %vm5013, %v5419
        %5438 = vst.msk [vmem:[%s204 + $0x6a] sm:$0x1] %vm5013, %v5421
        %5439 = vst.msk [vmem:[%s204 + $0x7a] sm:$0x1] %vm5013, %v5423
        %5440 = vrot.lane.b32.xlu0 %v5347, 80
        %v5441 = vpop.permute.xlu0 %5440
        %5442 = vrot.lane.b32.xlu0 %v5351, 80
        %v5443 = vpop.permute.xlu0 %5442
        %5444 = vrot.lane.b32.xlu0 %v5355, 80
        %v5445 = vpop.permute.xlu0 %5444
        %5446 = vrot.lane.b32.xlu0 %v5359, 80
        %v5447 = vpop.permute.xlu0 %5446
        %5448 = vrot.lane.b32.xlu0 %v5363, 80
        %v5449 = vpop.permute.xlu0 %5448
        %5450 = vrot.lane.b32.xlu0 %v5367, 80
        %v5451 = vpop.permute.xlu0 %5450
        %5452 = vrot.lane.b32.xlu0 %v5371, 80
        %v5453 = vpop.permute.xlu0 %5452
        %5454 = vrot.lane.b32.xlu0 %v5375, 80
        %v5455 = vpop.permute.xlu0 %5454
        %5464 = vst.msk [vmem:[%s204 + $0xb] sm:$0x1] %vm5013, %v5441
        %5465 = vst.msk [vmem:[%s204 + $0x1b] sm:$0x1] %vm5013, %v5443
        %5466 = vst.msk [vmem:[%s204 + $0x2b] sm:$0x1] %vm5013, %v5445
        %5467 = vst.msk [vmem:[%s204 + $0x3b] sm:$0x1] %vm5013, %v5447
        %5468 = vst.msk [vmem:[%s204 + $0x4b] sm:$0x1] %vm5013, %v5449
        %5469 = vst.msk [vmem:[%s204 + $0x5b] sm:$0x1] %vm5013, %v5451
        %5470 = vst.msk [vmem:[%s204 + $0x6b] sm:$0x1] %vm5013, %v5453
        %5471 = vst.msk [vmem:[%s204 + $0x7b] sm:$0x1] %vm5013, %v5455
        %5472 = vrot.lane.b32.xlu0 %v5347, 64
        %v5473 = vpop.permute.xlu0 %5472
        %5474 = vrot.lane.b32.xlu0 %v5351, 64
        %v5475 = vpop.permute.xlu0 %5474
        %5476 = vrot.lane.b32.xlu0 %v5355, 64
        %v5477 = vpop.permute.xlu0 %5476
        %5478 = vrot.lane.b32.xlu0 %v5359, 64
        %v5479 = vpop.permute.xlu0 %5478
        %5480 = vrot.lane.b32.xlu0 %v5363, 64
        %v5481 = vpop.permute.xlu0 %5480
        %5482 = vrot.lane.b32.xlu0 %v5367, 64
        %v5483 = vpop.permute.xlu0 %5482
        %5484 = vrot.lane.b32.xlu0 %v5371, 64
        %v5485 = vpop.permute.xlu0 %5484
        %5486 = vrot.lane.b32.xlu0 %v5375, 64
        %v5487 = vpop.permute.xlu0 %5486
        %5496 = vst.msk [vmem:[%s204 + $0xc] sm:$0x1] %vm5013, %v5473
        %5497 = vst.msk [vmem:[%s204 + $0x1c] sm:$0x1] %vm5013, %v5475
        %5498 = vst.msk [vmem:[%s204 + $0x2c] sm:$0x1] %vm5013, %v5477
        %5499 = vst.msk [vmem:[%s204 + $0x3c] sm:$0x1] %vm5013, %v5479
        %5500 = vst.msk [vmem:[%s204 + $0x4c] sm:$0x1] %vm5013, %v5481
        %5501 = vst.msk [vmem:[%s204 + $0x5c] sm:$0x1] %vm5013, %v5483
        %5502 = vst.msk [vmem:[%s204 + $0x6c] sm:$0x1] %vm5013, %v5485
        %5503 = vst.msk [vmem:[%s204 + $0x7c] sm:$0x1] %vm5013, %v5487
        %5504 = vrot.lane.b32.xlu0 %v5347, 48
        %v5505 = vpop.permute.xlu0 %5504
        %5506 = vrot.lane.b32.xlu0 %v5351, 48
        %v5507 = vpop.permute.xlu0 %5506
        %5508 = vrot.lane.b32.xlu0 %v5355, 48
        %v5509 = vpop.permute.xlu0 %5508
        %5510 = vrot.lane.b32.xlu0 %v5359, 48
        %v5511 = vpop.permute.xlu0 %5510
        %5512 = vrot.lane.b32.xlu0 %v5363, 48
        %v5513 = vpop.permute.xlu0 %5512
        %5514 = vrot.lane.b32.xlu0 %v5367, 48
        %v5515 = vpop.permute.xlu0 %5514
        %5516 = vrot.lane.b32.xlu0 %v5371, 48
        %v5517 = vpop.permute.xlu0 %5516
        %5518 = vrot.lane.b32.xlu0 %v5375, 48
        %v5519 = vpop.permute.xlu0 %5518
        %5528 = vst.msk [vmem:[%s204 + $0xd] sm:$0x1] %vm5013, %v5505
        %5529 = vst.msk [vmem:[%s204 + $0x1d] sm:$0x1] %vm5013, %v5507
        %5530 = vst.msk [vmem:[%s204 + $0x2d] sm:$0x1] %vm5013, %v5509
        %5531 = vst.msk [vmem:[%s204 + $0x3d] sm:$0x1] %vm5013, %v5511
        %5532 = vst.msk [vmem:[%s204 + $0x4d] sm:$0x1] %vm5013, %v5513
        %5533 = vst.msk [vmem:[%s204 + $0x5d] sm:$0x1] %vm5013, %v5515
        %5534 = vst.msk [vmem:[%s204 + $0x6d] sm:$0x1] %vm5013, %v5517
        %5535 = vst.msk [vmem:[%s204 + $0x7d] sm:$0x1] %vm5013, %v5519
        %5536 = vrot.lane.b32.xlu0 %v5347, 32
        %v5537 = vpop.permute.xlu0 %5536
        %5538 = vrot.lane.b32.xlu0 %v5351, 32
        %v5539 = vpop.permute.xlu0 %5538
        %5540 = vrot.lane.b32.xlu0 %v5355, 32
        %v5541 = vpop.permute.xlu0 %5540
        %5542 = vrot.lane.b32.xlu0 %v5359, 32
        %v5543 = vpop.permute.xlu0 %5542
        %5544 = vrot.lane.b32.xlu0 %v5363, 32
        %v5545 = vpop.permute.xlu0 %5544
        %5546 = vrot.lane.b32.xlu0 %v5367, 32
        %v5547 = vpop.permute.xlu0 %5546
        %5548 = vrot.lane.b32.xlu0 %v5371, 32
        %v5549 = vpop.permute.xlu0 %5548
        %5550 = vrot.lane.b32.xlu0 %v5375, 32
        %v5551 = vpop.permute.xlu0 %5550
        %5560 = vst.msk [vmem:[%s204 + $0xe] sm:$0x1] %vm5013, %v5537
        %5561 = vst.msk [vmem:[%s204 + $0x1e] sm:$0x1] %vm5013, %v5539
        %5562 = vst.msk [vmem:[%s204 + $0x2e] sm:$0x1] %vm5013, %v5541
        %5563 = vst.msk [vmem:[%s204 + $0x3e] sm:$0x1] %vm5013, %v5543
        %5564 = vst.msk [vmem:[%s204 + $0x4e] sm:$0x1] %vm5013, %v5545
        %5565 = vst.msk [vmem:[%s204 + $0x5e] sm:$0x1] %vm5013, %v5547
        %5566 = vst.msk [vmem:[%s204 + $0x6e] sm:$0x1] %vm5013, %v5549
        %5567 = vst.msk [vmem:[%s204 + $0x7e] sm:$0x1] %vm5013, %v5551
        %5568 = vrot.lane.b32.xlu0 %v5347, 16
        %v5569 = vpop.permute.xlu0 %5568
        %5570 = vrot.lane.b32.xlu0 %v5351, 16
        %v5571 = vpop.permute.xlu0 %5570
        %5572 = vrot.lane.b32.xlu0 %v5355, 16
        %v5573 = vpop.permute.xlu0 %5572
        %5574 = vrot.lane.b32.xlu0 %v5359, 16
        %v5575 = vpop.permute.xlu0 %5574
        %5576 = vrot.lane.b32.xlu0 %v5363, 16
        %v5577 = vpop.permute.xlu0 %5576
        %5578 = vrot.lane.b32.xlu0 %v5367, 16
        %v5579 = vpop.permute.xlu0 %5578
        %5580 = vrot.lane.b32.xlu0 %v5371, 16
        %v5581 = vpop.permute.xlu0 %5580
        %5582 = vrot.lane.b32.xlu0 %v5375, 16
        %v5583 = vpop.permute.xlu0 %5582
        %5592 = vst.msk [vmem:[%s204 + $0xf] sm:$0x1] %vm5013, %v5569
        %5593 = vst.msk [vmem:[%s204 + $0x1f] sm:$0x1] %vm5013, %v5571
        %5594 = vst.msk [vmem:[%s204 + $0x2f] sm:$0x1] %vm5013, %v5573
        %5595 = vst.msk [vmem:[%s204 + $0x3f] sm:$0x1] %vm5013, %v5575
        %5596 = vst.msk [vmem:[%s204 + $0x4f] sm:$0x1] %vm5013, %v5577
        %5597 = vst.msk [vmem:[%s204 + $0x5f] sm:$0x1] %vm5013, %v5579
        %5598 = vst.msk [vmem:[%s204 + $0x6f] sm:$0x1] %vm5013, %v5581
        %5599 = vst.msk [vmem:[%s204 + $0x7f] sm:$0x1] %vm5013, %v5583
        %s5600 = sand.u32 %s129, 1
        %s5601 = scalar_lea.sflag [#allocation3], %s5600
        %s5602 = sand.u32 %s129, 1
        %s5603 = smul.addr %s5602, 128
        %s5604 = scalar_lea.vmem [#allocation2], %s5603
        // Predicated region
        $region37: #{conv2d_bn_tanh.3} parent=35 // pred_check
          %p5605 = pneg %p139
        $region38: #{conv2d_bn_tanh.3} parent=35 // pred_check_branch
          %5607 = sbr.rel (%p5605) target = $region40
        $region39: #{conv2d_bn_tanh.3} parent=35 // pred_region
          %s5608 = smul.u32 2, %s23
          %s5610 = ssub.s32 2048, 2048
          %5611 = vsyncadd %s5601, %s5610
          %s5612 = smul.addr %s22, 16
          %s5613 = sadd.s32 %s5608, %s5612
          %s5614 = smul.addr %s5613, 128
          %s5615 = scalar_lea.hbm %s4, %s5614
          %s5616 = sshll.u32 %s5604, 4
          %s5617 = int_to_ptr.vmem [resolvable:$true] %s5616
          %5622 = dma.vmem_to_hbm [thread:$0]  %s5617, 2048, %s5615, %s5601, 128, 128, 8
        $region40: #{conv2d_bn_tanh.3} parent=35 // pred_fallthru
          _
      $region36: #{conv2d_bn_tanh.3} parent=5 // pred_fallthru
        _
      %p5623 = scmp.le.s32.totalorder 2, %s13
      // Predicated region
      $region41: #{conv2d_bn_tanh.3} parent=5 // pred_check
        %p5624 = pneg %p5623
      $region42: #{conv2d_bn_tanh.3} parent=5 // pred_check_branch
        %5626 = sbr.rel (%p5624) target = $region44
      $region43: #{conv2d_bn_tanh.3} parent=5 // pred_region
        %s5627 = ssub.s32 %s13, 2
        // Predicated region
        $region45: #{conv2d_bn_tanh.3} parent=43 // pred_check
          %p5628 = pneg %p145
        $region46: #{conv2d_bn_tanh.3} parent=43 // pred_check_branch
          %5630 = sbr.rel (%p5628) target = $region48
        $region47: #{conv2d_bn_tanh.3} parent=43 // pred_region
          %s5631 = sand.u32 %s130, 1
          %s5632 = scalar_lea.sflag [#allocation3], %s5631
          %s5633 = sand.u32 %s130, 1
          %s5634 = smul.addr %s5633, 128
          %s5635 = scalar_lea.vmem [#allocation2], %s5634
          %5636 = dma.done %s5632, 2048
        $region48: #{conv2d_bn_tanh.3} parent=43 // pred_fallthru
          _
      $region44: #{conv2d_bn_tanh.3} parent=5 // pred_fallthru
        _
    $region6: #{conv2d_bn_tanh.3} parent=1 // loop_footer
      %s17 = sadd.s32 1, %s13
    $region7: #{conv2d_bn_tanh.3} parent=1 // loop_footer_branch
      %12 = sbr.rel target = $region3
    $region8: #{conv2d_bn_tanh.3} parent=1 // loop_exit
      _
    %5637 = vsyncpa [#allocation3], 1
    %s5638 = scalar_lea.sflag [#allocation3], 1
    %5639 = vsyncpa %s5638, 1

</llo_original>
